<compile_context>
chip_gen: v7x
topology: tpu7x:2x2x1
jax: 0.10.0
libtpu: 0.0.40
codegen_flags: <defaults>
</compile_context>

<pallas_src>
import functools

import jax
import jax.numpy as jnp
from jax import lax
from jax.experimental import pallas as pl
from jax.experimental.pallas import tpu as pltpu


def _round_up(v, m):
    return (v + m - 1) // m * m


def _fold_bn(p, eps=1e-5):
    gamma, beta, mean, var = p
    scale = gamma / jnp.sqrt(var + eps)
    return scale, beta - mean * scale


# ------------------------------- Pallas kernel -------------------------------

def basic_unit_kernel(x_ref, w1_ref, w2_ref, bn_ref, o_ref, y1_ref, y2_ref, *, H, W):
    """One image per grid step.

    x_ref : (H*W, Cp)   f32  input rows (row-major spatial, channels last, lane-dense)
    w1/w2 : (9, Cp, Cp) bf16 conv weights, tap-major ((kh*3+kw), Cin, Cout)
    bn_ref: (4, Cp)     f32  rows = [scale1, shift1, scale2, shift2] (folded BN)
    o_ref : (H*W, Cp)   f32  output rows
    y1/y2 : (FLAT, Cp)  f32  VMEM scratch: zero-padded (H+2)x(W+2) spatial grid,
                             flattened row-major (+ a few alignment rows).
    """
    Wp = W + 2                       # padded width
    M = H * Wp                       # slab rows covering every interior output
    cp = x_ref.shape[-1]

    s1 = bn_ref[0:1, :]
    b1 = bn_ref[1:2, :]
    s2 = bn_ref[2:3, :]
    b2 = bn_ref[3:4, :]

    x = x_ref[...]                                        # (H*W, Cp) f32

    # ---- stage 1: y1 = ReLU(BN1(x)), scattered into the zero-padded grid ----
    # (conv "SAME" zero-padding must see 0, not ReLU(shift), hence the zero ring)
    y1_ref[...] = jnp.zeros_like(y1_ref)
    y1 = jnp.maximum(x * s1 + b1, 0.0)
    for h in range(H):
        y1_ref[pl.ds((h + 1) * Wp + 1, W), :] = y1[h * W:(h + 1) * W, :]

    # ---- stage 2: conv1 as 9 shifted matmuls (implicit im2col) + BN2 + ReLU ----
    # Dropout is the identity in eval mode.
    acc = jnp.zeros((M, cp), jnp.float32)
    for dy in range(3):
        for dx in range(3):
            a = y1_ref[pl.ds(dy * Wp + dx, M), :].astype(jnp.bfloat16)
            acc = acc + jnp.dot(a, w1_ref[dy * 3 + dx],
                                preferred_element_type=jnp.float32)
    y2 = jnp.maximum(acc * s2 + b2, 0.0)
    y2_ref[...] = jnp.zeros_like(y2_ref)
    for h in range(H):
        y2_ref[pl.ds((h + 1) * Wp + 1, W), :] = y2[h * Wp:h * Wp + W, :]

    # ---- stage 3: conv2 (9 shifted matmuls) + residual add epilogue ----
    acc2 = jnp.zeros((M, cp), jnp.float32)
    for dy in range(3):
        for dx in range(3):
            a = y2_ref[pl.ds(dy * Wp + dx, M), :].astype(jnp.bfloat16)
            acc2 = acc2 + jnp.dot(a, w2_ref[dy * 3 + dx],
                                  preferred_element_type=jnp.float32)
    for h in range(H):
        o_ref[pl.ds(h * W, W), :] = x[h * W:(h + 1) * W, :] + acc2[h * Wp:h * Wp + W, :]


# -------------------------------- host wrapper --------------------------------

@jax.jit
def basic_unit_forward(x_nchw, params):
    """Pallas implementation of BasicUnit.forward (eval mode).  Input NCHW f32."""
    x = jnp.transpose(x_nchw, (0, 2, 3, 1)).astype(jnp.float32)      # -> NHWC
    n, h, w, c = x.shape
    cp = _round_up(max(c, 128), 128)          # lane-dense channel dim
    hw = h * w
    wp = w + 2
    flat = _round_up((h + 2) * wp + 2, 8)     # padded-grid rows (+ alignment slack)

    x2d = jnp.pad(x, ((0, 0), (0, 0), (0, 0), (0, cp - c))).reshape(n, hw, cp)

    s1, b1 = _fold_bn(params["bn1"])
    s2, b2 = _fold_bn(params["bn2"])
    bn = jnp.zeros((4, cp), jnp.float32)
    bn = bn.at[0, :c].set(s1).at[1, :c].set(b1).at[2, :c].set(s2).at[3, :c].set(b2)

    def prep_w(wt):  # torch (Cout, Cin, 3, 3) -> (9, Cp, Cp) bf16, tap-major
        wk = jnp.transpose(wt, (2, 3, 1, 0)).reshape(9, c, c)
        return jnp.pad(wk, ((0, 0), (0, cp - c), (0, cp - c))).astype(jnp.bfloat16)

    w1k = prep_w(params["w1"])
    w2k = prep_w(params["w2"])

    kernel = functools.partial(basic_unit_kernel, H=h, W=w)
    out2d = pl.pallas_call(
        kernel,
        out_shape=jax.ShapeDtypeStruct((n, hw, cp), jnp.float32),
        grid=(n,),
        in_specs=[
            pl.BlockSpec((None, hw, cp), lambda i: (i, 0, 0)),   # x: one image/step
            pl.BlockSpec((9, cp, cp), lambda i: (0, 0, 0)),      # w1 (resident)
            pl.BlockSpec((9, cp, cp), lambda i: (0, 0, 0)),      # w2 (resident)
            pl.BlockSpec((4, cp), lambda i: (0, 0)),             # folded BN params
        ],
        out_specs=pl.BlockSpec((None, hw, cp), lambda i: (i, 0, 0)),
        scratch_shapes=[
            pltpu.VMEM((flat, cp), jnp.float32),                 # y1 padded grid
            pltpu.VMEM((flat, cp), jnp.float32),                 # y2 padded grid
        ],
        compiler_params=pltpu.CompilerParams(
            dimension_semantics=("parallel",),
            vmem_limit_bytes=48 * 1024 * 1024,
        ),
    )(x2d, w1k, w2k, bn)

    out = out2d[:, :, :c].reshape(n, h, w, c)
    return jnp.transpose(out, (0, 3, 1, 2))                          # -> NCHW


# ----------------------------- pure-JAX references -----------------------------

def ref_forward(x_nchw, params, *, bf16_operands=False):
    """XLA reference.  bf16_operands=True applies the same bf16 rounding to the
    conv inputs/weights that the kernel's MXU path uses (f32 accumulation)."""
    x = jnp.transpose(x_nchw, (0, 2, 3, 1)).astype(jnp.float32)      # NHWC
    dn = ("NHWC", "HWIO", "NHWC")

    def conv(v, wt):
        w_hwio = jnp.transpose(wt, (2, 3, 1, 0)).astype(jnp.float32)
        if bf16_operands:
            v = v.astype(jnp.bfloat16).astype(jnp.float32)
            w_hwio = w_hwio.astype(jnp.bfloat16).astype(jnp.float32)
        return lax.conv_general_dilated(v, w_hwio, (1, 1), "SAME",
                                        dimension_numbers=dn,
                                        precision=lax.Precision.HIGHEST)

    s1, b1 = _fold_bn(params["bn1"])
    s2, b2 = _fold_bn(params["bn2"])
    h1 = jnp.maximum(x * s1 + b1, 0.0)
    h2 = jnp.maximum(conv(h1, params["w1"]) * s2 + b2, 0.0)
    out = x + conv(h2, params["w2"])
    return jnp.transpose(out, (0, 3, 1, 2))


# ------------------------------------ main ------------------------------------

if __name__ == "__main__":
    N, C, H, W = 2, 4, 16, 16  # small shapes consistent with BasicUnit(channels=4)
    key = jax.random.PRNGKey(0)
    kx, kw1, kw2, kg1, kb1, km1, kv1, kg2, kb2, km2, kv2 = jax.random.split(key, 11)

    x = jax.random.normal(kx, (N, C, H, W), dtype=jnp.float32)

    fan_in = C * 3 * 3
    params = {
        "w1": jax.random.normal(kw1, (C, C, 3, 3), jnp.float32) / jnp.sqrt(fan_in),
        "w2": jax.random.normal(kw2, (C, C, 3, 3), jnp.float32) / jnp.sqrt(fan_in),
        "bn1": (
            jax.random.uniform(kg1, (C,), jnp.float32, 0.5, 1.5),    # gamma
            0.1 * jax.random.normal(kb1, (C,), jnp.float32),          # beta
            0.1 * jax.random.normal(km1, (C,), jnp.float32),          # running_mean
            jax.random.uniform(kv1, (C,), jnp.float32, 0.5, 1.5),     # running_var
        ),
        "bn2": (
            jax.random.uniform(kg2, (C,), jnp.float32, 0.5, 1.5),
            0.1 * jax.random.normal(kb2, (C,), jnp.float32),
            0.1 * jax.random.normal(km2, (C,), jnp.float32),
            jax.random.uniform(kv2, (C,), jnp.float32, 0.5, 1.5),
        ),
    }

    out = jax.block_until_ready(basic_unit_forward(x, params))
    assert out.shape == (N, C, H, W) and out.dtype == jnp.float32

    # Tight check vs. a reference with matched bf16 conv-operand rounding.
    ref_q = jax.block_until_ready(ref_forward(x, params, bf16_operands=True))
    assert jnp.allclose(out, ref_q, atol=5e-3, rtol=5e-3), \
        float(jnp.max(jnp.abs(out - ref_q)))

    # Loose sanity bound vs. the full-f32 reference (bf16 MXU operands -> ~1e-2 err).
    ref_f = jax.block_until_ready(ref_forward(x, params, bf16_operands=False))
    assert jnp.allclose(out, ref_f, atol=1e-1, rtol=1e-1), \
        float(jnp.max(jnp.abs(out - ref_f)))

    print("KERNEL_OK")
</pallas_src>

<mosaic_0001>
module attributes {stable_mosaic.version = 11 : i64} {
  func.func @basic_unit_kernel(%arg0: i32, %arg1: memref<1x256x128xf32, #tpu.memory_space<vmem>>, %arg2: memref<9x128x128xbf16, #tpu.memory_space<vmem>>, %arg3: memref<9x128x128xbf16, #tpu.memory_space<vmem>>, %arg4: memref<4x128xf32, #tpu.memory_space<vmem>>, %arg5: memref<1x256x128xf32, #tpu.memory_space<vmem>>, %arg6: memref<328x128xf32, #tpu.memory_space<vmem>>, %arg7: memref<328x128xf32, #tpu.memory_space<vmem>>) attributes {dimension_semantics = [#tpu.dimension_semantics<parallel>], iteration_bounds = array<i64: 2>, scalar_prefetch = 0 : i64, scratch_operands = 2 : i64, tpu.core_type = #tpu.core_type<tc>, window_params = [{transform_indices = @transform_0, window_bounds = array<i64: 1, 256, 128>}, {pipeline_mode = #tpu.pipeline_mode<synchronous>, transform_indices = @transform_1, window_bounds = array<i64: 9, 128, 128>}, {pipeline_mode = #tpu.pipeline_mode<synchronous>, transform_indices = @transform_2, window_bounds = array<i64: 9, 128, 128>}, {pipeline_mode = #tpu.pipeline_mode<synchronous>, transform_indices = @transform_3, window_bounds = array<i64: 4, 128>}, {transform_indices = @transform_4, window_bounds = array<i64: 1, 256, 128>}]} {
    %c0 = arith.constant 0 : index
    %c0_0 = arith.constant 0 : index
    %0 = vector.load %arg4[%c0, %c0_0] : memref<4x128xf32, #tpu.memory_space<vmem>>, vector<1x128xf32>
    %c1 = arith.constant 1 : index
    %c0_1 = arith.constant 0 : index
    %1 = vector.load %arg4[%c1, %c0_1] : memref<4x128xf32, #tpu.memory_space<vmem>>, vector<1x128xf32>
    %c2 = arith.constant 2 : index
    %c0_2 = arith.constant 0 : index
    %2 = vector.load %arg4[%c2, %c0_2] : memref<4x128xf32, #tpu.memory_space<vmem>>, vector<1x128xf32>
    %c3 = arith.constant 3 : index
    %c0_3 = arith.constant 0 : index
    %3 = vector.load %arg4[%c3, %c0_3] : memref<4x128xf32, #tpu.memory_space<vmem>>, vector<1x128xf32>
    %c0_4 = arith.constant 0 : index
    %c0_5 = arith.constant 0 : index
    %c0_6 = arith.constant 0 : index
    %4 = vector.load %arg1[%c0_4, %c0_5, %c0_6] : memref<1x256x128xf32, #tpu.memory_space<vmem>>, vector<1x256x128xf32>
    %5 = vector.shape_cast %4 : vector<1x256x128xf32> to vector<256x128xf32>
    %cst = arith.constant 0.000000e+00 : f32
    %6 = vector.broadcast %cst : f32 to vector<328x128xf32>
    %c0_7 = arith.constant 0 : index
    %c0_8 = arith.constant 0 : index
    %7 = vector.load %arg6[%c0_7, %c0_8] : memref<328x128xf32, #tpu.memory_space<vmem>>, vector<328x128xf32>
    tpu.vector_store %arg6[%c0_7, %c0_8], %6 {strides = array<i32>} : memref<328x128xf32, #tpu.memory_space<vmem>>, vector<328x128xf32>,
    %8 = vector.broadcast %0 : vector<1x128xf32> to vector<256x128xf32>
    %9 = arith.mulf %5, %8 : vector<256x128xf32>
    %10 = vector.broadcast %1 : vector<1x128xf32> to vector<256x128xf32>
    %11 = arith.addf %9, %10 : vector<256x128xf32>
    %cst_9 = arith.constant 0.000000e+00 : f32
    %12 = vector.broadcast %cst_9 : f32 to vector<256x128xf32>
    %13 = arith.maximumf %11, %12 : vector<256x128xf32>
    %14 = vector.extract_strided_slice %13 {offsets = [0, 0], sizes = [16, 128], strides = [1, 1]} : vector<256x128xf32> to vector<16x128xf32>
    %c19 = arith.constant 19 : index
    %c0_10 = arith.constant 0 : index
    %15 = vector.load %arg6[%c19, %c0_10] : memref<328x128xf32, #tpu.memory_space<vmem>>, vector<16x128xf32>
    tpu.vector_store %arg6[%c19, %c0_10], %14 {strides = array<i32>} : memref<328x128xf32, #tpu.memory_space<vmem>>, vector<16x128xf32>,
    %16 = vector.extract_strided_slice %13 {offsets = [16, 0], sizes = [16, 128], strides = [1, 1]} : vector<256x128xf32> to vector<16x128xf32>
    %c37 = arith.constant 37 : index
    %c0_11 = arith.constant 0 : index
    %17 = vector.load %arg6[%c37, %c0_11] : memref<328x128xf32, #tpu.memory_space<vmem>>, vector<16x128xf32>
    tpu.vector_store %arg6[%c37, %c0_11], %16 {strides = array<i32>} : memref<328x128xf32, #tpu.memory_space<vmem>>, vector<16x128xf32>,
    %18 = vector.extract_strided_slice %13 {offsets = [32, 0], sizes = [16, 128], strides = [1, 1]} : vector<256x128xf32> to vector<16x128xf32>
    %c55 = arith.constant 55 : index
    %c0_12 = arith.constant 0 : index
    %19 = vector.load %arg6[%c55, %c0_12] : memref<328x128xf32, #tpu.memory_space<vmem>>, vector<16x128xf32>
    tpu.vector_store %arg6[%c55, %c0_12], %18 {strides = array<i32>} : memref<328x128xf32, #tpu.memory_space<vmem>>, vector<16x128xf32>,
    %20 = vector.extract_strided_slice %13 {offsets = [48, 0], sizes = [16, 128], strides = [1, 1]} : vector<256x128xf32> to vector<16x128xf32>
    %c73 = arith.constant 73 : index
    %c0_13 = arith.constant 0 : index
    %21 = vector.load %arg6[%c73, %c0_13] : memref<328x128xf32, #tpu.memory_space<vmem>>, vector<16x128xf32>
    tpu.vector_store %arg6[%c73, %c0_13], %20 {strides = array<i32>} : memref<328x128xf32, #tpu.memory_space<vmem>>, vector<16x128xf32>,
    %22 = vector.extract_strided_slice %13 {offsets = [64, 0], sizes = [16, 128], strides = [1, 1]} : vector<256x128xf32> to vector<16x128xf32>
    %c91 = arith.constant 91 : index
    %c0_14 = arith.constant 0 : index
    %23 = vector.load %arg6[%c91, %c0_14] : memref<328x128xf32, #tpu.memory_space<vmem>>, vector<16x128xf32>
    tpu.vector_store %arg6[%c91, %c0_14], %22 {strides = array<i32>} : memref<328x128xf32, #tpu.memory_space<vmem>>, vector<16x128xf32>,
    %24 = vector.extract_strided_slice %13 {offsets = [80, 0], sizes = [16, 128], strides = [1, 1]} : vector<256x128xf32> to vector<16x128xf32>
    %c109 = arith.constant 109 : index
    %c0_15 = arith.constant 0 : index
    %25 = vector.load %arg6[%c109, %c0_15] : memref<328x128xf32, #tpu.memory_space<vmem>>, vector<16x128xf32>
    tpu.vector_store %arg6[%c109, %c0_15], %24 {strides = array<i32>} : memref<328x128xf32, #tpu.memory_space<vmem>>, vector<16x128xf32>,
    %26 = vector.extract_strided_slice %13 {offsets = [96, 0], sizes = [16, 128], strides = [1, 1]} : vector<256x128xf32> to vector<16x128xf32>
    %c127 = arith.constant 127 : index
    %c0_16 = arith.constant 0 : index
    %27 = vector.load %arg6[%c127, %c0_16] : memref<328x128xf32, #tpu.memory_space<vmem>>, vector<16x128xf32>
    tpu.vector_store %arg6[%c127, %c0_16], %26 {strides = array<i32>} : memref<328x128xf32, #tpu.memory_space<vmem>>, vector<16x128xf32>,
    %28 = vector.extract_strided_slice %13 {offsets = [112, 0], sizes = [16, 128], strides = [1, 1]} : vector<256x128xf32> to vector<16x128xf32>
    %c145 = arith.constant 145 : index
    %c0_17 = arith.constant 0 : index
    %29 = vector.load %arg6[%c145, %c0_17] : memref<328x128xf32, #tpu.memory_space<vmem>>, vector<16x128xf32>
    tpu.vector_store %arg6[%c145, %c0_17], %28 {strides = array<i32>} : memref<328x128xf32, #tpu.memory_space<vmem>>, vector<16x128xf32>,
    %30 = vector.extract_strided_slice %13 {offsets = [128, 0], sizes = [16, 128], strides = [1, 1]} : vector<256x128xf32> to vector<16x128xf32>
    %c163 = arith.constant 163 : index
    %c0_18 = arith.constant 0 : index
    %31 = vector.load %arg6[%c163, %c0_18] : memref<328x128xf32, #tpu.memory_space<vmem>>, vector<16x128xf32>
    tpu.vector_store %arg6[%c163, %c0_18], %30 {strides = array<i32>} : memref<328x128xf32, #tpu.memory_space<vmem>>, vector<16x128xf32>,
    %32 = vector.extract_strided_slice %13 {offsets = [144, 0], sizes = [16, 128], strides = [1, 1]} : vector<256x128xf32> to vector<16x128xf32>
    %c181 = arith.constant 181 : index
    %c0_19 = arith.constant 0 : index
    %33 = vector.load %arg6[%c181, %c0_19] : memref<328x128xf32, #tpu.memory_space<vmem>>, vector<16x128xf32>
    tpu.vector_store %arg6[%c181, %c0_19], %32 {strides = array<i32>} : memref<328x128xf32, #tpu.memory_space<vmem>>, vector<16x128xf32>,
    %34 = vector.extract_strided_slice %13 {offsets = [160, 0], sizes = [16, 128], strides = [1, 1]} : vector<256x128xf32> to vector<16x128xf32>
    %c199 = arith.constant 199 : index
    %c0_20 = arith.constant 0 : index
    %35 = vector.load %arg6[%c199, %c0_20] : memref<328x128xf32, #tpu.memory_space<vmem>>, vector<16x128xf32>
    tpu.vector_store %arg6[%c199, %c0_20], %34 {strides = array<i32>} : memref<328x128xf32, #tpu.memory_space<vmem>>, vector<16x128xf32>,
    %36 = vector.extract_strided_slice %13 {offsets = [176, 0], sizes = [16, 128], strides = [1, 1]} : vector<256x128xf32> to vector<16x128xf32>
    %c217 = arith.constant 217 : index
    %c0_21 = arith.constant 0 : index
    %37 = vector.load %arg6[%c217, %c0_21] : memref<328x128xf32, #tpu.memory_space<vmem>>, vector<16x128xf32>
    tpu.vector_store %arg6[%c217, %c0_21], %36 {strides = array<i32>} : memref<328x128xf32, #tpu.memory_space<vmem>>, vector<16x128xf32>,
    %38 = vector.extract_strided_slice %13 {offsets = [192, 0], sizes = [16, 128], strides = [1, 1]} : vector<256x128xf32> to vector<16x128xf32>
    %c235 = arith.constant 235 : index
    %c0_22 = arith.constant 0 : index
    %39 = vector.load %arg6[%c235, %c0_22] : memref<328x128xf32, #tpu.memory_space<vmem>>, vector<16x128xf32>
    tpu.vector_store %arg6[%c235, %c0_22], %38 {strides = array<i32>} : memref<328x128xf32, #tpu.memory_space<vmem>>, vector<16x128xf32>,
    %40 = vector.extract_strided_slice %13 {offsets = [208, 0], sizes = [16, 128], strides = [1, 1]} : vector<256x128xf32> to vector<16x128xf32>
    %c253 = arith.constant 253 : index
    %c0_23 = arith.constant 0 : index
    %41 = vector.load %arg6[%c253, %c0_23] : memref<328x128xf32, #tpu.memory_space<vmem>>, vector<16x128xf32>
    tpu.vector_store %arg6[%c253, %c0_23], %40 {strides = array<i32>} : memref<328x128xf32, #tpu.memory_space<vmem>>, vector<16x128xf32>,
    %42 = vector.extract_strided_slice %13 {offsets = [224, 0], sizes = [16, 128], strides = [1, 1]} : vector<256x128xf32> to vector<16x128xf32>
    %c271 = arith.constant 271 : index
    %c0_24 = arith.constant 0 : index
    %43 = vector.load %arg6[%c271, %c0_24] : memref<328x128xf32, #tpu.memory_space<vmem>>, vector<16x128xf32>
    tpu.vector_store %arg6[%c271, %c0_24], %42 {strides = array<i32>} : memref<328x128xf32, #tpu.memory_space<vmem>>, vector<16x128xf32>,
    %44 = vector.extract_strided_slice %13 {offsets = [240, 0], sizes = [16, 128], strides = [1, 1]} : vector<256x128xf32> to vector<16x128xf32>
    %c289 = arith.constant 289 : index
    %c0_25 = arith.constant 0 : index
    %45 = vector.load %arg6[%c289, %c0_25] : memref<328x128xf32, #tpu.memory_space<vmem>>, vector<16x128xf32>
    tpu.vector_store %arg6[%c289, %c0_25], %44 {strides = array<i32>} : memref<328x128xf32, #tpu.memory_space<vmem>>, vector<16x128xf32>,
    %cst_26 = arith.constant 0.000000e+00 : f32
    %46 = vector.broadcast %cst_26 : f32 to vector<288x128xf32>
    %c0_27 = arith.constant 0 : index
    %c0_28 = arith.constant 0 : index
    %47 = vector.load %arg6[%c0_27, %c0_28] : memref<328x128xf32, #tpu.memory_space<vmem>>, vector<288x128xf32>
    %48 = arith.truncf %47 : vector<288x128xf32> to vector<288x128xbf16>
    %c0_29 = arith.constant 0 : index
    %c0_30 = arith.constant 0 : index
    %c0_31 = arith.constant 0 : index
    %49 = vector.load %arg2[%c0_29, %c0_30, %c0_31] : memref<9x128x128xbf16, #tpu.memory_space<vmem>>, vector<1x128x128xbf16>
    %50 = vector.shape_cast %49 : vector<1x128x128xbf16> to vector<128x128xbf16>
    %cst_32 = arith.constant dense<0.000000e+00> : vector<288x128xf32>
    %51 = tpu.matmul %48, %50, %cst_32 {dimension_numbers = #tpu.dot_dimension_numbers<[1], [0], [0], [1], [0, 0, 1, 1], [], []>} : vector<288x128xbf16>, vector<128x128xbf16>, vector<288x128xf32> -> vector<288x128xf32>
    %52 = arith.addf %46, %51 : vector<288x128xf32>
    %c1_33 = arith.constant 1 : index
    %c0_34 = arith.constant 0 : index
    %53 = vector.load %arg6[%c1_33, %c0_34] : memref<328x128xf32, #tpu.memory_space<vmem>>, vector<288x128xf32>
    %54 = arith.truncf %53 : vector<288x128xf32> to vector<288x128xbf16>
    %c1_35 = arith.constant 1 : index
    %c0_36 = arith.constant 0 : index
    %c0_37 = arith.constant 0 : index
    %55 = vector.load %arg2[%c1_35, %c0_36, %c0_37] : memref<9x128x128xbf16, #tpu.memory_space<vmem>>, vector<1x128x128xbf16>
    %56 = vector.shape_cast %55 : vector<1x128x128xbf16> to vector<128x128xbf16>
    %cst_38 = arith.constant dense<0.000000e+00> : vector<288x128xf32>
    %57 = tpu.matmul %54, %56, %cst_38 {dimension_numbers = #tpu.dot_dimension_numbers<[1], [0], [0], [1], [0, 0, 1, 1], [], []>} : vector<288x128xbf16>, vector<128x128xbf16>, vector<288x128xf32> -> vector<288x128xf32>
    %58 = arith.addf %52, %57 : vector<288x128xf32>
    %c2_39 = arith.constant 2 : index
    %c0_40 = arith.constant 0 : index
    %59 = vector.load %arg6[%c2_39, %c0_40] : memref<328x128xf32, #tpu.memory_space<vmem>>, vector<288x128xf32>
    %60 = arith.truncf %59 : vector<288x128xf32> to vector<288x128xbf16>
    %c2_41 = arith.constant 2 : index
    %c0_42 = arith.constant 0 : index
    %c0_43 = arith.constant 0 : index
    %61 = vector.load %arg2[%c2_41, %c0_42, %c0_43] : memref<9x128x128xbf16, #tpu.memory_space<vmem>>, vector<1x128x128xbf16>
    %62 = vector.shape_cast %61 : vector<1x128x128xbf16> to vector<128x128xbf16>
    %cst_44 = arith.constant dense<0.000000e+00> : vector<288x128xf32>
    %63 = tpu.matmul %60, %62, %cst_44 {dimension_numbers = #tpu.dot_dimension_numbers<[1], [0], [0], [1], [0, 0, 1, 1], [], []>} : vector<288x128xbf16>, vector<128x128xbf16>, vector<288x128xf32> -> vector<288x128xf32>
    %64 = arith.addf %58, %63 : vector<288x128xf32>
    %c18 = arith.constant 18 : index
    %c0_45 = arith.constant 0 : index
    %65 = vector.load %arg6[%c18, %c0_45] : memref<328x128xf32, #tpu.memory_space<vmem>>, vector<288x128xf32>
    %66 = arith.truncf %65 : vector<288x128xf32> to vector<288x128xbf16>
    %c3_46 = arith.constant 3 : index
    %c0_47 = arith.constant 0 : index
    %c0_48 = arith.constant 0 : index
    %67 = vector.load %arg2[%c3_46, %c0_47, %c0_48] : memref<9x128x128xbf16, #tpu.memory_space<vmem>>, vector<1x128x128xbf16>
    %68 = vector.shape_cast %67 : vector<1x128x128xbf16> to vector<128x128xbf16>
    %cst_49 = arith.constant dense<0.000000e+00> : vector<288x128xf32>
    %69 = tpu.matmul %66, %68, %cst_49 {dimension_numbers = #tpu.dot_dimension_numbers<[1], [0], [0], [1], [0, 0, 1, 1], [], []>} : vector<288x128xbf16>, vector<128x128xbf16>, vector<288x128xf32> -> vector<288x128xf32>
    %70 = arith.addf %64, %69 : vector<288x128xf32>
    %c19_50 = arith.constant 19 : index
    %c0_51 = arith.constant 0 : index
    %71 = vector.load %arg6[%c19_50, %c0_51] : memref<328x128xf32, #tpu.memory_space<vmem>>, vector<288x128xf32>
    %72 = arith.truncf %71 : vector<288x128xf32> to vector<288x128xbf16>
    %c4 = arith.constant 4 : index
    %c0_52 = arith.constant 0 : index
    %c0_53 = arith.constant 0 : index
    %73 = vector.load %arg2[%c4, %c0_52, %c0_53] : memref<9x128x128xbf16, #tpu.memory_space<vmem>>, vector<1x128x128xbf16>
    %74 = vector.shape_cast %73 : vector<1x128x128xbf16> to vector<128x128xbf16>
    %cst_54 = arith.constant dense<0.000000e+00> : vector<288x128xf32>
    %75 = tpu.matmul %72, %74, %cst_54 {dimension_numbers = #tpu.dot_dimension_numbers<[1], [0], [0], [1], [0, 0, 1, 1], [], []>} : vector<288x128xbf16>, vector<128x128xbf16>, vector<288x128xf32> -> vector<288x128xf32>
    %76 = arith.addf %70, %75 : vector<288x128xf32>
    %c20 = arith.constant 20 : index
    %c0_55 = arith.constant 0 : index
    %77 = vector.load %arg6[%c20, %c0_55] : memref<328x128xf32, #tpu.memory_space<vmem>>, vector<288x128xf32>
    %78 = arith.truncf %77 : vector<288x128xf32> to vector<288x128xbf16>
    %c5 = arith.constant 5 : index
    %c0_56 = arith.constant 0 : index
    %c0_57 = arith.constant 0 : index
    %79 = vector.load %arg2[%c5, %c0_56, %c0_57] : memref<9x128x128xbf16, #tpu.memory_space<vmem>>, vector<1x128x128xbf16>
    %80 = vector.shape_cast %79 : vector<1x128x128xbf16> to vector<128x128xbf16>
    %cst_58 = arith.constant dense<0.000000e+00> : vector<288x128xf32>
    %81 = tpu.matmul %78, %80, %cst_58 {dimension_numbers = #tpu.dot_dimension_numbers<[1], [0], [0], [1], [0, 0, 1, 1], [], []>} : vector<288x128xbf16>, vector<128x128xbf16>, vector<288x128xf32> -> vector<288x128xf32>
    %82 = arith.addf %76, %81 : vector<288x128xf32>
    %c36 = arith.constant 36 : index
    %c0_59 = arith.constant 0 : index
    %83 = vector.load %arg6[%c36, %c0_59] : memref<328x128xf32, #tpu.memory_space<vmem>>, vector<288x128xf32>
    %84 = arith.truncf %83 : vector<288x128xf32> to vector<288x128xbf16>
    %c6 = arith.constant 6 : index
    %c0_60 = arith.constant 0 : index
    %c0_61 = arith.constant 0 : index
    %85 = vector.load %arg2[%c6, %c0_60, %c0_61] : memref<9x128x128xbf16, #tpu.memory_space<vmem>>, vector<1x128x128xbf16>
    %86 = vector.shape_cast %85 : vector<1x128x128xbf16> to vector<128x128xbf16>
    %cst_62 = arith.constant dense<0.000000e+00> : vector<288x128xf32>
    %87 = tpu.matmul %84, %86, %cst_62 {dimension_numbers = #tpu.dot_dimension_numbers<[1], [0], [0], [1], [0, 0, 1, 1], [], []>} : vector<288x128xbf16>, vector<128x128xbf16>, vector<288x128xf32> -> vector<288x128xf32>
    %88 = arith.addf %82, %87 : vector<288x128xf32>
    %c37_63 = arith.constant 37 : index
    %c0_64 = arith.constant 0 : index
    %89 = vector.load %arg6[%c37_63, %c0_64] : memref<328x128xf32, #tpu.memory_space<vmem>>, vector<288x128xf32>
    %90 = arith.truncf %89 : vector<288x128xf32> to vector<288x128xbf16>
    %c7 = arith.constant 7 : index
    %c0_65 = arith.constant 0 : index
    %c0_66 = arith.constant 0 : index
    %91 = vector.load %arg2[%c7, %c0_65, %c0_66] : memref<9x128x128xbf16, #tpu.memory_space<vmem>>, vector<1x128x128xbf16>
    %92 = vector.shape_cast %91 : vector<1x128x128xbf16> to vector<128x128xbf16>
    %cst_67 = arith.constant dense<0.000000e+00> : vector<288x128xf32>
    %93 = tpu.matmul %90, %92, %cst_67 {dimension_numbers = #tpu.dot_dimension_numbers<[1], [0], [0], [1], [0, 0, 1, 1], [], []>} : vector<288x128xbf16>, vector<128x128xbf16>, vector<288x128xf32> -> vector<288x128xf32>
    %94 = arith.addf %88, %93 : vector<288x128xf32>
    %c38 = arith.constant 38 : index
    %c0_68 = arith.constant 0 : index
    %95 = vector.load %arg6[%c38, %c0_68] : memref<328x128xf32, #tpu.memory_space<vmem>>, vector<288x128xf32>
    %96 = arith.truncf %95 : vector<288x128xf32> to vector<288x128xbf16>
    %c8 = arith.constant 8 : index
    %c0_69 = arith.constant 0 : index
    %c0_70 = arith.constant 0 : index
    %97 = vector.load %arg2[%c8, %c0_69, %c0_70] : memref<9x128x128xbf16, #tpu.memory_space<vmem>>, vector<1x128x128xbf16>
    %98 = vector.shape_cast %97 : vector<1x128x128xbf16> to vector<128x128xbf16>
    %cst_71 = arith.constant dense<0.000000e+00> : vector<288x128xf32>
    %99 = tpu.matmul %96, %98, %cst_71 {dimension_numbers = #tpu.dot_dimension_numbers<[1], [0], [0], [1], [0, 0, 1, 1], [], []>} : vector<288x128xbf16>, vector<128x128xbf16>, vector<288x128xf32> -> vector<288x128xf32>
    %100 = arith.addf %94, %99 : vector<288x128xf32>
    %101 = vector.broadcast %2 : vector<1x128xf32> to vector<288x128xf32>
    %102 = arith.mulf %100, %101 : vector<288x128xf32>
    %103 = vector.broadcast %3 : vector<1x128xf32> to vector<288x128xf32>
    %104 = arith.addf %102, %103 : vector<288x128xf32>
    %cst_72 = arith.constant 0.000000e+00 : f32
    %105 = vector.broadcast %cst_72 : f32 to vector<288x128xf32>
    %106 = arith.maximumf %104, %105 : vector<288x128xf32>
    %cst_73 = arith.constant 0.000000e+00 : f32
    %107 = vector.broadcast %cst_73 : f32 to vector<328x128xf32>
    %c0_74 = arith.constant 0 : index
    %c0_75 = arith.constant 0 : index
    %108 = vector.load %arg7[%c0_74, %c0_75] : memref<328x128xf32, #tpu.memory_space<vmem>>, vector<328x128xf32>
    tpu.vector_store %arg7[%c0_74, %c0_75], %107 {strides = array<i32>} : memref<328x128xf32, #tpu.memory_space<vmem>>, vector<328x128xf32>,
    %109 = vector.extract_strided_slice %106 {offsets = [0, 0], sizes = [16, 128], strides = [1, 1]} : vector<288x128xf32> to vector<16x128xf32>
    %c19_76 = arith.constant 19 : index
    %c0_77 = arith.constant 0 : index
    %110 = vector.load %arg7[%c19_76, %c0_77] : memref<328x128xf32, #tpu.memory_space<vmem>>, vector<16x128xf32>
    tpu.vector_store %arg7[%c19_76, %c0_77], %109 {strides = array<i32>} : memref<328x128xf32, #tpu.memory_space<vmem>>, vector<16x128xf32>,
    %111 = vector.extract_strided_slice %106 {offsets = [18, 0], sizes = [16, 128], strides = [1, 1]} : vector<288x128xf32> to vector<16x128xf32>
    %c37_78 = arith.constant 37 : index
    %c0_79 = arith.constant 0 : index
    %112 = vector.load %arg7[%c37_78, %c0_79] : memref<328x128xf32, #tpu.memory_space<vmem>>, vector<16x128xf32>
    tpu.vector_store %arg7[%c37_78, %c0_79], %111 {strides = array<i32>} : memref<328x128xf32, #tpu.memory_space<vmem>>, vector<16x128xf32>,
    %113 = vector.extract_strided_slice %106 {offsets = [36, 0], sizes = [16, 128], strides = [1, 1]} : vector<288x128xf32> to vector<16x128xf32>
    %c55_80 = arith.constant 55 : index
    %c0_81 = arith.constant 0 : index
    %114 = vector.load %arg7[%c55_80, %c0_81] : memref<328x128xf32, #tpu.memory_space<vmem>>, vector<16x128xf32>
    tpu.vector_store %arg7[%c55_80, %c0_81], %113 {strides = array<i32>} : memref<328x128xf32, #tpu.memory_space<vmem>>, vector<16x128xf32>,
    %115 = vector.extract_strided_slice %106 {offsets = [54, 0], sizes = [16, 128], strides = [1, 1]} : vector<288x128xf32> to vector<16x128xf32>
    %c73_82 = arith.constant 73 : index
    %c0_83 = arith.constant 0 : index
    %116 = vector.load %arg7[%c73_82, %c0_83] : memref<328x128xf32, #tpu.memory_space<vmem>>, vector<16x128xf32>
    tpu.vector_store %arg7[%c73_82, %c0_83], %115 {strides = array<i32>} : memref<328x128xf32, #tpu.memory_space<vmem>>, vector<16x128xf32>,
    %117 = vector.extract_strided_slice %106 {offsets = [72, 0], sizes = [16, 128], strides = [1, 1]} : vector<288x128xf32> to vector<16x128xf32>
    %c91_84 = arith.constant 91 : index
    %c0_85 = arith.constant 0 : index
    %118 = vector.load %arg7[%c91_84, %c0_85] : memref<328x128xf32, #tpu.memory_space<vmem>>, vector<16x128xf32>
    tpu.vector_store %arg7[%c91_84, %c0_85], %117 {strides = array<i32>} : memref<328x128xf32, #tpu.memory_space<vmem>>, vector<16x128xf32>,
    %119 = vector.extract_strided_slice %106 {offsets = [90, 0], sizes = [16, 128], strides = [1, 1]} : vector<288x128xf32> to vector<16x128xf32>
    %c109_86 = arith.constant 109 : index
    %c0_87 = arith.constant 0 : index
    %120 = vector.load %arg7[%c109_86, %c0_87] : memref<328x128xf32, #tpu.memory_space<vmem>>, vector<16x128xf32>
    tpu.vector_store %arg7[%c109_86, %c0_87], %119 {strides = array<i32>} : memref<328x128xf32, #tpu.memory_space<vmem>>, vector<16x128xf32>,
    %121 = vector.extract_strided_slice %106 {offsets = [108, 0], sizes = [16, 128], strides = [1, 1]} : vector<288x128xf32> to vector<16x128xf32>
    %c127_88 = arith.constant 127 : index
    %c0_89 = arith.constant 0 : index
    %122 = vector.load %arg7[%c127_88, %c0_89] : memref<328x128xf32, #tpu.memory_space<vmem>>, vector<16x128xf32>
    tpu.vector_store %arg7[%c127_88, %c0_89], %121 {strides = array<i32>} : memref<328x128xf32, #tpu.memory_space<vmem>>, vector<16x128xf32>,
    %123 = vector.extract_strided_slice %106 {offsets = [126, 0], sizes = [16, 128], strides = [1, 1]} : vector<288x128xf32> to vector<16x128xf32>
    %c145_90 = arith.constant 145 : index
    %c0_91 = arith.constant 0 : index
    %124 = vector.load %arg7[%c145_90, %c0_91] : memref<328x128xf32, #tpu.memory_space<vmem>>, vector<16x128xf32>
    tpu.vector_store %arg7[%c145_90, %c0_91], %123 {strides = array<i32>} : memref<328x128xf32, #tpu.memory_space<vmem>>, vector<16x128xf32>,
    %125 = vector.extract_strided_slice %106 {offsets = [144, 0], sizes = [16, 128], strides = [1, 1]} : vector<288x128xf32> to vector<16x128xf32>
    %c163_92 = arith.constant 163 : index
    %c0_93 = arith.constant 0 : index
    %126 = vector.load %arg7[%c163_92, %c0_93] : memref<328x128xf32, #tpu.memory_space<vmem>>, vector<16x128xf32>
    tpu.vector_store %arg7[%c163_92, %c0_93], %125 {strides = array<i32>} : memref<328x128xf32, #tpu.memory_space<vmem>>, vector<16x128xf32>,
    %127 = vector.extract_strided_slice %106 {offsets = [162, 0], sizes = [16, 128], strides = [1, 1]} : vector<288x128xf32> to vector<16x128xf32>
    %c181_94 = arith.constant 181 : index
    %c0_95 = arith.constant 0 : index
    %128 = vector.load %arg7[%c181_94, %c0_95] : memref<328x128xf32, #tpu.memory_space<vmem>>, vector<16x128xf32>
    tpu.vector_store %arg7[%c181_94, %c0_95], %127 {strides = array<i32>} : memref<328x128xf32, #tpu.memory_space<vmem>>, vector<16x128xf32>,
    %129 = vector.extract_strided_slice %106 {offsets = [180, 0], sizes = [16, 128], strides = [1, 1]} : vector<288x128xf32> to vector<16x128xf32>
    %c199_96 = arith.constant 199 : index
    %c0_97 = arith.constant 0 : index
    %130 = vector.load %arg7[%c199_96, %c0_97] : memref<328x128xf32, #tpu.memory_space<vmem>>, vector<16x128xf32>
    tpu.vector_store %arg7[%c199_96, %c0_97], %129 {strides = array<i32>} : memref<328x128xf32, #tpu.memory_space<vmem>>, vector<16x128xf32>,
    %131 = vector.extract_strided_slice %106 {offsets = [198, 0], sizes = [16, 128], strides = [1, 1]} : vector<288x128xf32> to vector<16x128xf32>
    %c217_98 = arith.constant 217 : index
    %c0_99 = arith.constant 0 : index
    %132 = vector.load %arg7[%c217_98, %c0_99] : memref<328x128xf32, #tpu.memory_space<vmem>>, vector<16x128xf32>
    tpu.vector_store %arg7[%c217_98, %c0_99], %131 {strides = array<i32>} : memref<328x128xf32, #tpu.memory_space<vmem>>, vector<16x128xf32>,
    %133 = vector.extract_strided_slice %106 {offsets = [216, 0], sizes = [16, 128], strides = [1, 1]} : vector<288x128xf32> to vector<16x128xf32>
    %c235_100 = arith.constant 235 : index
    %c0_101 = arith.constant 0 : index
    %134 = vector.load %arg7[%c235_100, %c0_101] : memref<328x128xf32, #tpu.memory_space<vmem>>, vector<16x128xf32>
    tpu.vector_store %arg7[%c235_100, %c0_101], %133 {strides = array<i32>} : memref<328x128xf32, #tpu.memory_space<vmem>>, vector<16x128xf32>,
    %135 = vector.extract_strided_slice %106 {offsets = [234, 0], sizes = [16, 128], strides = [1, 1]} : vector<288x128xf32> to vector<16x128xf32>
    %c253_102 = arith.constant 253 : index
    %c0_103 = arith.constant 0 : index
    %136 = vector.load %arg7[%c253_102, %c0_103] : memref<328x128xf32, #tpu.memory_space<vmem>>, vector<16x128xf32>
    tpu.vector_store %arg7[%c253_102, %c0_103], %135 {strides = array<i32>} : memref<328x128xf32, #tpu.memory_space<vmem>>, vector<16x128xf32>,
    %137 = vector.extract_strided_slice %106 {offsets = [252, 0], sizes = [16, 128], strides = [1, 1]} : vector<288x128xf32> to vector<16x128xf32>
    %c271_104 = arith.constant 271 : index
    %c0_105 = arith.constant 0 : index
    %138 = vector.load %arg7[%c271_104, %c0_105] : memref<328x128xf32, #tpu.memory_space<vmem>>, vector<16x128xf32>
    tpu.vector_store %arg7[%c271_104, %c0_105], %137 {strides = array<i32>} : memref<328x128xf32, #tpu.memory_space<vmem>>, vector<16x128xf32>,
    %139 = vector.extract_strided_slice %106 {offsets = [270, 0], sizes = [16, 128], strides = [1, 1]} : vector<288x128xf32> to vector<16x128xf32>
    %c289_106 = arith.constant 289 : index
    %c0_107 = arith.constant 0 : index
    %140 = vector.load %arg7[%c289_106, %c0_107] : memref<328x128xf32, #tpu.memory_space<vmem>>, vector<16x128xf32>
    tpu.vector_store %arg7[%c289_106, %c0_107], %139 {strides = array<i32>} : memref<328x128xf32, #tpu.memory_space<vmem>>, vector<16x128xf32>,
    %cst_108 = arith.constant 0.000000e+00 : f32
    %141 = vector.broadcast %cst_108 : f32 to vector<288x128xf32>
    %c0_109 = arith.constant 0 : index
    %c0_110 = arith.constant 0 : index
    %142 = vector.load %arg7[%c0_109, %c0_110] : memref<328x128xf32, #tpu.memory_space<vmem>>, vector<288x128xf32>
    %143 = arith.truncf %142 : vector<288x128xf32> to vector<288x128xbf16>
    %c0_111 = arith.constant 0 : index
    %c0_112 = arith.constant 0 : index
    %c0_113 = arith.constant 0 : index
    %144 = vector.load %arg3[%c0_111, %c0_112, %c0_113] : memref<9x128x128xbf16, #tpu.memory_space<vmem>>, vector<1x128x128xbf16>
    %145 = vector.shape_cast %144 : vector<1x128x128xbf16> to vector<128x128xbf16>
    %cst_114 = arith.constant dense<0.000000e+00> : vector<288x128xf32>
    %146 = tpu.matmul %143, %145, %cst_114 {dimension_numbers = #tpu.dot_dimension_numbers<[1], [0], [0], [1], [0, 0, 1, 1], [], []>} : vector<288x128xbf16>, vector<128x128xbf16>, vector<288x128xf32> -> vector<288x128xf32>
    %147 = arith.addf %141, %146 : vector<288x128xf32>
    %c1_115 = arith.constant 1 : index
    %c0_116 = arith.constant 0 : index
    %148 = vector.load %arg7[%c1_115, %c0_116] : memref<328x128xf32, #tpu.memory_space<vmem>>, vector<288x128xf32>
    %149 = arith.truncf %148 : vector<288x128xf32> to vector<288x128xbf16>
    %c1_117 = arith.constant 1 : index
    %c0_118 = arith.constant 0 : index
    %c0_119 = arith.constant 0 : index
    %150 = vector.load %arg3[%c1_117, %c0_118, %c0_119] : memref<9x128x128xbf16, #tpu.memory_space<vmem>>, vector<1x128x128xbf16>
    %151 = vector.shape_cast %150 : vector<1x128x128xbf16> to vector<128x128xbf16>
    %cst_120 = arith.constant dense<0.000000e+00> : vector<288x128xf32>
    %152 = tpu.matmul %149, %151, %cst_120 {dimension_numbers = #tpu.dot_dimension_numbers<[1], [0], [0], [1], [0, 0, 1, 1], [], []>} : vector<288x128xbf16>, vector<128x128xbf16>, vector<288x128xf32> -> vector<288x128xf32>
    %153 = arith.addf %147, %152 : vector<288x128xf32>
    %c2_121 = arith.constant 2 : index
    %c0_122 = arith.constant 0 : index
    %154 = vector.load %arg7[%c2_121, %c0_122] : memref<328x128xf32, #tpu.memory_space<vmem>>, vector<288x128xf32>
    %155 = arith.truncf %154 : vector<288x128xf32> to vector<288x128xbf16>
    %c2_123 = arith.constant 2 : index
    %c0_124 = arith.constant 0 : index
    %c0_125 = arith.constant 0 : index
    %156 = vector.load %arg3[%c2_123, %c0_124, %c0_125] : memref<9x128x128xbf16, #tpu.memory_space<vmem>>, vector<1x128x128xbf16>
    %157 = vector.shape_cast %156 : vector<1x128x128xbf16> to vector<128x128xbf16>
    %cst_126 = arith.constant dense<0.000000e+00> : vector<288x128xf32>
    %158 = tpu.matmul %155, %157, %cst_126 {dimension_numbers = #tpu.dot_dimension_numbers<[1], [0], [0], [1], [0, 0, 1, 1], [], []>} : vector<288x128xbf16>, vector<128x128xbf16>, vector<288x128xf32> -> vector<288x128xf32>
    %159 = arith.addf %153, %158 : vector<288x128xf32>
    %c18_127 = arith.constant 18 : index
    %c0_128 = arith.constant 0 : index
    %160 = vector.load %arg7[%c18_127, %c0_128] : memref<328x128xf32, #tpu.memory_space<vmem>>, vector<288x128xf32>
    %161 = arith.truncf %160 : vector<288x128xf32> to vector<288x128xbf16>
    %c3_129 = arith.constant 3 : index
    %c0_130 = arith.constant 0 : index
    %c0_131 = arith.constant 0 : index
    %162 = vector.load %arg3[%c3_129, %c0_130, %c0_131] : memref<9x128x128xbf16, #tpu.memory_space<vmem>>, vector<1x128x128xbf16>
    %163 = vector.shape_cast %162 : vector<1x128x128xbf16> to vector<128x128xbf16>
    %cst_132 = arith.constant dense<0.000000e+00> : vector<288x128xf32>
    %164 = tpu.matmul %161, %163, %cst_132 {dimension_numbers = #tpu.dot_dimension_numbers<[1], [0], [0], [1], [0, 0, 1, 1], [], []>} : vector<288x128xbf16>, vector<128x128xbf16>, vector<288x128xf32> -> vector<288x128xf32>
    %165 = arith.addf %159, %164 : vector<288x128xf32>
    %c19_133 = arith.constant 19 : index
    %c0_134 = arith.constant 0 : index
    %166 = vector.load %arg7[%c19_133, %c0_134] : memref<328x128xf32, #tpu.memory_space<vmem>>, vector<288x128xf32>
    %167 = arith.truncf %166 : vector<288x128xf32> to vector<288x128xbf16>
    %c4_135 = arith.constant 4 : index
    %c0_136 = arith.constant 0 : index
    %c0_137 = arith.constant 0 : index
    %168 = vector.load %arg3[%c4_135, %c0_136, %c0_137] : memref<9x128x128xbf16, #tpu.memory_space<vmem>>, vector<1x128x128xbf16>
    %169 = vector.shape_cast %168 : vector<1x128x128xbf16> to vector<128x128xbf16>
    %cst_138 = arith.constant dense<0.000000e+00> : vector<288x128xf32>
    %170 = tpu.matmul %167, %169, %cst_138 {dimension_numbers = #tpu.dot_dimension_numbers<[1], [0], [0], [1], [0, 0, 1, 1], [], []>} : vector<288x128xbf16>, vector<128x128xbf16>, vector<288x128xf32> -> vector<288x128xf32>
    %171 = arith.addf %165, %170 : vector<288x128xf32>
    %c20_139 = arith.constant 20 : index
    %c0_140 = arith.constant 0 : index
    %172 = vector.load %arg7[%c20_139, %c0_140] : memref<328x128xf32, #tpu.memory_space<vmem>>, vector<288x128xf32>
    %173 = arith.truncf %172 : vector<288x128xf32> to vector<288x128xbf16>
    %c5_141 = arith.constant 5 : index
    %c0_142 = arith.constant 0 : index
    %c0_143 = arith.constant 0 : index
    %174 = vector.load %arg3[%c5_141, %c0_142, %c0_143] : memref<9x128x128xbf16, #tpu.memory_space<vmem>>, vector<1x128x128xbf16>
    %175 = vector.shape_cast %174 : vector<1x128x128xbf16> to vector<128x128xbf16>
    %cst_144 = arith.constant dense<0.000000e+00> : vector<288x128xf32>
    %176 = tpu.matmul %173, %175, %cst_144 {dimension_numbers = #tpu.dot_dimension_numbers<[1], [0], [0], [1], [0, 0, 1, 1], [], []>} : vector<288x128xbf16>, vector<128x128xbf16>, vector<288x128xf32> -> vector<288x128xf32>
    %177 = arith.addf %171, %176 : vector<288x128xf32>
    %c36_145 = arith.constant 36 : index
    %c0_146 = arith.constant 0 : index
    %178 = vector.load %arg7[%c36_145, %c0_146] : memref<328x128xf32, #tpu.memory_space<vmem>>, vector<288x128xf32>
    %179 = arith.truncf %178 : vector<288x128xf32> to vector<288x128xbf16>
    %c6_147 = arith.constant 6 : index
    %c0_148 = arith.constant 0 : index
    %c0_149 = arith.constant 0 : index
    %180 = vector.load %arg3[%c6_147, %c0_148, %c0_149] : memref<9x128x128xbf16, #tpu.memory_space<vmem>>, vector<1x128x128xbf16>
    %181 = vector.shape_cast %180 : vector<1x128x128xbf16> to vector<128x128xbf16>
    %cst_150 = arith.constant dense<0.000000e+00> : vector<288x128xf32>
    %182 = tpu.matmul %179, %181, %cst_150 {dimension_numbers = #tpu.dot_dimension_numbers<[1], [0], [0], [1], [0, 0, 1, 1], [], []>} : vector<288x128xbf16>, vector<128x128xbf16>, vector<288x128xf32> -> vector<288x128xf32>
    %183 = arith.addf %177, %182 : vector<288x128xf32>
    %c37_151 = arith.constant 37 : index
    %c0_152 = arith.constant 0 : index
    %184 = vector.load %arg7[%c37_151, %c0_152] : memref<328x128xf32, #tpu.memory_space<vmem>>, vector<288x128xf32>
    %185 = arith.truncf %184 : vector<288x128xf32> to vector<288x128xbf16>
    %c7_153 = arith.constant 7 : index
    %c0_154 = arith.constant 0 : index
    %c0_155 = arith.constant 0 : index
    %186 = vector.load %arg3[%c7_153, %c0_154, %c0_155] : memref<9x128x128xbf16, #tpu.memory_space<vmem>>, vector<1x128x128xbf16>
    %187 = vector.shape_cast %186 : vector<1x128x128xbf16> to vector<128x128xbf16>
    %cst_156 = arith.constant dense<0.000000e+00> : vector<288x128xf32>
    %188 = tpu.matmul %185, %187, %cst_156 {dimension_numbers = #tpu.dot_dimension_numbers<[1], [0], [0], [1], [0, 0, 1, 1], [], []>} : vector<288x128xbf16>, vector<128x128xbf16>, vector<288x128xf32> -> vector<288x128xf32>
    %189 = arith.addf %183, %188 : vector<288x128xf32>
    %c38_157 = arith.constant 38 : index
    %c0_158 = arith.constant 0 : index
    %190 = vector.load %arg7[%c38_157, %c0_158] : memref<328x128xf32, #tpu.memory_space<vmem>>, vector<288x128xf32>
    %191 = arith.truncf %190 : vector<288x128xf32> to vector<288x128xbf16>
    %c8_159 = arith.constant 8 : index
    %c0_160 = arith.constant 0 : index
    %c0_161 = arith.constant 0 : index
    %192 = vector.load %arg3[%c8_159, %c0_160, %c0_161] : memref<9x128x128xbf16, #tpu.memory_space<vmem>>, vector<1x128x128xbf16>
    %193 = vector.shape_cast %192 : vector<1x128x128xbf16> to vector<128x128xbf16>
    %cst_162 = arith.constant dense<0.000000e+00> : vector<288x128xf32>
    %194 = tpu.matmul %191, %193, %cst_162 {dimension_numbers = #tpu.dot_dimension_numbers<[1], [0], [0], [1], [0, 0, 1, 1], [], []>} : vector<288x128xbf16>, vector<128x128xbf16>, vector<288x128xf32> -> vector<288x128xf32>
    %195 = arith.addf %189, %194 : vector<288x128xf32>
    %196 = vector.extract_strided_slice %5 {offsets = [0, 0], sizes = [16, 128], strides = [1, 1]} : vector<256x128xf32> to vector<16x128xf32>
    %197 = vector.extract_strided_slice %195 {offsets = [0, 0], sizes = [16, 128], strides = [1, 1]} : vector<288x128xf32> to vector<16x128xf32>
    %198 = arith.addf %196, %197 : vector<16x128xf32>
    %c0_163 = arith.constant 0 : index
    %c0_164 = arith.constant 0 : index
    %c0_165 = arith.constant 0 : index
    %199 = vector.load %arg5[%c0_163, %c0_164, %c0_165] : memref<1x256x128xf32, #tpu.memory_space<vmem>>, vector<1x16x128xf32>
    %200 = vector.shape_cast %199 : vector<1x16x128xf32> to vector<16x128xf32>
    %201 = vector.shape_cast %198 : vector<16x128xf32> to vector<1x16x128xf32>
    tpu.vector_store %arg5[%c0_163, %c0_164, %c0_165], %201 {strides = array<i32>} : memref<1x256x128xf32, #tpu.memory_space<vmem>>, vector<1x16x128xf32>,
    %202 = vector.extract_strided_slice %5 {offsets = [16, 0], sizes = [16, 128], strides = [1, 1]} : vector<256x128xf32> to vector<16x128xf32>
    %203 = vector.extract_strided_slice %195 {offsets = [18, 0], sizes = [16, 128], strides = [1, 1]} : vector<288x128xf32> to vector<16x128xf32>
    %204 = arith.addf %202, %203 : vector<16x128xf32>
    %c0_166 = arith.constant 0 : index
    %c16 = arith.constant 16 : index
    %c0_167 = arith.constant 0 : index
    %205 = vector.load %arg5[%c0_166, %c16, %c0_167] : memref<1x256x128xf32, #tpu.memory_space<vmem>>, vector<1x16x128xf32>
    %206 = vector.shape_cast %205 : vector<1x16x128xf32> to vector<16x128xf32>
    %207 = vector.shape_cast %204 : vector<16x128xf32> to vector<1x16x128xf32>
    tpu.vector_store %arg5[%c0_166, %c16, %c0_167], %207 {strides = array<i32>} : memref<1x256x128xf32, #tpu.memory_space<vmem>>, vector<1x16x128xf32>,
    %208 = vector.extract_strided_slice %5 {offsets = [32, 0], sizes = [16, 128], strides = [1, 1]} : vector<256x128xf32> to vector<16x128xf32>
    %209 = vector.extract_strided_slice %195 {offsets = [36, 0], sizes = [16, 128], strides = [1, 1]} : vector<288x128xf32> to vector<16x128xf32>
    %210 = arith.addf %208, %209 : vector<16x128xf32>
    %c0_168 = arith.constant 0 : index
    %c32 = arith.constant 32 : index
    %c0_169 = arith.constant 0 : index
    %211 = vector.load %arg5[%c0_168, %c32, %c0_169] : memref<1x256x128xf32, #tpu.memory_space<vmem>>, vector<1x16x128xf32>
    %212 = vector.shape_cast %211 : vector<1x16x128xf32> to vector<16x128xf32>
    %213 = vector.shape_cast %210 : vector<16x128xf32> to vector<1x16x128xf32>
    tpu.vector_store %arg5[%c0_168, %c32, %c0_169], %213 {strides = array<i32>} : memref<1x256x128xf32, #tpu.memory_space<vmem>>, vector<1x16x128xf32>,
    %214 = vector.extract_strided_slice %5 {offsets = [48, 0], sizes = [16, 128], strides = [1, 1]} : vector<256x128xf32> to vector<16x128xf32>
    %215 = vector.extract_strided_slice %195 {offsets = [54, 0], sizes = [16, 128], strides = [1, 1]} : vector<288x128xf32> to vector<16x128xf32>
    %216 = arith.addf %214, %215 : vector<16x128xf32>
    %c0_170 = arith.constant 0 : index
    %c48 = arith.constant 48 : index
    %c0_171 = arith.constant 0 : index
    %217 = vector.load %arg5[%c0_170, %c48, %c0_171] : memref<1x256x128xf32, #tpu.memory_space<vmem>>, vector<1x16x128xf32>
    %218 = vector.shape_cast %217 : vector<1x16x128xf32> to vector<16x128xf32>
    %219 = vector.shape_cast %216 : vector<16x128xf32> to vector<1x16x128xf32>
    tpu.vector_store %arg5[%c0_170, %c48, %c0_171], %219 {strides = array<i32>} : memref<1x256x128xf32, #tpu.memory_space<vmem>>, vector<1x16x128xf32>,
    %220 = vector.extract_strided_slice %5 {offsets = [64, 0], sizes = [16, 128], strides = [1, 1]} : vector<256x128xf32> to vector<16x128xf32>
    %221 = vector.extract_strided_slice %195 {offsets = [72, 0], sizes = [16, 128], strides = [1, 1]} : vector<288x128xf32> to vector<16x128xf32>
    %222 = arith.addf %220, %221 : vector<16x128xf32>
    %c0_172 = arith.constant 0 : index
    %c64 = arith.constant 64 : index
    %c0_173 = arith.constant 0 : index
    %223 = vector.load %arg5[%c0_172, %c64, %c0_173] : memref<1x256x128xf32, #tpu.memory_space<vmem>>, vector<1x16x128xf32>
    %224 = vector.shape_cast %223 : vector<1x16x128xf32> to vector<16x128xf32>
    %225 = vector.shape_cast %222 : vector<16x128xf32> to vector<1x16x128xf32>
    tpu.vector_store %arg5[%c0_172, %c64, %c0_173], %225 {strides = array<i32>} : memref<1x256x128xf32, #tpu.memory_space<vmem>>, vector<1x16x128xf32>,
    %226 = vector.extract_strided_slice %5 {offsets = [80, 0], sizes = [16, 128], strides = [1, 1]} : vector<256x128xf32> to vector<16x128xf32>
    %227 = vector.extract_strided_slice %195 {offsets = [90, 0], sizes = [16, 128], strides = [1, 1]} : vector<288x128xf32> to vector<16x128xf32>
    %228 = arith.addf %226, %227 : vector<16x128xf32>
    %c0_174 = arith.constant 0 : index
    %c80 = arith.constant 80 : index
    %c0_175 = arith.constant 0 : index
    %229 = vector.load %arg5[%c0_174, %c80, %c0_175] : memref<1x256x128xf32, #tpu.memory_space<vmem>>, vector<1x16x128xf32>
    %230 = vector.shape_cast %229 : vector<1x16x128xf32> to vector<16x128xf32>
    %231 = vector.shape_cast %228 : vector<16x128xf32> to vector<1x16x128xf32>
    tpu.vector_store %arg5[%c0_174, %c80, %c0_175], %231 {strides = array<i32>} : memref<1x256x128xf32, #tpu.memory_space<vmem>>, vector<1x16x128xf32>,
    %232 = vector.extract_strided_slice %5 {offsets = [96, 0], sizes = [16, 128], strides = [1, 1]} : vector<256x128xf32> to vector<16x128xf32>
    %233 = vector.extract_strided_slice %195 {offsets = [108, 0], sizes = [16, 128], strides = [1, 1]} : vector<288x128xf32> to vector<16x128xf32>
    %234 = arith.addf %232, %233 : vector<16x128xf32>
    %c0_176 = arith.constant 0 : index
    %c96 = arith.constant 96 : index
    %c0_177 = arith.constant 0 : index
    %235 = vector.load %arg5[%c0_176, %c96, %c0_177] : memref<1x256x128xf32, #tpu.memory_space<vmem>>, vector<1x16x128xf32>
    %236 = vector.shape_cast %235 : vector<1x16x128xf32> to vector<16x128xf32>
    %237 = vector.shape_cast %234 : vector<16x128xf32> to vector<1x16x128xf32>
    tpu.vector_store %arg5[%c0_176, %c96, %c0_177], %237 {strides = array<i32>} : memref<1x256x128xf32, #tpu.memory_space<vmem>>, vector<1x16x128xf32>,
    %238 = vector.extract_strided_slice %5 {offsets = [112, 0], sizes = [16, 128], strides = [1, 1]} : vector<256x128xf32> to vector<16x128xf32>
    %239 = vector.extract_strided_slice %195 {offsets = [126, 0], sizes = [16, 128], strides = [1, 1]} : vector<288x128xf32> to vector<16x128xf32>
    %240 = arith.addf %238, %239 : vector<16x128xf32>
    %c0_178 = arith.constant 0 : index
    %c112 = arith.constant 112 : index
    %c0_179 = arith.constant 0 : index
    %241 = vector.load %arg5[%c0_178, %c112, %c0_179] : memref<1x256x128xf32, #tpu.memory_space<vmem>>, vector<1x16x128xf32>
    %242 = vector.shape_cast %241 : vector<1x16x128xf32> to vector<16x128xf32>
    %243 = vector.shape_cast %240 : vector<16x128xf32> to vector<1x16x128xf32>
    tpu.vector_store %arg5[%c0_178, %c112, %c0_179], %243 {strides = array<i32>} : memref<1x256x128xf32, #tpu.memory_space<vmem>>, vector<1x16x128xf32>,
    %244 = vector.extract_strided_slice %5 {offsets = [128, 0], sizes = [16, 128], strides = [1, 1]} : vector<256x128xf32> to vector<16x128xf32>
    %245 = vector.extract_strided_slice %195 {offsets = [144, 0], sizes = [16, 128], strides = [1, 1]} : vector<288x128xf32> to vector<16x128xf32>
    %246 = arith.addf %244, %245 : vector<16x128xf32>
    %c0_180 = arith.constant 0 : index
    %c128 = arith.constant 128 : index
    %c0_181 = arith.constant 0 : index
    %247 = vector.load %arg5[%c0_180, %c128, %c0_181] : memref<1x256x128xf32, #tpu.memory_space<vmem>>, vector<1x16x128xf32>
    %248 = vector.shape_cast %247 : vector<1x16x128xf32> to vector<16x128xf32>
    %249 = vector.shape_cast %246 : vector<16x128xf32> to vector<1x16x128xf32>
    tpu.vector_store %arg5[%c0_180, %c128, %c0_181], %249 {strides = array<i32>} : memref<1x256x128xf32, #tpu.memory_space<vmem>>, vector<1x16x128xf32>,
    %250 = vector.extract_strided_slice %5 {offsets = [144, 0], sizes = [16, 128], strides = [1, 1]} : vector<256x128xf32> to vector<16x128xf32>
    %251 = vector.extract_strided_slice %195 {offsets = [162, 0], sizes = [16, 128], strides = [1, 1]} : vector<288x128xf32> to vector<16x128xf32>
    %252 = arith.addf %250, %251 : vector<16x128xf32>
    %c0_182 = arith.constant 0 : index
    %c144 = arith.constant 144 : index
    %c0_183 = arith.constant 0 : index
    %253 = vector.load %arg5[%c0_182, %c144, %c0_183] : memref<1x256x128xf32, #tpu.memory_space<vmem>>, vector<1x16x128xf32>
    %254 = vector.shape_cast %253 : vector<1x16x128xf32> to vector<16x128xf32>
    %255 = vector.shape_cast %252 : vector<16x128xf32> to vector<1x16x128xf32>
    tpu.vector_store %arg5[%c0_182, %c144, %c0_183], %255 {strides = array<i32>} : memref<1x256x128xf32, #tpu.memory_space<vmem>>, vector<1x16x128xf32>,
    %256 = vector.extract_strided_slice %5 {offsets = [160, 0], sizes = [16, 128], strides = [1, 1]} : vector<256x128xf32> to vector<16x128xf32>
    %257 = vector.extract_strided_slice %195 {offsets = [180, 0], sizes = [16, 128], strides = [1, 1]} : vector<288x128xf32> to vector<16x128xf32>
    %258 = arith.addf %256, %257 : vector<16x128xf32>
    %c0_184 = arith.constant 0 : index
    %c160 = arith.constant 160 : index
    %c0_185 = arith.constant 0 : index
    %259 = vector.load %arg5[%c0_184, %c160, %c0_185] : memref<1x256x128xf32, #tpu.memory_space<vmem>>, vector<1x16x128xf32>
    %260 = vector.shape_cast %259 : vector<1x16x128xf32> to vector<16x128xf32>
    %261 = vector.shape_cast %258 : vector<16x128xf32> to vector<1x16x128xf32>
    tpu.vector_store %arg5[%c0_184, %c160, %c0_185], %261 {strides = array<i32>} : memref<1x256x128xf32, #tpu.memory_space<vmem>>, vector<1x16x128xf32>,
    %262 = vector.extract_strided_slice %5 {offsets = [176, 0], sizes = [16, 128], strides = [1, 1]} : vector<256x128xf32> to vector<16x128xf32>
    %263 = vector.extract_strided_slice %195 {offsets = [198, 0], sizes = [16, 128], strides = [1, 1]} : vector<288x128xf32> to vector<16x128xf32>
    %264 = arith.addf %262, %263 : vector<16x128xf32>
    %c0_186 = arith.constant 0 : index
    %c176 = arith.constant 176 : index
    %c0_187 = arith.constant 0 : index
    %265 = vector.load %arg5[%c0_186, %c176, %c0_187] : memref<1x256x128xf32, #tpu.memory_space<vmem>>, vector<1x16x128xf32>
    %266 = vector.shape_cast %265 : vector<1x16x128xf32> to vector<16x128xf32>
    %267 = vector.shape_cast %264 : vector<16x128xf32> to vector<1x16x128xf32>
    tpu.vector_store %arg5[%c0_186, %c176, %c0_187], %267 {strides = array<i32>} : memref<1x256x128xf32, #tpu.memory_space<vmem>>, vector<1x16x128xf32>,
    %268 = vector.extract_strided_slice %5 {offsets = [192, 0], sizes = [16, 128], strides = [1, 1]} : vector<256x128xf32> to vector<16x128xf32>
    %269 = vector.extract_strided_slice %195 {offsets = [216, 0], sizes = [16, 128], strides = [1, 1]} : vector<288x128xf32> to vector<16x128xf32>
    %270 = arith.addf %268, %269 : vector<16x128xf32>
    %c0_188 = arith.constant 0 : index
    %c192 = arith.constant 192 : index
    %c0_189 = arith.constant 0 : index
    %271 = vector.load %arg5[%c0_188, %c192, %c0_189] : memref<1x256x128xf32, #tpu.memory_space<vmem>>, vector<1x16x128xf32>
    %272 = vector.shape_cast %271 : vector<1x16x128xf32> to vector<16x128xf32>
    %273 = vector.shape_cast %270 : vector<16x128xf32> to vector<1x16x128xf32>
    tpu.vector_store %arg5[%c0_188, %c192, %c0_189], %273 {strides = array<i32>} : memref<1x256x128xf32, #tpu.memory_space<vmem>>, vector<1x16x128xf32>,
    %274 = vector.extract_strided_slice %5 {offsets = [208, 0], sizes = [16, 128], strides = [1, 1]} : vector<256x128xf32> to vector<16x128xf32>
    %275 = vector.extract_strided_slice %195 {offsets = [234, 0], sizes = [16, 128], strides = [1, 1]} : vector<288x128xf32> to vector<16x128xf32>
    %276 = arith.addf %274, %275 : vector<16x128xf32>
    %c0_190 = arith.constant 0 : index
    %c208 = arith.constant 208 : index
    %c0_191 = arith.constant 0 : index
    %277 = vector.load %arg5[%c0_190, %c208, %c0_191] : memref<1x256x128xf32, #tpu.memory_space<vmem>>, vector<1x16x128xf32>
    %278 = vector.shape_cast %277 : vector<1x16x128xf32> to vector<16x128xf32>
    %279 = vector.shape_cast %276 : vector<16x128xf32> to vector<1x16x128xf32>
    tpu.vector_store %arg5[%c0_190, %c208, %c0_191], %279 {strides = array<i32>} : memref<1x256x128xf32, #tpu.memory_space<vmem>>, vector<1x16x128xf32>,
    %280 = vector.extract_strided_slice %5 {offsets = [224, 0], sizes = [16, 128], strides = [1, 1]} : vector<256x128xf32> to vector<16x128xf32>
    %281 = vector.extract_strided_slice %195 {offsets = [252, 0], sizes = [16, 128], strides = [1, 1]} : vector<288x128xf32> to vector<16x128xf32>
    %282 = arith.addf %280, %281 : vector<16x128xf32>
    %c0_192 = arith.constant 0 : index
    %c224 = arith.constant 224 : index
    %c0_193 = arith.constant 0 : index
    %283 = vector.load %arg5[%c0_192, %c224, %c0_193] : memref<1x256x128xf32, #tpu.memory_space<vmem>>, vector<1x16x128xf32>
    %284 = vector.shape_cast %283 : vector<1x16x128xf32> to vector<16x128xf32>
    %285 = vector.shape_cast %282 : vector<16x128xf32> to vector<1x16x128xf32>
    tpu.vector_store %arg5[%c0_192, %c224, %c0_193], %285 {strides = array<i32>} : memref<1x256x128xf32, #tpu.memory_space<vmem>>, vector<1x16x128xf32>,
    %286 = vector.extract_strided_slice %5 {offsets = [240, 0], sizes = [16, 128], strides = [1, 1]} : vector<256x128xf32> to vector<16x128xf32>
    %287 = vector.extract_strided_slice %195 {offsets = [270, 0], sizes = [16, 128], strides = [1, 1]} : vector<288x128xf32> to vector<16x128xf32>
    %288 = arith.addf %286, %287 : vector<16x128xf32>
    %c0_194 = arith.constant 0 : index
    %c240 = arith.constant 240 : index
    %c0_195 = arith.constant 0 : index
    %289 = vector.load %arg5[%c0_194, %c240, %c0_195] : memref<1x256x128xf32, #tpu.memory_space<vmem>>, vector<1x16x128xf32>
    %290 = vector.shape_cast %289 : vector<1x16x128xf32> to vector<16x128xf32>
    %291 = vector.shape_cast %288 : vector<16x128xf32> to vector<1x16x128xf32>
    tpu.vector_store %arg5[%c0_194, %c240, %c0_195], %291 {strides = array<i32>} : memref<1x256x128xf32, #tpu.memory_space<vmem>>, vector<1x16x128xf32>,
    return
  }
  func.func @transform_0(%arg0: i32) -> (i32, i32, i32) {
    %c0_i32 = arith.constant 0 : i32
    %c0_i32_0 = arith.constant 0 : i32
    %c0_i32_1 = arith.constant 0 : i32
    return %arg0, %c0_i32, %c0_i32_0 : i32, i32, i32
  }
  func.func @transform_1(%arg0: i32) -> (i32, i32, i32) {
    %c0_i32 = arith.constant 0 : i32
    %c0_i32_0 = arith.constant 0 : i32
    %c0_i32_1 = arith.constant 0 : i32
    %c0_i32_2 = arith.constant 0 : i32
    return %c0_i32, %c0_i32_0, %c0_i32_1 : i32, i32, i32
  }
  func.func @transform_2(%arg0: i32) -> (i32, i32, i32) {
    %c0_i32 = arith.constant 0 : i32
    %c0_i32_0 = arith.constant 0 : i32
    %c0_i32_1 = arith.constant 0 : i32
    %c0_i32_2 = arith.constant 0 : i32
    return %c0_i32, %c0_i32_0, %c0_i32_1 : i32, i32, i32
  }
  func.func @transform_3(%arg0: i32) -> (i32, i32) {
    %c0_i32 = arith.constant 0 : i32
    %c0_i32_0 = arith.constant 0 : i32
    %c0_i32_1 = arith.constant 0 : i32
    return %c0_i32, %c0_i32_0 : i32, i32
  }
  func.func @transform_4(%arg0: i32) -> (i32, i32, i32) {
    %c0_i32 = arith.constant 0 : i32
    %c0_i32_0 = arith.constant 0 : i32
    %c0_i32_1 = arith.constant 0 : i32
    return %arg0, %c0_i32, %c0_i32_0 : i32, i32, i32
  }
}

</mosaic_0001>

<llo_original>
// kernel: basic_unit_forward.1
$region0: #{basic_unit_forward.1}
  #allocation0 [shape = 'u32[]', space=smem, size = 0x4, offset = 0x4, fixed_abs, tag = 'smem constant byte address 0x4 - core index']
  #allocation1 [shape = 'u32[144,128]{1,0:T(1,128)}', space=vmem, size = 0x12000, scoped, tag = 'internal scratch']
  #allocation2 [shape = 'f32[328,128]{1,0:T(8,128)}', space=vmem, size = 0x29000, scoped, tag = 'scratch operand']
  #allocation3 [shape = 'f32[328,128]{1,0:T(8,128)}', space=vmem, size = 0x29000, scoped, tag = 'scratch operand']
  %s0 = inlined_call_operand.vmem [shape: f32[2,256,128], index: 0, kind: input, shape index: {}]
  %s1 = inlined_call_operand.vmem [shape: bf16[9,128,128], index: 1, kind: input, shape index: {}]
  %s2 = inlined_call_operand.vmem [shape: bf16[9,128,128], index: 2, kind: input, shape index: {}]
  %s3 = inlined_call_operand.vmem [shape: f32[4,128], index: 3, kind: input, shape index: {}]
  %s4 = inlined_call_operand.vmem [shape: f32[2,256,128], index: 4, kind: output, shape index: {}]
  %s5 = sld [smem:[#allocation0]]
  $region49: #{basic_unit_forward.1} parent=0
    _
  %s7 = ssub.s32 1, %s5
  %s8 = scalar_select 0, %s7, %s5
  loop: start=0, step=1, limit=4
  $region2: #{basic_unit_forward.1} parent=0 // loop_pre_header
    _
  $region3: #{basic_unit_forward.1} parent=0 // loop_header
    %s10 = sphi 0, %s14
    %p11 = scmp.ge.s32.totalorder %s10, 4
    %s20 = sphi 0, %s22
    %s23 = sphi 0, %s20
    %s24 = sphi 0, %s23
    %s40 = sphi 0, %s24
    %s44 = sphi 0, %s44
    %s46 = sphi 0, %s44
    %s47 = sphi 0, %s46
    %s61 = sphi 0, %s47
    %s65 = sphi 0, %s65
    %s67 = sphi 0, %s65
    %s68 = sphi 0, %s67
    %s82 = sphi 0, %s68
    %s86 = sphi 0, %s86
    %s88 = sphi 0, %s86
    %s89 = sphi 0, %s88
    %s103 = sphi 0, %s89
    %s109 = sphi 0, %s111
    %s112 = sphi 0, %s109
    %s113 = sphi 0, %s112
    %s129 = sphi 0, %s113
  $region4: #{basic_unit_forward.1} parent=0 // loop_header_branch
    %13 = sbr.rel (%p11) target = $region8
  $region5: #{basic_unit_forward.1} parent=0 // loop_body
    %s15 = ssub.s32 %s10, 1
    %s16 = ssub.s32 %s10, 2
    %s17 = sadd.s32 %s10, 1
    %s18 = ssub.s32 %s10, %s17
    %p19 = scmp.eq.s32.totalorder %s18, 0
    %s21 = sadd.s32 %s20, 1
    %s22 = scalar_select %p19, %s20, %s21
    %p25 = pneg %p19
    %p26 = scmp.eq.s32.totalorder %s10, 1
    %p27 = por %p25, %p26
    %p28 = scmp.ne.s32.totalorder %s20, %s23
    %p29 = scmp.eq.s32.totalorder %s10, 0
    %p30 = por %p28, %p29
    %p31 = scmp.ne.s32.totalorder %s20, %s23
    %p32 = scmp.eq.s32.totalorder %s15, 1
    %p33 = por %p31, %p32
    %p34 = scmp.ne.s32.totalorder %s23, %s24
    %p35 = scmp.eq.s32.totalorder %s15, 0
    %p36 = por %p34, %p35
    %p37 = scmp.ne.s32.totalorder %s23, %s24
    %p38 = scmp.eq.s32.totalorder %s16, 1
    %p39 = por %p37, %p38
    %p41 = scmp.ne.s32.totalorder %s24, %s40
    %p42 = scmp.eq.s32.totalorder %s16, 0
    %p43 = por %p41, %p42
    %s45 = sadd.s32 %s44, 1
    %p48 = scmp.eq.s32.totalorder %s10, 1
    %p49 = scmp.ne.s32.totalorder %s44, %s46
    %p50 = scmp.eq.s32.totalorder %s10, 0
    %p51 = por %p49, %p50
    %p52 = scmp.ne.s32.totalorder %s44, %s46
    %p53 = scmp.eq.s32.totalorder %s15, 1
    %p54 = por %p52, %p53
    %p55 = scmp.ne.s32.totalorder %s46, %s47
    %p56 = scmp.eq.s32.totalorder %s15, 0
    %p57 = por %p55, %p56
    %p58 = scmp.ne.s32.totalorder %s46, %s47
    %p59 = scmp.eq.s32.totalorder %s16, 1
    %p60 = por %p58, %p59
    %p62 = scmp.ne.s32.totalorder %s47, %s61
    %p63 = scmp.eq.s32.totalorder %s16, 0
    %p64 = por %p62, %p63
    %s66 = sadd.s32 %s65, 1
    %p69 = scmp.eq.s32.totalorder %s10, 1
    %p70 = scmp.ne.s32.totalorder %s65, %s67
    %p71 = scmp.eq.s32.totalorder %s10, 0
    %p72 = por %p70, %p71
    %p73 = scmp.ne.s32.totalorder %s65, %s67
    %p74 = scmp.eq.s32.totalorder %s15, 1
    %p75 = por %p73, %p74
    %p76 = scmp.ne.s32.totalorder %s67, %s68
    %p77 = scmp.eq.s32.totalorder %s15, 0
    %p78 = por %p76, %p77
    %p79 = scmp.ne.s32.totalorder %s67, %s68
    %p80 = scmp.eq.s32.totalorder %s16, 1
    %p81 = por %p79, %p80
    %p83 = scmp.ne.s32.totalorder %s68, %s82
    %p84 = scmp.eq.s32.totalorder %s16, 0
    %p85 = por %p83, %p84
    %s87 = sadd.s32 %s86, 1
    %p90 = scmp.eq.s32.totalorder %s10, 1
    %p91 = scmp.ne.s32.totalorder %s86, %s88
    %p92 = scmp.eq.s32.totalorder %s10, 0
    %p93 = por %p91, %p92
    %p94 = scmp.ne.s32.totalorder %s86, %s88
    %p95 = scmp.eq.s32.totalorder %s15, 1
    %p96 = por %p94, %p95
    %p97 = scmp.ne.s32.totalorder %s88, %s89
    %p98 = scmp.eq.s32.totalorder %s15, 0
    %p99 = por %p97, %p98
    %p100 = scmp.ne.s32.totalorder %s88, %s89
    %p101 = scmp.eq.s32.totalorder %s16, 1
    %p102 = por %p100, %p101
    %p104 = scmp.ne.s32.totalorder %s89, %s103
    %p105 = scmp.eq.s32.totalorder %s16, 0
    %p106 = por %p104, %p105
    %s107 = ssub.s32 %s10, %s17
    %p108 = scmp.eq.s32.totalorder %s107, 0
    %s110 = sadd.s32 %s109, 1
    %s111 = scalar_select %p108, %s109, %s110
    %p114 = pneg %p108
    %p115 = scmp.eq.s32.totalorder %s10, 1
    %p116 = por %p114, %p115
    %p117 = scmp.ne.s32.totalorder %s109, %s112
    %p118 = scmp.eq.s32.totalorder %s10, 0
    %p119 = por %p117, %p118
    %p120 = scmp.ne.s32.totalorder %s109, %s112
    %p121 = scmp.eq.s32.totalorder %s15, 1
    %p122 = por %p120, %p121
    %p123 = scmp.ne.s32.totalorder %s112, %s113
    %p124 = scmp.eq.s32.totalorder %s15, 0
    %p125 = por %p123, %p124
    %p126 = scmp.ne.s32.totalorder %s112, %s113
    %p127 = scmp.eq.s32.totalorder %s16, 1
    %p128 = por %p126, %p127
    %p130 = scmp.ne.s32.totalorder %s113, %s129
    %p131 = scmp.eq.s32.totalorder %s16, 0
    %p132 = por %p130, %p131
    %p133 = scmp.le.s32.totalorder 1, %s10
    %p134 = scmp.lt.s32.totalorder %s10, 3
    %p135 = pnand %p133, %p134
    %p136 = pneg %p135
    // Predicated region
    $region9: #{basic_unit_forward.1} parent=5 // pred_check
      _
    $region10: #{basic_unit_forward.1} parent=5 // pred_check_branch
      %138 = sbr.rel (%p135) target = $region12
    $region11: #{basic_unit_forward.1} parent=5 // pred_region
      %s139 = ssub.s32 %s10, 1
      // Predicated region
      $region13: #{basic_unit_forward.1} parent=11 // pred_check
        %p140 = pneg %p57
      $region14: #{basic_unit_forward.1} parent=11 // pred_check_branch
        %142 = sbr.rel (%p140) target = $region16
      $region15: #{basic_unit_forward.1} parent=11 // pred_region
        _
      $region16: #{basic_unit_forward.1} parent=11 // pred_fallthru
        _
      // Predicated region
      $region17: #{basic_unit_forward.1} parent=11 // pred_check
        %p143 = pneg %p78
      $region18: #{basic_unit_forward.1} parent=11 // pred_check_branch
        %145 = sbr.rel (%p143) target = $region20
      $region19: #{basic_unit_forward.1} parent=11 // pred_region
        _
      $region20: #{basic_unit_forward.1} parent=11 // pred_fallthru
        _
      // Predicated region
      $region21: #{basic_unit_forward.1} parent=11 // pred_check
        %p146 = pneg %p99
      $region22: #{basic_unit_forward.1} parent=11 // pred_check_branch
        %148 = sbr.rel (%p146) target = $region24
      $region23: #{basic_unit_forward.1} parent=11 // pred_region
        _
      $region24: #{basic_unit_forward.1} parent=11 // pred_fallthru
        _
    $region12: #{basic_unit_forward.1} parent=5 // pred_fallthru
      _
    %p149 = scmp.lt.s32.totalorder %s10, 2
    // Predicated region
    $region25: #{basic_unit_forward.1} parent=5 // pred_check
      %p150 = pneg %p149
    $region26: #{basic_unit_forward.1} parent=5 // pred_check_branch
      %152 = sbr.rel (%p150) target = $region28
    $region27: #{basic_unit_forward.1} parent=5 // pred_region
      // Predicated region
      $region29: #{basic_unit_forward.1} parent=27 // pred_check
        %p153 = pneg %p30
      $region30: #{basic_unit_forward.1} parent=27 // pred_check_branch
        %155 = sbr.rel (%p153) target = $region32
      $region31: #{basic_unit_forward.1} parent=27 // pred_region
        %p156 = scmp.lt.s32.totalorder %s10, 1
        %s157 = scalar_select %p156, %s10, 1
        %s158 = smul.addr %s157, 32
        %s159 = smul.addr %s158, 8
        %s160 = scalar_lea.vmem %s0, %s159
      $region32: #{basic_unit_forward.1} parent=27 // pred_fallthru
        _
    $region28: #{basic_unit_forward.1} parent=5 // pred_fallthru
      _
    %p161 = scmp.le.s32.totalorder 1, %s10
    %p162 = scmp.lt.s32.totalorder %s10, 3
    %p163 = pnand %p161, %p162
    %p164 = pneg %p163
    // Predicated region
    $region33: #{basic_unit_forward.1} parent=5 // pred_check
      _
    $region34: #{basic_unit_forward.1} parent=5 // pred_check_branch
      %166 = sbr.rel (%p163) target = $region36
    $region35: #{basic_unit_forward.1} parent=5 // pred_region
      %s167 = ssub.s32 %s10, 1
      %p168 = scmp.lt.s32.totalorder %s15, 1
      %s169 = scalar_select %p168, %s15, 1
      %s170 = smul.addr %s169, 32
      %s171 = smul.addr %s170, 8
      %s172 = scalar_lea.vmem %s0, %s171
      %p173 = pneg %p36
      %p174 = pneg %p33
      %p175 = pneg %p57
      %p176 = pneg %p54
      %p177 = pneg %p78
      %p178 = pneg %p75
      %p179 = pneg %p99
      %p180 = pneg %p96
      %p181 = pneg %p125
      %p182 = pneg %p122
      %p183 = scmp.lt.s32.totalorder %s15, 1
      %s184 = scalar_select %p183, %s15, 1
      %s185 = smul.addr %s184, 32
      %s186 = smul.addr %s185, 8
      %s187 = scalar_lea.vmem %s4, %s186
      %p188 = scmp.lt.s32.totalorder %s15, 1
      %s189 = scalar_select %p188, %s15, 1
      %s190 = smul.addr %s189, 32
      %s191 = smul.addr %s190, 8
      %s192 = scalar_lea.vmem %s0, %s191
      %p193 = scmp.lt.s32.totalorder %s15, 1
      %s194 = scalar_select %p193, %s15, 1
      %s195 = smul.addr %s194, 32
      %s196 = smul.addr %s195, 8
      %s197 = scalar_lea.vmem %s4, %s196
      %v199 = vld [vmem:[%s3] sm:$0x1]
      %v200 = vld [vmem:[%s3 + $0x1] sm:$0x1]
      %v201 = vld [vmem:[%s3 + $0x2] sm:$0x1]
      %v202 = vld [vmem:[%s3 + $0x3] sm:$0x1]
      %v203 = vld [vmem:[%s192] sm:$0xff]
      %v204 = vld [vmem:[%s192 + $0x8] sm:$0xff]
      %v205 = vld [vmem:[%s192 + $0x10] sm:$0xff]
      %v206 = vld [vmem:[%s192 + $0x18] sm:$0xff]
      %v207 = vld [vmem:[%s192 + $0x20] sm:$0xff]
      %v208 = vld [vmem:[%s192 + $0x28] sm:$0xff]
      %v209 = vld [vmem:[%s192 + $0x30] sm:$0xff]
      %v210 = vld [vmem:[%s192 + $0x38] sm:$0xff]
      %v211 = vld [vmem:[%s192 + $0x40] sm:$0xff]
      %v212 = vld [vmem:[%s192 + $0x48] sm:$0xff]
      %v213 = vld [vmem:[%s192 + $0x50] sm:$0xff]
      %v214 = vld [vmem:[%s192 + $0x58] sm:$0xff]
      %v215 = vld [vmem:[%s192 + $0x60] sm:$0xff]
      %v216 = vld [vmem:[%s192 + $0x68] sm:$0xff]
      %v217 = vld [vmem:[%s192 + $0x70] sm:$0xff]
      %v218 = vld [vmem:[%s192 + $0x78] sm:$0xff]
      %v219 = vld [vmem:[%s192 + $0x80] sm:$0xff]
      %v220 = vld [vmem:[%s192 + $0x88] sm:$0xff]
      %v221 = vld [vmem:[%s192 + $0x90] sm:$0xff]
      %v222 = vld [vmem:[%s192 + $0x98] sm:$0xff]
      %v223 = vld [vmem:[%s192 + $0xa0] sm:$0xff]
      %v224 = vld [vmem:[%s192 + $0xa8] sm:$0xff]
      %v225 = vld [vmem:[%s192 + $0xb0] sm:$0xff]
      %v226 = vld [vmem:[%s192 + $0xb8] sm:$0xff]
      %v227 = vld [vmem:[%s192 + $0xc0] sm:$0xff]
      %v228 = vld [vmem:[%s192 + $0xc8] sm:$0xff]
      %v229 = vld [vmem:[%s192 + $0xd0] sm:$0xff]
      %v230 = vld [vmem:[%s192 + $0xd8] sm:$0xff]
      %v231 = vld [vmem:[%s192 + $0xe0] sm:$0xff]
      %v232 = vld [vmem:[%s192 + $0xe8] sm:$0xff]
      %v233 = vld [vmem:[%s192 + $0xf0] sm:$0xff]
      %v234 = vld [vmem:[%s192 + $0xf8] sm:$0xff]
      %235 = vst [vmem:[#allocation2] sm:$0xff] 0.0
      %236 = vst [vmem:[#allocation2 + $0x8] sm:$0xff] 0.0
      %237 = vst [vmem:[#allocation2 + $0x10] sm:$0xff] 0.0
      %238 = vst [vmem:[#allocation2 + $0x18] sm:$0xff] 0.0
      %239 = vst [vmem:[#allocation2 + $0x20] sm:$0xff] 0.0
      %240 = vst [vmem:[#allocation2 + $0x28] sm:$0xff] 0.0
      %241 = vst [vmem:[#allocation2 + $0x30] sm:$0xff] 0.0
      %242 = vst [vmem:[#allocation2 + $0x38] sm:$0xff] 0.0
      %243 = vst [vmem:[#allocation2 + $0x40] sm:$0xff] 0.0
      %244 = vst [vmem:[#allocation2 + $0x48] sm:$0xff] 0.0
      %245 = vst [vmem:[#allocation2 + $0x50] sm:$0xff] 0.0
      %246 = vst [vmem:[#allocation2 + $0x58] sm:$0xff] 0.0
      %247 = vst [vmem:[#allocation2 + $0x60] sm:$0xff] 0.0
      %248 = vst [vmem:[#allocation2 + $0x68] sm:$0xff] 0.0
      %249 = vst [vmem:[#allocation2 + $0x70] sm:$0xff] 0.0
      %250 = vst [vmem:[#allocation2 + $0x78] sm:$0xff] 0.0
      %251 = vst [vmem:[#allocation2 + $0x80] sm:$0xff] 0.0
      %252 = vst [vmem:[#allocation2 + $0x88] sm:$0xff] 0.0
      %253 = vst [vmem:[#allocation2 + $0x90] sm:$0xff] 0.0
      %254 = vst [vmem:[#allocation2 + $0x98] sm:$0xff] 0.0
      %255 = vst [vmem:[#allocation2 + $0xa0] sm:$0xff] 0.0
      %256 = vst [vmem:[#allocation2 + $0xa8] sm:$0xff] 0.0
      %257 = vst [vmem:[#allocation2 + $0xb0] sm:$0xff] 0.0
      %258 = vst [vmem:[#allocation2 + $0xb8] sm:$0xff] 0.0
      %259 = vst [vmem:[#allocation2 + $0xc0] sm:$0xff] 0.0
      %260 = vst [vmem:[#allocation2 + $0xc8] sm:$0xff] 0.0
      %261 = vst [vmem:[#allocation2 + $0xd0] sm:$0xff] 0.0
      %262 = vst [vmem:[#allocation2 + $0xd8] sm:$0xff] 0.0
      %263 = vst [vmem:[#allocation2 + $0xe0] sm:$0xff] 0.0
      %264 = vst [vmem:[#allocation2 + $0xe8] sm:$0xff] 0.0
      %265 = vst [vmem:[#allocation2 + $0xf0] sm:$0xff] 0.0
      %266 = vst [vmem:[#allocation2 + $0xf8] sm:$0xff] 0.0
      %267 = vst [vmem:[#allocation2 + $0x100] sm:$0xff] 0.0
      %268 = vst [vmem:[#allocation2 + $0x108] sm:$0xff] 0.0
      %269 = vst [vmem:[#allocation2 + $0x110] sm:$0xff] 0.0
      %270 = vst [vmem:[#allocation2 + $0x118] sm:$0xff] 0.0
      %271 = vst [vmem:[#allocation2 + $0x120] sm:$0xff] 0.0
      %272 = vst [vmem:[#allocation2 + $0x128] sm:$0xff] 0.0
      %273 = vst [vmem:[#allocation2 + $0x130] sm:$0xff] 0.0
      %274 = vst [vmem:[#allocation2 + $0x138] sm:$0xff] 0.0
      %275 = vst [vmem:[#allocation2 + $0x140] sm:$0xff] 0.0
      %v276 = vlaneseq
      %v277 = vshrl.u32 %v276, 7
      %v278 = vsub.s32 0, %v277
      %v279 = vrot.slane %v199, %v278
      %v280 = vmul.f32 %v203, %v279
      %v281 = vmul.f32 %v204, %v279
      %v282 = vmul.f32 %v205, %v279
      %v283 = vmul.f32 %v206, %v279
      %v284 = vmul.f32 %v207, %v279
      %v285 = vmul.f32 %v208, %v279
      %v286 = vmul.f32 %v209, %v279
      %v287 = vmul.f32 %v210, %v279
      %v288 = vmul.f32 %v211, %v279
      %v289 = vmul.f32 %v212, %v279
      %v290 = vmul.f32 %v213, %v279
      %v291 = vmul.f32 %v214, %v279
      %v292 = vmul.f32 %v215, %v279
      %v293 = vmul.f32 %v216, %v279
      %v294 = vmul.f32 %v217, %v279
      %v295 = vmul.f32 %v218, %v279
      %v296 = vmul.f32 %v219, %v279
      %v297 = vmul.f32 %v220, %v279
      %v298 = vmul.f32 %v221, %v279
      %v299 = vmul.f32 %v222, %v279
      %v300 = vmul.f32 %v223, %v279
      %v301 = vmul.f32 %v224, %v279
      %v302 = vmul.f32 %v225, %v279
      %v303 = vmul.f32 %v226, %v279
      %v304 = vmul.f32 %v227, %v279
      %v305 = vmul.f32 %v228, %v279
      %v306 = vmul.f32 %v229, %v279
      %v307 = vmul.f32 %v230, %v279
      %v308 = vmul.f32 %v231, %v279
      %v309 = vmul.f32 %v232, %v279
      %v310 = vmul.f32 %v233, %v279
      %v311 = vmul.f32 %v234, %v279
      %v312 = vlaneseq
      %v313 = vshrl.u32 %v312, 7
      %v314 = vsub.s32 0, %v313
      %v315 = vrot.slane %v200, %v314
      %v316 = vadd.f32 %v280, %v315
      %v317 = vadd.f32 %v281, %v315
      %v318 = vadd.f32 %v282, %v315
      %v319 = vadd.f32 %v283, %v315
      %v320 = vadd.f32 %v284, %v315
      %v321 = vadd.f32 %v285, %v315
      %v322 = vadd.f32 %v286, %v315
      %v323 = vadd.f32 %v287, %v315
      %v324 = vadd.f32 %v288, %v315
      %v325 = vadd.f32 %v289, %v315
      %v326 = vadd.f32 %v290, %v315
      %v327 = vadd.f32 %v291, %v315
      %v328 = vadd.f32 %v292, %v315
      %v329 = vadd.f32 %v293, %v315
      %v330 = vadd.f32 %v294, %v315
      %v331 = vadd.f32 %v295, %v315
      %v332 = vadd.f32 %v296, %v315
      %v333 = vadd.f32 %v297, %v315
      %v334 = vadd.f32 %v298, %v315
      %v335 = vadd.f32 %v299, %v315
      %v336 = vadd.f32 %v300, %v315
      %v337 = vadd.f32 %v301, %v315
      %v338 = vadd.f32 %v302, %v315
      %v339 = vadd.f32 %v303, %v315
      %v340 = vadd.f32 %v304, %v315
      %v341 = vadd.f32 %v305, %v315
      %v342 = vadd.f32 %v306, %v315
      %v343 = vadd.f32 %v307, %v315
      %v344 = vadd.f32 %v308, %v315
      %v345 = vadd.f32 %v309, %v315
      %v346 = vadd.f32 %v310, %v315
      %v347 = vadd.f32 %v311, %v315
      %v348 = vmax.f32 %v316, 0.0
      %v349 = vmax.f32 %v317, 0.0
      %v350 = vmax.f32 %v318, 0.0
      %v351 = vmax.f32 %v319, 0.0
      %v352 = vmax.f32 %v320, 0.0
      %v353 = vmax.f32 %v321, 0.0
      %v354 = vmax.f32 %v322, 0.0
      %v355 = vmax.f32 %v323, 0.0
      %v356 = vmax.f32 %v324, 0.0
      %v357 = vmax.f32 %v325, 0.0
      %v358 = vmax.f32 %v326, 0.0
      %v359 = vmax.f32 %v327, 0.0
      %v360 = vmax.f32 %v328, 0.0
      %v361 = vmax.f32 %v329, 0.0
      %v362 = vmax.f32 %v330, 0.0
      %v363 = vmax.f32 %v331, 0.0
      %v364 = vmax.f32 %v332, 0.0
      %v365 = vmax.f32 %v333, 0.0
      %v366 = vmax.f32 %v334, 0.0
      %v367 = vmax.f32 %v335, 0.0
      %v368 = vmax.f32 %v336, 0.0
      %v369 = vmax.f32 %v337, 0.0
      %v370 = vmax.f32 %v338, 0.0
      %v371 = vmax.f32 %v339, 0.0
      %v372 = vmax.f32 %v340, 0.0
      %v373 = vmax.f32 %v341, 0.0
      %v374 = vmax.f32 %v342, 0.0
      %v375 = vmax.f32 %v343, 0.0
      %v376 = vmax.f32 %v344, 0.0
      %v377 = vmax.f32 %v345, 0.0
      %v378 = vmax.f32 %v346, 0.0
      %v379 = vmax.f32 %v347, 0.0
      %380 = vst [vmem:[#allocation2 + $0x13] sm:$0xff] %v348
      %381 = vst [vmem:[#allocation2 + $0x1b] sm:$0xff] %v349
      %382 = vst [vmem:[#allocation2 + $0x25] sm:$0xff] %v350
      %383 = vst [vmem:[#allocation2 + $0x2d] sm:$0xff] %v351
      %384 = vst [vmem:[#allocation2 + $0x37] sm:$0xff] %v352
      %385 = vst [vmem:[#allocation2 + $0x3f] sm:$0xff] %v353
      %386 = vst [vmem:[#allocation2 + $0x49] sm:$0xff] %v354
      %387 = vst [vmem:[#allocation2 + $0x51] sm:$0xff] %v355
      %388 = vst [vmem:[#allocation2 + $0x5b] sm:$0xff] %v356
      %389 = vst [vmem:[#allocation2 + $0x63] sm:$0xff] %v357
      %390 = vst [vmem:[#allocation2 + $0x6d] sm:$0xff] %v358
      %391 = vst [vmem:[#allocation2 + $0x75] sm:$0xff] %v359
      %392 = vst [vmem:[#allocation2 + $0x7f] sm:$0xff] %v360
      %393 = vst [vmem:[#allocation2 + $0x87] sm:$0xff] %v361
      %394 = vst [vmem:[#allocation2 + $0x91] sm:$0xff] %v362
      %395 = vst [vmem:[#allocation2 + $0x99] sm:$0xff] %v363
      %396 = vst [vmem:[#allocation2 + $0xa3] sm:$0xff] %v364
      %397 = vst [vmem:[#allocation2 + $0xab] sm:$0xff] %v365
      %398 = vst [vmem:[#allocation2 + $0xb5] sm:$0xff] %v366
      %399 = vst [vmem:[#allocation2 + $0xbd] sm:$0xff] %v367
      %400 = vst [vmem:[#allocation2 + $0xc7] sm:$0xff] %v368
      %401 = vst [vmem:[#allocation2 + $0xcf] sm:$0xff] %v369
      %402 = vst [vmem:[#allocation2 + $0xd9] sm:$0xff] %v370
      %403 = vst [vmem:[#allocation2 + $0xe1] sm:$0xff] %v371
      %404 = vst [vmem:[#allocation2 + $0xeb] sm:$0xff] %v372
      %405 = vst [vmem:[#allocation2 + $0xf3] sm:$0xff] %v373
      %406 = vst [vmem:[#allocation2 + $0xfd] sm:$0xff] %v374
      %407 = vst [vmem:[#allocation2 + $0x105] sm:$0xff] %v375
      %408 = vst [vmem:[#allocation2 + $0x10f] sm:$0xff] %v376
      %409 = vst [vmem:[#allocation2 + $0x117] sm:$0xff] %v377
      %410 = vst [vmem:[#allocation2 + $0x121] sm:$0xff] %v378
      %411 = vst [vmem:[#allocation2 + $0x129] sm:$0xff] %v379
      %v412 = vld [vmem:[#allocation2] sm:$0xff]
      %v413 = vld [vmem:[#allocation2 + $0x8] sm:$0xff]
      %v414 = vld [vmem:[#allocation2 + $0x10] sm:$0xff]
      %v415 = vld [vmem:[#allocation2 + $0x18] sm:$0xff]
      %v416 = vld [vmem:[#allocation2 + $0x20] sm:$0xff]
      %v417 = vld [vmem:[#allocation2 + $0x28] sm:$0xff]
      %v418 = vld [vmem:[#allocation2 + $0x30] sm:$0xff]
      %v419 = vld [vmem:[#allocation2 + $0x38] sm:$0xff]
      %v420 = vld [vmem:[#allocation2 + $0x40] sm:$0xff]
      %v421 = vld [vmem:[#allocation2 + $0x48] sm:$0xff]
      %v422 = vld [vmem:[#allocation2 + $0x50] sm:$0xff]
      %v423 = vld [vmem:[#allocation2 + $0x58] sm:$0xff]
      %v424 = vld [vmem:[#allocation2 + $0x60] sm:$0xff]
      %v425 = vld [vmem:[#allocation2 + $0x68] sm:$0xff]
      %v426 = vld [vmem:[#allocation2 + $0x70] sm:$0xff]
      %v427 = vld [vmem:[#allocation2 + $0x78] sm:$0xff]
      %v428 = vld [vmem:[#allocation2 + $0x80] sm:$0xff]
      %v429 = vld [vmem:[#allocation2 + $0x88] sm:$0xff]
      %v430 = vld [vmem:[#allocation2 + $0x90] sm:$0xff]
      %v431 = vld [vmem:[#allocation2 + $0x98] sm:$0xff]
      %v432 = vld [vmem:[#allocation2 + $0xa0] sm:$0xff]
      %v433 = vld [vmem:[#allocation2 + $0xa8] sm:$0xff]
      %v434 = vld [vmem:[#allocation2 + $0xb0] sm:$0xff]
      %v435 = vld [vmem:[#allocation2 + $0xb8] sm:$0xff]
      %v436 = vld [vmem:[#allocation2 + $0xc0] sm:$0xff]
      %v437 = vld [vmem:[#allocation2 + $0xc8] sm:$0xff]
      %v438 = vld [vmem:[#allocation2 + $0xd0] sm:$0xff]
      %v439 = vld [vmem:[#allocation2 + $0xd8] sm:$0xff]
      %v440 = vld [vmem:[#allocation2 + $0xe0] sm:$0xff]
      %v441 = vld [vmem:[#allocation2 + $0xe8] sm:$0xff]
      %v442 = vld [vmem:[#allocation2 + $0xf0] sm:$0xff]
      %v443 = vld [vmem:[#allocation2 + $0xf8] sm:$0xff]
      %v444 = vld [vmem:[#allocation2 + $0x100] sm:$0xff]
      %v445 = vld [vmem:[#allocation2 + $0x108] sm:$0xff]
      %v446 = vld [vmem:[#allocation2 + $0x110] sm:$0xff]
      %v447 = vld [vmem:[#allocation2 + $0x118] sm:$0xff]
      %v448 = vpack.c.bf16 %v413, %v412
      %v449 = vpack.c.bf16 %v415, %v414
      %v450 = vpack.c.bf16 %v417, %v416
      %v451 = vpack.c.bf16 %v419, %v418
      %v452 = vpack.c.bf16 %v421, %v420
      %v453 = vpack.c.bf16 %v423, %v422
      %v454 = vpack.c.bf16 %v425, %v424
      %v455 = vpack.c.bf16 %v427, %v426
      %v456 = vpack.c.bf16 %v429, %v428
      %v457 = vpack.c.bf16 %v431, %v430
      %v458 = vpack.c.bf16 %v433, %v432
      %v459 = vpack.c.bf16 %v435, %v434
      %v460 = vpack.c.bf16 %v437, %v436
      %v461 = vpack.c.bf16 %v439, %v438
      %v462 = vpack.c.bf16 %v441, %v440
      %v463 = vpack.c.bf16 %v443, %v442
      %v464 = vpack.c.bf16 %v445, %v444
      %v465 = vpack.c.bf16 %v447, %v446
      %v466 = vld [vmem:[%s1] sm:$0xf]
      %v467 = vld [vmem:[%s1 + $0x4] sm:$0xf]
      %v468 = vld [vmem:[%s1 + $0x8] sm:$0xf]
      %v469 = vld [vmem:[%s1 + $0xc] sm:$0xf]
      %v470 = vld [vmem:[%s1 + $0x10] sm:$0xf]
      %v471 = vld [vmem:[%s1 + $0x14] sm:$0xf]
      %v472 = vld [vmem:[%s1 + $0x18] sm:$0xf]
      %v473 = vld [vmem:[%s1 + $0x1c] sm:$0xf]
      %v474 = vld [vmem:[%s1 + $0x20] sm:$0xf]
      %v475 = vld [vmem:[%s1 + $0x24] sm:$0xf]
      %v476 = vld [vmem:[%s1 + $0x28] sm:$0xf]
      %v477 = vld [vmem:[%s1 + $0x2c] sm:$0xf]
      %v478 = vld [vmem:[%s1 + $0x30] sm:$0xf]
      %v479 = vld [vmem:[%s1 + $0x34] sm:$0xf]
      %v480 = vld [vmem:[%s1 + $0x38] sm:$0xf]
      %v481 = vld [vmem:[%s1 + $0x3c] sm:$0xf]
      %v482 = vld [vmem:[#allocation2 + $0x1] sm:$0xff]
      %v483 = vld [vmem:[#allocation2 + $0x9] sm:$0xff]
      %v484 = vld [vmem:[#allocation2 + $0x11] sm:$0xff]
      %v485 = vld [vmem:[#allocation2 + $0x19] sm:$0xff]
      %v486 = vld [vmem:[#allocation2 + $0x21] sm:$0xff]
      %v487 = vld [vmem:[#allocation2 + $0x29] sm:$0xff]
      %v488 = vld [vmem:[#allocation2 + $0x31] sm:$0xff]
      %v489 = vld [vmem:[#allocation2 + $0x39] sm:$0xff]
      %v490 = vld [vmem:[#allocation2 + $0x41] sm:$0xff]
      %v491 = vld [vmem:[#allocation2 + $0x49] sm:$0xff]
      %v492 = vld [vmem:[#allocation2 + $0x51] sm:$0xff]
      %v493 = vld [vmem:[#allocation2 + $0x59] sm:$0xff]
      %v494 = vld [vmem:[#allocation2 + $0x61] sm:$0xff]
      %v495 = vld [vmem:[#allocation2 + $0x69] sm:$0xff]
      %v496 = vld [vmem:[#allocation2 + $0x71] sm:$0xff]
      %v497 = vld [vmem:[#allocation2 + $0x79] sm:$0xff]
      %v498 = vld [vmem:[#allocation2 + $0x81] sm:$0xff]
      %v499 = vld [vmem:[#allocation2 + $0x89] sm:$0xff]
      %v500 = vld [vmem:[#allocation2 + $0x91] sm:$0xff]
      %v501 = vld [vmem:[#allocation2 + $0x99] sm:$0xff]
      %v502 = vld [vmem:[#allocation2 + $0xa1] sm:$0xff]
      %v503 = vld [vmem:[#allocation2 + $0xa9] sm:$0xff]
      %v504 = vld [vmem:[#allocation2 + $0xb1] sm:$0xff]
      %v505 = vld [vmem:[#allocation2 + $0xb9] sm:$0xff]
      %v506 = vld [vmem:[#allocation2 + $0xc1] sm:$0xff]
      %v507 = vld [vmem:[#allocation2 + $0xc9] sm:$0xff]
      %v508 = vld [vmem:[#allocation2 + $0xd1] sm:$0xff]
      %v509 = vld [vmem:[#allocation2 + $0xd9] sm:$0xff]
      %v510 = vld [vmem:[#allocation2 + $0xe1] sm:$0xff]
      %v511 = vld [vmem:[#allocation2 + $0xe9] sm:$0xff]
      %v512 = vld [vmem:[#allocation2 + $0xf1] sm:$0xff]
      %v513 = vld [vmem:[#allocation2 + $0xf9] sm:$0xff]
      %v514 = vld [vmem:[#allocation2 + $0x101] sm:$0xff]
      %v515 = vld [vmem:[#allocation2 + $0x109] sm:$0xff]
      %v516 = vld [vmem:[#allocation2 + $0x111] sm:$0xff]
      %v517 = vld [vmem:[#allocation2 + $0x119] sm:$0xff]
      %v518 = vpack.c.bf16 %v483, %v482
      %v519 = vpack.c.bf16 %v485, %v484
      %v520 = vpack.c.bf16 %v487, %v486
      %v521 = vpack.c.bf16 %v489, %v488
      %v522 = vpack.c.bf16 %v491, %v490
      %v523 = vpack.c.bf16 %v493, %v492
      %v524 = vpack.c.bf16 %v495, %v494
      %v525 = vpack.c.bf16 %v497, %v496
      %v526 = vpack.c.bf16 %v499, %v498
      %v527 = vpack.c.bf16 %v501, %v500
      %v528 = vpack.c.bf16 %v503, %v502
      %v529 = vpack.c.bf16 %v505, %v504
      %v530 = vpack.c.bf16 %v507, %v506
      %v531 = vpack.c.bf16 %v509, %v508
      %v532 = vpack.c.bf16 %v511, %v510
      %v533 = vpack.c.bf16 %v513, %v512
      %v534 = vpack.c.bf16 %v515, %v514
      %v535 = vpack.c.bf16 %v517, %v516
      %s536 = scalar_lea.vmem %s1, 64
      %v537 = vld [vmem:[%s536] sm:$0xf]
      %v538 = vld [vmem:[%s536 + $0x4] sm:$0xf]
      %v539 = vld [vmem:[%s536 + $0x8] sm:$0xf]
      %v540 = vld [vmem:[%s536 + $0xc] sm:$0xf]
      %v541 = vld [vmem:[%s536 + $0x10] sm:$0xf]
      %v542 = vld [vmem:[%s536 + $0x14] sm:$0xf]
      %v543 = vld [vmem:[%s536 + $0x18] sm:$0xf]
      %v544 = vld [vmem:[%s536 + $0x1c] sm:$0xf]
      %v545 = vld [vmem:[%s536 + $0x20] sm:$0xf]
      %v546 = vld [vmem:[%s536 + $0x24] sm:$0xf]
      %v547 = vld [vmem:[%s536 + $0x28] sm:$0xf]
      %v548 = vld [vmem:[%s536 + $0x2c] sm:$0xf]
      %v549 = vld [vmem:[%s536 + $0x30] sm:$0xf]
      %v550 = vld [vmem:[%s536 + $0x34] sm:$0xf]
      %v551 = vld [vmem:[%s536 + $0x38] sm:$0xf]
      %v552 = vld [vmem:[%s536 + $0x3c] sm:$0xf]
      %v569 = vunpack.c.l.b16 %v537
      %v570 = vunpack.c.l.b16 %v538
      %v571 = vunpack.c.l.b16 %v539
      %v572 = vunpack.c.l.b16 %v540
      %v573 = vunpack.c.l.b16 %v541
      %v574 = vunpack.c.l.b16 %v542
      %v575 = vunpack.c.l.b16 %v543
      %v576 = vunpack.c.l.b16 %v544
      %v577 = vunpack.c.l.b16 %v545
      %v578 = vunpack.c.l.b16 %v546
      %v579 = vunpack.c.l.b16 %v547
      %v580 = vunpack.c.l.b16 %v548
      %v581 = vunpack.c.l.b16 %v549
      %v582 = vunpack.c.l.b16 %v550
      %v583 = vunpack.c.l.b16 %v551
      %v584 = vunpack.c.l.b16 %v552
      %v585 = vpack.c.b16 %v570, %v569
      %v586 = vpack.c.b16 %v572, %v571
      %v587 = vpack.c.b16 %v574, %v573
      %v588 = vpack.c.b16 %v576, %v575
      %v589 = vpack.c.b16 %v578, %v577
      %v590 = vpack.c.b16 %v580, %v579
      %v591 = vpack.c.b16 %v582, %v581
      %v592 = vpack.c.b16 %v584, %v583
      %601 = vmatprep.subr.bf16.mxu0 0
      %602 = vmatpush1.bf16.msra.mxu0 %v585
      %603 = vmatprep.subr.bf16.mxu0 0
      %604 = vmatpush1.bf16.msra.mxu0 %v586
      %605 = vmatprep.subr.bf16.mxu0 0
      %606 = vmatpush1.bf16.msra.mxu0 %v587
      %607 = vmatprep.subr.bf16.mxu0 0
      %608 = vmatpush1.bf16.msra.mxu0 %v588
      %609 = vmatprep.subr.bf16.mxu0 0
      %610 = vmatpush1.bf16.msra.mxu0 %v589
      %611 = vmatprep.subr.bf16.mxu0 0
      %612 = vmatpush1.bf16.msra.mxu0 %v590
      %613 = vmatprep.subr.bf16.mxu0 0
      %614 = vmatpush1.bf16.msra.mxu0 %v591
      %615 = vmatprep.subr.bf16.mxu0 0
      %616 = vmatpush1.bf16.msra.mxu0 %v592
      %617 = vmatprep.subr.bf16.mxu0 0
      %618 = vmatpush1.bf16.msra.mxu0 0
      %619 = vmatprep.subr.bf16.mxu0 0
      %620 = vmatpush1.bf16.msra.mxu0 0
      %621 = vmatprep.subr.bf16.mxu0 0
      %622 = vmatpush1.bf16.msra.mxu0 0
      %623 = vmatprep.subr.bf16.mxu0 0
      %624 = vmatpush1.bf16.msra.mxu0 0
      %625 = vmatprep.subr.bf16.mxu0 0
      %626 = vmatpush1.bf16.msra.mxu0 0
      %627 = vmatprep.subr.bf16.mxu0 0
      %628 = vmatpush1.bf16.msra.mxu0 0
      %629 = vmatprep.subr.bf16.mxu0 0
      %630 = vmatpush1.bf16.msra.mxu0 0
      %631 = vmatprep.subr.bf16.mxu0 0
      %632 = vmatpush1.bf16.msra.mxu0 0
      %633 = vmatprep.mubr.bf16.mxu0 0
      %634 = vmatmul.mubr.bf16.gmra.mrb[0].mxu0 %v518
      %v635 = vpop.f32.mrb[0].mxu0
      %v636 = vadd.f32 0.0, %v635
      %v637 = vpop.f32.mrb[0].mxu0
      %v638 = vpop.f32.mrb[0].mxu0
      %v639 = vadd.f32 0.0, %v638
      %v640 = vpop.f32.mrb[0].mxu0
      %641 = vmatprep.mubr.bf16.mxu0 0
      %642 = vmatmul.mubr.bf16.gmra.mrb[0].mxu0 %v519
      %v643 = vpop.f32.mrb[0].mxu0
      %v644 = vadd.f32 0.0, %v643
      %v645 = vpop.f32.mrb[0].mxu0
      %v646 = vpop.f32.mrb[0].mxu0
      %v647 = vadd.f32 0.0, %v646
      %v648 = vpop.f32.mrb[0].mxu0
      %649 = vmatprep.mubr.bf16.mxu0 0
      %650 = vmatmul.mubr.bf16.gmra.mrb[0].mxu0 %v520
      %v651 = vpop.f32.mrb[0].mxu0
      %v652 = vadd.f32 0.0, %v651
      %v653 = vpop.f32.mrb[0].mxu0
      %v654 = vpop.f32.mrb[0].mxu0
      %v655 = vadd.f32 0.0, %v654
      %v656 = vpop.f32.mrb[0].mxu0
      %657 = vmatprep.mubr.bf16.mxu0 0
      %658 = vmatmul.mubr.bf16.gmra.mrb[0].mxu0 %v521
      %v659 = vpop.f32.mrb[0].mxu0
      %v660 = vadd.f32 0.0, %v659
      %v661 = vpop.f32.mrb[0].mxu0
      %v662 = vpop.f32.mrb[0].mxu0
      %v663 = vadd.f32 0.0, %v662
      %v664 = vpop.f32.mrb[0].mxu0
      %665 = vmatprep.mubr.bf16.mxu0 0
      %666 = vmatmul.mubr.bf16.gmra.mrb[0].mxu0 %v522
      %v667 = vpop.f32.mrb[0].mxu0
      %v668 = vadd.f32 0.0, %v667
      %v669 = vpop.f32.mrb[0].mxu0
      %v670 = vpop.f32.mrb[0].mxu0
      %v671 = vadd.f32 0.0, %v670
      %v672 = vpop.f32.mrb[0].mxu0
      %673 = vmatprep.mubr.bf16.mxu0 0
      %674 = vmatmul.mubr.bf16.gmra.mrb[0].mxu0 %v523
      %v675 = vpop.f32.mrb[0].mxu0
      %v676 = vadd.f32 0.0, %v675
      %v677 = vpop.f32.mrb[0].mxu0
      %v678 = vpop.f32.mrb[0].mxu0
      %v679 = vadd.f32 0.0, %v678
      %v680 = vpop.f32.mrb[0].mxu0
      %681 = vmatprep.mubr.bf16.mxu0 0
      %682 = vmatmul.mubr.bf16.gmra.mrb[0].mxu0 %v524
      %v683 = vpop.f32.mrb[0].mxu0
      %v684 = vadd.f32 0.0, %v683
      %v685 = vpop.f32.mrb[0].mxu0
      %v686 = vpop.f32.mrb[0].mxu0
      %v687 = vadd.f32 0.0, %v686
      %v688 = vpop.f32.mrb[0].mxu0
      %689 = vmatprep.mubr.bf16.mxu0 0
      %690 = vmatmul.mubr.bf16.gmra.mrb[0].mxu0 %v525
      %v691 = vpop.f32.mrb[0].mxu0
      %v692 = vadd.f32 0.0, %v691
      %v693 = vpop.f32.mrb[0].mxu0
      %v694 = vpop.f32.mrb[0].mxu0
      %v695 = vadd.f32 0.0, %v694
      %v696 = vpop.f32.mrb[0].mxu0
      %697 = vmatprep.mubr.bf16.mxu0 0
      %698 = vmatmul.mubr.bf16.gmra.mrb[0].mxu0 %v526
      %v699 = vpop.f32.mrb[0].mxu0
      %v700 = vadd.f32 0.0, %v699
      %v701 = vpop.f32.mrb[0].mxu0
      %v702 = vpop.f32.mrb[0].mxu0
      %v703 = vadd.f32 0.0, %v702
      %v704 = vpop.f32.mrb[0].mxu0
      %705 = vmatprep.mubr.bf16.mxu0 0
      %706 = vmatmul.mubr.bf16.gmra.mrb[0].mxu0 %v527
      %v707 = vpop.f32.mrb[0].mxu0
      %v708 = vadd.f32 0.0, %v707
      %v709 = vpop.f32.mrb[0].mxu0
      %v710 = vpop.f32.mrb[0].mxu0
      %v711 = vadd.f32 0.0, %v710
      %v712 = vpop.f32.mrb[0].mxu0
      %713 = vmatprep.mubr.bf16.mxu0 0
      %714 = vmatmul.mubr.bf16.gmra.mrb[0].mxu0 %v528
      %v715 = vpop.f32.mrb[0].mxu0
      %v716 = vadd.f32 0.0, %v715
      %v717 = vpop.f32.mrb[0].mxu0
      %v718 = vpop.f32.mrb[0].mxu0
      %v719 = vadd.f32 0.0, %v718
      %v720 = vpop.f32.mrb[0].mxu0
      %721 = vmatprep.mubr.bf16.mxu0 0
      %722 = vmatmul.mubr.bf16.gmra.mrb[0].mxu0 %v529
      %v723 = vpop.f32.mrb[0].mxu0
      %v724 = vadd.f32 0.0, %v723
      %v725 = vpop.f32.mrb[0].mxu0
      %v726 = vpop.f32.mrb[0].mxu0
      %v727 = vadd.f32 0.0, %v726
      %v728 = vpop.f32.mrb[0].mxu0
      %729 = vmatprep.mubr.bf16.mxu0 0
      %730 = vmatmul.mubr.bf16.gmra.mrb[0].mxu0 %v530
      %v731 = vpop.f32.mrb[0].mxu0
      %v732 = vadd.f32 0.0, %v731
      %v733 = vpop.f32.mrb[0].mxu0
      %v734 = vpop.f32.mrb[0].mxu0
      %v735 = vadd.f32 0.0, %v734
      %v736 = vpop.f32.mrb[0].mxu0
      %737 = vmatprep.mubr.bf16.mxu0 0
      %738 = vmatmul.mubr.bf16.gmra.mrb[0].mxu0 %v531
      %v739 = vpop.f32.mrb[0].mxu0
      %v740 = vadd.f32 0.0, %v739
      %v741 = vpop.f32.mrb[0].mxu0
      %v742 = vpop.f32.mrb[0].mxu0
      %v743 = vadd.f32 0.0, %v742
      %v744 = vpop.f32.mrb[0].mxu0
      %745 = vmatprep.mubr.bf16.mxu0 0
      %746 = vmatmul.mubr.bf16.gmra.mrb[0].mxu0 %v532
      %v747 = vpop.f32.mrb[0].mxu0
      %v748 = vadd.f32 0.0, %v747
      %v749 = vpop.f32.mrb[0].mxu0
      %v750 = vpop.f32.mrb[0].mxu0
      %v751 = vadd.f32 0.0, %v750
      %v752 = vpop.f32.mrb[0].mxu0
      %753 = vmatprep.mubr.bf16.mxu0 0
      %754 = vmatmul.mubr.bf16.gmra.mrb[0].mxu0 %v533
      %v755 = vpop.f32.mrb[0].mxu0
      %v756 = vadd.f32 0.0, %v755
      %v757 = vpop.f32.mrb[0].mxu0
      %v758 = vpop.f32.mrb[0].mxu0
      %v759 = vadd.f32 0.0, %v758
      %v760 = vpop.f32.mrb[0].mxu0
      %761 = vmatprep.mubr.bf16.mxu0 0
      %762 = vmatmul.mubr.bf16.gmra.mrb[0].mxu0 %v534
      %v763 = vpop.f32.mrb[0].mxu0
      %v764 = vadd.f32 0.0, %v763
      %v765 = vpop.f32.mrb[0].mxu0
      %v766 = vpop.f32.mrb[0].mxu0
      %v767 = vadd.f32 0.0, %v766
      %v768 = vpop.f32.mrb[0].mxu0
      %769 = vmatprep.mubr.bf16.mxu0 0
      %770 = vmatmul.mubr.bf16.gmra.mrb[0].mxu0 %v535
      %v771 = vpop.f32.mrb[0].mxu0
      %v772 = vadd.f32 0.0, %v771
      %v773 = vpop.f32.mrb[0].mxu0
      %v774 = vpop.f32.mrb[0].mxu0
      %v775 = vadd.f32 0.0, %v774
      %v776 = vpop.f32.mrb[0].mxu0
      %777 = vdwg.mxu0
      %v794 = vunpack.c.l.b16 %v466
      %v795 = vunpack.c.l.b16 %v467
      %v796 = vunpack.c.l.b16 %v468
      %v797 = vunpack.c.l.b16 %v469
      %v798 = vunpack.c.l.b16 %v470
      %v799 = vunpack.c.l.b16 %v471
      %v800 = vunpack.c.l.b16 %v472
      %v801 = vunpack.c.l.b16 %v473
      %v802 = vunpack.c.l.b16 %v474
      %v803 = vunpack.c.l.b16 %v475
      %v804 = vunpack.c.l.b16 %v476
      %v805 = vunpack.c.l.b16 %v477
      %v806 = vunpack.c.l.b16 %v478
      %v807 = vunpack.c.l.b16 %v479
      %v808 = vunpack.c.l.b16 %v480
      %v809 = vunpack.c.l.b16 %v481
      %v810 = vpack.c.b16 %v795, %v794
      %v811 = vpack.c.b16 %v797, %v796
      %v812 = vpack.c.b16 %v799, %v798
      %v813 = vpack.c.b16 %v801, %v800
      %v814 = vpack.c.b16 %v803, %v802
      %v815 = vpack.c.b16 %v805, %v804
      %v816 = vpack.c.b16 %v807, %v806
      %v817 = vpack.c.b16 %v809, %v808
      %826 = vmatprep.subr.bf16.mxu0 0
      %827 = vmatpush1.bf16.msra.mxu0 %v810
      %828 = vmatprep.subr.bf16.mxu0 0
      %829 = vmatpush1.bf16.msra.mxu0 %v811
      %830 = vmatprep.subr.bf16.mxu0 0
      %831 = vmatpush1.bf16.msra.mxu0 %v812
      %832 = vmatprep.subr.bf16.mxu0 0
      %833 = vmatpush1.bf16.msra.mxu0 %v813
      %834 = vmatprep.subr.bf16.mxu0 0
      %835 = vmatpush1.bf16.msra.mxu0 %v814
      %836 = vmatprep.subr.bf16.mxu0 0
      %837 = vmatpush1.bf16.msra.mxu0 %v815
      %838 = vmatprep.subr.bf16.mxu0 0
      %839 = vmatpush1.bf16.msra.mxu0 %v816
      %840 = vmatprep.subr.bf16.mxu0 0
      %841 = vmatpush1.bf16.msra.mxu0 %v817
      %842 = vmatprep.subr.bf16.mxu0 0
      %843 = vmatpush1.bf16.msra.mxu0 0
      %844 = vmatprep.subr.bf16.mxu0 0
      %845 = vmatpush1.bf16.msra.mxu0 0
      %846 = vmatprep.subr.bf16.mxu0 0
      %847 = vmatpush1.bf16.msra.mxu0 0
      %848 = vmatprep.subr.bf16.mxu0 0
      %849 = vmatpush1.bf16.msra.mxu0 0
      %850 = vmatprep.subr.bf16.mxu0 0
      %851 = vmatpush1.bf16.msra.mxu0 0
      %852 = vmatprep.subr.bf16.mxu0 0
      %853 = vmatpush1.bf16.msra.mxu0 0
      %854 = vmatprep.subr.bf16.mxu0 0
      %855 = vmatpush1.bf16.msra.mxu0 0
      %856 = vmatprep.subr.bf16.mxu0 0
      %857 = vmatpush1.bf16.msra.mxu0 0
      %858 = vmatprep.mubr.bf16.mxu0 0
      %859 = vmatmul.mubr.bf16.gmra.mrb[0].mxu0 %v448
      %v860 = vpop.f32.mrb[0].mxu0
      %v861 = vadd.f32 %v636, %v860
      %v862 = vpop.f32.mrb[0].mxu0
      %v863 = vpop.f32.mrb[0].mxu0
      %v864 = vadd.f32 %v639, %v863
      %v865 = vpop.f32.mrb[0].mxu0
      %866 = vmatprep.mubr.bf16.mxu0 0
      %867 = vmatmul.mubr.bf16.gmra.mrb[0].mxu0 %v449
      %v868 = vpop.f32.mrb[0].mxu0
      %v869 = vadd.f32 %v644, %v868
      %v870 = vpop.f32.mrb[0].mxu0
      %v871 = vpop.f32.mrb[0].mxu0
      %v872 = vadd.f32 %v647, %v871
      %v873 = vpop.f32.mrb[0].mxu0
      %874 = vmatprep.mubr.bf16.mxu0 0
      %875 = vmatmul.mubr.bf16.gmra.mrb[0].mxu0 %v450
      %v876 = vpop.f32.mrb[0].mxu0
      %v877 = vadd.f32 %v652, %v876
      %v878 = vpop.f32.mrb[0].mxu0
      %v879 = vpop.f32.mrb[0].mxu0
      %v880 = vadd.f32 %v655, %v879
      %v881 = vpop.f32.mrb[0].mxu0
      %882 = vmatprep.mubr.bf16.mxu0 0
      %883 = vmatmul.mubr.bf16.gmra.mrb[0].mxu0 %v451
      %v884 = vpop.f32.mrb[0].mxu0
      %v885 = vadd.f32 %v660, %v884
      %v886 = vpop.f32.mrb[0].mxu0
      %v887 = vpop.f32.mrb[0].mxu0
      %v888 = vadd.f32 %v663, %v887
      %v889 = vpop.f32.mrb[0].mxu0
      %890 = vmatprep.mubr.bf16.mxu0 0
      %891 = vmatmul.mubr.bf16.gmra.mrb[0].mxu0 %v452
      %v892 = vpop.f32.mrb[0].mxu0
      %v893 = vadd.f32 %v668, %v892
      %v894 = vpop.f32.mrb[0].mxu0
      %v895 = vpop.f32.mrb[0].mxu0
      %v896 = vadd.f32 %v671, %v895
      %v897 = vpop.f32.mrb[0].mxu0
      %898 = vmatprep.mubr.bf16.mxu0 0
      %899 = vmatmul.mubr.bf16.gmra.mrb[0].mxu0 %v453
      %v900 = vpop.f32.mrb[0].mxu0
      %v901 = vadd.f32 %v676, %v900
      %v902 = vpop.f32.mrb[0].mxu0
      %v903 = vpop.f32.mrb[0].mxu0
      %v904 = vadd.f32 %v679, %v903
      %v905 = vpop.f32.mrb[0].mxu0
      %906 = vmatprep.mubr.bf16.mxu0 0
      %907 = vmatmul.mubr.bf16.gmra.mrb[0].mxu0 %v454
      %v908 = vpop.f32.mrb[0].mxu0
      %v909 = vadd.f32 %v684, %v908
      %v910 = vpop.f32.mrb[0].mxu0
      %v911 = vpop.f32.mrb[0].mxu0
      %v912 = vadd.f32 %v687, %v911
      %v913 = vpop.f32.mrb[0].mxu0
      %914 = vmatprep.mubr.bf16.mxu0 0
      %915 = vmatmul.mubr.bf16.gmra.mrb[0].mxu0 %v455
      %v916 = vpop.f32.mrb[0].mxu0
      %v917 = vadd.f32 %v692, %v916
      %v918 = vpop.f32.mrb[0].mxu0
      %v919 = vpop.f32.mrb[0].mxu0
      %v920 = vadd.f32 %v695, %v919
      %v921 = vpop.f32.mrb[0].mxu0
      %922 = vmatprep.mubr.bf16.mxu0 0
      %923 = vmatmul.mubr.bf16.gmra.mrb[0].mxu0 %v456
      %v924 = vpop.f32.mrb[0].mxu0
      %v925 = vadd.f32 %v700, %v924
      %v926 = vpop.f32.mrb[0].mxu0
      %v927 = vpop.f32.mrb[0].mxu0
      %v928 = vadd.f32 %v703, %v927
      %v929 = vpop.f32.mrb[0].mxu0
      %930 = vmatprep.mubr.bf16.mxu0 0
      %931 = vmatmul.mubr.bf16.gmra.mrb[0].mxu0 %v457
      %v932 = vpop.f32.mrb[0].mxu0
      %v933 = vadd.f32 %v708, %v932
      %v934 = vpop.f32.mrb[0].mxu0
      %v935 = vpop.f32.mrb[0].mxu0
      %v936 = vadd.f32 %v711, %v935
      %v937 = vpop.f32.mrb[0].mxu0
      %938 = vmatprep.mubr.bf16.mxu0 0
      %939 = vmatmul.mubr.bf16.gmra.mrb[0].mxu0 %v458
      %v940 = vpop.f32.mrb[0].mxu0
      %v941 = vadd.f32 %v716, %v940
      %v942 = vpop.f32.mrb[0].mxu0
      %v943 = vpop.f32.mrb[0].mxu0
      %v944 = vadd.f32 %v719, %v943
      %v945 = vpop.f32.mrb[0].mxu0
      %946 = vmatprep.mubr.bf16.mxu0 0
      %947 = vmatmul.mubr.bf16.gmra.mrb[0].mxu0 %v459
      %v948 = vpop.f32.mrb[0].mxu0
      %v949 = vadd.f32 %v724, %v948
      %v950 = vpop.f32.mrb[0].mxu0
      %v951 = vpop.f32.mrb[0].mxu0
      %v952 = vadd.f32 %v727, %v951
      %v953 = vpop.f32.mrb[0].mxu0
      %954 = vmatprep.mubr.bf16.mxu0 0
      %955 = vmatmul.mubr.bf16.gmra.mrb[0].mxu0 %v460
      %v956 = vpop.f32.mrb[0].mxu0
      %v957 = vadd.f32 %v732, %v956
      %v958 = vpop.f32.mrb[0].mxu0
      %v959 = vpop.f32.mrb[0].mxu0
      %v960 = vadd.f32 %v735, %v959
      %v961 = vpop.f32.mrb[0].mxu0
      %962 = vmatprep.mubr.bf16.mxu0 0
      %963 = vmatmul.mubr.bf16.gmra.mrb[0].mxu0 %v461
      %v964 = vpop.f32.mrb[0].mxu0
      %v965 = vadd.f32 %v740, %v964
      %v966 = vpop.f32.mrb[0].mxu0
      %v967 = vpop.f32.mrb[0].mxu0
      %v968 = vadd.f32 %v743, %v967
      %v969 = vpop.f32.mrb[0].mxu0
      %970 = vmatprep.mubr.bf16.mxu0 0
      %971 = vmatmul.mubr.bf16.gmra.mrb[0].mxu0 %v462
      %v972 = vpop.f32.mrb[0].mxu0
      %v973 = vadd.f32 %v748, %v972
      %v974 = vpop.f32.mrb[0].mxu0
      %v975 = vpop.f32.mrb[0].mxu0
      %v976 = vadd.f32 %v751, %v975
      %v977 = vpop.f32.mrb[0].mxu0
      %978 = vmatprep.mubr.bf16.mxu0 0
      %979 = vmatmul.mubr.bf16.gmra.mrb[0].mxu0 %v463
      %v980 = vpop.f32.mrb[0].mxu0
      %v981 = vadd.f32 %v756, %v980
      %v982 = vpop.f32.mrb[0].mxu0
      %v983 = vpop.f32.mrb[0].mxu0
      %v984 = vadd.f32 %v759, %v983
      %v985 = vpop.f32.mrb[0].mxu0
      %986 = vmatprep.mubr.bf16.mxu0 0
      %987 = vmatmul.mubr.bf16.gmra.mrb[0].mxu0 %v464
      %v988 = vpop.f32.mrb[0].mxu0
      %v989 = vadd.f32 %v764, %v988
      %v990 = vpop.f32.mrb[0].mxu0
      %v991 = vpop.f32.mrb[0].mxu0
      %v992 = vadd.f32 %v767, %v991
      %v993 = vpop.f32.mrb[0].mxu0
      %994 = vmatprep.mubr.bf16.mxu0 0
      %995 = vmatmul.mubr.bf16.gmra.mrb[0].mxu0 %v465
      %v996 = vpop.f32.mrb[0].mxu0
      %v997 = vadd.f32 %v772, %v996
      %v998 = vpop.f32.mrb[0].mxu0
      %v999 = vpop.f32.mrb[0].mxu0
      %v1000 = vadd.f32 %v775, %v999
      %v1001 = vpop.f32.mrb[0].mxu0
      %1002 = vdwg.mxu0
      %v1003 = vld [vmem:[#allocation2 + $0x2] sm:$0xff]
      %v1004 = vld [vmem:[#allocation2 + $0xa] sm:$0xff]
      %v1005 = vld [vmem:[#allocation2 + $0x12] sm:$0xff]
      %v1006 = vld [vmem:[#allocation2 + $0x1a] sm:$0xff]
      %v1007 = vld [vmem:[#allocation2 + $0x22] sm:$0xff]
      %v1008 = vld [vmem:[#allocation2 + $0x2a] sm:$0xff]
      %v1009 = vld [vmem:[#allocation2 + $0x32] sm:$0xff]
      %v1010 = vld [vmem:[#allocation2 + $0x3a] sm:$0xff]
      %v1011 = vld [vmem:[#allocation2 + $0x42] sm:$0xff]
      %v1012 = vld [vmem:[#allocation2 + $0x4a] sm:$0xff]
      %v1013 = vld [vmem:[#allocation2 + $0x52] sm:$0xff]
      %v1014 = vld [vmem:[#allocation2 + $0x5a] sm:$0xff]
      %v1015 = vld [vmem:[#allocation2 + $0x62] sm:$0xff]
      %v1016 = vld [vmem:[#allocation2 + $0x6a] sm:$0xff]
      %v1017 = vld [vmem:[#allocation2 + $0x72] sm:$0xff]
      %v1018 = vld [vmem:[#allocation2 + $0x7a] sm:$0xff]
      %v1019 = vld [vmem:[#allocation2 + $0x82] sm:$0xff]
      %v1020 = vld [vmem:[#allocation2 + $0x8a] sm:$0xff]
      %v1021 = vld [vmem:[#allocation2 + $0x92] sm:$0xff]
      %v1022 = vld [vmem:[#allocation2 + $0x9a] sm:$0xff]
      %v1023 = vld [vmem:[#allocation2 + $0xa2] sm:$0xff]
      %v1024 = vld [vmem:[#allocation2 + $0xaa] sm:$0xff]
      %v1025 = vld [vmem:[#allocation2 + $0xb2] sm:$0xff]
      %v1026 = vld [vmem:[#allocation2 + $0xba] sm:$0xff]
      %v1027 = vld [vmem:[#allocation2 + $0xc2] sm:$0xff]
      %v1028 = vld [vmem:[#allocation2 + $0xca] sm:$0xff]
      %v1029 = vld [vmem:[#allocation2 + $0xd2] sm:$0xff]
      %v1030 = vld [vmem:[#allocation2 + $0xda] sm:$0xff]
      %v1031 = vld [vmem:[#allocation2 + $0xe2] sm:$0xff]
      %v1032 = vld [vmem:[#allocation2 + $0xea] sm:$0xff]
      %v1033 = vld [vmem:[#allocation2 + $0xf2] sm:$0xff]
      %v1034 = vld [vmem:[#allocation2 + $0xfa] sm:$0xff]
      %v1035 = vld [vmem:[#allocation2 + $0x102] sm:$0xff]
      %v1036 = vld [vmem:[#allocation2 + $0x10a] sm:$0xff]
      %v1037 = vld [vmem:[#allocation2 + $0x112] sm:$0xff]
      %v1038 = vld [vmem:[#allocation2 + $0x11a] sm:$0xff]
      %v1039 = vpack.c.bf16 %v1004, %v1003
      %v1040 = vpack.c.bf16 %v1006, %v1005
      %v1041 = vpack.c.bf16 %v1008, %v1007
      %v1042 = vpack.c.bf16 %v1010, %v1009
      %v1043 = vpack.c.bf16 %v1012, %v1011
      %v1044 = vpack.c.bf16 %v1014, %v1013
      %v1045 = vpack.c.bf16 %v1016, %v1015
      %v1046 = vpack.c.bf16 %v1018, %v1017
      %v1047 = vpack.c.bf16 %v1020, %v1019
      %v1048 = vpack.c.bf16 %v1022, %v1021
      %v1049 = vpack.c.bf16 %v1024, %v1023
      %v1050 = vpack.c.bf16 %v1026, %v1025
      %v1051 = vpack.c.bf16 %v1028, %v1027
      %v1052 = vpack.c.bf16 %v1030, %v1029
      %v1053 = vpack.c.bf16 %v1032, %v1031
      %v1054 = vpack.c.bf16 %v1034, %v1033
      %v1055 = vpack.c.bf16 %v1036, %v1035
      %v1056 = vpack.c.bf16 %v1038, %v1037
      %s1057 = scalar_lea.vmem %s1, 128
      %v1058 = vld [vmem:[%s1057] sm:$0xf]
      %v1059 = vld [vmem:[%s1057 + $0x4] sm:$0xf]
      %v1060 = vld [vmem:[%s1057 + $0x8] sm:$0xf]
      %v1061 = vld [vmem:[%s1057 + $0xc] sm:$0xf]
      %v1062 = vld [vmem:[%s1057 + $0x10] sm:$0xf]
      %v1063 = vld [vmem:[%s1057 + $0x14] sm:$0xf]
      %v1064 = vld [vmem:[%s1057 + $0x18] sm:$0xf]
      %v1065 = vld [vmem:[%s1057 + $0x1c] sm:$0xf]
      %v1066 = vld [vmem:[%s1057 + $0x20] sm:$0xf]
      %v1067 = vld [vmem:[%s1057 + $0x24] sm:$0xf]
      %v1068 = vld [vmem:[%s1057 + $0x28] sm:$0xf]
      %v1069 = vld [vmem:[%s1057 + $0x2c] sm:$0xf]
      %v1070 = vld [vmem:[%s1057 + $0x30] sm:$0xf]
      %v1071 = vld [vmem:[%s1057 + $0x34] sm:$0xf]
      %v1072 = vld [vmem:[%s1057 + $0x38] sm:$0xf]
      %v1073 = vld [vmem:[%s1057 + $0x3c] sm:$0xf]
      %v1090 = vunpack.c.l.b16 %v1058
      %v1091 = vunpack.c.l.b16 %v1059
      %v1092 = vunpack.c.l.b16 %v1060
      %v1093 = vunpack.c.l.b16 %v1061
      %v1094 = vunpack.c.l.b16 %v1062
      %v1095 = vunpack.c.l.b16 %v1063
      %v1096 = vunpack.c.l.b16 %v1064
      %v1097 = vunpack.c.l.b16 %v1065
      %v1098 = vunpack.c.l.b16 %v1066
      %v1099 = vunpack.c.l.b16 %v1067
      %v1100 = vunpack.c.l.b16 %v1068
      %v1101 = vunpack.c.l.b16 %v1069
      %v1102 = vunpack.c.l.b16 %v1070
      %v1103 = vunpack.c.l.b16 %v1071
      %v1104 = vunpack.c.l.b16 %v1072
      %v1105 = vunpack.c.l.b16 %v1073
      %v1106 = vpack.c.b16 %v1091, %v1090
      %v1107 = vpack.c.b16 %v1093, %v1092
      %v1108 = vpack.c.b16 %v1095, %v1094
      %v1109 = vpack.c.b16 %v1097, %v1096
      %v1110 = vpack.c.b16 %v1099, %v1098
      %v1111 = vpack.c.b16 %v1101, %v1100
      %v1112 = vpack.c.b16 %v1103, %v1102
      %v1113 = vpack.c.b16 %v1105, %v1104
      %1122 = vmatprep.subr.bf16.mxu0 0
      %1123 = vmatpush1.bf16.msra.mxu0 %v1106
      %1124 = vmatprep.subr.bf16.mxu0 0
      %1125 = vmatpush1.bf16.msra.mxu0 %v1107
      %1126 = vmatprep.subr.bf16.mxu0 0
      %1127 = vmatpush1.bf16.msra.mxu0 %v1108
      %1128 = vmatprep.subr.bf16.mxu0 0
      %1129 = vmatpush1.bf16.msra.mxu0 %v1109
      %1130 = vmatprep.subr.bf16.mxu0 0
      %1131 = vmatpush1.bf16.msra.mxu0 %v1110
      %1132 = vmatprep.subr.bf16.mxu0 0
      %1133 = vmatpush1.bf16.msra.mxu0 %v1111
      %1134 = vmatprep.subr.bf16.mxu0 0
      %1135 = vmatpush1.bf16.msra.mxu0 %v1112
      %1136 = vmatprep.subr.bf16.mxu0 0
      %1137 = vmatpush1.bf16.msra.mxu0 %v1113
      %1138 = vmatprep.subr.bf16.mxu0 0
      %1139 = vmatpush1.bf16.msra.mxu0 0
      %1140 = vmatprep.subr.bf16.mxu0 0
      %1141 = vmatpush1.bf16.msra.mxu0 0
      %1142 = vmatprep.subr.bf16.mxu0 0
      %1143 = vmatpush1.bf16.msra.mxu0 0
      %1144 = vmatprep.subr.bf16.mxu0 0
      %1145 = vmatpush1.bf16.msra.mxu0 0
      %1146 = vmatprep.subr.bf16.mxu0 0
      %1147 = vmatpush1.bf16.msra.mxu0 0
      %1148 = vmatprep.subr.bf16.mxu0 0
      %1149 = vmatpush1.bf16.msra.mxu0 0
      %1150 = vmatprep.subr.bf16.mxu0 0
      %1151 = vmatpush1.bf16.msra.mxu0 0
      %1152 = vmatprep.subr.bf16.mxu0 0
      %1153 = vmatpush1.bf16.msra.mxu0 0
      %1154 = vmatprep.mubr.bf16.mxu0 0
      %1155 = vmatmul.mubr.bf16.gmra.mrb[0].mxu0 %v1039
      %v1156 = vpop.f32.mrb[0].mxu0
      %v1157 = vadd.f32 0.0, %v1156
      %v1158 = vpop.f32.mrb[0].mxu0
      %v1159 = vpop.f32.mrb[0].mxu0
      %v1160 = vadd.f32 0.0, %v1159
      %v1161 = vpop.f32.mrb[0].mxu0
      %1162 = vmatprep.mubr.bf16.mxu0 0
      %1163 = vmatmul.mubr.bf16.gmra.mrb[0].mxu0 %v1040
      %v1164 = vpop.f32.mrb[0].mxu0
      %v1165 = vadd.f32 0.0, %v1164
      %v1166 = vpop.f32.mrb[0].mxu0
      %v1167 = vpop.f32.mrb[0].mxu0
      %v1168 = vadd.f32 0.0, %v1167
      %v1169 = vpop.f32.mrb[0].mxu0
      %1170 = vmatprep.mubr.bf16.mxu0 0
      %1171 = vmatmul.mubr.bf16.gmra.mrb[0].mxu0 %v1041
      %v1172 = vpop.f32.mrb[0].mxu0
      %v1173 = vadd.f32 0.0, %v1172
      %v1174 = vpop.f32.mrb[0].mxu0
      %v1175 = vpop.f32.mrb[0].mxu0
      %v1176 = vadd.f32 0.0, %v1175
      %v1177 = vpop.f32.mrb[0].mxu0
      %1178 = vmatprep.mubr.bf16.mxu0 0
      %1179 = vmatmul.mubr.bf16.gmra.mrb[0].mxu0 %v1042
      %v1180 = vpop.f32.mrb[0].mxu0
      %v1181 = vadd.f32 0.0, %v1180
      %v1182 = vpop.f32.mrb[0].mxu0
      %v1183 = vpop.f32.mrb[0].mxu0
      %v1184 = vadd.f32 0.0, %v1183
      %v1185 = vpop.f32.mrb[0].mxu0
      %1186 = vmatprep.mubr.bf16.mxu0 0
      %1187 = vmatmul.mubr.bf16.gmra.mrb[0].mxu0 %v1043
      %v1188 = vpop.f32.mrb[0].mxu0
      %v1189 = vadd.f32 0.0, %v1188
      %v1190 = vpop.f32.mrb[0].mxu0
      %v1191 = vpop.f32.mrb[0].mxu0
      %v1192 = vadd.f32 0.0, %v1191
      %v1193 = vpop.f32.mrb[0].mxu0
      %1194 = vmatprep.mubr.bf16.mxu0 0
      %1195 = vmatmul.mubr.bf16.gmra.mrb[0].mxu0 %v1044
      %v1196 = vpop.f32.mrb[0].mxu0
      %v1197 = vadd.f32 0.0, %v1196
      %v1198 = vpop.f32.mrb[0].mxu0
      %v1199 = vpop.f32.mrb[0].mxu0
      %v1200 = vadd.f32 0.0, %v1199
      %v1201 = vpop.f32.mrb[0].mxu0
      %1202 = vmatprep.mubr.bf16.mxu0 0
      %1203 = vmatmul.mubr.bf16.gmra.mrb[0].mxu0 %v1045
      %v1204 = vpop.f32.mrb[0].mxu0
      %v1205 = vadd.f32 0.0, %v1204
      %v1206 = vpop.f32.mrb[0].mxu0
      %v1207 = vpop.f32.mrb[0].mxu0
      %v1208 = vadd.f32 0.0, %v1207
      %v1209 = vpop.f32.mrb[0].mxu0
      %1210 = vmatprep.mubr.bf16.mxu0 0
      %1211 = vmatmul.mubr.bf16.gmra.mrb[0].mxu0 %v1046
      %v1212 = vpop.f32.mrb[0].mxu0
      %v1213 = vadd.f32 0.0, %v1212
      %v1214 = vpop.f32.mrb[0].mxu0
      %v1215 = vpop.f32.mrb[0].mxu0
      %v1216 = vadd.f32 0.0, %v1215
      %v1217 = vpop.f32.mrb[0].mxu0
      %1218 = vmatprep.mubr.bf16.mxu0 0
      %1219 = vmatmul.mubr.bf16.gmra.mrb[0].mxu0 %v1047
      %v1220 = vpop.f32.mrb[0].mxu0
      %v1221 = vadd.f32 0.0, %v1220
      %v1222 = vpop.f32.mrb[0].mxu0
      %v1223 = vpop.f32.mrb[0].mxu0
      %v1224 = vadd.f32 0.0, %v1223
      %v1225 = vpop.f32.mrb[0].mxu0
      %1226 = vmatprep.mubr.bf16.mxu0 0
      %1227 = vmatmul.mubr.bf16.gmra.mrb[0].mxu0 %v1048
      %v1228 = vpop.f32.mrb[0].mxu0
      %v1229 = vadd.f32 0.0, %v1228
      %v1230 = vpop.f32.mrb[0].mxu0
      %v1231 = vpop.f32.mrb[0].mxu0
      %v1232 = vadd.f32 0.0, %v1231
      %v1233 = vpop.f32.mrb[0].mxu0
      %1234 = vmatprep.mubr.bf16.mxu0 0
      %1235 = vmatmul.mubr.bf16.gmra.mrb[0].mxu0 %v1049
      %v1236 = vpop.f32.mrb[0].mxu0
      %v1237 = vadd.f32 0.0, %v1236
      %v1238 = vpop.f32.mrb[0].mxu0
      %v1239 = vpop.f32.mrb[0].mxu0
      %v1240 = vadd.f32 0.0, %v1239
      %v1241 = vpop.f32.mrb[0].mxu0
      %1242 = vmatprep.mubr.bf16.mxu0 0
      %1243 = vmatmul.mubr.bf16.gmra.mrb[0].mxu0 %v1050
      %v1244 = vpop.f32.mrb[0].mxu0
      %v1245 = vadd.f32 0.0, %v1244
      %v1246 = vpop.f32.mrb[0].mxu0
      %v1247 = vpop.f32.mrb[0].mxu0
      %v1248 = vadd.f32 0.0, %v1247
      %v1249 = vpop.f32.mrb[0].mxu0
      %1250 = vmatprep.mubr.bf16.mxu0 0
      %1251 = vmatmul.mubr.bf16.gmra.mrb[0].mxu0 %v1051
      %v1252 = vpop.f32.mrb[0].mxu0
      %v1253 = vadd.f32 0.0, %v1252
      %v1254 = vpop.f32.mrb[0].mxu0
      %v1255 = vpop.f32.mrb[0].mxu0
      %v1256 = vadd.f32 0.0, %v1255
      %v1257 = vpop.f32.mrb[0].mxu0
      %1258 = vmatprep.mubr.bf16.mxu0 0
      %1259 = vmatmul.mubr.bf16.gmra.mrb[0].mxu0 %v1052
      %v1260 = vpop.f32.mrb[0].mxu0
      %v1261 = vadd.f32 0.0, %v1260
      %v1262 = vpop.f32.mrb[0].mxu0
      %v1263 = vpop.f32.mrb[0].mxu0
      %v1264 = vadd.f32 0.0, %v1263
      %v1265 = vpop.f32.mrb[0].mxu0
      %1266 = vmatprep.mubr.bf16.mxu0 0
      %1267 = vmatmul.mubr.bf16.gmra.mrb[0].mxu0 %v1053
      %v1268 = vpop.f32.mrb[0].mxu0
      %v1269 = vadd.f32 0.0, %v1268
      %v1270 = vpop.f32.mrb[0].mxu0
      %v1271 = vpop.f32.mrb[0].mxu0
      %v1272 = vadd.f32 0.0, %v1271
      %v1273 = vpop.f32.mrb[0].mxu0
      %1274 = vmatprep.mubr.bf16.mxu0 0
      %1275 = vmatmul.mubr.bf16.gmra.mrb[0].mxu0 %v1054
      %v1276 = vpop.f32.mrb[0].mxu0
      %v1277 = vadd.f32 0.0, %v1276
      %v1278 = vpop.f32.mrb[0].mxu0
      %v1279 = vpop.f32.mrb[0].mxu0
      %v1280 = vadd.f32 0.0, %v1279
      %v1281 = vpop.f32.mrb[0].mxu0
      %1282 = vmatprep.mubr.bf16.mxu0 0
      %1283 = vmatmul.mubr.bf16.gmra.mrb[0].mxu0 %v1055
      %v1284 = vpop.f32.mrb[0].mxu0
      %v1285 = vadd.f32 0.0, %v1284
      %v1286 = vpop.f32.mrb[0].mxu0
      %v1287 = vpop.f32.mrb[0].mxu0
      %v1288 = vadd.f32 0.0, %v1287
      %v1289 = vpop.f32.mrb[0].mxu0
      %1290 = vmatprep.mubr.bf16.mxu0 0
      %1291 = vmatmul.mubr.bf16.gmra.mrb[0].mxu0 %v1056
      %v1292 = vpop.f32.mrb[0].mxu0
      %v1293 = vadd.f32 0.0, %v1292
      %v1294 = vpop.f32.mrb[0].mxu0
      %v1295 = vpop.f32.mrb[0].mxu0
      %v1296 = vadd.f32 0.0, %v1295
      %v1297 = vpop.f32.mrb[0].mxu0
      %1298 = vdwg.mxu0
      %v1299 = vadd.f32 %v861, %v1157
      %v1300 = vadd.f32 %v864, %v1160
      %v1301 = vadd.f32 %v869, %v1165
      %v1302 = vadd.f32 %v872, %v1168
      %v1303 = vadd.f32 %v877, %v1173
      %v1304 = vadd.f32 %v880, %v1176
      %v1305 = vadd.f32 %v885, %v1181
      %v1306 = vadd.f32 %v888, %v1184
      %v1307 = vadd.f32 %v893, %v1189
      %v1308 = vadd.f32 %v896, %v1192
      %v1309 = vadd.f32 %v901, %v1197
      %v1310 = vadd.f32 %v904, %v1200
      %v1311 = vadd.f32 %v909, %v1205
      %v1312 = vadd.f32 %v912, %v1208
      %v1313 = vadd.f32 %v917, %v1213
      %v1314 = vadd.f32 %v920, %v1216
      %v1315 = vadd.f32 %v925, %v1221
      %v1316 = vadd.f32 %v928, %v1224
      %v1317 = vadd.f32 %v933, %v1229
      %v1318 = vadd.f32 %v936, %v1232
      %v1319 = vadd.f32 %v941, %v1237
      %v1320 = vadd.f32 %v944, %v1240
      %v1321 = vadd.f32 %v949, %v1245
      %v1322 = vadd.f32 %v952, %v1248
      %v1323 = vadd.f32 %v957, %v1253
      %v1324 = vadd.f32 %v960, %v1256
      %v1325 = vadd.f32 %v965, %v1261
      %v1326 = vadd.f32 %v968, %v1264
      %v1327 = vadd.f32 %v973, %v1269
      %v1328 = vadd.f32 %v976, %v1272
      %v1329 = vadd.f32 %v981, %v1277
      %v1330 = vadd.f32 %v984, %v1280
      %v1331 = vadd.f32 %v989, %v1285
      %v1332 = vadd.f32 %v992, %v1288
      %v1333 = vadd.f32 %v997, %v1293
      %v1334 = vadd.f32 %v1000, %v1296
      %v1335 = vld [vmem:[#allocation2 + $0x12] sm:$0xff]
      %v1336 = vld [vmem:[#allocation2 + $0x1a] sm:$0xff]
      %v1337 = vld [vmem:[#allocation2 + $0x22] sm:$0xff]
      %v1338 = vld [vmem:[#allocation2 + $0x2a] sm:$0xff]
      %v1339 = vld [vmem:[#allocation2 + $0x32] sm:$0xff]
      %v1340 = vld [vmem:[#allocation2 + $0x3a] sm:$0xff]
      %v1341 = vld [vmem:[#allocation2 + $0x42] sm:$0xff]
      %v1342 = vld [vmem:[#allocation2 + $0x4a] sm:$0xff]
      %v1343 = vld [vmem:[#allocation2 + $0x52] sm:$0xff]
      %v1344 = vld [vmem:[#allocation2 + $0x5a] sm:$0xff]
      %v1345 = vld [vmem:[#allocation2 + $0x62] sm:$0xff]
      %v1346 = vld [vmem:[#allocation2 + $0x6a] sm:$0xff]
      %v1347 = vld [vmem:[#allocation2 + $0x72] sm:$0xff]
      %v1348 = vld [vmem:[#allocation2 + $0x7a] sm:$0xff]
      %v1349 = vld [vmem:[#allocation2 + $0x82] sm:$0xff]
      %v1350 = vld [vmem:[#allocation2 + $0x8a] sm:$0xff]
      %v1351 = vld [vmem:[#allocation2 + $0x92] sm:$0xff]
      %v1352 = vld [vmem:[#allocation2 + $0x9a] sm:$0xff]
      %v1353 = vld [vmem:[#allocation2 + $0xa2] sm:$0xff]
      %v1354 = vld [vmem:[#allocation2 + $0xaa] sm:$0xff]
      %v1355 = vld [vmem:[#allocation2 + $0xb2] sm:$0xff]
      %v1356 = vld [vmem:[#allocation2 + $0xba] sm:$0xff]
      %v1357 = vld [vmem:[#allocation2 + $0xc2] sm:$0xff]
      %v1358 = vld [vmem:[#allocation2 + $0xca] sm:$0xff]
      %v1359 = vld [vmem:[#allocation2 + $0xd2] sm:$0xff]
      %v1360 = vld [vmem:[#allocation2 + $0xda] sm:$0xff]
      %v1361 = vld [vmem:[#allocation2 + $0xe2] sm:$0xff]
      %v1362 = vld [vmem:[#allocation2 + $0xea] sm:$0xff]
      %v1363 = vld [vmem:[#allocation2 + $0xf2] sm:$0xff]
      %v1364 = vld [vmem:[#allocation2 + $0xfa] sm:$0xff]
      %v1365 = vld [vmem:[#allocation2 + $0x102] sm:$0xff]
      %v1366 = vld [vmem:[#allocation2 + $0x10a] sm:$0xff]
      %v1367 = vld [vmem:[#allocation2 + $0x112] sm:$0xff]
      %v1368 = vld [vmem:[#allocation2 + $0x11a] sm:$0xff]
      %v1369 = vld [vmem:[#allocation2 + $0x122] sm:$0xff]
      %v1370 = vld [vmem:[#allocation2 + $0x12a] sm:$0xff]
      %v1371 = vpack.c.bf16 %v1336, %v1335
      %v1372 = vpack.c.bf16 %v1338, %v1337
      %v1373 = vpack.c.bf16 %v1340, %v1339
      %v1374 = vpack.c.bf16 %v1342, %v1341
      %v1375 = vpack.c.bf16 %v1344, %v1343
      %v1376 = vpack.c.bf16 %v1346, %v1345
      %v1377 = vpack.c.bf16 %v1348, %v1347
      %v1378 = vpack.c.bf16 %v1350, %v1349
      %v1379 = vpack.c.bf16 %v1352, %v1351
      %v1380 = vpack.c.bf16 %v1354, %v1353
      %v1381 = vpack.c.bf16 %v1356, %v1355
      %v1382 = vpack.c.bf16 %v1358, %v1357
      %v1383 = vpack.c.bf16 %v1360, %v1359
      %v1384 = vpack.c.bf16 %v1362, %v1361
      %v1385 = vpack.c.bf16 %v1364, %v1363
      %v1386 = vpack.c.bf16 %v1366, %v1365
      %v1387 = vpack.c.bf16 %v1368, %v1367
      %v1388 = vpack.c.bf16 %v1370, %v1369
      %s1389 = scalar_lea.vmem %s1, 192
      %v1390 = vld [vmem:[%s1389] sm:$0xf]
      %v1391 = vld [vmem:[%s1389 + $0x4] sm:$0xf]
      %v1392 = vld [vmem:[%s1389 + $0x8] sm:$0xf]
      %v1393 = vld [vmem:[%s1389 + $0xc] sm:$0xf]
      %v1394 = vld [vmem:[%s1389 + $0x10] sm:$0xf]
      %v1395 = vld [vmem:[%s1389 + $0x14] sm:$0xf]
      %v1396 = vld [vmem:[%s1389 + $0x18] sm:$0xf]
      %v1397 = vld [vmem:[%s1389 + $0x1c] sm:$0xf]
      %v1398 = vld [vmem:[%s1389 + $0x20] sm:$0xf]
      %v1399 = vld [vmem:[%s1389 + $0x24] sm:$0xf]
      %v1400 = vld [vmem:[%s1389 + $0x28] sm:$0xf]
      %v1401 = vld [vmem:[%s1389 + $0x2c] sm:$0xf]
      %v1402 = vld [vmem:[%s1389 + $0x30] sm:$0xf]
      %v1403 = vld [vmem:[%s1389 + $0x34] sm:$0xf]
      %v1404 = vld [vmem:[%s1389 + $0x38] sm:$0xf]
      %v1405 = vld [vmem:[%s1389 + $0x3c] sm:$0xf]
      %v1422 = vunpack.c.l.b16 %v1390
      %v1423 = vunpack.c.l.b16 %v1391
      %v1424 = vunpack.c.l.b16 %v1392
      %v1425 = vunpack.c.l.b16 %v1393
      %v1426 = vunpack.c.l.b16 %v1394
      %v1427 = vunpack.c.l.b16 %v1395
      %v1428 = vunpack.c.l.b16 %v1396
      %v1429 = vunpack.c.l.b16 %v1397
      %v1430 = vunpack.c.l.b16 %v1398
      %v1431 = vunpack.c.l.b16 %v1399
      %v1432 = vunpack.c.l.b16 %v1400
      %v1433 = vunpack.c.l.b16 %v1401
      %v1434 = vunpack.c.l.b16 %v1402
      %v1435 = vunpack.c.l.b16 %v1403
      %v1436 = vunpack.c.l.b16 %v1404
      %v1437 = vunpack.c.l.b16 %v1405
      %v1438 = vpack.c.b16 %v1423, %v1422
      %v1439 = vpack.c.b16 %v1425, %v1424
      %v1440 = vpack.c.b16 %v1427, %v1426
      %v1441 = vpack.c.b16 %v1429, %v1428
      %v1442 = vpack.c.b16 %v1431, %v1430
      %v1443 = vpack.c.b16 %v1433, %v1432
      %v1444 = vpack.c.b16 %v1435, %v1434
      %v1445 = vpack.c.b16 %v1437, %v1436
      %1454 = vmatprep.subr.bf16.mxu0 0
      %1455 = vmatpush1.bf16.msra.mxu0 %v1438
      %1456 = vmatprep.subr.bf16.mxu0 0
      %1457 = vmatpush1.bf16.msra.mxu0 %v1439
      %1458 = vmatprep.subr.bf16.mxu0 0
      %1459 = vmatpush1.bf16.msra.mxu0 %v1440
      %1460 = vmatprep.subr.bf16.mxu0 0
      %1461 = vmatpush1.bf16.msra.mxu0 %v1441
      %1462 = vmatprep.subr.bf16.mxu0 0
      %1463 = vmatpush1.bf16.msra.mxu0 %v1442
      %1464 = vmatprep.subr.bf16.mxu0 0
      %1465 = vmatpush1.bf16.msra.mxu0 %v1443
      %1466 = vmatprep.subr.bf16.mxu0 0
      %1467 = vmatpush1.bf16.msra.mxu0 %v1444
      %1468 = vmatprep.subr.bf16.mxu0 0
      %1469 = vmatpush1.bf16.msra.mxu0 %v1445
      %1470 = vmatprep.subr.bf16.mxu0 0
      %1471 = vmatpush1.bf16.msra.mxu0 0
      %1472 = vmatprep.subr.bf16.mxu0 0
      %1473 = vmatpush1.bf16.msra.mxu0 0
      %1474 = vmatprep.subr.bf16.mxu0 0
      %1475 = vmatpush1.bf16.msra.mxu0 0
      %1476 = vmatprep.subr.bf16.mxu0 0
      %1477 = vmatpush1.bf16.msra.mxu0 0
      %1478 = vmatprep.subr.bf16.mxu0 0
      %1479 = vmatpush1.bf16.msra.mxu0 0
      %1480 = vmatprep.subr.bf16.mxu0 0
      %1481 = vmatpush1.bf16.msra.mxu0 0
      %1482 = vmatprep.subr.bf16.mxu0 0
      %1483 = vmatpush1.bf16.msra.mxu0 0
      %1484 = vmatprep.subr.bf16.mxu0 0
      %1485 = vmatpush1.bf16.msra.mxu0 0
      %1486 = vmatprep.mubr.bf16.mxu0 0
      %1487 = vmatmul.mubr.bf16.gmra.mrb[0].mxu0 %v1371
      %v1488 = vpop.f32.mrb[0].mxu0
      %v1489 = vadd.f32 0.0, %v1488
      %v1490 = vpop.f32.mrb[0].mxu0
      %v1491 = vpop.f32.mrb[0].mxu0
      %v1492 = vadd.f32 0.0, %v1491
      %v1493 = vpop.f32.mrb[0].mxu0
      %1494 = vmatprep.mubr.bf16.mxu0 0
      %1495 = vmatmul.mubr.bf16.gmra.mrb[0].mxu0 %v1372
      %v1496 = vpop.f32.mrb[0].mxu0
      %v1497 = vadd.f32 0.0, %v1496
      %v1498 = vpop.f32.mrb[0].mxu0
      %v1499 = vpop.f32.mrb[0].mxu0
      %v1500 = vadd.f32 0.0, %v1499
      %v1501 = vpop.f32.mrb[0].mxu0
      %1502 = vmatprep.mubr.bf16.mxu0 0
      %1503 = vmatmul.mubr.bf16.gmra.mrb[0].mxu0 %v1373
      %v1504 = vpop.f32.mrb[0].mxu0
      %v1505 = vadd.f32 0.0, %v1504
      %v1506 = vpop.f32.mrb[0].mxu0
      %v1507 = vpop.f32.mrb[0].mxu0
      %v1508 = vadd.f32 0.0, %v1507
      %v1509 = vpop.f32.mrb[0].mxu0
      %1510 = vmatprep.mubr.bf16.mxu0 0
      %1511 = vmatmul.mubr.bf16.gmra.mrb[0].mxu0 %v1374
      %v1512 = vpop.f32.mrb[0].mxu0
      %v1513 = vadd.f32 0.0, %v1512
      %v1514 = vpop.f32.mrb[0].mxu0
      %v1515 = vpop.f32.mrb[0].mxu0
      %v1516 = vadd.f32 0.0, %v1515
      %v1517 = vpop.f32.mrb[0].mxu0
      %1518 = vmatprep.mubr.bf16.mxu0 0
      %1519 = vmatmul.mubr.bf16.gmra.mrb[0].mxu0 %v1375
      %v1520 = vpop.f32.mrb[0].mxu0
      %v1521 = vadd.f32 0.0, %v1520
      %v1522 = vpop.f32.mrb[0].mxu0
      %v1523 = vpop.f32.mrb[0].mxu0
      %v1524 = vadd.f32 0.0, %v1523
      %v1525 = vpop.f32.mrb[0].mxu0
      %1526 = vmatprep.mubr.bf16.mxu0 0
      %1527 = vmatmul.mubr.bf16.gmra.mrb[0].mxu0 %v1376
      %v1528 = vpop.f32.mrb[0].mxu0
      %v1529 = vadd.f32 0.0, %v1528
      %v1530 = vpop.f32.mrb[0].mxu0
      %v1531 = vpop.f32.mrb[0].mxu0
      %v1532 = vadd.f32 0.0, %v1531
      %v1533 = vpop.f32.mrb[0].mxu0
      %1534 = vmatprep.mubr.bf16.mxu0 0
      %1535 = vmatmul.mubr.bf16.gmra.mrb[0].mxu0 %v1377
      %v1536 = vpop.f32.mrb[0].mxu0
      %v1537 = vadd.f32 0.0, %v1536
      %v1538 = vpop.f32.mrb[0].mxu0
      %v1539 = vpop.f32.mrb[0].mxu0
      %v1540 = vadd.f32 0.0, %v1539
      %v1541 = vpop.f32.mrb[0].mxu0
      %1542 = vmatprep.mubr.bf16.mxu0 0
      %1543 = vmatmul.mubr.bf16.gmra.mrb[0].mxu0 %v1378
      %v1544 = vpop.f32.mrb[0].mxu0
      %v1545 = vadd.f32 0.0, %v1544
      %v1546 = vpop.f32.mrb[0].mxu0
      %v1547 = vpop.f32.mrb[0].mxu0
      %v1548 = vadd.f32 0.0, %v1547
      %v1549 = vpop.f32.mrb[0].mxu0
      %1550 = vmatprep.mubr.bf16.mxu0 0
      %1551 = vmatmul.mubr.bf16.gmra.mrb[0].mxu0 %v1379
      %v1552 = vpop.f32.mrb[0].mxu0
      %v1553 = vadd.f32 0.0, %v1552
      %v1554 = vpop.f32.mrb[0].mxu0
      %v1555 = vpop.f32.mrb[0].mxu0
      %v1556 = vadd.f32 0.0, %v1555
      %v1557 = vpop.f32.mrb[0].mxu0
      %1558 = vmatprep.mubr.bf16.mxu0 0
      %1559 = vmatmul.mubr.bf16.gmra.mrb[0].mxu0 %v1380
      %v1560 = vpop.f32.mrb[0].mxu0
      %v1561 = vadd.f32 0.0, %v1560
      %v1562 = vpop.f32.mrb[0].mxu0
      %v1563 = vpop.f32.mrb[0].mxu0
      %v1564 = vadd.f32 0.0, %v1563
      %v1565 = vpop.f32.mrb[0].mxu0
      %1566 = vmatprep.mubr.bf16.mxu0 0
      %1567 = vmatmul.mubr.bf16.gmra.mrb[0].mxu0 %v1381
      %v1568 = vpop.f32.mrb[0].mxu0
      %v1569 = vadd.f32 0.0, %v1568
      %v1570 = vpop.f32.mrb[0].mxu0
      %v1571 = vpop.f32.mrb[0].mxu0
      %v1572 = vadd.f32 0.0, %v1571
      %v1573 = vpop.f32.mrb[0].mxu0
      %1574 = vmatprep.mubr.bf16.mxu0 0
      %1575 = vmatmul.mubr.bf16.gmra.mrb[0].mxu0 %v1382
      %v1576 = vpop.f32.mrb[0].mxu0
      %v1577 = vadd.f32 0.0, %v1576
      %v1578 = vpop.f32.mrb[0].mxu0
      %v1579 = vpop.f32.mrb[0].mxu0
      %v1580 = vadd.f32 0.0, %v1579
      %v1581 = vpop.f32.mrb[0].mxu0
      %1582 = vmatprep.mubr.bf16.mxu0 0
      %1583 = vmatmul.mubr.bf16.gmra.mrb[0].mxu0 %v1383
      %v1584 = vpop.f32.mrb[0].mxu0
      %v1585 = vadd.f32 0.0, %v1584
      %v1586 = vpop.f32.mrb[0].mxu0
      %v1587 = vpop.f32.mrb[0].mxu0
      %v1588 = vadd.f32 0.0, %v1587
      %v1589 = vpop.f32.mrb[0].mxu0
      %1590 = vmatprep.mubr.bf16.mxu0 0
      %1591 = vmatmul.mubr.bf16.gmra.mrb[0].mxu0 %v1384
      %v1592 = vpop.f32.mrb[0].mxu0
      %v1593 = vadd.f32 0.0, %v1592
      %v1594 = vpop.f32.mrb[0].mxu0
      %v1595 = vpop.f32.mrb[0].mxu0
      %v1596 = vadd.f32 0.0, %v1595
      %v1597 = vpop.f32.mrb[0].mxu0
      %1598 = vmatprep.mubr.bf16.mxu0 0
      %1599 = vmatmul.mubr.bf16.gmra.mrb[0].mxu0 %v1385
      %v1600 = vpop.f32.mrb[0].mxu0
      %v1601 = vadd.f32 0.0, %v1600
      %v1602 = vpop.f32.mrb[0].mxu0
      %v1603 = vpop.f32.mrb[0].mxu0
      %v1604 = vadd.f32 0.0, %v1603
      %v1605 = vpop.f32.mrb[0].mxu0
      %1606 = vmatprep.mubr.bf16.mxu0 0
      %1607 = vmatmul.mubr.bf16.gmra.mrb[0].mxu0 %v1386
      %v1608 = vpop.f32.mrb[0].mxu0
      %v1609 = vadd.f32 0.0, %v1608
      %v1610 = vpop.f32.mrb[0].mxu0
      %v1611 = vpop.f32.mrb[0].mxu0
      %v1612 = vadd.f32 0.0, %v1611
      %v1613 = vpop.f32.mrb[0].mxu0
      %1614 = vmatprep.mubr.bf16.mxu0 0
      %1615 = vmatmul.mubr.bf16.gmra.mrb[0].mxu0 %v1387
      %v1616 = vpop.f32.mrb[0].mxu0
      %v1617 = vadd.f32 0.0, %v1616
      %v1618 = vpop.f32.mrb[0].mxu0
      %v1619 = vpop.f32.mrb[0].mxu0
      %v1620 = vadd.f32 0.0, %v1619
      %v1621 = vpop.f32.mrb[0].mxu0
      %1622 = vmatprep.mubr.bf16.mxu0 0
      %1623 = vmatmul.mubr.bf16.gmra.mrb[0].mxu0 %v1388
      %v1624 = vpop.f32.mrb[0].mxu0
      %v1625 = vadd.f32 0.0, %v1624
      %v1626 = vpop.f32.mrb[0].mxu0
      %v1627 = vpop.f32.mrb[0].mxu0
      %v1628 = vadd.f32 0.0, %v1627
      %v1629 = vpop.f32.mrb[0].mxu0
      %1630 = vdwg.mxu0
      %v1631 = vadd.f32 %v1299, %v1489
      %v1632 = vadd.f32 %v1300, %v1492
      %v1633 = vadd.f32 %v1301, %v1497
      %v1634 = vadd.f32 %v1302, %v1500
      %v1635 = vadd.f32 %v1303, %v1505
      %v1636 = vadd.f32 %v1304, %v1508
      %v1637 = vadd.f32 %v1305, %v1513
      %v1638 = vadd.f32 %v1306, %v1516
      %v1639 = vadd.f32 %v1307, %v1521
      %v1640 = vadd.f32 %v1308, %v1524
      %v1641 = vadd.f32 %v1309, %v1529
      %v1642 = vadd.f32 %v1310, %v1532
      %v1643 = vadd.f32 %v1311, %v1537
      %v1644 = vadd.f32 %v1312, %v1540
      %v1645 = vadd.f32 %v1313, %v1545
      %v1646 = vadd.f32 %v1314, %v1548
      %v1647 = vadd.f32 %v1315, %v1553
      %v1648 = vadd.f32 %v1316, %v1556
      %v1649 = vadd.f32 %v1317, %v1561
      %v1650 = vadd.f32 %v1318, %v1564
      %v1651 = vadd.f32 %v1319, %v1569
      %v1652 = vadd.f32 %v1320, %v1572
      %v1653 = vadd.f32 %v1321, %v1577
      %v1654 = vadd.f32 %v1322, %v1580
      %v1655 = vadd.f32 %v1323, %v1585
      %v1656 = vadd.f32 %v1324, %v1588
      %v1657 = vadd.f32 %v1325, %v1593
      %v1658 = vadd.f32 %v1326, %v1596
      %v1659 = vadd.f32 %v1327, %v1601
      %v1660 = vadd.f32 %v1328, %v1604
      %v1661 = vadd.f32 %v1329, %v1609
      %v1662 = vadd.f32 %v1330, %v1612
      %v1663 = vadd.f32 %v1331, %v1617
      %v1664 = vadd.f32 %v1332, %v1620
      %v1665 = vadd.f32 %v1333, %v1625
      %v1666 = vadd.f32 %v1334, %v1628
      %v1667 = vld [vmem:[#allocation2 + $0x13] sm:$0xff]
      %v1668 = vld [vmem:[#allocation2 + $0x1b] sm:$0xff]
      %v1669 = vld [vmem:[#allocation2 + $0x23] sm:$0xff]
      %v1670 = vld [vmem:[#allocation2 + $0x2b] sm:$0xff]
      %v1671 = vld [vmem:[#allocation2 + $0x33] sm:$0xff]
      %v1672 = vld [vmem:[#allocation2 + $0x3b] sm:$0xff]
      %v1673 = vld [vmem:[#allocation2 + $0x43] sm:$0xff]
      %v1674 = vld [vmem:[#allocation2 + $0x4b] sm:$0xff]
      %v1675 = vld [vmem:[#allocation2 + $0x53] sm:$0xff]
      %v1676 = vld [vmem:[#allocation2 + $0x5b] sm:$0xff]
      %v1677 = vld [vmem:[#allocation2 + $0x63] sm:$0xff]
      %v1678 = vld [vmem:[#allocation2 + $0x6b] sm:$0xff]
      %v1679 = vld [vmem:[#allocation2 + $0x73] sm:$0xff]
      %v1680 = vld [vmem:[#allocation2 + $0x7b] sm:$0xff]
      %v1681 = vld [vmem:[#allocation2 + $0x83] sm:$0xff]
      %v1682 = vld [vmem:[#allocation2 + $0x8b] sm:$0xff]
      %v1683 = vld [vmem:[#allocation2 + $0x93] sm:$0xff]
      %v1684 = vld [vmem:[#allocation2 + $0x9b] sm:$0xff]
      %v1685 = vld [vmem:[#allocation2 + $0xa3] sm:$0xff]
      %v1686 = vld [vmem:[#allocation2 + $0xab] sm:$0xff]
      %v1687 = vld [vmem:[#allocation2 + $0xb3] sm:$0xff]
      %v1688 = vld [vmem:[#allocation2 + $0xbb] sm:$0xff]
      %v1689 = vld [vmem:[#allocation2 + $0xc3] sm:$0xff]
      %v1690 = vld [vmem:[#allocation2 + $0xcb] sm:$0xff]
      %v1691 = vld [vmem:[#allocation2 + $0xd3] sm:$0xff]
      %v1692 = vld [vmem:[#allocation2 + $0xdb] sm:$0xff]
      %v1693 = vld [vmem:[#allocation2 + $0xe3] sm:$0xff]
      %v1694 = vld [vmem:[#allocation2 + $0xeb] sm:$0xff]
      %v1695 = vld [vmem:[#allocation2 + $0xf3] sm:$0xff]
      %v1696 = vld [vmem:[#allocation2 + $0xfb] sm:$0xff]
      %v1697 = vld [vmem:[#allocation2 + $0x103] sm:$0xff]
      %v1698 = vld [vmem:[#allocation2 + $0x10b] sm:$0xff]
      %v1699 = vld [vmem:[#allocation2 + $0x113] sm:$0xff]
      %v1700 = vld [vmem:[#allocation2 + $0x11b] sm:$0xff]
      %v1701 = vld [vmem:[#allocation2 + $0x123] sm:$0xff]
      %v1702 = vld [vmem:[#allocation2 + $0x12b] sm:$0xff]
      %v1703 = vpack.c.bf16 %v1668, %v1667
      %v1704 = vpack.c.bf16 %v1670, %v1669
      %v1705 = vpack.c.bf16 %v1672, %v1671
      %v1706 = vpack.c.bf16 %v1674, %v1673
      %v1707 = vpack.c.bf16 %v1676, %v1675
      %v1708 = vpack.c.bf16 %v1678, %v1677
      %v1709 = vpack.c.bf16 %v1680, %v1679
      %v1710 = vpack.c.bf16 %v1682, %v1681
      %v1711 = vpack.c.bf16 %v1684, %v1683
      %v1712 = vpack.c.bf16 %v1686, %v1685
      %v1713 = vpack.c.bf16 %v1688, %v1687
      %v1714 = vpack.c.bf16 %v1690, %v1689
      %v1715 = vpack.c.bf16 %v1692, %v1691
      %v1716 = vpack.c.bf16 %v1694, %v1693
      %v1717 = vpack.c.bf16 %v1696, %v1695
      %v1718 = vpack.c.bf16 %v1698, %v1697
      %v1719 = vpack.c.bf16 %v1700, %v1699
      %v1720 = vpack.c.bf16 %v1702, %v1701
      %s1721 = scalar_lea.vmem %s1, 256
      %v1722 = vld [vmem:[%s1721] sm:$0xf]
      %v1723 = vld [vmem:[%s1721 + $0x4] sm:$0xf]
      %v1724 = vld [vmem:[%s1721 + $0x8] sm:$0xf]
      %v1725 = vld [vmem:[%s1721 + $0xc] sm:$0xf]
      %v1726 = vld [vmem:[%s1721 + $0x10] sm:$0xf]
      %v1727 = vld [vmem:[%s1721 + $0x14] sm:$0xf]
      %v1728 = vld [vmem:[%s1721 + $0x18] sm:$0xf]
      %v1729 = vld [vmem:[%s1721 + $0x1c] sm:$0xf]
      %v1730 = vld [vmem:[%s1721 + $0x20] sm:$0xf]
      %v1731 = vld [vmem:[%s1721 + $0x24] sm:$0xf]
      %v1732 = vld [vmem:[%s1721 + $0x28] sm:$0xf]
      %v1733 = vld [vmem:[%s1721 + $0x2c] sm:$0xf]
      %v1734 = vld [vmem:[%s1721 + $0x30] sm:$0xf]
      %v1735 = vld [vmem:[%s1721 + $0x34] sm:$0xf]
      %v1736 = vld [vmem:[%s1721 + $0x38] sm:$0xf]
      %v1737 = vld [vmem:[%s1721 + $0x3c] sm:$0xf]
      %v1754 = vunpack.c.l.b16 %v1722
      %v1755 = vunpack.c.l.b16 %v1723
      %v1756 = vunpack.c.l.b16 %v1724
      %v1757 = vunpack.c.l.b16 %v1725
      %v1758 = vunpack.c.l.b16 %v1726
      %v1759 = vunpack.c.l.b16 %v1727
      %v1760 = vunpack.c.l.b16 %v1728
      %v1761 = vunpack.c.l.b16 %v1729
      %v1762 = vunpack.c.l.b16 %v1730
      %v1763 = vunpack.c.l.b16 %v1731
      %v1764 = vunpack.c.l.b16 %v1732
      %v1765 = vunpack.c.l.b16 %v1733
      %v1766 = vunpack.c.l.b16 %v1734
      %v1767 = vunpack.c.l.b16 %v1735
      %v1768 = vunpack.c.l.b16 %v1736
      %v1769 = vunpack.c.l.b16 %v1737
      %v1770 = vpack.c.b16 %v1755, %v1754
      %v1771 = vpack.c.b16 %v1757, %v1756
      %v1772 = vpack.c.b16 %v1759, %v1758
      %v1773 = vpack.c.b16 %v1761, %v1760
      %v1774 = vpack.c.b16 %v1763, %v1762
      %v1775 = vpack.c.b16 %v1765, %v1764
      %v1776 = vpack.c.b16 %v1767, %v1766
      %v1777 = vpack.c.b16 %v1769, %v1768
      %1786 = vmatprep.subr.bf16.mxu0 0
      %1787 = vmatpush1.bf16.msra.mxu0 %v1770
      %1788 = vmatprep.subr.bf16.mxu0 0
      %1789 = vmatpush1.bf16.msra.mxu0 %v1771
      %1790 = vmatprep.subr.bf16.mxu0 0
      %1791 = vmatpush1.bf16.msra.mxu0 %v1772
      %1792 = vmatprep.subr.bf16.mxu0 0
      %1793 = vmatpush1.bf16.msra.mxu0 %v1773
      %1794 = vmatprep.subr.bf16.mxu0 0
      %1795 = vmatpush1.bf16.msra.mxu0 %v1774
      %1796 = vmatprep.subr.bf16.mxu0 0
      %1797 = vmatpush1.bf16.msra.mxu0 %v1775
      %1798 = vmatprep.subr.bf16.mxu0 0
      %1799 = vmatpush1.bf16.msra.mxu0 %v1776
      %1800 = vmatprep.subr.bf16.mxu0 0
      %1801 = vmatpush1.bf16.msra.mxu0 %v1777
      %1802 = vmatprep.subr.bf16.mxu0 0
      %1803 = vmatpush1.bf16.msra.mxu0 0
      %1804 = vmatprep.subr.bf16.mxu0 0
      %1805 = vmatpush1.bf16.msra.mxu0 0
      %1806 = vmatprep.subr.bf16.mxu0 0
      %1807 = vmatpush1.bf16.msra.mxu0 0
      %1808 = vmatprep.subr.bf16.mxu0 0
      %1809 = vmatpush1.bf16.msra.mxu0 0
      %1810 = vmatprep.subr.bf16.mxu0 0
      %1811 = vmatpush1.bf16.msra.mxu0 0
      %1812 = vmatprep.subr.bf16.mxu0 0
      %1813 = vmatpush1.bf16.msra.mxu0 0
      %1814 = vmatprep.subr.bf16.mxu0 0
      %1815 = vmatpush1.bf16.msra.mxu0 0
      %1816 = vmatprep.subr.bf16.mxu0 0
      %1817 = vmatpush1.bf16.msra.mxu0 0
      %1818 = vmatprep.mubr.bf16.mxu0 0
      %1819 = vmatmul.mubr.bf16.gmra.mrb[0].mxu0 %v1703
      %v1820 = vpop.f32.mrb[0].mxu0
      %v1821 = vadd.f32 0.0, %v1820
      %v1822 = vpop.f32.mrb[0].mxu0
      %v1823 = vpop.f32.mrb[0].mxu0
      %v1824 = vadd.f32 0.0, %v1823
      %v1825 = vpop.f32.mrb[0].mxu0
      %1826 = vmatprep.mubr.bf16.mxu0 0
      %1827 = vmatmul.mubr.bf16.gmra.mrb[0].mxu0 %v1704
      %v1828 = vpop.f32.mrb[0].mxu0
      %v1829 = vadd.f32 0.0, %v1828
      %v1830 = vpop.f32.mrb[0].mxu0
      %v1831 = vpop.f32.mrb[0].mxu0
      %v1832 = vadd.f32 0.0, %v1831
      %v1833 = vpop.f32.mrb[0].mxu0
      %1834 = vmatprep.mubr.bf16.mxu0 0
      %1835 = vmatmul.mubr.bf16.gmra.mrb[0].mxu0 %v1705
      %v1836 = vpop.f32.mrb[0].mxu0
      %v1837 = vadd.f32 0.0, %v1836
      %v1838 = vpop.f32.mrb[0].mxu0
      %v1839 = vpop.f32.mrb[0].mxu0
      %v1840 = vadd.f32 0.0, %v1839
      %v1841 = vpop.f32.mrb[0].mxu0
      %1842 = vmatprep.mubr.bf16.mxu0 0
      %1843 = vmatmul.mubr.bf16.gmra.mrb[0].mxu0 %v1706
      %v1844 = vpop.f32.mrb[0].mxu0
      %v1845 = vadd.f32 0.0, %v1844
      %v1846 = vpop.f32.mrb[0].mxu0
      %v1847 = vpop.f32.mrb[0].mxu0
      %v1848 = vadd.f32 0.0, %v1847
      %v1849 = vpop.f32.mrb[0].mxu0
      %1850 = vmatprep.mubr.bf16.mxu0 0
      %1851 = vmatmul.mubr.bf16.gmra.mrb[0].mxu0 %v1707
      %v1852 = vpop.f32.mrb[0].mxu0
      %v1853 = vadd.f32 0.0, %v1852
      %v1854 = vpop.f32.mrb[0].mxu0
      %v1855 = vpop.f32.mrb[0].mxu0
      %v1856 = vadd.f32 0.0, %v1855
      %v1857 = vpop.f32.mrb[0].mxu0
      %1858 = vmatprep.mubr.bf16.mxu0 0
      %1859 = vmatmul.mubr.bf16.gmra.mrb[0].mxu0 %v1708
      %v1860 = vpop.f32.mrb[0].mxu0
      %v1861 = vadd.f32 0.0, %v1860
      %v1862 = vpop.f32.mrb[0].mxu0
      %v1863 = vpop.f32.mrb[0].mxu0
      %v1864 = vadd.f32 0.0, %v1863
      %v1865 = vpop.f32.mrb[0].mxu0
      %1866 = vmatprep.mubr.bf16.mxu0 0
      %1867 = vmatmul.mubr.bf16.gmra.mrb[0].mxu0 %v1709
      %v1868 = vpop.f32.mrb[0].mxu0
      %v1869 = vadd.f32 0.0, %v1868
      %v1870 = vpop.f32.mrb[0].mxu0
      %v1871 = vpop.f32.mrb[0].mxu0
      %v1872 = vadd.f32 0.0, %v1871
      %v1873 = vpop.f32.mrb[0].mxu0
      %1874 = vmatprep.mubr.bf16.mxu0 0
      %1875 = vmatmul.mubr.bf16.gmra.mrb[0].mxu0 %v1710
      %v1876 = vpop.f32.mrb[0].mxu0
      %v1877 = vadd.f32 0.0, %v1876
      %v1878 = vpop.f32.mrb[0].mxu0
      %v1879 = vpop.f32.mrb[0].mxu0
      %v1880 = vadd.f32 0.0, %v1879
      %v1881 = vpop.f32.mrb[0].mxu0
      %1882 = vmatprep.mubr.bf16.mxu0 0
      %1883 = vmatmul.mubr.bf16.gmra.mrb[0].mxu0 %v1711
      %v1884 = vpop.f32.mrb[0].mxu0
      %v1885 = vadd.f32 0.0, %v1884
      %v1886 = vpop.f32.mrb[0].mxu0
      %v1887 = vpop.f32.mrb[0].mxu0
      %v1888 = vadd.f32 0.0, %v1887
      %v1889 = vpop.f32.mrb[0].mxu0
      %1890 = vmatprep.mubr.bf16.mxu0 0
      %1891 = vmatmul.mubr.bf16.gmra.mrb[0].mxu0 %v1712
      %v1892 = vpop.f32.mrb[0].mxu0
      %v1893 = vadd.f32 0.0, %v1892
      %v1894 = vpop.f32.mrb[0].mxu0
      %v1895 = vpop.f32.mrb[0].mxu0
      %v1896 = vadd.f32 0.0, %v1895
      %v1897 = vpop.f32.mrb[0].mxu0
      %1898 = vmatprep.mubr.bf16.mxu0 0
      %1899 = vmatmul.mubr.bf16.gmra.mrb[0].mxu0 %v1713
      %v1900 = vpop.f32.mrb[0].mxu0
      %v1901 = vadd.f32 0.0, %v1900
      %v1902 = vpop.f32.mrb[0].mxu0
      %v1903 = vpop.f32.mrb[0].mxu0
      %v1904 = vadd.f32 0.0, %v1903
      %v1905 = vpop.f32.mrb[0].mxu0
      %1906 = vmatprep.mubr.bf16.mxu0 0
      %1907 = vmatmul.mubr.bf16.gmra.mrb[0].mxu0 %v1714
      %v1908 = vpop.f32.mrb[0].mxu0
      %v1909 = vadd.f32 0.0, %v1908
      %v1910 = vpop.f32.mrb[0].mxu0
      %v1911 = vpop.f32.mrb[0].mxu0
      %v1912 = vadd.f32 0.0, %v1911
      %v1913 = vpop.f32.mrb[0].mxu0
      %1914 = vmatprep.mubr.bf16.mxu0 0
      %1915 = vmatmul.mubr.bf16.gmra.mrb[0].mxu0 %v1715
      %v1916 = vpop.f32.mrb[0].mxu0
      %v1917 = vadd.f32 0.0, %v1916
      %v1918 = vpop.f32.mrb[0].mxu0
      %v1919 = vpop.f32.mrb[0].mxu0
      %v1920 = vadd.f32 0.0, %v1919
      %v1921 = vpop.f32.mrb[0].mxu0
      %1922 = vmatprep.mubr.bf16.mxu0 0
      %1923 = vmatmul.mubr.bf16.gmra.mrb[0].mxu0 %v1716
      %v1924 = vpop.f32.mrb[0].mxu0
      %v1925 = vadd.f32 0.0, %v1924
      %v1926 = vpop.f32.mrb[0].mxu0
      %v1927 = vpop.f32.mrb[0].mxu0
      %v1928 = vadd.f32 0.0, %v1927
      %v1929 = vpop.f32.mrb[0].mxu0
      %1930 = vmatprep.mubr.bf16.mxu0 0
      %1931 = vmatmul.mubr.bf16.gmra.mrb[0].mxu0 %v1717
      %v1932 = vpop.f32.mrb[0].mxu0
      %v1933 = vadd.f32 0.0, %v1932
      %v1934 = vpop.f32.mrb[0].mxu0
      %v1935 = vpop.f32.mrb[0].mxu0
      %v1936 = vadd.f32 0.0, %v1935
      %v1937 = vpop.f32.mrb[0].mxu0
      %1938 = vmatprep.mubr.bf16.mxu0 0
      %1939 = vmatmul.mubr.bf16.gmra.mrb[0].mxu0 %v1718
      %v1940 = vpop.f32.mrb[0].mxu0
      %v1941 = vadd.f32 0.0, %v1940
      %v1942 = vpop.f32.mrb[0].mxu0
      %v1943 = vpop.f32.mrb[0].mxu0
      %v1944 = vadd.f32 0.0, %v1943
      %v1945 = vpop.f32.mrb[0].mxu0
      %1946 = vmatprep.mubr.bf16.mxu0 0
      %1947 = vmatmul.mubr.bf16.gmra.mrb[0].mxu0 %v1719
      %v1948 = vpop.f32.mrb[0].mxu0
      %v1949 = vadd.f32 0.0, %v1948
      %v1950 = vpop.f32.mrb[0].mxu0
      %v1951 = vpop.f32.mrb[0].mxu0
      %v1952 = vadd.f32 0.0, %v1951
      %v1953 = vpop.f32.mrb[0].mxu0
      %1954 = vmatprep.mubr.bf16.mxu0 0
      %1955 = vmatmul.mubr.bf16.gmra.mrb[0].mxu0 %v1720
      %v1956 = vpop.f32.mrb[0].mxu0
      %v1957 = vadd.f32 0.0, %v1956
      %v1958 = vpop.f32.mrb[0].mxu0
      %v1959 = vpop.f32.mrb[0].mxu0
      %v1960 = vadd.f32 0.0, %v1959
      %v1961 = vpop.f32.mrb[0].mxu0
      %1962 = vdwg.mxu0
      %v1963 = vadd.f32 %v1631, %v1821
      %v1964 = vadd.f32 %v1632, %v1824
      %v1965 = vadd.f32 %v1633, %v1829
      %v1966 = vadd.f32 %v1634, %v1832
      %v1967 = vadd.f32 %v1635, %v1837
      %v1968 = vadd.f32 %v1636, %v1840
      %v1969 = vadd.f32 %v1637, %v1845
      %v1970 = vadd.f32 %v1638, %v1848
      %v1971 = vadd.f32 %v1639, %v1853
      %v1972 = vadd.f32 %v1640, %v1856
      %v1973 = vadd.f32 %v1641, %v1861
      %v1974 = vadd.f32 %v1642, %v1864
      %v1975 = vadd.f32 %v1643, %v1869
      %v1976 = vadd.f32 %v1644, %v1872
      %v1977 = vadd.f32 %v1645, %v1877
      %v1978 = vadd.f32 %v1646, %v1880
      %v1979 = vadd.f32 %v1647, %v1885
      %v1980 = vadd.f32 %v1648, %v1888
      %v1981 = vadd.f32 %v1649, %v1893
      %v1982 = vadd.f32 %v1650, %v1896
      %v1983 = vadd.f32 %v1651, %v1901
      %v1984 = vadd.f32 %v1652, %v1904
      %v1985 = vadd.f32 %v1653, %v1909
      %v1986 = vadd.f32 %v1654, %v1912
      %v1987 = vadd.f32 %v1655, %v1917
      %v1988 = vadd.f32 %v1656, %v1920
      %v1989 = vadd.f32 %v1657, %v1925
      %v1990 = vadd.f32 %v1658, %v1928
      %v1991 = vadd.f32 %v1659, %v1933
      %v1992 = vadd.f32 %v1660, %v1936
      %v1993 = vadd.f32 %v1661, %v1941
      %v1994 = vadd.f32 %v1662, %v1944
      %v1995 = vadd.f32 %v1663, %v1949
      %v1996 = vadd.f32 %v1664, %v1952
      %v1997 = vadd.f32 %v1665, %v1957
      %v1998 = vadd.f32 %v1666, %v1960
      %v1999 = vld [vmem:[#allocation2 + $0x14] sm:$0xff]
      %v2000 = vld [vmem:[#allocation2 + $0x1c] sm:$0xff]
      %v2001 = vld [vmem:[#allocation2 + $0x24] sm:$0xff]
      %v2002 = vld [vmem:[#allocation2 + $0x2c] sm:$0xff]
      %v2003 = vld [vmem:[#allocation2 + $0x34] sm:$0xff]
      %v2004 = vld [vmem:[#allocation2 + $0x3c] sm:$0xff]
      %v2005 = vld [vmem:[#allocation2 + $0x44] sm:$0xff]
      %v2006 = vld [vmem:[#allocation2 + $0x4c] sm:$0xff]
      %v2007 = vld [vmem:[#allocation2 + $0x54] sm:$0xff]
      %v2008 = vld [vmem:[#allocation2 + $0x5c] sm:$0xff]
      %v2009 = vld [vmem:[#allocation2 + $0x64] sm:$0xff]
      %v2010 = vld [vmem:[#allocation2 + $0x6c] sm:$0xff]
      %v2011 = vld [vmem:[#allocation2 + $0x74] sm:$0xff]
      %v2012 = vld [vmem:[#allocation2 + $0x7c] sm:$0xff]
      %v2013 = vld [vmem:[#allocation2 + $0x84] sm:$0xff]
      %v2014 = vld [vmem:[#allocation2 + $0x8c] sm:$0xff]
      %v2015 = vld [vmem:[#allocation2 + $0x94] sm:$0xff]
      %v2016 = vld [vmem:[#allocation2 + $0x9c] sm:$0xff]
      %v2017 = vld [vmem:[#allocation2 + $0xa4] sm:$0xff]
      %v2018 = vld [vmem:[#allocation2 + $0xac] sm:$0xff]
      %v2019 = vld [vmem:[#allocation2 + $0xb4] sm:$0xff]
      %v2020 = vld [vmem:[#allocation2 + $0xbc] sm:$0xff]
      %v2021 = vld [vmem:[#allocation2 + $0xc4] sm:$0xff]
      %v2022 = vld [vmem:[#allocation2 + $0xcc] sm:$0xff]
      %v2023 = vld [vmem:[#allocation2 + $0xd4] sm:$0xff]
      %v2024 = vld [vmem:[#allocation2 + $0xdc] sm:$0xff]
      %v2025 = vld [vmem:[#allocation2 + $0xe4] sm:$0xff]
      %v2026 = vld [vmem:[#allocation2 + $0xec] sm:$0xff]
      %v2027 = vld [vmem:[#allocation2 + $0xf4] sm:$0xff]
      %v2028 = vld [vmem:[#allocation2 + $0xfc] sm:$0xff]
      %v2029 = vld [vmem:[#allocation2 + $0x104] sm:$0xff]
      %v2030 = vld [vmem:[#allocation2 + $0x10c] sm:$0xff]
      %v2031 = vld [vmem:[#allocation2 + $0x114] sm:$0xff]
      %v2032 = vld [vmem:[#allocation2 + $0x11c] sm:$0xff]
      %v2033 = vld [vmem:[#allocation2 + $0x124] sm:$0xff]
      %v2034 = vld [vmem:[#allocation2 + $0x12c] sm:$0xff]
      %v2035 = vpack.c.bf16 %v2000, %v1999
      %v2036 = vpack.c.bf16 %v2002, %v2001
      %v2037 = vpack.c.bf16 %v2004, %v2003
      %v2038 = vpack.c.bf16 %v2006, %v2005
      %v2039 = vpack.c.bf16 %v2008, %v2007
      %v2040 = vpack.c.bf16 %v2010, %v2009
      %v2041 = vpack.c.bf16 %v2012, %v2011
      %v2042 = vpack.c.bf16 %v2014, %v2013
      %v2043 = vpack.c.bf16 %v2016, %v2015
      %v2044 = vpack.c.bf16 %v2018, %v2017
      %v2045 = vpack.c.bf16 %v2020, %v2019
      %v2046 = vpack.c.bf16 %v2022, %v2021
      %v2047 = vpack.c.bf16 %v2024, %v2023
      %v2048 = vpack.c.bf16 %v2026, %v2025
      %v2049 = vpack.c.bf16 %v2028, %v2027
      %v2050 = vpack.c.bf16 %v2030, %v2029
      %v2051 = vpack.c.bf16 %v2032, %v2031
      %v2052 = vpack.c.bf16 %v2034, %v2033
      %s2053 = scalar_lea.vmem %s1, 320
      %v2054 = vld [vmem:[%s2053] sm:$0xf]
      %v2055 = vld [vmem:[%s2053 + $0x4] sm:$0xf]
      %v2056 = vld [vmem:[%s2053 + $0x8] sm:$0xf]
      %v2057 = vld [vmem:[%s2053 + $0xc] sm:$0xf]
      %v2058 = vld [vmem:[%s2053 + $0x10] sm:$0xf]
      %v2059 = vld [vmem:[%s2053 + $0x14] sm:$0xf]
      %v2060 = vld [vmem:[%s2053 + $0x18] sm:$0xf]
      %v2061 = vld [vmem:[%s2053 + $0x1c] sm:$0xf]
      %v2062 = vld [vmem:[%s2053 + $0x20] sm:$0xf]
      %v2063 = vld [vmem:[%s2053 + $0x24] sm:$0xf]
      %v2064 = vld [vmem:[%s2053 + $0x28] sm:$0xf]
      %v2065 = vld [vmem:[%s2053 + $0x2c] sm:$0xf]
      %v2066 = vld [vmem:[%s2053 + $0x30] sm:$0xf]
      %v2067 = vld [vmem:[%s2053 + $0x34] sm:$0xf]
      %v2068 = vld [vmem:[%s2053 + $0x38] sm:$0xf]
      %v2069 = vld [vmem:[%s2053 + $0x3c] sm:$0xf]
      %v2086 = vunpack.c.l.b16 %v2054
      %v2087 = vunpack.c.l.b16 %v2055
      %v2088 = vunpack.c.l.b16 %v2056
      %v2089 = vunpack.c.l.b16 %v2057
      %v2090 = vunpack.c.l.b16 %v2058
      %v2091 = vunpack.c.l.b16 %v2059
      %v2092 = vunpack.c.l.b16 %v2060
      %v2093 = vunpack.c.l.b16 %v2061
      %v2094 = vunpack.c.l.b16 %v2062
      %v2095 = vunpack.c.l.b16 %v2063
      %v2096 = vunpack.c.l.b16 %v2064
      %v2097 = vunpack.c.l.b16 %v2065
      %v2098 = vunpack.c.l.b16 %v2066
      %v2099 = vunpack.c.l.b16 %v2067
      %v2100 = vunpack.c.l.b16 %v2068
      %v2101 = vunpack.c.l.b16 %v2069
      %v2102 = vpack.c.b16 %v2087, %v2086
      %v2103 = vpack.c.b16 %v2089, %v2088
      %v2104 = vpack.c.b16 %v2091, %v2090
      %v2105 = vpack.c.b16 %v2093, %v2092
      %v2106 = vpack.c.b16 %v2095, %v2094
      %v2107 = vpack.c.b16 %v2097, %v2096
      %v2108 = vpack.c.b16 %v2099, %v2098
      %v2109 = vpack.c.b16 %v2101, %v2100
      %2118 = vmatprep.subr.bf16.mxu0 0
      %2119 = vmatpush1.bf16.msra.mxu0 %v2102
      %2120 = vmatprep.subr.bf16.mxu0 0
      %2121 = vmatpush1.bf16.msra.mxu0 %v2103
      %2122 = vmatprep.subr.bf16.mxu0 0
      %2123 = vmatpush1.bf16.msra.mxu0 %v2104
      %2124 = vmatprep.subr.bf16.mxu0 0
      %2125 = vmatpush1.bf16.msra.mxu0 %v2105
      %2126 = vmatprep.subr.bf16.mxu0 0
      %2127 = vmatpush1.bf16.msra.mxu0 %v2106
      %2128 = vmatprep.subr.bf16.mxu0 0
      %2129 = vmatpush1.bf16.msra.mxu0 %v2107
      %2130 = vmatprep.subr.bf16.mxu0 0
      %2131 = vmatpush1.bf16.msra.mxu0 %v2108
      %2132 = vmatprep.subr.bf16.mxu0 0
      %2133 = vmatpush1.bf16.msra.mxu0 %v2109
      %2134 = vmatprep.subr.bf16.mxu0 0
      %2135 = vmatpush1.bf16.msra.mxu0 0
      %2136 = vmatprep.subr.bf16.mxu0 0
      %2137 = vmatpush1.bf16.msra.mxu0 0
      %2138 = vmatprep.subr.bf16.mxu0 0
      %2139 = vmatpush1.bf16.msra.mxu0 0
      %2140 = vmatprep.subr.bf16.mxu0 0
      %2141 = vmatpush1.bf16.msra.mxu0 0
      %2142 = vmatprep.subr.bf16.mxu0 0
      %2143 = vmatpush1.bf16.msra.mxu0 0
      %2144 = vmatprep.subr.bf16.mxu0 0
      %2145 = vmatpush1.bf16.msra.mxu0 0
      %2146 = vmatprep.subr.bf16.mxu0 0
      %2147 = vmatpush1.bf16.msra.mxu0 0
      %2148 = vmatprep.subr.bf16.mxu0 0
      %2149 = vmatpush1.bf16.msra.mxu0 0
      %2150 = vmatprep.mubr.bf16.mxu0 0
      %2151 = vmatmul.mubr.bf16.gmra.mrb[0].mxu0 %v2035
      %v2152 = vpop.f32.mrb[0].mxu0
      %v2153 = vadd.f32 0.0, %v2152
      %v2154 = vpop.f32.mrb[0].mxu0
      %v2155 = vpop.f32.mrb[0].mxu0
      %v2156 = vadd.f32 0.0, %v2155
      %v2157 = vpop.f32.mrb[0].mxu0
      %2158 = vmatprep.mubr.bf16.mxu0 0
      %2159 = vmatmul.mubr.bf16.gmra.mrb[0].mxu0 %v2036
      %v2160 = vpop.f32.mrb[0].mxu0
      %v2161 = vadd.f32 0.0, %v2160
      %v2162 = vpop.f32.mrb[0].mxu0
      %v2163 = vpop.f32.mrb[0].mxu0
      %v2164 = vadd.f32 0.0, %v2163
      %v2165 = vpop.f32.mrb[0].mxu0
      %2166 = vmatprep.mubr.bf16.mxu0 0
      %2167 = vmatmul.mubr.bf16.gmra.mrb[0].mxu0 %v2037
      %v2168 = vpop.f32.mrb[0].mxu0
      %v2169 = vadd.f32 0.0, %v2168
      %v2170 = vpop.f32.mrb[0].mxu0
      %v2171 = vpop.f32.mrb[0].mxu0
      %v2172 = vadd.f32 0.0, %v2171
      %v2173 = vpop.f32.mrb[0].mxu0
      %2174 = vmatprep.mubr.bf16.mxu0 0
      %2175 = vmatmul.mubr.bf16.gmra.mrb[0].mxu0 %v2038
      %v2176 = vpop.f32.mrb[0].mxu0
      %v2177 = vadd.f32 0.0, %v2176
      %v2178 = vpop.f32.mrb[0].mxu0
      %v2179 = vpop.f32.mrb[0].mxu0
      %v2180 = vadd.f32 0.0, %v2179
      %v2181 = vpop.f32.mrb[0].mxu0
      %2182 = vmatprep.mubr.bf16.mxu0 0
      %2183 = vmatmul.mubr.bf16.gmra.mrb[0].mxu0 %v2039
      %v2184 = vpop.f32.mrb[0].mxu0
      %v2185 = vadd.f32 0.0, %v2184
      %v2186 = vpop.f32.mrb[0].mxu0
      %v2187 = vpop.f32.mrb[0].mxu0
      %v2188 = vadd.f32 0.0, %v2187
      %v2189 = vpop.f32.mrb[0].mxu0
      %2190 = vmatprep.mubr.bf16.mxu0 0
      %2191 = vmatmul.mubr.bf16.gmra.mrb[0].mxu0 %v2040
      %v2192 = vpop.f32.mrb[0].mxu0
      %v2193 = vadd.f32 0.0, %v2192
      %v2194 = vpop.f32.mrb[0].mxu0
      %v2195 = vpop.f32.mrb[0].mxu0
      %v2196 = vadd.f32 0.0, %v2195
      %v2197 = vpop.f32.mrb[0].mxu0
      %2198 = vmatprep.mubr.bf16.mxu0 0
      %2199 = vmatmul.mubr.bf16.gmra.mrb[0].mxu0 %v2041
      %v2200 = vpop.f32.mrb[0].mxu0
      %v2201 = vadd.f32 0.0, %v2200
      %v2202 = vpop.f32.mrb[0].mxu0
      %v2203 = vpop.f32.mrb[0].mxu0
      %v2204 = vadd.f32 0.0, %v2203
      %v2205 = vpop.f32.mrb[0].mxu0
      %2206 = vmatprep.mubr.bf16.mxu0 0
      %2207 = vmatmul.mubr.bf16.gmra.mrb[0].mxu0 %v2042
      %v2208 = vpop.f32.mrb[0].mxu0
      %v2209 = vadd.f32 0.0, %v2208
      %v2210 = vpop.f32.mrb[0].mxu0
      %v2211 = vpop.f32.mrb[0].mxu0
      %v2212 = vadd.f32 0.0, %v2211
      %v2213 = vpop.f32.mrb[0].mxu0
      %2214 = vmatprep.mubr.bf16.mxu0 0
      %2215 = vmatmul.mubr.bf16.gmra.mrb[0].mxu0 %v2043
      %v2216 = vpop.f32.mrb[0].mxu0
      %v2217 = vadd.f32 0.0, %v2216
      %v2218 = vpop.f32.mrb[0].mxu0
      %v2219 = vpop.f32.mrb[0].mxu0
      %v2220 = vadd.f32 0.0, %v2219
      %v2221 = vpop.f32.mrb[0].mxu0
      %2222 = vmatprep.mubr.bf16.mxu0 0
      %2223 = vmatmul.mubr.bf16.gmra.mrb[0].mxu0 %v2044
      %v2224 = vpop.f32.mrb[0].mxu0
      %v2225 = vadd.f32 0.0, %v2224
      %v2226 = vpop.f32.mrb[0].mxu0
      %v2227 = vpop.f32.mrb[0].mxu0
      %v2228 = vadd.f32 0.0, %v2227
      %v2229 = vpop.f32.mrb[0].mxu0
      %2230 = vmatprep.mubr.bf16.mxu0 0
      %2231 = vmatmul.mubr.bf16.gmra.mrb[0].mxu0 %v2045
      %v2232 = vpop.f32.mrb[0].mxu0
      %v2233 = vadd.f32 0.0, %v2232
      %v2234 = vpop.f32.mrb[0].mxu0
      %v2235 = vpop.f32.mrb[0].mxu0
      %v2236 = vadd.f32 0.0, %v2235
      %v2237 = vpop.f32.mrb[0].mxu0
      %2238 = vmatprep.mubr.bf16.mxu0 0
      %2239 = vmatmul.mubr.bf16.gmra.mrb[0].mxu0 %v2046
      %v2240 = vpop.f32.mrb[0].mxu0
      %v2241 = vadd.f32 0.0, %v2240
      %v2242 = vpop.f32.mrb[0].mxu0
      %v2243 = vpop.f32.mrb[0].mxu0
      %v2244 = vadd.f32 0.0, %v2243
      %v2245 = vpop.f32.mrb[0].mxu0
      %2246 = vmatprep.mubr.bf16.mxu0 0
      %2247 = vmatmul.mubr.bf16.gmra.mrb[0].mxu0 %v2047
      %v2248 = vpop.f32.mrb[0].mxu0
      %v2249 = vadd.f32 0.0, %v2248
      %v2250 = vpop.f32.mrb[0].mxu0
      %v2251 = vpop.f32.mrb[0].mxu0
      %v2252 = vadd.f32 0.0, %v2251
      %v2253 = vpop.f32.mrb[0].mxu0
      %2254 = vmatprep.mubr.bf16.mxu0 0
      %2255 = vmatmul.mubr.bf16.gmra.mrb[0].mxu0 %v2048
      %v2256 = vpop.f32.mrb[0].mxu0
      %v2257 = vadd.f32 0.0, %v2256
      %v2258 = vpop.f32.mrb[0].mxu0
      %v2259 = vpop.f32.mrb[0].mxu0
      %v2260 = vadd.f32 0.0, %v2259
      %v2261 = vpop.f32.mrb[0].mxu0
      %2262 = vmatprep.mubr.bf16.mxu0 0
      %2263 = vmatmul.mubr.bf16.gmra.mrb[0].mxu0 %v2049
      %v2264 = vpop.f32.mrb[0].mxu0
      %v2265 = vadd.f32 0.0, %v2264
      %v2266 = vpop.f32.mrb[0].mxu0
      %v2267 = vpop.f32.mrb[0].mxu0
      %v2268 = vadd.f32 0.0, %v2267
      %v2269 = vpop.f32.mrb[0].mxu0
      %2270 = vmatprep.mubr.bf16.mxu0 0
      %2271 = vmatmul.mubr.bf16.gmra.mrb[0].mxu0 %v2050
      %v2272 = vpop.f32.mrb[0].mxu0
      %v2273 = vadd.f32 0.0, %v2272
      %v2274 = vpop.f32.mrb[0].mxu0
      %v2275 = vpop.f32.mrb[0].mxu0
      %v2276 = vadd.f32 0.0, %v2275
      %v2277 = vpop.f32.mrb[0].mxu0
      %2278 = vmatprep.mubr.bf16.mxu0 0
      %2279 = vmatmul.mubr.bf16.gmra.mrb[0].mxu0 %v2051
      %v2280 = vpop.f32.mrb[0].mxu0
      %v2281 = vadd.f32 0.0, %v2280
      %v2282 = vpop.f32.mrb[0].mxu0
      %v2283 = vpop.f32.mrb[0].mxu0
      %v2284 = vadd.f32 0.0, %v2283
      %v2285 = vpop.f32.mrb[0].mxu0
      %2286 = vmatprep.mubr.bf16.mxu0 0
      %2287 = vmatmul.mubr.bf16.gmra.mrb[0].mxu0 %v2052
      %v2288 = vpop.f32.mrb[0].mxu0
      %v2289 = vadd.f32 0.0, %v2288
      %v2290 = vpop.f32.mrb[0].mxu0
      %v2291 = vpop.f32.mrb[0].mxu0
      %v2292 = vadd.f32 0.0, %v2291
      %v2293 = vpop.f32.mrb[0].mxu0
      %2294 = vdwg.mxu0
      %v2295 = vadd.f32 %v1963, %v2153
      %v2296 = vadd.f32 %v1964, %v2156
      %v2297 = vadd.f32 %v1965, %v2161
      %v2298 = vadd.f32 %v1966, %v2164
      %v2299 = vadd.f32 %v1967, %v2169
      %v2300 = vadd.f32 %v1968, %v2172
      %v2301 = vadd.f32 %v1969, %v2177
      %v2302 = vadd.f32 %v1970, %v2180
      %v2303 = vadd.f32 %v1971, %v2185
      %v2304 = vadd.f32 %v1972, %v2188
      %v2305 = vadd.f32 %v1973, %v2193
      %v2306 = vadd.f32 %v1974, %v2196
      %v2307 = vadd.f32 %v1975, %v2201
      %v2308 = vadd.f32 %v1976, %v2204
      %v2309 = vadd.f32 %v1977, %v2209
      %v2310 = vadd.f32 %v1978, %v2212
      %v2311 = vadd.f32 %v1979, %v2217
      %v2312 = vadd.f32 %v1980, %v2220
      %v2313 = vadd.f32 %v1981, %v2225
      %v2314 = vadd.f32 %v1982, %v2228
      %v2315 = vadd.f32 %v1983, %v2233
      %v2316 = vadd.f32 %v1984, %v2236
      %v2317 = vadd.f32 %v1985, %v2241
      %v2318 = vadd.f32 %v1986, %v2244
      %v2319 = vadd.f32 %v1987, %v2249
      %v2320 = vadd.f32 %v1988, %v2252
      %v2321 = vadd.f32 %v1989, %v2257
      %v2322 = vadd.f32 %v1990, %v2260
      %v2323 = vadd.f32 %v1991, %v2265
      %v2324 = vadd.f32 %v1992, %v2268
      %v2325 = vadd.f32 %v1993, %v2273
      %v2326 = vadd.f32 %v1994, %v2276
      %v2327 = vadd.f32 %v1995, %v2281
      %v2328 = vadd.f32 %v1996, %v2284
      %v2329 = vadd.f32 %v1997, %v2289
      %v2330 = vadd.f32 %v1998, %v2292
      %v2331 = vld [vmem:[#allocation2 + $0x24] sm:$0xff]
      %v2332 = vld [vmem:[#allocation2 + $0x2c] sm:$0xff]
      %v2333 = vld [vmem:[#allocation2 + $0x34] sm:$0xff]
      %v2334 = vld [vmem:[#allocation2 + $0x3c] sm:$0xff]
      %v2335 = vld [vmem:[#allocation2 + $0x44] sm:$0xff]
      %v2336 = vld [vmem:[#allocation2 + $0x4c] sm:$0xff]
      %v2337 = vld [vmem:[#allocation2 + $0x54] sm:$0xff]
      %v2338 = vld [vmem:[#allocation2 + $0x5c] sm:$0xff]
      %v2339 = vld [vmem:[#allocation2 + $0x64] sm:$0xff]
      %v2340 = vld [vmem:[#allocation2 + $0x6c] sm:$0xff]
      %v2341 = vld [vmem:[#allocation2 + $0x74] sm:$0xff]
      %v2342 = vld [vmem:[#allocation2 + $0x7c] sm:$0xff]
      %v2343 = vld [vmem:[#allocation2 + $0x84] sm:$0xff]
      %v2344 = vld [vmem:[#allocation2 + $0x8c] sm:$0xff]
      %v2345 = vld [vmem:[#allocation2 + $0x94] sm:$0xff]
      %v2346 = vld [vmem:[#allocation2 + $0x9c] sm:$0xff]
      %v2347 = vld [vmem:[#allocation2 + $0xa4] sm:$0xff]
      %v2348 = vld [vmem:[#allocation2 + $0xac] sm:$0xff]
      %v2349 = vld [vmem:[#allocation2 + $0xb4] sm:$0xff]
      %v2350 = vld [vmem:[#allocation2 + $0xbc] sm:$0xff]
      %v2351 = vld [vmem:[#allocation2 + $0xc4] sm:$0xff]
      %v2352 = vld [vmem:[#allocation2 + $0xcc] sm:$0xff]
      %v2353 = vld [vmem:[#allocation2 + $0xd4] sm:$0xff]
      %v2354 = vld [vmem:[#allocation2 + $0xdc] sm:$0xff]
      %v2355 = vld [vmem:[#allocation2 + $0xe4] sm:$0xff]
      %v2356 = vld [vmem:[#allocation2 + $0xec] sm:$0xff]
      %v2357 = vld [vmem:[#allocation2 + $0xf4] sm:$0xff]
      %v2358 = vld [vmem:[#allocation2 + $0xfc] sm:$0xff]
      %v2359 = vld [vmem:[#allocation2 + $0x104] sm:$0xff]
      %v2360 = vld [vmem:[#allocation2 + $0x10c] sm:$0xff]
      %v2361 = vld [vmem:[#allocation2 + $0x114] sm:$0xff]
      %v2362 = vld [vmem:[#allocation2 + $0x11c] sm:$0xff]
      %v2363 = vld [vmem:[#allocation2 + $0x124] sm:$0xff]
      %v2364 = vld [vmem:[#allocation2 + $0x12c] sm:$0xff]
      %v2365 = vld [vmem:[#allocation2 + $0x134] sm:$0xff]
      %v2366 = vld [vmem:[#allocation2 + $0x13c] sm:$0xff]
      %v2367 = vpack.c.bf16 %v2332, %v2331
      %v2368 = vpack.c.bf16 %v2334, %v2333
      %v2369 = vpack.c.bf16 %v2336, %v2335
      %v2370 = vpack.c.bf16 %v2338, %v2337
      %v2371 = vpack.c.bf16 %v2340, %v2339
      %v2372 = vpack.c.bf16 %v2342, %v2341
      %v2373 = vpack.c.bf16 %v2344, %v2343
      %v2374 = vpack.c.bf16 %v2346, %v2345
      %v2375 = vpack.c.bf16 %v2348, %v2347
      %v2376 = vpack.c.bf16 %v2350, %v2349
      %v2377 = vpack.c.bf16 %v2352, %v2351
      %v2378 = vpack.c.bf16 %v2354, %v2353
      %v2379 = vpack.c.bf16 %v2356, %v2355
      %v2380 = vpack.c.bf16 %v2358, %v2357
      %v2381 = vpack.c.bf16 %v2360, %v2359
      %v2382 = vpack.c.bf16 %v2362, %v2361
      %v2383 = vpack.c.bf16 %v2364, %v2363
      %v2384 = vpack.c.bf16 %v2366, %v2365
      %s2385 = scalar_lea.vmem %s1, 384
      %v2386 = vld [vmem:[%s2385] sm:$0xf]
      %v2387 = vld [vmem:[%s2385 + $0x4] sm:$0xf]
      %v2388 = vld [vmem:[%s2385 + $0x8] sm:$0xf]
      %v2389 = vld [vmem:[%s2385 + $0xc] sm:$0xf]
      %v2390 = vld [vmem:[%s2385 + $0x10] sm:$0xf]
      %v2391 = vld [vmem:[%s2385 + $0x14] sm:$0xf]
      %v2392 = vld [vmem:[%s2385 + $0x18] sm:$0xf]
      %v2393 = vld [vmem:[%s2385 + $0x1c] sm:$0xf]
      %v2394 = vld [vmem:[%s2385 + $0x20] sm:$0xf]
      %v2395 = vld [vmem:[%s2385 + $0x24] sm:$0xf]
      %v2396 = vld [vmem:[%s2385 + $0x28] sm:$0xf]
      %v2397 = vld [vmem:[%s2385 + $0x2c] sm:$0xf]
      %v2398 = vld [vmem:[%s2385 + $0x30] sm:$0xf]
      %v2399 = vld [vmem:[%s2385 + $0x34] sm:$0xf]
      %v2400 = vld [vmem:[%s2385 + $0x38] sm:$0xf]
      %v2401 = vld [vmem:[%s2385 + $0x3c] sm:$0xf]
      %v2418 = vunpack.c.l.b16 %v2386
      %v2419 = vunpack.c.l.b16 %v2387
      %v2420 = vunpack.c.l.b16 %v2388
      %v2421 = vunpack.c.l.b16 %v2389
      %v2422 = vunpack.c.l.b16 %v2390
      %v2423 = vunpack.c.l.b16 %v2391
      %v2424 = vunpack.c.l.b16 %v2392
      %v2425 = vunpack.c.l.b16 %v2393
      %v2426 = vunpack.c.l.b16 %v2394
      %v2427 = vunpack.c.l.b16 %v2395
      %v2428 = vunpack.c.l.b16 %v2396
      %v2429 = vunpack.c.l.b16 %v2397
      %v2430 = vunpack.c.l.b16 %v2398
      %v2431 = vunpack.c.l.b16 %v2399
      %v2432 = vunpack.c.l.b16 %v2400
      %v2433 = vunpack.c.l.b16 %v2401
      %v2434 = vpack.c.b16 %v2419, %v2418
      %v2435 = vpack.c.b16 %v2421, %v2420
      %v2436 = vpack.c.b16 %v2423, %v2422
      %v2437 = vpack.c.b16 %v2425, %v2424
      %v2438 = vpack.c.b16 %v2427, %v2426
      %v2439 = vpack.c.b16 %v2429, %v2428
      %v2440 = vpack.c.b16 %v2431, %v2430
      %v2441 = vpack.c.b16 %v2433, %v2432
      %2450 = vmatprep.subr.bf16.mxu0 0
      %2451 = vmatpush1.bf16.msra.mxu0 %v2434
      %2452 = vmatprep.subr.bf16.mxu0 0
      %2453 = vmatpush1.bf16.msra.mxu0 %v2435
      %2454 = vmatprep.subr.bf16.mxu0 0
      %2455 = vmatpush1.bf16.msra.mxu0 %v2436
      %2456 = vmatprep.subr.bf16.mxu0 0
      %2457 = vmatpush1.bf16.msra.mxu0 %v2437
      %2458 = vmatprep.subr.bf16.mxu0 0
      %2459 = vmatpush1.bf16.msra.mxu0 %v2438
      %2460 = vmatprep.subr.bf16.mxu0 0
      %2461 = vmatpush1.bf16.msra.mxu0 %v2439
      %2462 = vmatprep.subr.bf16.mxu0 0
      %2463 = vmatpush1.bf16.msra.mxu0 %v2440
      %2464 = vmatprep.subr.bf16.mxu0 0
      %2465 = vmatpush1.bf16.msra.mxu0 %v2441
      %2466 = vmatprep.subr.bf16.mxu0 0
      %2467 = vmatpush1.bf16.msra.mxu0 0
      %2468 = vmatprep.subr.bf16.mxu0 0
      %2469 = vmatpush1.bf16.msra.mxu0 0
      %2470 = vmatprep.subr.bf16.mxu0 0
      %2471 = vmatpush1.bf16.msra.mxu0 0
      %2472 = vmatprep.subr.bf16.mxu0 0
      %2473 = vmatpush1.bf16.msra.mxu0 0
      %2474 = vmatprep.subr.bf16.mxu0 0
      %2475 = vmatpush1.bf16.msra.mxu0 0
      %2476 = vmatprep.subr.bf16.mxu0 0
      %2477 = vmatpush1.bf16.msra.mxu0 0
      %2478 = vmatprep.subr.bf16.mxu0 0
      %2479 = vmatpush1.bf16.msra.mxu0 0
      %2480 = vmatprep.subr.bf16.mxu0 0
      %2481 = vmatpush1.bf16.msra.mxu0 0
      %2482 = vmatprep.mubr.bf16.mxu0 0
      %2483 = vmatmul.mubr.bf16.gmra.mrb[0].mxu0 %v2367
      %v2484 = vpop.f32.mrb[0].mxu0
      %v2485 = vadd.f32 0.0, %v2484
      %v2486 = vpop.f32.mrb[0].mxu0
      %v2487 = vpop.f32.mrb[0].mxu0
      %v2488 = vadd.f32 0.0, %v2487
      %v2489 = vpop.f32.mrb[0].mxu0
      %2490 = vmatprep.mubr.bf16.mxu0 0
      %2491 = vmatmul.mubr.bf16.gmra.mrb[0].mxu0 %v2368
      %v2492 = vpop.f32.mrb[0].mxu0
      %v2493 = vadd.f32 0.0, %v2492
      %v2494 = vpop.f32.mrb[0].mxu0
      %v2495 = vpop.f32.mrb[0].mxu0
      %v2496 = vadd.f32 0.0, %v2495
      %v2497 = vpop.f32.mrb[0].mxu0
      %2498 = vmatprep.mubr.bf16.mxu0 0
      %2499 = vmatmul.mubr.bf16.gmra.mrb[0].mxu0 %v2369
      %v2500 = vpop.f32.mrb[0].mxu0
      %v2501 = vadd.f32 0.0, %v2500
      %v2502 = vpop.f32.mrb[0].mxu0
      %v2503 = vpop.f32.mrb[0].mxu0
      %v2504 = vadd.f32 0.0, %v2503
      %v2505 = vpop.f32.mrb[0].mxu0
      %2506 = vmatprep.mubr.bf16.mxu0 0
      %2507 = vmatmul.mubr.bf16.gmra.mrb[0].mxu0 %v2370
      %v2508 = vpop.f32.mrb[0].mxu0
      %v2509 = vadd.f32 0.0, %v2508
      %v2510 = vpop.f32.mrb[0].mxu0
      %v2511 = vpop.f32.mrb[0].mxu0
      %v2512 = vadd.f32 0.0, %v2511
      %v2513 = vpop.f32.mrb[0].mxu0
      %2514 = vmatprep.mubr.bf16.mxu0 0
      %2515 = vmatmul.mubr.bf16.gmra.mrb[0].mxu0 %v2371
      %v2516 = vpop.f32.mrb[0].mxu0
      %v2517 = vadd.f32 0.0, %v2516
      %v2518 = vpop.f32.mrb[0].mxu0
      %v2519 = vpop.f32.mrb[0].mxu0
      %v2520 = vadd.f32 0.0, %v2519
      %v2521 = vpop.f32.mrb[0].mxu0
      %2522 = vmatprep.mubr.bf16.mxu0 0
      %2523 = vmatmul.mubr.bf16.gmra.mrb[0].mxu0 %v2372
      %v2524 = vpop.f32.mrb[0].mxu0
      %v2525 = vadd.f32 0.0, %v2524
      %v2526 = vpop.f32.mrb[0].mxu0
      %v2527 = vpop.f32.mrb[0].mxu0
      %v2528 = vadd.f32 0.0, %v2527
      %v2529 = vpop.f32.mrb[0].mxu0
      %2530 = vmatprep.mubr.bf16.mxu0 0
      %2531 = vmatmul.mubr.bf16.gmra.mrb[0].mxu0 %v2373
      %v2532 = vpop.f32.mrb[0].mxu0
      %v2533 = vadd.f32 0.0, %v2532
      %v2534 = vpop.f32.mrb[0].mxu0
      %v2535 = vpop.f32.mrb[0].mxu0
      %v2536 = vadd.f32 0.0, %v2535
      %v2537 = vpop.f32.mrb[0].mxu0
      %2538 = vmatprep.mubr.bf16.mxu0 0
      %2539 = vmatmul.mubr.bf16.gmra.mrb[0].mxu0 %v2374
      %v2540 = vpop.f32.mrb[0].mxu0
      %v2541 = vadd.f32 0.0, %v2540
      %v2542 = vpop.f32.mrb[0].mxu0
      %v2543 = vpop.f32.mrb[0].mxu0
      %v2544 = vadd.f32 0.0, %v2543
      %v2545 = vpop.f32.mrb[0].mxu0
      %2546 = vmatprep.mubr.bf16.mxu0 0
      %2547 = vmatmul.mubr.bf16.gmra.mrb[0].mxu0 %v2375
      %v2548 = vpop.f32.mrb[0].mxu0
      %v2549 = vadd.f32 0.0, %v2548
      %v2550 = vpop.f32.mrb[0].mxu0
      %v2551 = vpop.f32.mrb[0].mxu0
      %v2552 = vadd.f32 0.0, %v2551
      %v2553 = vpop.f32.mrb[0].mxu0
      %2554 = vmatprep.mubr.bf16.mxu0 0
      %2555 = vmatmul.mubr.bf16.gmra.mrb[0].mxu0 %v2376
      %v2556 = vpop.f32.mrb[0].mxu0
      %v2557 = vadd.f32 0.0, %v2556
      %v2558 = vpop.f32.mrb[0].mxu0
      %v2559 = vpop.f32.mrb[0].mxu0
      %v2560 = vadd.f32 0.0, %v2559
      %v2561 = vpop.f32.mrb[0].mxu0
      %2562 = vmatprep.mubr.bf16.mxu0 0
      %2563 = vmatmul.mubr.bf16.gmra.mrb[0].mxu0 %v2377
      %v2564 = vpop.f32.mrb[0].mxu0
      %v2565 = vadd.f32 0.0, %v2564
      %v2566 = vpop.f32.mrb[0].mxu0
      %v2567 = vpop.f32.mrb[0].mxu0
      %v2568 = vadd.f32 0.0, %v2567
      %v2569 = vpop.f32.mrb[0].mxu0
      %2570 = vmatprep.mubr.bf16.mxu0 0
      %2571 = vmatmul.mubr.bf16.gmra.mrb[0].mxu0 %v2378
      %v2572 = vpop.f32.mrb[0].mxu0
      %v2573 = vadd.f32 0.0, %v2572
      %v2574 = vpop.f32.mrb[0].mxu0
      %v2575 = vpop.f32.mrb[0].mxu0
      %v2576 = vadd.f32 0.0, %v2575
      %v2577 = vpop.f32.mrb[0].mxu0
      %2578 = vmatprep.mubr.bf16.mxu0 0
      %2579 = vmatmul.mubr.bf16.gmra.mrb[0].mxu0 %v2379
      %v2580 = vpop.f32.mrb[0].mxu0
      %v2581 = vadd.f32 0.0, %v2580
      %v2582 = vpop.f32.mrb[0].mxu0
      %v2583 = vpop.f32.mrb[0].mxu0
      %v2584 = vadd.f32 0.0, %v2583
      %v2585 = vpop.f32.mrb[0].mxu0
      %2586 = vmatprep.mubr.bf16.mxu0 0
      %2587 = vmatmul.mubr.bf16.gmra.mrb[0].mxu0 %v2380
      %v2588 = vpop.f32.mrb[0].mxu0
      %v2589 = vadd.f32 0.0, %v2588
      %v2590 = vpop.f32.mrb[0].mxu0
      %v2591 = vpop.f32.mrb[0].mxu0
      %v2592 = vadd.f32 0.0, %v2591
      %v2593 = vpop.f32.mrb[0].mxu0
      %2594 = vmatprep.mubr.bf16.mxu0 0
      %2595 = vmatmul.mubr.bf16.gmra.mrb[0].mxu0 %v2381
      %v2596 = vpop.f32.mrb[0].mxu0
      %v2597 = vadd.f32 0.0, %v2596
      %v2598 = vpop.f32.mrb[0].mxu0
      %v2599 = vpop.f32.mrb[0].mxu0
      %v2600 = vadd.f32 0.0, %v2599
      %v2601 = vpop.f32.mrb[0].mxu0
      %2602 = vmatprep.mubr.bf16.mxu0 0
      %2603 = vmatmul.mubr.bf16.gmra.mrb[0].mxu0 %v2382
      %v2604 = vpop.f32.mrb[0].mxu0
      %v2605 = vadd.f32 0.0, %v2604
      %v2606 = vpop.f32.mrb[0].mxu0
      %v2607 = vpop.f32.mrb[0].mxu0
      %v2608 = vadd.f32 0.0, %v2607
      %v2609 = vpop.f32.mrb[0].mxu0
      %2610 = vmatprep.mubr.bf16.mxu0 0
      %2611 = vmatmul.mubr.bf16.gmra.mrb[0].mxu0 %v2383
      %v2612 = vpop.f32.mrb[0].mxu0
      %v2613 = vadd.f32 0.0, %v2612
      %v2614 = vpop.f32.mrb[0].mxu0
      %v2615 = vpop.f32.mrb[0].mxu0
      %v2616 = vadd.f32 0.0, %v2615
      %v2617 = vpop.f32.mrb[0].mxu0
      %2618 = vmatprep.mubr.bf16.mxu0 0
      %2619 = vmatmul.mubr.bf16.gmra.mrb[0].mxu0 %v2384
      %v2620 = vpop.f32.mrb[0].mxu0
      %v2621 = vadd.f32 0.0, %v2620
      %v2622 = vpop.f32.mrb[0].mxu0
      %v2623 = vpop.f32.mrb[0].mxu0
      %v2624 = vadd.f32 0.0, %v2623
      %v2625 = vpop.f32.mrb[0].mxu0
      %2626 = vdwg.mxu0
      %v2627 = vadd.f32 %v2295, %v2485
      %v2628 = vadd.f32 %v2296, %v2488
      %v2629 = vadd.f32 %v2297, %v2493
      %v2630 = vadd.f32 %v2298, %v2496
      %v2631 = vadd.f32 %v2299, %v2501
      %v2632 = vadd.f32 %v2300, %v2504
      %v2633 = vadd.f32 %v2301, %v2509
      %v2634 = vadd.f32 %v2302, %v2512
      %v2635 = vadd.f32 %v2303, %v2517
      %v2636 = vadd.f32 %v2304, %v2520
      %v2637 = vadd.f32 %v2305, %v2525
      %v2638 = vadd.f32 %v2306, %v2528
      %v2639 = vadd.f32 %v2307, %v2533
      %v2640 = vadd.f32 %v2308, %v2536
      %v2641 = vadd.f32 %v2309, %v2541
      %v2642 = vadd.f32 %v2310, %v2544
      %v2643 = vadd.f32 %v2311, %v2549
      %v2644 = vadd.f32 %v2312, %v2552
      %v2645 = vadd.f32 %v2313, %v2557
      %v2646 = vadd.f32 %v2314, %v2560
      %v2647 = vadd.f32 %v2315, %v2565
      %v2648 = vadd.f32 %v2316, %v2568
      %v2649 = vadd.f32 %v2317, %v2573
      %v2650 = vadd.f32 %v2318, %v2576
      %v2651 = vadd.f32 %v2319, %v2581
      %v2652 = vadd.f32 %v2320, %v2584
      %v2653 = vadd.f32 %v2321, %v2589
      %v2654 = vadd.f32 %v2322, %v2592
      %v2655 = vadd.f32 %v2323, %v2597
      %v2656 = vadd.f32 %v2324, %v2600
      %v2657 = vadd.f32 %v2325, %v2605
      %v2658 = vadd.f32 %v2326, %v2608
      %v2659 = vadd.f32 %v2327, %v2613
      %v2660 = vadd.f32 %v2328, %v2616
      %v2661 = vadd.f32 %v2329, %v2621
      %v2662 = vadd.f32 %v2330, %v2624
      %v2663 = vld [vmem:[#allocation2 + $0x25] sm:$0xff]
      %v2664 = vld [vmem:[#allocation2 + $0x2d] sm:$0xff]
      %v2665 = vld [vmem:[#allocation2 + $0x35] sm:$0xff]
      %v2666 = vld [vmem:[#allocation2 + $0x3d] sm:$0xff]
      %v2667 = vld [vmem:[#allocation2 + $0x45] sm:$0xff]
      %v2668 = vld [vmem:[#allocation2 + $0x4d] sm:$0xff]
      %v2669 = vld [vmem:[#allocation2 + $0x55] sm:$0xff]
      %v2670 = vld [vmem:[#allocation2 + $0x5d] sm:$0xff]
      %v2671 = vld [vmem:[#allocation2 + $0x65] sm:$0xff]
      %v2672 = vld [vmem:[#allocation2 + $0x6d] sm:$0xff]
      %v2673 = vld [vmem:[#allocation2 + $0x75] sm:$0xff]
      %v2674 = vld [vmem:[#allocation2 + $0x7d] sm:$0xff]
      %v2675 = vld [vmem:[#allocation2 + $0x85] sm:$0xff]
      %v2676 = vld [vmem:[#allocation2 + $0x8d] sm:$0xff]
      %v2677 = vld [vmem:[#allocation2 + $0x95] sm:$0xff]
      %v2678 = vld [vmem:[#allocation2 + $0x9d] sm:$0xff]
      %v2679 = vld [vmem:[#allocation2 + $0xa5] sm:$0xff]
      %v2680 = vld [vmem:[#allocation2 + $0xad] sm:$0xff]
      %v2681 = vld [vmem:[#allocation2 + $0xb5] sm:$0xff]
      %v2682 = vld [vmem:[#allocation2 + $0xbd] sm:$0xff]
      %v2683 = vld [vmem:[#allocation2 + $0xc5] sm:$0xff]
      %v2684 = vld [vmem:[#allocation2 + $0xcd] sm:$0xff]
      %v2685 = vld [vmem:[#allocation2 + $0xd5] sm:$0xff]
      %v2686 = vld [vmem:[#allocation2 + $0xdd] sm:$0xff]
      %v2687 = vld [vmem:[#allocation2 + $0xe5] sm:$0xff]
      %v2688 = vld [vmem:[#allocation2 + $0xed] sm:$0xff]
      %v2689 = vld [vmem:[#allocation2 + $0xf5] sm:$0xff]
      %v2690 = vld [vmem:[#allocation2 + $0xfd] sm:$0xff]
      %v2691 = vld [vmem:[#allocation2 + $0x105] sm:$0xff]
      %v2692 = vld [vmem:[#allocation2 + $0x10d] sm:$0xff]
      %v2693 = vld [vmem:[#allocation2 + $0x115] sm:$0xff]
      %v2694 = vld [vmem:[#allocation2 + $0x11d] sm:$0xff]
      %v2695 = vld [vmem:[#allocation2 + $0x125] sm:$0xff]
      %v2696 = vld [vmem:[#allocation2 + $0x12d] sm:$0xff]
      %v2697 = vld [vmem:[#allocation2 + $0x135] sm:$0xff]
      %v2698 = vld [vmem:[#allocation2 + $0x13d] sm:$0xff]
      %v2699 = vpack.c.bf16 %v2664, %v2663
      %v2700 = vpack.c.bf16 %v2666, %v2665
      %v2701 = vpack.c.bf16 %v2668, %v2667
      %v2702 = vpack.c.bf16 %v2670, %v2669
      %v2703 = vpack.c.bf16 %v2672, %v2671
      %v2704 = vpack.c.bf16 %v2674, %v2673
      %v2705 = vpack.c.bf16 %v2676, %v2675
      %v2706 = vpack.c.bf16 %v2678, %v2677
      %v2707 = vpack.c.bf16 %v2680, %v2679
      %v2708 = vpack.c.bf16 %v2682, %v2681
      %v2709 = vpack.c.bf16 %v2684, %v2683
      %v2710 = vpack.c.bf16 %v2686, %v2685
      %v2711 = vpack.c.bf16 %v2688, %v2687
      %v2712 = vpack.c.bf16 %v2690, %v2689
      %v2713 = vpack.c.bf16 %v2692, %v2691
      %v2714 = vpack.c.bf16 %v2694, %v2693
      %v2715 = vpack.c.bf16 %v2696, %v2695
      %v2716 = vpack.c.bf16 %v2698, %v2697
      %s2717 = scalar_lea.vmem %s1, 448
      %v2718 = vld [vmem:[%s2717] sm:$0xf]
      %v2719 = vld [vmem:[%s2717 + $0x4] sm:$0xf]
      %v2720 = vld [vmem:[%s2717 + $0x8] sm:$0xf]
      %v2721 = vld [vmem:[%s2717 + $0xc] sm:$0xf]
      %v2722 = vld [vmem:[%s2717 + $0x10] sm:$0xf]
      %v2723 = vld [vmem:[%s2717 + $0x14] sm:$0xf]
      %v2724 = vld [vmem:[%s2717 + $0x18] sm:$0xf]
      %v2725 = vld [vmem:[%s2717 + $0x1c] sm:$0xf]
      %v2726 = vld [vmem:[%s2717 + $0x20] sm:$0xf]
      %v2727 = vld [vmem:[%s2717 + $0x24] sm:$0xf]
      %v2728 = vld [vmem:[%s2717 + $0x28] sm:$0xf]
      %v2729 = vld [vmem:[%s2717 + $0x2c] sm:$0xf]
      %v2730 = vld [vmem:[%s2717 + $0x30] sm:$0xf]
      %v2731 = vld [vmem:[%s2717 + $0x34] sm:$0xf]
      %v2732 = vld [vmem:[%s2717 + $0x38] sm:$0xf]
      %v2733 = vld [vmem:[%s2717 + $0x3c] sm:$0xf]
      %v2750 = vunpack.c.l.b16 %v2718
      %v2751 = vunpack.c.l.b16 %v2719
      %v2752 = vunpack.c.l.b16 %v2720
      %v2753 = vunpack.c.l.b16 %v2721
      %v2754 = vunpack.c.l.b16 %v2722
      %v2755 = vunpack.c.l.b16 %v2723
      %v2756 = vunpack.c.l.b16 %v2724
      %v2757 = vunpack.c.l.b16 %v2725
      %v2758 = vunpack.c.l.b16 %v2726
      %v2759 = vunpack.c.l.b16 %v2727
      %v2760 = vunpack.c.l.b16 %v2728
      %v2761 = vunpack.c.l.b16 %v2729
      %v2762 = vunpack.c.l.b16 %v2730
      %v2763 = vunpack.c.l.b16 %v2731
      %v2764 = vunpack.c.l.b16 %v2732
      %v2765 = vunpack.c.l.b16 %v2733
      %v2766 = vpack.c.b16 %v2751, %v2750
      %v2767 = vpack.c.b16 %v2753, %v2752
      %v2768 = vpack.c.b16 %v2755, %v2754
      %v2769 = vpack.c.b16 %v2757, %v2756
      %v2770 = vpack.c.b16 %v2759, %v2758
      %v2771 = vpack.c.b16 %v2761, %v2760
      %v2772 = vpack.c.b16 %v2763, %v2762
      %v2773 = vpack.c.b16 %v2765, %v2764
      %2782 = vmatprep.subr.bf16.mxu0 0
      %2783 = vmatpush1.bf16.msra.mxu0 %v2766
      %2784 = vmatprep.subr.bf16.mxu0 0
      %2785 = vmatpush1.bf16.msra.mxu0 %v2767
      %2786 = vmatprep.subr.bf16.mxu0 0
      %2787 = vmatpush1.bf16.msra.mxu0 %v2768
      %2788 = vmatprep.subr.bf16.mxu0 0
      %2789 = vmatpush1.bf16.msra.mxu0 %v2769
      %2790 = vmatprep.subr.bf16.mxu0 0
      %2791 = vmatpush1.bf16.msra.mxu0 %v2770
      %2792 = vmatprep.subr.bf16.mxu0 0
      %2793 = vmatpush1.bf16.msra.mxu0 %v2771
      %2794 = vmatprep.subr.bf16.mxu0 0
      %2795 = vmatpush1.bf16.msra.mxu0 %v2772
      %2796 = vmatprep.subr.bf16.mxu0 0
      %2797 = vmatpush1.bf16.msra.mxu0 %v2773
      %2798 = vmatprep.subr.bf16.mxu0 0
      %2799 = vmatpush1.bf16.msra.mxu0 0
      %2800 = vmatprep.subr.bf16.mxu0 0
      %2801 = vmatpush1.bf16.msra.mxu0 0
      %2802 = vmatprep.subr.bf16.mxu0 0
      %2803 = vmatpush1.bf16.msra.mxu0 0
      %2804 = vmatprep.subr.bf16.mxu0 0
      %2805 = vmatpush1.bf16.msra.mxu0 0
      %2806 = vmatprep.subr.bf16.mxu0 0
      %2807 = vmatpush1.bf16.msra.mxu0 0
      %2808 = vmatprep.subr.bf16.mxu0 0
      %2809 = vmatpush1.bf16.msra.mxu0 0
      %2810 = vmatprep.subr.bf16.mxu0 0
      %2811 = vmatpush1.bf16.msra.mxu0 0
      %2812 = vmatprep.subr.bf16.mxu0 0
      %2813 = vmatpush1.bf16.msra.mxu0 0
      %2814 = vmatprep.mubr.bf16.mxu0 0
      %2815 = vmatmul.mubr.bf16.gmra.mrb[0].mxu0 %v2699
      %v2816 = vpop.f32.mrb[0].mxu0
      %v2817 = vadd.f32 0.0, %v2816
      %v2818 = vpop.f32.mrb[0].mxu0
      %v2819 = vpop.f32.mrb[0].mxu0
      %v2820 = vadd.f32 0.0, %v2819
      %v2821 = vpop.f32.mrb[0].mxu0
      %2822 = vmatprep.mubr.bf16.mxu0 0
      %2823 = vmatmul.mubr.bf16.gmra.mrb[0].mxu0 %v2700
      %v2824 = vpop.f32.mrb[0].mxu0
      %v2825 = vadd.f32 0.0, %v2824
      %v2826 = vpop.f32.mrb[0].mxu0
      %v2827 = vpop.f32.mrb[0].mxu0
      %v2828 = vadd.f32 0.0, %v2827
      %v2829 = vpop.f32.mrb[0].mxu0
      %2830 = vmatprep.mubr.bf16.mxu0 0
      %2831 = vmatmul.mubr.bf16.gmra.mrb[0].mxu0 %v2701
      %v2832 = vpop.f32.mrb[0].mxu0
      %v2833 = vadd.f32 0.0, %v2832
      %v2834 = vpop.f32.mrb[0].mxu0
      %v2835 = vpop.f32.mrb[0].mxu0
      %v2836 = vadd.f32 0.0, %v2835
      %v2837 = vpop.f32.mrb[0].mxu0
      %2838 = vmatprep.mubr.bf16.mxu0 0
      %2839 = vmatmul.mubr.bf16.gmra.mrb[0].mxu0 %v2702
      %v2840 = vpop.f32.mrb[0].mxu0
      %v2841 = vadd.f32 0.0, %v2840
      %v2842 = vpop.f32.mrb[0].mxu0
      %v2843 = vpop.f32.mrb[0].mxu0
      %v2844 = vadd.f32 0.0, %v2843
      %v2845 = vpop.f32.mrb[0].mxu0
      %2846 = vmatprep.mubr.bf16.mxu0 0
      %2847 = vmatmul.mubr.bf16.gmra.mrb[0].mxu0 %v2703
      %v2848 = vpop.f32.mrb[0].mxu0
      %v2849 = vadd.f32 0.0, %v2848
      %v2850 = vpop.f32.mrb[0].mxu0
      %v2851 = vpop.f32.mrb[0].mxu0
      %v2852 = vadd.f32 0.0, %v2851
      %v2853 = vpop.f32.mrb[0].mxu0
      %2854 = vmatprep.mubr.bf16.mxu0 0
      %2855 = vmatmul.mubr.bf16.gmra.mrb[0].mxu0 %v2704
      %v2856 = vpop.f32.mrb[0].mxu0
      %v2857 = vadd.f32 0.0, %v2856
      %v2858 = vpop.f32.mrb[0].mxu0
      %v2859 = vpop.f32.mrb[0].mxu0
      %v2860 = vadd.f32 0.0, %v2859
      %v2861 = vpop.f32.mrb[0].mxu0
      %2862 = vmatprep.mubr.bf16.mxu0 0
      %2863 = vmatmul.mubr.bf16.gmra.mrb[0].mxu0 %v2705
      %v2864 = vpop.f32.mrb[0].mxu0
      %v2865 = vadd.f32 0.0, %v2864
      %v2866 = vpop.f32.mrb[0].mxu0
      %v2867 = vpop.f32.mrb[0].mxu0
      %v2868 = vadd.f32 0.0, %v2867
      %v2869 = vpop.f32.mrb[0].mxu0
      %2870 = vmatprep.mubr.bf16.mxu0 0
      %2871 = vmatmul.mubr.bf16.gmra.mrb[0].mxu0 %v2706
      %v2872 = vpop.f32.mrb[0].mxu0
      %v2873 = vadd.f32 0.0, %v2872
      %v2874 = vpop.f32.mrb[0].mxu0
      %v2875 = vpop.f32.mrb[0].mxu0
      %v2876 = vadd.f32 0.0, %v2875
      %v2877 = vpop.f32.mrb[0].mxu0
      %2878 = vmatprep.mubr.bf16.mxu0 0
      %2879 = vmatmul.mubr.bf16.gmra.mrb[0].mxu0 %v2707
      %v2880 = vpop.f32.mrb[0].mxu0
      %v2881 = vadd.f32 0.0, %v2880
      %v2882 = vpop.f32.mrb[0].mxu0
      %v2883 = vpop.f32.mrb[0].mxu0
      %v2884 = vadd.f32 0.0, %v2883
      %v2885 = vpop.f32.mrb[0].mxu0
      %2886 = vmatprep.mubr.bf16.mxu0 0
      %2887 = vmatmul.mubr.bf16.gmra.mrb[0].mxu0 %v2708
      %v2888 = vpop.f32.mrb[0].mxu0
      %v2889 = vadd.f32 0.0, %v2888
      %v2890 = vpop.f32.mrb[0].mxu0
      %v2891 = vpop.f32.mrb[0].mxu0
      %v2892 = vadd.f32 0.0, %v2891
      %v2893 = vpop.f32.mrb[0].mxu0
      %2894 = vmatprep.mubr.bf16.mxu0 0
      %2895 = vmatmul.mubr.bf16.gmra.mrb[0].mxu0 %v2709
      %v2896 = vpop.f32.mrb[0].mxu0
      %v2897 = vadd.f32 0.0, %v2896
      %v2898 = vpop.f32.mrb[0].mxu0
      %v2899 = vpop.f32.mrb[0].mxu0
      %v2900 = vadd.f32 0.0, %v2899
      %v2901 = vpop.f32.mrb[0].mxu0
      %2902 = vmatprep.mubr.bf16.mxu0 0
      %2903 = vmatmul.mubr.bf16.gmra.mrb[0].mxu0 %v2710
      %v2904 = vpop.f32.mrb[0].mxu0
      %v2905 = vadd.f32 0.0, %v2904
      %v2906 = vpop.f32.mrb[0].mxu0
      %v2907 = vpop.f32.mrb[0].mxu0
      %v2908 = vadd.f32 0.0, %v2907
      %v2909 = vpop.f32.mrb[0].mxu0
      %2910 = vmatprep.mubr.bf16.mxu0 0
      %2911 = vmatmul.mubr.bf16.gmra.mrb[0].mxu0 %v2711
      %v2912 = vpop.f32.mrb[0].mxu0
      %v2913 = vadd.f32 0.0, %v2912
      %v2914 = vpop.f32.mrb[0].mxu0
      %v2915 = vpop.f32.mrb[0].mxu0
      %v2916 = vadd.f32 0.0, %v2915
      %v2917 = vpop.f32.mrb[0].mxu0
      %2918 = vmatprep.mubr.bf16.mxu0 0
      %2919 = vmatmul.mubr.bf16.gmra.mrb[0].mxu0 %v2712
      %v2920 = vpop.f32.mrb[0].mxu0
      %v2921 = vadd.f32 0.0, %v2920
      %v2922 = vpop.f32.mrb[0].mxu0
      %v2923 = vpop.f32.mrb[0].mxu0
      %v2924 = vadd.f32 0.0, %v2923
      %v2925 = vpop.f32.mrb[0].mxu0
      %2926 = vmatprep.mubr.bf16.mxu0 0
      %2927 = vmatmul.mubr.bf16.gmra.mrb[0].mxu0 %v2713
      %v2928 = vpop.f32.mrb[0].mxu0
      %v2929 = vadd.f32 0.0, %v2928
      %v2930 = vpop.f32.mrb[0].mxu0
      %v2931 = vpop.f32.mrb[0].mxu0
      %v2932 = vadd.f32 0.0, %v2931
      %v2933 = vpop.f32.mrb[0].mxu0
      %2934 = vmatprep.mubr.bf16.mxu0 0
      %2935 = vmatmul.mubr.bf16.gmra.mrb[0].mxu0 %v2714
      %v2936 = vpop.f32.mrb[0].mxu0
      %v2937 = vadd.f32 0.0, %v2936
      %v2938 = vpop.f32.mrb[0].mxu0
      %v2939 = vpop.f32.mrb[0].mxu0
      %v2940 = vadd.f32 0.0, %v2939
      %v2941 = vpop.f32.mrb[0].mxu0
      %2942 = vmatprep.mubr.bf16.mxu0 0
      %2943 = vmatmul.mubr.bf16.gmra.mrb[0].mxu0 %v2715
      %v2944 = vpop.f32.mrb[0].mxu0
      %v2945 = vadd.f32 0.0, %v2944
      %v2946 = vpop.f32.mrb[0].mxu0
      %v2947 = vpop.f32.mrb[0].mxu0
      %v2948 = vadd.f32 0.0, %v2947
      %v2949 = vpop.f32.mrb[0].mxu0
      %2950 = vmatprep.mubr.bf16.mxu0 0
      %2951 = vmatmul.mubr.bf16.gmra.mrb[0].mxu0 %v2716
      %v2952 = vpop.f32.mrb[0].mxu0
      %v2953 = vadd.f32 0.0, %v2952
      %v2954 = vpop.f32.mrb[0].mxu0
      %v2955 = vpop.f32.mrb[0].mxu0
      %v2956 = vadd.f32 0.0, %v2955
      %v2957 = vpop.f32.mrb[0].mxu0
      %2958 = vdwg.mxu0
      %v2959 = vadd.f32 %v2627, %v2817
      %v2960 = vadd.f32 %v2628, %v2820
      %v2961 = vadd.f32 %v2629, %v2825
      %v2962 = vadd.f32 %v2630, %v2828
      %v2963 = vadd.f32 %v2631, %v2833
      %v2964 = vadd.f32 %v2632, %v2836
      %v2965 = vadd.f32 %v2633, %v2841
      %v2966 = vadd.f32 %v2634, %v2844
      %v2967 = vadd.f32 %v2635, %v2849
      %v2968 = vadd.f32 %v2636, %v2852
      %v2969 = vadd.f32 %v2637, %v2857
      %v2970 = vadd.f32 %v2638, %v2860
      %v2971 = vadd.f32 %v2639, %v2865
      %v2972 = vadd.f32 %v2640, %v2868
      %v2973 = vadd.f32 %v2641, %v2873
      %v2974 = vadd.f32 %v2642, %v2876
      %v2975 = vadd.f32 %v2643, %v2881
      %v2976 = vadd.f32 %v2644, %v2884
      %v2977 = vadd.f32 %v2645, %v2889
      %v2978 = vadd.f32 %v2646, %v2892
      %v2979 = vadd.f32 %v2647, %v2897
      %v2980 = vadd.f32 %v2648, %v2900
      %v2981 = vadd.f32 %v2649, %v2905
      %v2982 = vadd.f32 %v2650, %v2908
      %v2983 = vadd.f32 %v2651, %v2913
      %v2984 = vadd.f32 %v2652, %v2916
      %v2985 = vadd.f32 %v2653, %v2921
      %v2986 = vadd.f32 %v2654, %v2924
      %v2987 = vadd.f32 %v2655, %v2929
      %v2988 = vadd.f32 %v2656, %v2932
      %v2989 = vadd.f32 %v2657, %v2937
      %v2990 = vadd.f32 %v2658, %v2940
      %v2991 = vadd.f32 %v2659, %v2945
      %v2992 = vadd.f32 %v2660, %v2948
      %v2993 = vadd.f32 %v2661, %v2953
      %v2994 = vadd.f32 %v2662, %v2956
      %v2995 = vld [vmem:[#allocation2 + $0x26] sm:$0xff]
      %v2996 = vld [vmem:[#allocation2 + $0x2e] sm:$0xff]
      %v2997 = vld [vmem:[#allocation2 + $0x36] sm:$0xff]
      %v2998 = vld [vmem:[#allocation2 + $0x3e] sm:$0xff]
      %v2999 = vld [vmem:[#allocation2 + $0x46] sm:$0xff]
      %v3000 = vld [vmem:[#allocation2 + $0x4e] sm:$0xff]
      %v3001 = vld [vmem:[#allocation2 + $0x56] sm:$0xff]
      %v3002 = vld [vmem:[#allocation2 + $0x5e] sm:$0xff]
      %v3003 = vld [vmem:[#allocation2 + $0x66] sm:$0xff]
      %v3004 = vld [vmem:[#allocation2 + $0x6e] sm:$0xff]
      %v3005 = vld [vmem:[#allocation2 + $0x76] sm:$0xff]
      %v3006 = vld [vmem:[#allocation2 + $0x7e] sm:$0xff]
      %v3007 = vld [vmem:[#allocation2 + $0x86] sm:$0xff]
      %v3008 = vld [vmem:[#allocation2 + $0x8e] sm:$0xff]
      %v3009 = vld [vmem:[#allocation2 + $0x96] sm:$0xff]
      %v3010 = vld [vmem:[#allocation2 + $0x9e] sm:$0xff]
      %v3011 = vld [vmem:[#allocation2 + $0xa6] sm:$0xff]
      %v3012 = vld [vmem:[#allocation2 + $0xae] sm:$0xff]
      %v3013 = vld [vmem:[#allocation2 + $0xb6] sm:$0xff]
      %v3014 = vld [vmem:[#allocation2 + $0xbe] sm:$0xff]
      %v3015 = vld [vmem:[#allocation2 + $0xc6] sm:$0xff]
      %v3016 = vld [vmem:[#allocation2 + $0xce] sm:$0xff]
      %v3017 = vld [vmem:[#allocation2 + $0xd6] sm:$0xff]
      %v3018 = vld [vmem:[#allocation2 + $0xde] sm:$0xff]
      %v3019 = vld [vmem:[#allocation2 + $0xe6] sm:$0xff]
      %v3020 = vld [vmem:[#allocation2 + $0xee] sm:$0xff]
      %v3021 = vld [vmem:[#allocation2 + $0xf6] sm:$0xff]
      %v3022 = vld [vmem:[#allocation2 + $0xfe] sm:$0xff]
      %v3023 = vld [vmem:[#allocation2 + $0x106] sm:$0xff]
      %v3024 = vld [vmem:[#allocation2 + $0x10e] sm:$0xff]
      %v3025 = vld [vmem:[#allocation2 + $0x116] sm:$0xff]
      %v3026 = vld [vmem:[#allocation2 + $0x11e] sm:$0xff]
      %v3027 = vld [vmem:[#allocation2 + $0x126] sm:$0xff]
      %v3028 = vld [vmem:[#allocation2 + $0x12e] sm:$0xff]
      %v3029 = vld [vmem:[#allocation2 + $0x136] sm:$0xff]
      %v3030 = vld [vmem:[#allocation2 + $0x13e] sm:$0xff]
      %v3031 = vpack.c.bf16 %v2996, %v2995
      %v3032 = vpack.c.bf16 %v2998, %v2997
      %v3033 = vpack.c.bf16 %v3000, %v2999
      %v3034 = vpack.c.bf16 %v3002, %v3001
      %v3035 = vpack.c.bf16 %v3004, %v3003
      %v3036 = vpack.c.bf16 %v3006, %v3005
      %v3037 = vpack.c.bf16 %v3008, %v3007
      %v3038 = vpack.c.bf16 %v3010, %v3009
      %v3039 = vpack.c.bf16 %v3012, %v3011
      %v3040 = vpack.c.bf16 %v3014, %v3013
      %v3041 = vpack.c.bf16 %v3016, %v3015
      %v3042 = vpack.c.bf16 %v3018, %v3017
      %v3043 = vpack.c.bf16 %v3020, %v3019
      %v3044 = vpack.c.bf16 %v3022, %v3021
      %v3045 = vpack.c.bf16 %v3024, %v3023
      %v3046 = vpack.c.bf16 %v3026, %v3025
      %v3047 = vpack.c.bf16 %v3028, %v3027
      %v3048 = vpack.c.bf16 %v3030, %v3029
      %s3049 = scalar_lea.vmem %s1, 512
      %v3050 = vld [vmem:[%s3049] sm:$0xf]
      %v3051 = vld [vmem:[%s3049 + $0x4] sm:$0xf]
      %v3052 = vld [vmem:[%s3049 + $0x8] sm:$0xf]
      %v3053 = vld [vmem:[%s3049 + $0xc] sm:$0xf]
      %v3054 = vld [vmem:[%s3049 + $0x10] sm:$0xf]
      %v3055 = vld [vmem:[%s3049 + $0x14] sm:$0xf]
      %v3056 = vld [vmem:[%s3049 + $0x18] sm:$0xf]
      %v3057 = vld [vmem:[%s3049 + $0x1c] sm:$0xf]
      %v3058 = vld [vmem:[%s3049 + $0x20] sm:$0xf]
      %v3059 = vld [vmem:[%s3049 + $0x24] sm:$0xf]
      %v3060 = vld [vmem:[%s3049 + $0x28] sm:$0xf]
      %v3061 = vld [vmem:[%s3049 + $0x2c] sm:$0xf]
      %v3062 = vld [vmem:[%s3049 + $0x30] sm:$0xf]
      %v3063 = vld [vmem:[%s3049 + $0x34] sm:$0xf]
      %v3064 = vld [vmem:[%s3049 + $0x38] sm:$0xf]
      %v3065 = vld [vmem:[%s3049 + $0x3c] sm:$0xf]
      %v3082 = vunpack.c.l.b16 %v3050
      %v3083 = vunpack.c.l.b16 %v3051
      %v3084 = vunpack.c.l.b16 %v3052
      %v3085 = vunpack.c.l.b16 %v3053
      %v3086 = vunpack.c.l.b16 %v3054
      %v3087 = vunpack.c.l.b16 %v3055
      %v3088 = vunpack.c.l.b16 %v3056
      %v3089 = vunpack.c.l.b16 %v3057
      %v3090 = vunpack.c.l.b16 %v3058
      %v3091 = vunpack.c.l.b16 %v3059
      %v3092 = vunpack.c.l.b16 %v3060
      %v3093 = vunpack.c.l.b16 %v3061
      %v3094 = vunpack.c.l.b16 %v3062
      %v3095 = vunpack.c.l.b16 %v3063
      %v3096 = vunpack.c.l.b16 %v3064
      %v3097 = vunpack.c.l.b16 %v3065
      %v3098 = vpack.c.b16 %v3083, %v3082
      %v3099 = vpack.c.b16 %v3085, %v3084
      %v3100 = vpack.c.b16 %v3087, %v3086
      %v3101 = vpack.c.b16 %v3089, %v3088
      %v3102 = vpack.c.b16 %v3091, %v3090
      %v3103 = vpack.c.b16 %v3093, %v3092
      %v3104 = vpack.c.b16 %v3095, %v3094
      %v3105 = vpack.c.b16 %v3097, %v3096
      %3114 = vmatprep.subr.bf16.mxu0 0
      %3115 = vmatpush1.bf16.msra.mxu0 %v3098
      %3116 = vmatprep.subr.bf16.mxu0 0
      %3117 = vmatpush1.bf16.msra.mxu0 %v3099
      %3118 = vmatprep.subr.bf16.mxu0 0
      %3119 = vmatpush1.bf16.msra.mxu0 %v3100
      %3120 = vmatprep.subr.bf16.mxu0 0
      %3121 = vmatpush1.bf16.msra.mxu0 %v3101
      %3122 = vmatprep.subr.bf16.mxu0 0
      %3123 = vmatpush1.bf16.msra.mxu0 %v3102
      %3124 = vmatprep.subr.bf16.mxu0 0
      %3125 = vmatpush1.bf16.msra.mxu0 %v3103
      %3126 = vmatprep.subr.bf16.mxu0 0
      %3127 = vmatpush1.bf16.msra.mxu0 %v3104
      %3128 = vmatprep.subr.bf16.mxu0 0
      %3129 = vmatpush1.bf16.msra.mxu0 %v3105
      %3130 = vmatprep.subr.bf16.mxu0 0
      %3131 = vmatpush1.bf16.msra.mxu0 0
      %3132 = vmatprep.subr.bf16.mxu0 0
      %3133 = vmatpush1.bf16.msra.mxu0 0
      %3134 = vmatprep.subr.bf16.mxu0 0
      %3135 = vmatpush1.bf16.msra.mxu0 0
      %3136 = vmatprep.subr.bf16.mxu0 0
      %3137 = vmatpush1.bf16.msra.mxu0 0
      %3138 = vmatprep.subr.bf16.mxu0 0
      %3139 = vmatpush1.bf16.msra.mxu0 0
      %3140 = vmatprep.subr.bf16.mxu0 0
      %3141 = vmatpush1.bf16.msra.mxu0 0
      %3142 = vmatprep.subr.bf16.mxu0 0
      %3143 = vmatpush1.bf16.msra.mxu0 0
      %3144 = vmatprep.subr.bf16.mxu0 0
      %3145 = vmatpush1.bf16.msra.mxu0 0
      %3146 = vmatprep.mubr.bf16.mxu0 0
      %3147 = vmatmul.mubr.bf16.gmra.mrb[0].mxu0 %v3031
      %v3148 = vpop.f32.mrb[0].mxu0
      %v3149 = vadd.f32 0.0, %v3148
      %v3150 = vpop.f32.mrb[0].mxu0
      %v3151 = vpop.f32.mrb[0].mxu0
      %v3152 = vadd.f32 0.0, %v3151
      %v3153 = vpop.f32.mrb[0].mxu0
      %3154 = vmatprep.mubr.bf16.mxu0 0
      %3155 = vmatmul.mubr.bf16.gmra.mrb[0].mxu0 %v3032
      %v3156 = vpop.f32.mrb[0].mxu0
      %v3157 = vadd.f32 0.0, %v3156
      %v3158 = vpop.f32.mrb[0].mxu0
      %v3159 = vpop.f32.mrb[0].mxu0
      %v3160 = vadd.f32 0.0, %v3159
      %v3161 = vpop.f32.mrb[0].mxu0
      %3162 = vmatprep.mubr.bf16.mxu0 0
      %3163 = vmatmul.mubr.bf16.gmra.mrb[0].mxu0 %v3033
      %v3164 = vpop.f32.mrb[0].mxu0
      %v3165 = vadd.f32 0.0, %v3164
      %v3166 = vpop.f32.mrb[0].mxu0
      %v3167 = vpop.f32.mrb[0].mxu0
      %v3168 = vadd.f32 0.0, %v3167
      %v3169 = vpop.f32.mrb[0].mxu0
      %3170 = vmatprep.mubr.bf16.mxu0 0
      %3171 = vmatmul.mubr.bf16.gmra.mrb[0].mxu0 %v3034
      %v3172 = vpop.f32.mrb[0].mxu0
      %v3173 = vadd.f32 0.0, %v3172
      %v3174 = vpop.f32.mrb[0].mxu0
      %v3175 = vpop.f32.mrb[0].mxu0
      %v3176 = vadd.f32 0.0, %v3175
      %v3177 = vpop.f32.mrb[0].mxu0
      %3178 = vmatprep.mubr.bf16.mxu0 0
      %3179 = vmatmul.mubr.bf16.gmra.mrb[0].mxu0 %v3035
      %v3180 = vpop.f32.mrb[0].mxu0
      %v3181 = vadd.f32 0.0, %v3180
      %v3182 = vpop.f32.mrb[0].mxu0
      %v3183 = vpop.f32.mrb[0].mxu0
      %v3184 = vadd.f32 0.0, %v3183
      %v3185 = vpop.f32.mrb[0].mxu0
      %3186 = vmatprep.mubr.bf16.mxu0 0
      %3187 = vmatmul.mubr.bf16.gmra.mrb[0].mxu0 %v3036
      %v3188 = vpop.f32.mrb[0].mxu0
      %v3189 = vadd.f32 0.0, %v3188
      %v3190 = vpop.f32.mrb[0].mxu0
      %v3191 = vpop.f32.mrb[0].mxu0
      %v3192 = vadd.f32 0.0, %v3191
      %v3193 = vpop.f32.mrb[0].mxu0
      %3194 = vmatprep.mubr.bf16.mxu0 0
      %3195 = vmatmul.mubr.bf16.gmra.mrb[0].mxu0 %v3037
      %v3196 = vpop.f32.mrb[0].mxu0
      %v3197 = vadd.f32 0.0, %v3196
      %v3198 = vpop.f32.mrb[0].mxu0
      %v3199 = vpop.f32.mrb[0].mxu0
      %v3200 = vadd.f32 0.0, %v3199
      %v3201 = vpop.f32.mrb[0].mxu0
      %3202 = vmatprep.mubr.bf16.mxu0 0
      %3203 = vmatmul.mubr.bf16.gmra.mrb[0].mxu0 %v3038
      %v3204 = vpop.f32.mrb[0].mxu0
      %v3205 = vadd.f32 0.0, %v3204
      %v3206 = vpop.f32.mrb[0].mxu0
      %v3207 = vpop.f32.mrb[0].mxu0
      %v3208 = vadd.f32 0.0, %v3207
      %v3209 = vpop.f32.mrb[0].mxu0
      %3210 = vmatprep.mubr.bf16.mxu0 0
      %3211 = vmatmul.mubr.bf16.gmra.mrb[0].mxu0 %v3039
      %v3212 = vpop.f32.mrb[0].mxu0
      %v3213 = vadd.f32 0.0, %v3212
      %v3214 = vpop.f32.mrb[0].mxu0
      %v3215 = vpop.f32.mrb[0].mxu0
      %v3216 = vadd.f32 0.0, %v3215
      %v3217 = vpop.f32.mrb[0].mxu0
      %3218 = vmatprep.mubr.bf16.mxu0 0
      %3219 = vmatmul.mubr.bf16.gmra.mrb[0].mxu0 %v3040
      %v3220 = vpop.f32.mrb[0].mxu0
      %v3221 = vadd.f32 0.0, %v3220
      %v3222 = vpop.f32.mrb[0].mxu0
      %v3223 = vpop.f32.mrb[0].mxu0
      %v3224 = vadd.f32 0.0, %v3223
      %v3225 = vpop.f32.mrb[0].mxu0
      %3226 = vmatprep.mubr.bf16.mxu0 0
      %3227 = vmatmul.mubr.bf16.gmra.mrb[0].mxu0 %v3041
      %v3228 = vpop.f32.mrb[0].mxu0
      %v3229 = vadd.f32 0.0, %v3228
      %v3230 = vpop.f32.mrb[0].mxu0
      %v3231 = vpop.f32.mrb[0].mxu0
      %v3232 = vadd.f32 0.0, %v3231
      %v3233 = vpop.f32.mrb[0].mxu0
      %3234 = vmatprep.mubr.bf16.mxu0 0
      %3235 = vmatmul.mubr.bf16.gmra.mrb[0].mxu0 %v3042
      %v3236 = vpop.f32.mrb[0].mxu0
      %v3237 = vadd.f32 0.0, %v3236
      %v3238 = vpop.f32.mrb[0].mxu0
      %v3239 = vpop.f32.mrb[0].mxu0
      %v3240 = vadd.f32 0.0, %v3239
      %v3241 = vpop.f32.mrb[0].mxu0
      %3242 = vmatprep.mubr.bf16.mxu0 0
      %3243 = vmatmul.mubr.bf16.gmra.mrb[0].mxu0 %v3043
      %v3244 = vpop.f32.mrb[0].mxu0
      %v3245 = vadd.f32 0.0, %v3244
      %v3246 = vpop.f32.mrb[0].mxu0
      %v3247 = vpop.f32.mrb[0].mxu0
      %v3248 = vadd.f32 0.0, %v3247
      %v3249 = vpop.f32.mrb[0].mxu0
      %3250 = vmatprep.mubr.bf16.mxu0 0
      %3251 = vmatmul.mubr.bf16.gmra.mrb[0].mxu0 %v3044
      %v3252 = vpop.f32.mrb[0].mxu0
      %v3253 = vadd.f32 0.0, %v3252
      %v3254 = vpop.f32.mrb[0].mxu0
      %v3255 = vpop.f32.mrb[0].mxu0
      %v3256 = vadd.f32 0.0, %v3255
      %v3257 = vpop.f32.mrb[0].mxu0
      %3258 = vmatprep.mubr.bf16.mxu0 0
      %3259 = vmatmul.mubr.bf16.gmra.mrb[0].mxu0 %v3045
      %v3260 = vpop.f32.mrb[0].mxu0
      %v3261 = vadd.f32 0.0, %v3260
      %v3262 = vpop.f32.mrb[0].mxu0
      %v3263 = vpop.f32.mrb[0].mxu0
      %v3264 = vadd.f32 0.0, %v3263
      %v3265 = vpop.f32.mrb[0].mxu0
      %3266 = vmatprep.mubr.bf16.mxu0 0
      %3267 = vmatmul.mubr.bf16.gmra.mrb[0].mxu0 %v3046
      %v3268 = vpop.f32.mrb[0].mxu0
      %v3269 = vadd.f32 0.0, %v3268
      %v3270 = vpop.f32.mrb[0].mxu0
      %v3271 = vpop.f32.mrb[0].mxu0
      %v3272 = vadd.f32 0.0, %v3271
      %v3273 = vpop.f32.mrb[0].mxu0
      %3274 = vmatprep.mubr.bf16.mxu0 0
      %3275 = vmatmul.mubr.bf16.gmra.mrb[0].mxu0 %v3047
      %v3276 = vpop.f32.mrb[0].mxu0
      %v3277 = vadd.f32 0.0, %v3276
      %v3278 = vpop.f32.mrb[0].mxu0
      %v3279 = vpop.f32.mrb[0].mxu0
      %v3280 = vadd.f32 0.0, %v3279
      %v3281 = vpop.f32.mrb[0].mxu0
      %3282 = vmatprep.mubr.bf16.mxu0 0
      %3283 = vmatmul.mubr.bf16.gmra.mrb[0].mxu0 %v3048
      %v3284 = vpop.f32.mrb[0].mxu0
      %v3285 = vadd.f32 0.0, %v3284
      %v3286 = vpop.f32.mrb[0].mxu0
      %v3287 = vpop.f32.mrb[0].mxu0
      %v3288 = vadd.f32 0.0, %v3287
      %v3289 = vpop.f32.mrb[0].mxu0
      %3290 = vdwg.mxu0
      %v3291 = vadd.f32 %v2959, %v3149
      %v3292 = vadd.f32 %v2960, %v3152
      %v3293 = vadd.f32 %v2961, %v3157
      %v3294 = vadd.f32 %v2962, %v3160
      %v3295 = vadd.f32 %v2963, %v3165
      %v3296 = vadd.f32 %v2964, %v3168
      %v3297 = vadd.f32 %v2965, %v3173
      %v3298 = vadd.f32 %v2966, %v3176
      %v3299 = vadd.f32 %v2967, %v3181
      %v3300 = vadd.f32 %v2968, %v3184
      %v3301 = vadd.f32 %v2969, %v3189
      %v3302 = vadd.f32 %v2970, %v3192
      %v3303 = vadd.f32 %v2971, %v3197
      %v3304 = vadd.f32 %v2972, %v3200
      %v3305 = vadd.f32 %v2973, %v3205
      %v3306 = vadd.f32 %v2974, %v3208
      %v3307 = vadd.f32 %v2975, %v3213
      %v3308 = vadd.f32 %v2976, %v3216
      %v3309 = vadd.f32 %v2977, %v3221
      %v3310 = vadd.f32 %v2978, %v3224
      %v3311 = vadd.f32 %v2979, %v3229
      %v3312 = vadd.f32 %v2980, %v3232
      %v3313 = vadd.f32 %v2981, %v3237
      %v3314 = vadd.f32 %v2982, %v3240
      %v3315 = vadd.f32 %v2983, %v3245
      %v3316 = vadd.f32 %v2984, %v3248
      %v3317 = vadd.f32 %v2985, %v3253
      %v3318 = vadd.f32 %v2986, %v3256
      %v3319 = vadd.f32 %v2987, %v3261
      %v3320 = vadd.f32 %v2988, %v3264
      %v3321 = vadd.f32 %v2989, %v3269
      %v3322 = vadd.f32 %v2990, %v3272
      %v3323 = vadd.f32 %v2991, %v3277
      %v3324 = vadd.f32 %v2992, %v3280
      %v3325 = vadd.f32 %v2993, %v3285
      %v3326 = vadd.f32 %v2994, %v3288
      %v3327 = vlaneseq
      %v3328 = vshrl.u32 %v3327, 7
      %v3329 = vsub.s32 0, %v3328
      %v3330 = vrot.slane %v201, %v3329
      %v3331 = vmul.f32 %v3291, %v3330
      %v3332 = vmul.f32 %v3292, %v3330
      %v3333 = vmul.f32 %v3293, %v3330
      %v3334 = vmul.f32 %v3294, %v3330
      %v3335 = vmul.f32 %v3295, %v3330
      %v3336 = vmul.f32 %v3296, %v3330
      %v3337 = vmul.f32 %v3297, %v3330
      %v3338 = vmul.f32 %v3298, %v3330
      %v3339 = vmul.f32 %v3299, %v3330
      %v3340 = vmul.f32 %v3300, %v3330
      %v3341 = vmul.f32 %v3301, %v3330
      %v3342 = vmul.f32 %v3302, %v3330
      %v3343 = vmul.f32 %v3303, %v3330
      %v3344 = vmul.f32 %v3304, %v3330
      %v3345 = vmul.f32 %v3305, %v3330
      %v3346 = vmul.f32 %v3306, %v3330
      %v3347 = vmul.f32 %v3307, %v3330
      %v3348 = vmul.f32 %v3308, %v3330
      %v3349 = vmul.f32 %v3309, %v3330
      %v3350 = vmul.f32 %v3310, %v3330
      %v3351 = vmul.f32 %v3311, %v3330
      %v3352 = vmul.f32 %v3312, %v3330
      %v3353 = vmul.f32 %v3313, %v3330
      %v3354 = vmul.f32 %v3314, %v3330
      %v3355 = vmul.f32 %v3315, %v3330
      %v3356 = vmul.f32 %v3316, %v3330
      %v3357 = vmul.f32 %v3317, %v3330
      %v3358 = vmul.f32 %v3318, %v3330
      %v3359 = vmul.f32 %v3319, %v3330
      %v3360 = vmul.f32 %v3320, %v3330
      %v3361 = vmul.f32 %v3321, %v3330
      %v3362 = vmul.f32 %v3322, %v3330
      %v3363 = vmul.f32 %v3323, %v3330
      %v3364 = vmul.f32 %v3324, %v3330
      %v3365 = vmul.f32 %v3325, %v3330
      %v3366 = vmul.f32 %v3326, %v3330
      %v3367 = vlaneseq
      %v3368 = vshrl.u32 %v3367, 7
      %v3369 = vsub.s32 0, %v3368
      %v3370 = vrot.slane %v202, %v3369
      %v3371 = vadd.f32 %v3331, %v3370
      %v3372 = vadd.f32 %v3332, %v3370
      %v3373 = vadd.f32 %v3333, %v3370
      %v3374 = vadd.f32 %v3334, %v3370
      %v3375 = vadd.f32 %v3335, %v3370
      %v3376 = vadd.f32 %v3336, %v3370
      %v3377 = vadd.f32 %v3337, %v3370
      %v3378 = vadd.f32 %v3338, %v3370
      %v3379 = vadd.f32 %v3339, %v3370
      %v3380 = vadd.f32 %v3340, %v3370
      %v3381 = vadd.f32 %v3341, %v3370
      %v3382 = vadd.f32 %v3342, %v3370
      %v3383 = vadd.f32 %v3343, %v3370
      %v3384 = vadd.f32 %v3344, %v3370
      %v3385 = vadd.f32 %v3345, %v3370
      %v3386 = vadd.f32 %v3346, %v3370
      %v3387 = vadd.f32 %v3347, %v3370
      %v3388 = vadd.f32 %v3348, %v3370
      %v3389 = vadd.f32 %v3349, %v3370
      %v3390 = vadd.f32 %v3350, %v3370
      %v3391 = vadd.f32 %v3351, %v3370
      %v3392 = vadd.f32 %v3352, %v3370
      %v3393 = vadd.f32 %v3353, %v3370
      %v3394 = vadd.f32 %v3354, %v3370
      %v3395 = vadd.f32 %v3355, %v3370
      %v3396 = vadd.f32 %v3356, %v3370
      %v3397 = vadd.f32 %v3357, %v3370
      %v3398 = vadd.f32 %v3358, %v3370
      %v3399 = vadd.f32 %v3359, %v3370
      %v3400 = vadd.f32 %v3360, %v3370
      %v3401 = vadd.f32 %v3361, %v3370
      %v3402 = vadd.f32 %v3362, %v3370
      %v3403 = vadd.f32 %v3363, %v3370
      %v3404 = vadd.f32 %v3364, %v3370
      %v3405 = vadd.f32 %v3365, %v3370
      %v3406 = vadd.f32 %v3366, %v3370
      %v3407 = vmax.f32 %v3371, 0.0
      %v3408 = vmax.f32 %v3372, 0.0
      %v3409 = vmax.f32 %v3373, 0.0
      %v3410 = vmax.f32 %v3374, 0.0
      %v3411 = vmax.f32 %v3375, 0.0
      %v3412 = vmax.f32 %v3376, 0.0
      %v3413 = vmax.f32 %v3377, 0.0
      %v3414 = vmax.f32 %v3378, 0.0
      %v3415 = vmax.f32 %v3379, 0.0
      %v3416 = vmax.f32 %v3380, 0.0
      %v3417 = vmax.f32 %v3381, 0.0
      %v3418 = vmax.f32 %v3382, 0.0
      %v3419 = vmax.f32 %v3383, 0.0
      %v3420 = vmax.f32 %v3384, 0.0
      %v3421 = vmax.f32 %v3385, 0.0
      %v3422 = vmax.f32 %v3386, 0.0
      %v3423 = vmax.f32 %v3387, 0.0
      %v3424 = vmax.f32 %v3388, 0.0
      %v3425 = vmax.f32 %v3389, 0.0
      %v3426 = vmax.f32 %v3390, 0.0
      %v3427 = vmax.f32 %v3391, 0.0
      %v3428 = vmax.f32 %v3392, 0.0
      %v3429 = vmax.f32 %v3393, 0.0
      %v3430 = vmax.f32 %v3394, 0.0
      %v3431 = vmax.f32 %v3395, 0.0
      %v3432 = vmax.f32 %v3396, 0.0
      %v3433 = vmax.f32 %v3397, 0.0
      %v3434 = vmax.f32 %v3398, 0.0
      %v3435 = vmax.f32 %v3399, 0.0
      %v3436 = vmax.f32 %v3400, 0.0
      %v3437 = vmax.f32 %v3401, 0.0
      %v3438 = vmax.f32 %v3402, 0.0
      %v3439 = vmax.f32 %v3403, 0.0
      %v3440 = vmax.f32 %v3404, 0.0
      %v3441 = vmax.f32 %v3405, 0.0
      %v3442 = vmax.f32 %v3406, 0.0
      %3443 = vst [vmem:[#allocation3] sm:$0xff] 0.0
      %3444 = vst [vmem:[#allocation3 + $0x8] sm:$0xff] 0.0
      %3445 = vst [vmem:[#allocation3 + $0x10] sm:$0xff] 0.0
      %3446 = vst [vmem:[#allocation3 + $0x18] sm:$0xff] 0.0
      %3447 = vst [vmem:[#allocation3 + $0x20] sm:$0xff] 0.0
      %3448 = vst [vmem:[#allocation3 + $0x28] sm:$0xff] 0.0
      %3449 = vst [vmem:[#allocation3 + $0x30] sm:$0xff] 0.0
      %3450 = vst [vmem:[#allocation3 + $0x38] sm:$0xff] 0.0
      %3451 = vst [vmem:[#allocation3 + $0x40] sm:$0xff] 0.0
      %3452 = vst [vmem:[#allocation3 + $0x48] sm:$0xff] 0.0
      %3453 = vst [vmem:[#allocation3 + $0x50] sm:$0xff] 0.0
      %3454 = vst [vmem:[#allocation3 + $0x58] sm:$0xff] 0.0
      %3455 = vst [vmem:[#allocation3 + $0x60] sm:$0xff] 0.0
      %3456 = vst [vmem:[#allocation3 + $0x68] sm:$0xff] 0.0
      %3457 = vst [vmem:[#allocation3 + $0x70] sm:$0xff] 0.0
      %3458 = vst [vmem:[#allocation3 + $0x78] sm:$0xff] 0.0
      %3459 = vst [vmem:[#allocation3 + $0x80] sm:$0xff] 0.0
      %3460 = vst [vmem:[#allocation3 + $0x88] sm:$0xff] 0.0
      %3461 = vst [vmem:[#allocation3 + $0x90] sm:$0xff] 0.0
      %3462 = vst [vmem:[#allocation3 + $0x98] sm:$0xff] 0.0
      %3463 = vst [vmem:[#allocation3 + $0xa0] sm:$0xff] 0.0
      %3464 = vst [vmem:[#allocation3 + $0xa8] sm:$0xff] 0.0
      %3465 = vst [vmem:[#allocation3 + $0xb0] sm:$0xff] 0.0
      %3466 = vst [vmem:[#allocation3 + $0xb8] sm:$0xff] 0.0
      %3467 = vst [vmem:[#allocation3 + $0xc0] sm:$0xff] 0.0
      %3468 = vst [vmem:[#allocation3 + $0xc8] sm:$0xff] 0.0
      %3469 = vst [vmem:[#allocation3 + $0xd0] sm:$0xff] 0.0
      %3470 = vst [vmem:[#allocation3 + $0xd8] sm:$0xff] 0.0
      %3471 = vst [vmem:[#allocation3 + $0xe0] sm:$0xff] 0.0
      %3472 = vst [vmem:[#allocation3 + $0xe8] sm:$0xff] 0.0
      %3473 = vst [vmem:[#allocation3 + $0xf0] sm:$0xff] 0.0
      %3474 = vst [vmem:[#allocation3 + $0xf8] sm:$0xff] 0.0
      %3475 = vst [vmem:[#allocation3 + $0x100] sm:$0xff] 0.0
      %3476 = vst [vmem:[#allocation3 + $0x108] sm:$0xff] 0.0
      %3477 = vst [vmem:[#allocation3 + $0x110] sm:$0xff] 0.0
      %3478 = vst [vmem:[#allocation3 + $0x118] sm:$0xff] 0.0
      %3479 = vst [vmem:[#allocation3 + $0x120] sm:$0xff] 0.0
      %3480 = vst [vmem:[#allocation3 + $0x128] sm:$0xff] 0.0
      %3481 = vst [vmem:[#allocation3 + $0x130] sm:$0xff] 0.0
      %3482 = vst [vmem:[#allocation3 + $0x138] sm:$0xff] 0.0
      %3483 = vst [vmem:[#allocation3 + $0x140] sm:$0xff] 0.0
      %3484 = vst [vmem:[#allocation3 + $0x13] sm:$0xff] %v3407
      %3485 = vst [vmem:[#allocation3 + $0x1b] sm:$0xff] %v3408
      %3486 = vst [vmem:[#allocation3 + $0x23] sm:$0xfc] %v3409
      %3487 = vst [vmem:[#allocation3 + $0x2b] sm:$0xff] %v3410
      %3488 = vst [vmem:[#allocation3 + $0x33] sm:$0x3] %v3411
      %3489 = vst [vmem:[#allocation3 + $0x33] sm:$0xf0] %v3411
      %3490 = vst [vmem:[#allocation3 + $0x3b] sm:$0xff] %v3412
      %3491 = vst [vmem:[#allocation3 + $0x43] sm:$0xf] %v3413
      %3492 = vst [vmem:[#allocation3 + $0x43] sm:$0xc0] %v3413
      %3493 = vst [vmem:[#allocation3 + $0x4b] sm:$0xff] %v3414
      %3494 = vst [vmem:[#allocation3 + $0x53] sm:$0x3f] %v3415
      %3495 = vst [vmem:[#allocation3 + $0x5b] sm:$0xff] %v3416
      %3496 = vst [vmem:[#allocation3 + $0x63] sm:$0xff] %v3417
      %3497 = vst [vmem:[#allocation3 + $0x6b] sm:$0xfc] %v3418
      %3498 = vst [vmem:[#allocation3 + $0x73] sm:$0xff] %v3419
      %3499 = vst [vmem:[#allocation3 + $0x7b] sm:$0x3] %v3420
      %3500 = vst [vmem:[#allocation3 + $0x7b] sm:$0xf0] %v3420
      %3501 = vst [vmem:[#allocation3 + $0x83] sm:$0xff] %v3421
      %3502 = vst [vmem:[#allocation3 + $0x8b] sm:$0xf] %v3422
      %3503 = vst [vmem:[#allocation3 + $0x8b] sm:$0xc0] %v3422
      %3504 = vst [vmem:[#allocation3 + $0x93] sm:$0xff] %v3423
      %3505 = vst [vmem:[#allocation3 + $0x9b] sm:$0x3f] %v3424
      %3506 = vst [vmem:[#allocation3 + $0xa3] sm:$0xff] %v3425
      %3507 = vst [vmem:[#allocation3 + $0xab] sm:$0xff] %v3426
      %3508 = vst [vmem:[#allocation3 + $0xb3] sm:$0xfc] %v3427
      %3509 = vst [vmem:[#allocation3 + $0xbb] sm:$0xff] %v3428
      %3510 = vst [vmem:[#allocation3 + $0xc3] sm:$0x3] %v3429
      %3511 = vst [vmem:[#allocation3 + $0xc3] sm:$0xf0] %v3429
      %3512 = vst [vmem:[#allocation3 + $0xcb] sm:$0xff] %v3430
      %3513 = vst [vmem:[#allocation3 + $0xd3] sm:$0xf] %v3431
      %3514 = vst [vmem:[#allocation3 + $0xd3] sm:$0xc0] %v3431
      %3515 = vst [vmem:[#allocation3 + $0xdb] sm:$0xff] %v3432
      %3516 = vst [vmem:[#allocation3 + $0xe3] sm:$0x3f] %v3433
      %3517 = vst [vmem:[#allocation3 + $0xeb] sm:$0xff] %v3434
      %3518 = vst [vmem:[#allocation3 + $0xf3] sm:$0xff] %v3435
      %3519 = vst [vmem:[#allocation3 + $0xfb] sm:$0xfc] %v3436
      %3520 = vst [vmem:[#allocation3 + $0x103] sm:$0xff] %v3437
      %3521 = vst [vmem:[#allocation3 + $0x10b] sm:$0x3] %v3438
      %3522 = vst [vmem:[#allocation3 + $0x10b] sm:$0xf0] %v3438
      %3523 = vst [vmem:[#allocation3 + $0x113] sm:$0xff] %v3439
      %3524 = vst [vmem:[#allocation3 + $0x11b] sm:$0xf] %v3440
      %3525 = vst [vmem:[#allocation3 + $0x11b] sm:$0xc0] %v3440
      %3526 = vst [vmem:[#allocation3 + $0x123] sm:$0xff] %v3441
      %3527 = vst [vmem:[#allocation3 + $0x12b] sm:$0x3f] %v3442
      %v3528 = vld [vmem:[#allocation3] sm:$0xff]
      %v3529 = vld [vmem:[#allocation3 + $0x8] sm:$0xff]
      %v3530 = vld [vmem:[#allocation3 + $0x10] sm:$0xff]
      %v3531 = vld [vmem:[#allocation3 + $0x18] sm:$0xff]
      %v3532 = vld [vmem:[#allocation3 + $0x20] sm:$0xff]
      %v3533 = vld [vmem:[#allocation3 + $0x28] sm:$0xff]
      %v3534 = vld [vmem:[#allocation3 + $0x30] sm:$0xff]
      %v3535 = vld [vmem:[#allocation3 + $0x38] sm:$0xff]
      %v3536 = vld [vmem:[#allocation3 + $0x40] sm:$0xff]
      %v3537 = vld [vmem:[#allocation3 + $0x48] sm:$0xff]
      %v3538 = vld [vmem:[#allocation3 + $0x50] sm:$0xff]
      %v3539 = vld [vmem:[#allocation3 + $0x58] sm:$0xff]
      %v3540 = vld [vmem:[#allocation3 + $0x60] sm:$0xff]
      %v3541 = vld [vmem:[#allocation3 + $0x68] sm:$0xff]
      %v3542 = vld [vmem:[#allocation3 + $0x70] sm:$0xff]
      %v3543 = vld [vmem:[#allocation3 + $0x78] sm:$0xff]
      %v3544 = vld [vmem:[#allocation3 + $0x80] sm:$0xff]
      %v3545 = vld [vmem:[#allocation3 + $0x88] sm:$0xff]
      %v3546 = vld [vmem:[#allocation3 + $0x90] sm:$0xff]
      %v3547 = vld [vmem:[#allocation3 + $0x98] sm:$0xff]
      %v3548 = vld [vmem:[#allocation3 + $0xa0] sm:$0xff]
      %v3549 = vld [vmem:[#allocation3 + $0xa8] sm:$0xff]
      %v3550 = vld [vmem:[#allocation3 + $0xb0] sm:$0xff]
      %v3551 = vld [vmem:[#allocation3 + $0xb8] sm:$0xff]
      %v3552 = vld [vmem:[#allocation3 + $0xc0] sm:$0xff]
      %v3553 = vld [vmem:[#allocation3 + $0xc8] sm:$0xff]
      %v3554 = vld [vmem:[#allocation3 + $0xd0] sm:$0xff]
      %v3555 = vld [vmem:[#allocation3 + $0xd8] sm:$0xff]
      %v3556 = vld [vmem:[#allocation3 + $0xe0] sm:$0xff]
      %v3557 = vld [vmem:[#allocation3 + $0xe8] sm:$0xff]
      %v3558 = vld [vmem:[#allocation3 + $0xf0] sm:$0xff]
      %v3559 = vld [vmem:[#allocation3 + $0xf8] sm:$0xff]
      %v3560 = vld [vmem:[#allocation3 + $0x100] sm:$0xff]
      %v3561 = vld [vmem:[#allocation3 + $0x108] sm:$0xff]
      %v3562 = vld [vmem:[#allocation3 + $0x110] sm:$0xff]
      %v3563 = vld [vmem:[#allocation3 + $0x118] sm:$0xff]
      %v3564 = vpack.c.bf16 %v3529, %v3528
      %v3565 = vpack.c.bf16 %v3531, %v3530
      %v3566 = vpack.c.bf16 %v3533, %v3532
      %v3567 = vpack.c.bf16 %v3535, %v3534
      %v3568 = vpack.c.bf16 %v3537, %v3536
      %v3569 = vpack.c.bf16 %v3539, %v3538
      %v3570 = vpack.c.bf16 %v3541, %v3540
      %v3571 = vpack.c.bf16 %v3543, %v3542
      %v3572 = vpack.c.bf16 %v3545, %v3544
      %v3573 = vpack.c.bf16 %v3547, %v3546
      %v3574 = vpack.c.bf16 %v3549, %v3548
      %v3575 = vpack.c.bf16 %v3551, %v3550
      %v3576 = vpack.c.bf16 %v3553, %v3552
      %v3577 = vpack.c.bf16 %v3555, %v3554
      %v3578 = vpack.c.bf16 %v3557, %v3556
      %v3579 = vpack.c.bf16 %v3559, %v3558
      %v3580 = vpack.c.bf16 %v3561, %v3560
      %v3581 = vpack.c.bf16 %v3563, %v3562
      %v3582 = vld [vmem:[%s2] sm:$0xf]
      %v3583 = vld [vmem:[%s2 + $0x4] sm:$0xf]
      %v3584 = vld [vmem:[%s2 + $0x8] sm:$0xf]
      %v3585 = vld [vmem:[%s2 + $0xc] sm:$0xf]
      %v3586 = vld [vmem:[%s2 + $0x10] sm:$0xf]
      %v3587 = vld [vmem:[%s2 + $0x14] sm:$0xf]
      %v3588 = vld [vmem:[%s2 + $0x18] sm:$0xf]
      %v3589 = vld [vmem:[%s2 + $0x1c] sm:$0xf]
      %v3590 = vld [vmem:[%s2 + $0x20] sm:$0xf]
      %v3591 = vld [vmem:[%s2 + $0x24] sm:$0xf]
      %v3592 = vld [vmem:[%s2 + $0x28] sm:$0xf]
      %v3593 = vld [vmem:[%s2 + $0x2c] sm:$0xf]
      %v3594 = vld [vmem:[%s2 + $0x30] sm:$0xf]
      %v3595 = vld [vmem:[%s2 + $0x34] sm:$0xf]
      %v3596 = vld [vmem:[%s2 + $0x38] sm:$0xf]
      %v3597 = vld [vmem:[%s2 + $0x3c] sm:$0xf]
      %v3598 = vld [vmem:[#allocation3 + $0x1] sm:$0xff]
      %v3599 = vld [vmem:[#allocation3 + $0x9] sm:$0xff]
      %v3600 = vld [vmem:[#allocation3 + $0x11] sm:$0xff]
      %v3601 = vld [vmem:[#allocation3 + $0x19] sm:$0xff]
      %v3602 = vld [vmem:[#allocation3 + $0x21] sm:$0xff]
      %v3603 = vld [vmem:[#allocation3 + $0x29] sm:$0xff]
      %v3604 = vld [vmem:[#allocation3 + $0x31] sm:$0xff]
      %v3605 = vld [vmem:[#allocation3 + $0x39] sm:$0xff]
      %v3606 = vld [vmem:[#allocation3 + $0x41] sm:$0xff]
      %v3607 = vld [vmem:[#allocation3 + $0x49] sm:$0xff]
      %v3608 = vld [vmem:[#allocation3 + $0x51] sm:$0xff]
      %v3609 = vld [vmem:[#allocation3 + $0x59] sm:$0xff]
      %v3610 = vld [vmem:[#allocation3 + $0x61] sm:$0xff]
      %v3611 = vld [vmem:[#allocation3 + $0x69] sm:$0xff]
      %v3612 = vld [vmem:[#allocation3 + $0x71] sm:$0xff]
      %v3613 = vld [vmem:[#allocation3 + $0x79] sm:$0xff]
      %v3614 = vld [vmem:[#allocation3 + $0x81] sm:$0xff]
      %v3615 = vld [vmem:[#allocation3 + $0x89] sm:$0xff]
      %v3616 = vld [vmem:[#allocation3 + $0x91] sm:$0xff]
      %v3617 = vld [vmem:[#allocation3 + $0x99] sm:$0xff]
      %v3618 = vld [vmem:[#allocation3 + $0xa1] sm:$0xff]
      %v3619 = vld [vmem:[#allocation3 + $0xa9] sm:$0xff]
      %v3620 = vld [vmem:[#allocation3 + $0xb1] sm:$0xff]
      %v3621 = vld [vmem:[#allocation3 + $0xb9] sm:$0xff]
      %v3622 = vld [vmem:[#allocation3 + $0xc1] sm:$0xff]
      %v3623 = vld [vmem:[#allocation3 + $0xc9] sm:$0xff]
      %v3624 = vld [vmem:[#allocation3 + $0xd1] sm:$0xff]
      %v3625 = vld [vmem:[#allocation3 + $0xd9] sm:$0xff]
      %v3626 = vld [vmem:[#allocation3 + $0xe1] sm:$0xff]
      %v3627 = vld [vmem:[#allocation3 + $0xe9] sm:$0xff]
      %v3628 = vld [vmem:[#allocation3 + $0xf1] sm:$0xff]
      %v3629 = vld [vmem:[#allocation3 + $0xf9] sm:$0xff]
      %v3630 = vld [vmem:[#allocation3 + $0x101] sm:$0xff]
      %v3631 = vld [vmem:[#allocation3 + $0x109] sm:$0xff]
      %v3632 = vld [vmem:[#allocation3 + $0x111] sm:$0xff]
      %v3633 = vld [vmem:[#allocation3 + $0x119] sm:$0xff]
      %v3634 = vpack.c.bf16 %v3599, %v3598
      %v3635 = vpack.c.bf16 %v3601, %v3600
      %v3636 = vpack.c.bf16 %v3603, %v3602
      %v3637 = vpack.c.bf16 %v3605, %v3604
      %v3638 = vpack.c.bf16 %v3607, %v3606
      %v3639 = vpack.c.bf16 %v3609, %v3608
      %v3640 = vpack.c.bf16 %v3611, %v3610
      %v3641 = vpack.c.bf16 %v3613, %v3612
      %v3642 = vpack.c.bf16 %v3615, %v3614
      %v3643 = vpack.c.bf16 %v3617, %v3616
      %v3644 = vpack.c.bf16 %v3619, %v3618
      %v3645 = vpack.c.bf16 %v3621, %v3620
      %v3646 = vpack.c.bf16 %v3623, %v3622
      %v3647 = vpack.c.bf16 %v3625, %v3624
      %v3648 = vpack.c.bf16 %v3627, %v3626
      %v3649 = vpack.c.bf16 %v3629, %v3628
      %v3650 = vpack.c.bf16 %v3631, %v3630
      %v3651 = vpack.c.bf16 %v3633, %v3632
      %s3652 = scalar_lea.vmem %s2, 64
      %v3653 = vld [vmem:[%s3652] sm:$0xf]
      %v3654 = vld [vmem:[%s3652 + $0x4] sm:$0xf]
      %v3655 = vld [vmem:[%s3652 + $0x8] sm:$0xf]
      %v3656 = vld [vmem:[%s3652 + $0xc] sm:$0xf]
      %v3657 = vld [vmem:[%s3652 + $0x10] sm:$0xf]
      %v3658 = vld [vmem:[%s3652 + $0x14] sm:$0xf]
      %v3659 = vld [vmem:[%s3652 + $0x18] sm:$0xf]
      %v3660 = vld [vmem:[%s3652 + $0x1c] sm:$0xf]
      %v3661 = vld [vmem:[%s3652 + $0x20] sm:$0xf]
      %v3662 = vld [vmem:[%s3652 + $0x24] sm:$0xf]
      %v3663 = vld [vmem:[%s3652 + $0x28] sm:$0xf]
      %v3664 = vld [vmem:[%s3652 + $0x2c] sm:$0xf]
      %v3665 = vld [vmem:[%s3652 + $0x30] sm:$0xf]
      %v3666 = vld [vmem:[%s3652 + $0x34] sm:$0xf]
      %v3667 = vld [vmem:[%s3652 + $0x38] sm:$0xf]
      %v3668 = vld [vmem:[%s3652 + $0x3c] sm:$0xf]
      %v3685 = vunpack.c.l.b16 %v3653
      %v3686 = vunpack.c.l.b16 %v3654
      %v3687 = vunpack.c.l.b16 %v3655
      %v3688 = vunpack.c.l.b16 %v3656
      %v3689 = vunpack.c.l.b16 %v3657
      %v3690 = vunpack.c.l.b16 %v3658
      %v3691 = vunpack.c.l.b16 %v3659
      %v3692 = vunpack.c.l.b16 %v3660
      %v3693 = vunpack.c.l.b16 %v3661
      %v3694 = vunpack.c.l.b16 %v3662
      %v3695 = vunpack.c.l.b16 %v3663
      %v3696 = vunpack.c.l.b16 %v3664
      %v3697 = vunpack.c.l.b16 %v3665
      %v3698 = vunpack.c.l.b16 %v3666
      %v3699 = vunpack.c.l.b16 %v3667
      %v3700 = vunpack.c.l.b16 %v3668
      %v3701 = vpack.c.b16 %v3686, %v3685
      %v3702 = vpack.c.b16 %v3688, %v3687
      %v3703 = vpack.c.b16 %v3690, %v3689
      %v3704 = vpack.c.b16 %v3692, %v3691
      %v3705 = vpack.c.b16 %v3694, %v3693
      %v3706 = vpack.c.b16 %v3696, %v3695
      %v3707 = vpack.c.b16 %v3698, %v3697
      %v3708 = vpack.c.b16 %v3700, %v3699
      %3717 = vmatprep.subr.bf16.mxu0 0
      %3718 = vmatpush1.bf16.msra.mxu0 %v3701
      %3719 = vmatprep.subr.bf16.mxu0 0
      %3720 = vmatpush1.bf16.msra.mxu0 %v3702
      %3721 = vmatprep.subr.bf16.mxu0 0
      %3722 = vmatpush1.bf16.msra.mxu0 %v3703
      %3723 = vmatprep.subr.bf16.mxu0 0
      %3724 = vmatpush1.bf16.msra.mxu0 %v3704
      %3725 = vmatprep.subr.bf16.mxu0 0
      %3726 = vmatpush1.bf16.msra.mxu0 %v3705
      %3727 = vmatprep.subr.bf16.mxu0 0
      %3728 = vmatpush1.bf16.msra.mxu0 %v3706
      %3729 = vmatprep.subr.bf16.mxu0 0
      %3730 = vmatpush1.bf16.msra.mxu0 %v3707
      %3731 = vmatprep.subr.bf16.mxu0 0
      %3732 = vmatpush1.bf16.msra.mxu0 %v3708
      %3733 = vmatprep.subr.bf16.mxu0 0
      %3734 = vmatpush1.bf16.msra.mxu0 0
      %3735 = vmatprep.subr.bf16.mxu0 0
      %3736 = vmatpush1.bf16.msra.mxu0 0
      %3737 = vmatprep.subr.bf16.mxu0 0
      %3738 = vmatpush1.bf16.msra.mxu0 0
      %3739 = vmatprep.subr.bf16.mxu0 0
      %3740 = vmatpush1.bf16.msra.mxu0 0
      %3741 = vmatprep.subr.bf16.mxu0 0
      %3742 = vmatpush1.bf16.msra.mxu0 0
      %3743 = vmatprep.subr.bf16.mxu0 0
      %3744 = vmatpush1.bf16.msra.mxu0 0
      %3745 = vmatprep.subr.bf16.mxu0 0
      %3746 = vmatpush1.bf16.msra.mxu0 0
      %3747 = vmatprep.subr.bf16.mxu0 0
      %3748 = vmatpush1.bf16.msra.mxu0 0
      %3749 = vmatprep.mubr.bf16.mxu0 0
      %3750 = vmatmul.mubr.bf16.gmra.mrb[0].mxu0 %v3634
      %v3751 = vpop.f32.mrb[0].mxu0
      %v3752 = vadd.f32 0.0, %v3751
      %v3753 = vpop.f32.mrb[0].mxu0
      %v3754 = vpop.f32.mrb[0].mxu0
      %v3755 = vadd.f32 0.0, %v3754
      %v3756 = vpop.f32.mrb[0].mxu0
      %3757 = vmatprep.mubr.bf16.mxu0 0
      %3758 = vmatmul.mubr.bf16.gmra.mrb[0].mxu0 %v3635
      %v3759 = vpop.f32.mrb[0].mxu0
      %v3760 = vadd.f32 0.0, %v3759
      %v3761 = vpop.f32.mrb[0].mxu0
      %v3762 = vpop.f32.mrb[0].mxu0
      %v3763 = vadd.f32 0.0, %v3762
      %v3764 = vpop.f32.mrb[0].mxu0
      %3765 = vmatprep.mubr.bf16.mxu0 0
      %3766 = vmatmul.mubr.bf16.gmra.mrb[0].mxu0 %v3636
      %v3767 = vpop.f32.mrb[0].mxu0
      %v3768 = vadd.f32 0.0, %v3767
      %v3769 = vpop.f32.mrb[0].mxu0
      %v3770 = vpop.f32.mrb[0].mxu0
      %v3771 = vadd.f32 0.0, %v3770
      %v3772 = vpop.f32.mrb[0].mxu0
      %3773 = vmatprep.mubr.bf16.mxu0 0
      %3774 = vmatmul.mubr.bf16.gmra.mrb[0].mxu0 %v3637
      %v3775 = vpop.f32.mrb[0].mxu0
      %v3776 = vadd.f32 0.0, %v3775
      %v3777 = vpop.f32.mrb[0].mxu0
      %v3778 = vpop.f32.mrb[0].mxu0
      %v3779 = vadd.f32 0.0, %v3778
      %v3780 = vpop.f32.mrb[0].mxu0
      %3781 = vmatprep.mubr.bf16.mxu0 0
      %3782 = vmatmul.mubr.bf16.gmra.mrb[0].mxu0 %v3638
      %v3783 = vpop.f32.mrb[0].mxu0
      %v3784 = vadd.f32 0.0, %v3783
      %v3785 = vpop.f32.mrb[0].mxu0
      %v3786 = vpop.f32.mrb[0].mxu0
      %v3787 = vadd.f32 0.0, %v3786
      %v3788 = vpop.f32.mrb[0].mxu0
      %3789 = vmatprep.mubr.bf16.mxu0 0
      %3790 = vmatmul.mubr.bf16.gmra.mrb[0].mxu0 %v3639
      %v3791 = vpop.f32.mrb[0].mxu0
      %v3792 = vadd.f32 0.0, %v3791
      %v3793 = vpop.f32.mrb[0].mxu0
      %v3794 = vpop.f32.mrb[0].mxu0
      %v3795 = vadd.f32 0.0, %v3794
      %v3796 = vpop.f32.mrb[0].mxu0
      %3797 = vmatprep.mubr.bf16.mxu0 0
      %3798 = vmatmul.mubr.bf16.gmra.mrb[0].mxu0 %v3640
      %v3799 = vpop.f32.mrb[0].mxu0
      %v3800 = vadd.f32 0.0, %v3799
      %v3801 = vpop.f32.mrb[0].mxu0
      %v3802 = vpop.f32.mrb[0].mxu0
      %v3803 = vadd.f32 0.0, %v3802
      %v3804 = vpop.f32.mrb[0].mxu0
      %3805 = vmatprep.mubr.bf16.mxu0 0
      %3806 = vmatmul.mubr.bf16.gmra.mrb[0].mxu0 %v3641
      %v3807 = vpop.f32.mrb[0].mxu0
      %v3808 = vadd.f32 0.0, %v3807
      %v3809 = vpop.f32.mrb[0].mxu0
      %v3810 = vpop.f32.mrb[0].mxu0
      %v3811 = vadd.f32 0.0, %v3810
      %v3812 = vpop.f32.mrb[0].mxu0
      %3813 = vmatprep.mubr.bf16.mxu0 0
      %3814 = vmatmul.mubr.bf16.gmra.mrb[0].mxu0 %v3642
      %v3815 = vpop.f32.mrb[0].mxu0
      %v3816 = vadd.f32 0.0, %v3815
      %v3817 = vpop.f32.mrb[0].mxu0
      %v3818 = vpop.f32.mrb[0].mxu0
      %v3819 = vadd.f32 0.0, %v3818
      %v3820 = vpop.f32.mrb[0].mxu0
      %3821 = vmatprep.mubr.bf16.mxu0 0
      %3822 = vmatmul.mubr.bf16.gmra.mrb[0].mxu0 %v3643
      %v3823 = vpop.f32.mrb[0].mxu0
      %v3824 = vadd.f32 0.0, %v3823
      %v3825 = vpop.f32.mrb[0].mxu0
      %v3826 = vpop.f32.mrb[0].mxu0
      %v3827 = vadd.f32 0.0, %v3826
      %v3828 = vpop.f32.mrb[0].mxu0
      %3829 = vmatprep.mubr.bf16.mxu0 0
      %3830 = vmatmul.mubr.bf16.gmra.mrb[0].mxu0 %v3644
      %v3831 = vpop.f32.mrb[0].mxu0
      %v3832 = vadd.f32 0.0, %v3831
      %v3833 = vpop.f32.mrb[0].mxu0
      %v3834 = vpop.f32.mrb[0].mxu0
      %v3835 = vadd.f32 0.0, %v3834
      %v3836 = vpop.f32.mrb[0].mxu0
      %3837 = vmatprep.mubr.bf16.mxu0 0
      %3838 = vmatmul.mubr.bf16.gmra.mrb[0].mxu0 %v3645
      %v3839 = vpop.f32.mrb[0].mxu0
      %v3840 = vadd.f32 0.0, %v3839
      %v3841 = vpop.f32.mrb[0].mxu0
      %v3842 = vpop.f32.mrb[0].mxu0
      %v3843 = vadd.f32 0.0, %v3842
      %v3844 = vpop.f32.mrb[0].mxu0
      %3845 = vmatprep.mubr.bf16.mxu0 0
      %3846 = vmatmul.mubr.bf16.gmra.mrb[0].mxu0 %v3646
      %v3847 = vpop.f32.mrb[0].mxu0
      %v3848 = vadd.f32 0.0, %v3847
      %v3849 = vpop.f32.mrb[0].mxu0
      %v3850 = vpop.f32.mrb[0].mxu0
      %v3851 = vadd.f32 0.0, %v3850
      %v3852 = vpop.f32.mrb[0].mxu0
      %3853 = vmatprep.mubr.bf16.mxu0 0
      %3854 = vmatmul.mubr.bf16.gmra.mrb[0].mxu0 %v3647
      %v3855 = vpop.f32.mrb[0].mxu0
      %v3856 = vadd.f32 0.0, %v3855
      %v3857 = vpop.f32.mrb[0].mxu0
      %v3858 = vpop.f32.mrb[0].mxu0
      %v3859 = vadd.f32 0.0, %v3858
      %v3860 = vpop.f32.mrb[0].mxu0
      %3861 = vmatprep.mubr.bf16.mxu0 0
      %3862 = vmatmul.mubr.bf16.gmra.mrb[0].mxu0 %v3648
      %v3863 = vpop.f32.mrb[0].mxu0
      %v3864 = vadd.f32 0.0, %v3863
      %v3865 = vpop.f32.mrb[0].mxu0
      %v3866 = vpop.f32.mrb[0].mxu0
      %v3867 = vadd.f32 0.0, %v3866
      %v3868 = vpop.f32.mrb[0].mxu0
      %3869 = vmatprep.mubr.bf16.mxu0 0
      %3870 = vmatmul.mubr.bf16.gmra.mrb[0].mxu0 %v3649
      %v3871 = vpop.f32.mrb[0].mxu0
      %v3872 = vadd.f32 0.0, %v3871
      %v3873 = vpop.f32.mrb[0].mxu0
      %v3874 = vpop.f32.mrb[0].mxu0
      %v3875 = vadd.f32 0.0, %v3874
      %v3876 = vpop.f32.mrb[0].mxu0
      %3877 = vmatprep.mubr.bf16.mxu0 0
      %3878 = vmatmul.mubr.bf16.gmra.mrb[0].mxu0 %v3650
      %v3879 = vpop.f32.mrb[0].mxu0
      %v3880 = vadd.f32 0.0, %v3879
      %v3881 = vpop.f32.mrb[0].mxu0
      %v3882 = vpop.f32.mrb[0].mxu0
      %v3883 = vadd.f32 0.0, %v3882
      %v3884 = vpop.f32.mrb[0].mxu0
      %3885 = vmatprep.mubr.bf16.mxu0 0
      %3886 = vmatmul.mubr.bf16.gmra.mrb[0].mxu0 %v3651
      %v3887 = vpop.f32.mrb[0].mxu0
      %v3888 = vadd.f32 0.0, %v3887
      %v3889 = vpop.f32.mrb[0].mxu0
      %v3890 = vpop.f32.mrb[0].mxu0
      %v3891 = vadd.f32 0.0, %v3890
      %v3892 = vpop.f32.mrb[0].mxu0
      %3893 = vdwg.mxu0
      %v3910 = vunpack.c.l.b16 %v3582
      %v3911 = vunpack.c.l.b16 %v3583
      %v3912 = vunpack.c.l.b16 %v3584
      %v3913 = vunpack.c.l.b16 %v3585
      %v3914 = vunpack.c.l.b16 %v3586
      %v3915 = vunpack.c.l.b16 %v3587
      %v3916 = vunpack.c.l.b16 %v3588
      %v3917 = vunpack.c.l.b16 %v3589
      %v3918 = vunpack.c.l.b16 %v3590
      %v3919 = vunpack.c.l.b16 %v3591
      %v3920 = vunpack.c.l.b16 %v3592
      %v3921 = vunpack.c.l.b16 %v3593
      %v3922 = vunpack.c.l.b16 %v3594
      %v3923 = vunpack.c.l.b16 %v3595
      %v3924 = vunpack.c.l.b16 %v3596
      %v3925 = vunpack.c.l.b16 %v3597
      %v3926 = vpack.c.b16 %v3911, %v3910
      %v3927 = vpack.c.b16 %v3913, %v3912
      %v3928 = vpack.c.b16 %v3915, %v3914
      %v3929 = vpack.c.b16 %v3917, %v3916
      %v3930 = vpack.c.b16 %v3919, %v3918
      %v3931 = vpack.c.b16 %v3921, %v3920
      %v3932 = vpack.c.b16 %v3923, %v3922
      %v3933 = vpack.c.b16 %v3925, %v3924
      %3942 = vmatprep.subr.bf16.mxu0 0
      %3943 = vmatpush1.bf16.msra.mxu0 %v3926
      %3944 = vmatprep.subr.bf16.mxu0 0
      %3945 = vmatpush1.bf16.msra.mxu0 %v3927
      %3946 = vmatprep.subr.bf16.mxu0 0
      %3947 = vmatpush1.bf16.msra.mxu0 %v3928
      %3948 = vmatprep.subr.bf16.mxu0 0
      %3949 = vmatpush1.bf16.msra.mxu0 %v3929
      %3950 = vmatprep.subr.bf16.mxu0 0
      %3951 = vmatpush1.bf16.msra.mxu0 %v3930
      %3952 = vmatprep.subr.bf16.mxu0 0
      %3953 = vmatpush1.bf16.msra.mxu0 %v3931
      %3954 = vmatprep.subr.bf16.mxu0 0
      %3955 = vmatpush1.bf16.msra.mxu0 %v3932
      %3956 = vmatprep.subr.bf16.mxu0 0
      %3957 = vmatpush1.bf16.msra.mxu0 %v3933
      %3958 = vmatprep.subr.bf16.mxu0 0
      %3959 = vmatpush1.bf16.msra.mxu0 0
      %3960 = vmatprep.subr.bf16.mxu0 0
      %3961 = vmatpush1.bf16.msra.mxu0 0
      %3962 = vmatprep.subr.bf16.mxu0 0
      %3963 = vmatpush1.bf16.msra.mxu0 0
      %3964 = vmatprep.subr.bf16.mxu0 0
      %3965 = vmatpush1.bf16.msra.mxu0 0
      %3966 = vmatprep.subr.bf16.mxu0 0
      %3967 = vmatpush1.bf16.msra.mxu0 0
      %3968 = vmatprep.subr.bf16.mxu0 0
      %3969 = vmatpush1.bf16.msra.mxu0 0
      %3970 = vmatprep.subr.bf16.mxu0 0
      %3971 = vmatpush1.bf16.msra.mxu0 0
      %3972 = vmatprep.subr.bf16.mxu0 0
      %3973 = vmatpush1.bf16.msra.mxu0 0
      %3974 = vmatprep.mubr.bf16.mxu0 0
      %3975 = vmatmul.mubr.bf16.gmra.mrb[0].mxu0 %v3564
      %v3976 = vpop.f32.mrb[0].mxu0
      %v3977 = vadd.f32 %v3752, %v3976
      %v3978 = vpop.f32.mrb[0].mxu0
      %v3979 = vpop.f32.mrb[0].mxu0
      %v3980 = vadd.f32 %v3755, %v3979
      %v3981 = vpop.f32.mrb[0].mxu0
      %3982 = vmatprep.mubr.bf16.mxu0 0
      %3983 = vmatmul.mubr.bf16.gmra.mrb[0].mxu0 %v3565
      %v3984 = vpop.f32.mrb[0].mxu0
      %v3985 = vadd.f32 %v3760, %v3984
      %v3986 = vpop.f32.mrb[0].mxu0
      %v3987 = vpop.f32.mrb[0].mxu0
      %v3988 = vadd.f32 %v3763, %v3987
      %v3989 = vpop.f32.mrb[0].mxu0
      %3990 = vmatprep.mubr.bf16.mxu0 0
      %3991 = vmatmul.mubr.bf16.gmra.mrb[0].mxu0 %v3566
      %v3992 = vpop.f32.mrb[0].mxu0
      %v3993 = vadd.f32 %v3768, %v3992
      %v3994 = vpop.f32.mrb[0].mxu0
      %v3995 = vpop.f32.mrb[0].mxu0
      %v3996 = vadd.f32 %v3771, %v3995
      %v3997 = vpop.f32.mrb[0].mxu0
      %3998 = vmatprep.mubr.bf16.mxu0 0
      %3999 = vmatmul.mubr.bf16.gmra.mrb[0].mxu0 %v3567
      %v4000 = vpop.f32.mrb[0].mxu0
      %v4001 = vadd.f32 %v3776, %v4000
      %v4002 = vpop.f32.mrb[0].mxu0
      %v4003 = vpop.f32.mrb[0].mxu0
      %v4004 = vadd.f32 %v3779, %v4003
      %v4005 = vpop.f32.mrb[0].mxu0
      %4006 = vmatprep.mubr.bf16.mxu0 0
      %4007 = vmatmul.mubr.bf16.gmra.mrb[0].mxu0 %v3568
      %v4008 = vpop.f32.mrb[0].mxu0
      %v4009 = vadd.f32 %v3784, %v4008
      %v4010 = vpop.f32.mrb[0].mxu0
      %v4011 = vpop.f32.mrb[0].mxu0
      %v4012 = vadd.f32 %v3787, %v4011
      %v4013 = vpop.f32.mrb[0].mxu0
      %4014 = vmatprep.mubr.bf16.mxu0 0
      %4015 = vmatmul.mubr.bf16.gmra.mrb[0].mxu0 %v3569
      %v4016 = vpop.f32.mrb[0].mxu0
      %v4017 = vadd.f32 %v3792, %v4016
      %v4018 = vpop.f32.mrb[0].mxu0
      %v4019 = vpop.f32.mrb[0].mxu0
      %v4020 = vadd.f32 %v3795, %v4019
      %v4021 = vpop.f32.mrb[0].mxu0
      %4022 = vmatprep.mubr.bf16.mxu0 0
      %4023 = vmatmul.mubr.bf16.gmra.mrb[0].mxu0 %v3570
      %v4024 = vpop.f32.mrb[0].mxu0
      %v4025 = vadd.f32 %v3800, %v4024
      %v4026 = vpop.f32.mrb[0].mxu0
      %v4027 = vpop.f32.mrb[0].mxu0
      %v4028 = vadd.f32 %v3803, %v4027
      %v4029 = vpop.f32.mrb[0].mxu0
      %4030 = vmatprep.mubr.bf16.mxu0 0
      %4031 = vmatmul.mubr.bf16.gmra.mrb[0].mxu0 %v3571
      %v4032 = vpop.f32.mrb[0].mxu0
      %v4033 = vadd.f32 %v3808, %v4032
      %v4034 = vpop.f32.mrb[0].mxu0
      %v4035 = vpop.f32.mrb[0].mxu0
      %v4036 = vadd.f32 %v3811, %v4035
      %v4037 = vpop.f32.mrb[0].mxu0
      %4038 = vmatprep.mubr.bf16.mxu0 0
      %4039 = vmatmul.mubr.bf16.gmra.mrb[0].mxu0 %v3572
      %v4040 = vpop.f32.mrb[0].mxu0
      %v4041 = vadd.f32 %v3816, %v4040
      %v4042 = vpop.f32.mrb[0].mxu0
      %v4043 = vpop.f32.mrb[0].mxu0
      %v4044 = vadd.f32 %v3819, %v4043
      %v4045 = vpop.f32.mrb[0].mxu0
      %4046 = vmatprep.mubr.bf16.mxu0 0
      %4047 = vmatmul.mubr.bf16.gmra.mrb[0].mxu0 %v3573
      %v4048 = vpop.f32.mrb[0].mxu0
      %v4049 = vadd.f32 %v3824, %v4048
      %v4050 = vpop.f32.mrb[0].mxu0
      %v4051 = vpop.f32.mrb[0].mxu0
      %v4052 = vadd.f32 %v3827, %v4051
      %v4053 = vpop.f32.mrb[0].mxu0
      %4054 = vmatprep.mubr.bf16.mxu0 0
      %4055 = vmatmul.mubr.bf16.gmra.mrb[0].mxu0 %v3574
      %v4056 = vpop.f32.mrb[0].mxu0
      %v4057 = vadd.f32 %v3832, %v4056
      %v4058 = vpop.f32.mrb[0].mxu0
      %v4059 = vpop.f32.mrb[0].mxu0
      %v4060 = vadd.f32 %v3835, %v4059
      %v4061 = vpop.f32.mrb[0].mxu0
      %4062 = vmatprep.mubr.bf16.mxu0 0
      %4063 = vmatmul.mubr.bf16.gmra.mrb[0].mxu0 %v3575
      %v4064 = vpop.f32.mrb[0].mxu0
      %v4065 = vadd.f32 %v3840, %v4064
      %v4066 = vpop.f32.mrb[0].mxu0
      %v4067 = vpop.f32.mrb[0].mxu0
      %v4068 = vadd.f32 %v3843, %v4067
      %v4069 = vpop.f32.mrb[0].mxu0
      %4070 = vmatprep.mubr.bf16.mxu0 0
      %4071 = vmatmul.mubr.bf16.gmra.mrb[0].mxu0 %v3576
      %v4072 = vpop.f32.mrb[0].mxu0
      %v4073 = vadd.f32 %v3848, %v4072
      %v4074 = vpop.f32.mrb[0].mxu0
      %v4075 = vpop.f32.mrb[0].mxu0
      %v4076 = vadd.f32 %v3851, %v4075
      %v4077 = vpop.f32.mrb[0].mxu0
      %4078 = vmatprep.mubr.bf16.mxu0 0
      %4079 = vmatmul.mubr.bf16.gmra.mrb[0].mxu0 %v3577
      %v4080 = vpop.f32.mrb[0].mxu0
      %v4081 = vadd.f32 %v3856, %v4080
      %v4082 = vpop.f32.mrb[0].mxu0
      %v4083 = vpop.f32.mrb[0].mxu0
      %v4084 = vadd.f32 %v3859, %v4083
      %v4085 = vpop.f32.mrb[0].mxu0
      %4086 = vmatprep.mubr.bf16.mxu0 0
      %4087 = vmatmul.mubr.bf16.gmra.mrb[0].mxu0 %v3578
      %v4088 = vpop.f32.mrb[0].mxu0
      %v4089 = vadd.f32 %v3864, %v4088
      %v4090 = vpop.f32.mrb[0].mxu0
      %v4091 = vpop.f32.mrb[0].mxu0
      %v4092 = vadd.f32 %v3867, %v4091
      %v4093 = vpop.f32.mrb[0].mxu0
      %4094 = vmatprep.mubr.bf16.mxu0 0
      %4095 = vmatmul.mubr.bf16.gmra.mrb[0].mxu0 %v3579
      %v4096 = vpop.f32.mrb[0].mxu0
      %v4097 = vadd.f32 %v3872, %v4096
      %v4098 = vpop.f32.mrb[0].mxu0
      %v4099 = vpop.f32.mrb[0].mxu0
      %v4100 = vadd.f32 %v3875, %v4099
      %v4101 = vpop.f32.mrb[0].mxu0
      %4102 = vmatprep.mubr.bf16.mxu0 0
      %4103 = vmatmul.mubr.bf16.gmra.mrb[0].mxu0 %v3580
      %v4104 = vpop.f32.mrb[0].mxu0
      %v4105 = vadd.f32 %v3880, %v4104
      %v4106 = vpop.f32.mrb[0].mxu0
      %v4107 = vpop.f32.mrb[0].mxu0
      %v4108 = vadd.f32 %v3883, %v4107
      %v4109 = vpop.f32.mrb[0].mxu0
      %4110 = vmatprep.mubr.bf16.mxu0 0
      %4111 = vmatmul.mubr.bf16.gmra.mrb[0].mxu0 %v3581
      %v4112 = vpop.f32.mrb[0].mxu0
      %v4113 = vadd.f32 %v3888, %v4112
      %v4114 = vpop.f32.mrb[0].mxu0
      %v4115 = vpop.f32.mrb[0].mxu0
      %v4116 = vadd.f32 %v3891, %v4115
      %v4117 = vpop.f32.mrb[0].mxu0
      %4118 = vdwg.mxu0
      %v4119 = vld [vmem:[#allocation3 + $0x2] sm:$0xff]
      %v4120 = vld [vmem:[#allocation3 + $0xa] sm:$0xff]
      %v4121 = vld [vmem:[#allocation3 + $0x12] sm:$0xff]
      %v4122 = vld [vmem:[#allocation3 + $0x1a] sm:$0xff]
      %v4123 = vld [vmem:[#allocation3 + $0x22] sm:$0xff]
      %v4124 = vld [vmem:[#allocation3 + $0x2a] sm:$0xff]
      %v4125 = vld [vmem:[#allocation3 + $0x32] sm:$0xff]
      %v4126 = vld [vmem:[#allocation3 + $0x3a] sm:$0xff]
      %v4127 = vld [vmem:[#allocation3 + $0x42] sm:$0xff]
      %v4128 = vld [vmem:[#allocation3 + $0x4a] sm:$0xff]
      %v4129 = vld [vmem:[#allocation3 + $0x52] sm:$0xff]
      %v4130 = vld [vmem:[#allocation3 + $0x5a] sm:$0xff]
      %v4131 = vld [vmem:[#allocation3 + $0x62] sm:$0xff]
      %v4132 = vld [vmem:[#allocation3 + $0x6a] sm:$0xff]
      %v4133 = vld [vmem:[#allocation3 + $0x72] sm:$0xff]
      %v4134 = vld [vmem:[#allocation3 + $0x7a] sm:$0xff]
      %v4135 = vld [vmem:[#allocation3 + $0x82] sm:$0xff]
      %v4136 = vld [vmem:[#allocation3 + $0x8a] sm:$0xff]
      %v4137 = vld [vmem:[#allocation3 + $0x92] sm:$0xff]
      %v4138 = vld [vmem:[#allocation3 + $0x9a] sm:$0xff]
      %v4139 = vld [vmem:[#allocation3 + $0xa2] sm:$0xff]
      %v4140 = vld [vmem:[#allocation3 + $0xaa] sm:$0xff]
      %v4141 = vld [vmem:[#allocation3 + $0xb2] sm:$0xff]
      %v4142 = vld [vmem:[#allocation3 + $0xba] sm:$0xff]
      %v4143 = vld [vmem:[#allocation3 + $0xc2] sm:$0xff]
      %v4144 = vld [vmem:[#allocation3 + $0xca] sm:$0xff]
      %v4145 = vld [vmem:[#allocation3 + $0xd2] sm:$0xff]
      %v4146 = vld [vmem:[#allocation3 + $0xda] sm:$0xff]
      %v4147 = vld [vmem:[#allocation3 + $0xe2] sm:$0xff]
      %v4148 = vld [vmem:[#allocation3 + $0xea] sm:$0xff]
      %v4149 = vld [vmem:[#allocation3 + $0xf2] sm:$0xff]
      %v4150 = vld [vmem:[#allocation3 + $0xfa] sm:$0xff]
      %v4151 = vld [vmem:[#allocation3 + $0x102] sm:$0xff]
      %v4152 = vld [vmem:[#allocation3 + $0x10a] sm:$0xff]
      %v4153 = vld [vmem:[#allocation3 + $0x112] sm:$0xff]
      %v4154 = vld [vmem:[#allocation3 + $0x11a] sm:$0xff]
      %v4155 = vpack.c.bf16 %v4120, %v4119
      %v4156 = vpack.c.bf16 %v4122, %v4121
      %v4157 = vpack.c.bf16 %v4124, %v4123
      %v4158 = vpack.c.bf16 %v4126, %v4125
      %v4159 = vpack.c.bf16 %v4128, %v4127
      %v4160 = vpack.c.bf16 %v4130, %v4129
      %v4161 = vpack.c.bf16 %v4132, %v4131
      %v4162 = vpack.c.bf16 %v4134, %v4133
      %v4163 = vpack.c.bf16 %v4136, %v4135
      %v4164 = vpack.c.bf16 %v4138, %v4137
      %v4165 = vpack.c.bf16 %v4140, %v4139
      %v4166 = vpack.c.bf16 %v4142, %v4141
      %v4167 = vpack.c.bf16 %v4144, %v4143
      %v4168 = vpack.c.bf16 %v4146, %v4145
      %v4169 = vpack.c.bf16 %v4148, %v4147
      %v4170 = vpack.c.bf16 %v4150, %v4149
      %v4171 = vpack.c.bf16 %v4152, %v4151
      %v4172 = vpack.c.bf16 %v4154, %v4153
      %s4173 = scalar_lea.vmem %s2, 128
      %v4174 = vld [vmem:[%s4173] sm:$0xf]
      %v4175 = vld [vmem:[%s4173 + $0x4] sm:$0xf]
      %v4176 = vld [vmem:[%s4173 + $0x8] sm:$0xf]
      %v4177 = vld [vmem:[%s4173 + $0xc] sm:$0xf]
      %v4178 = vld [vmem:[%s4173 + $0x10] sm:$0xf]
      %v4179 = vld [vmem:[%s4173 + $0x14] sm:$0xf]
      %v4180 = vld [vmem:[%s4173 + $0x18] sm:$0xf]
      %v4181 = vld [vmem:[%s4173 + $0x1c] sm:$0xf]
      %v4182 = vld [vmem:[%s4173 + $0x20] sm:$0xf]
      %v4183 = vld [vmem:[%s4173 + $0x24] sm:$0xf]
      %v4184 = vld [vmem:[%s4173 + $0x28] sm:$0xf]
      %v4185 = vld [vmem:[%s4173 + $0x2c] sm:$0xf]
      %v4186 = vld [vmem:[%s4173 + $0x30] sm:$0xf]
      %v4187 = vld [vmem:[%s4173 + $0x34] sm:$0xf]
      %v4188 = vld [vmem:[%s4173 + $0x38] sm:$0xf]
      %v4189 = vld [vmem:[%s4173 + $0x3c] sm:$0xf]
      %v4206 = vunpack.c.l.b16 %v4174
      %v4207 = vunpack.c.l.b16 %v4175
      %v4208 = vunpack.c.l.b16 %v4176
      %v4209 = vunpack.c.l.b16 %v4177
      %v4210 = vunpack.c.l.b16 %v4178
      %v4211 = vunpack.c.l.b16 %v4179
      %v4212 = vunpack.c.l.b16 %v4180
      %v4213 = vunpack.c.l.b16 %v4181
      %v4214 = vunpack.c.l.b16 %v4182
      %v4215 = vunpack.c.l.b16 %v4183
      %v4216 = vunpack.c.l.b16 %v4184
      %v4217 = vunpack.c.l.b16 %v4185
      %v4218 = vunpack.c.l.b16 %v4186
      %v4219 = vunpack.c.l.b16 %v4187
      %v4220 = vunpack.c.l.b16 %v4188
      %v4221 = vunpack.c.l.b16 %v4189
      %v4222 = vpack.c.b16 %v4207, %v4206
      %v4223 = vpack.c.b16 %v4209, %v4208
      %v4224 = vpack.c.b16 %v4211, %v4210
      %v4225 = vpack.c.b16 %v4213, %v4212
      %v4226 = vpack.c.b16 %v4215, %v4214
      %v4227 = vpack.c.b16 %v4217, %v4216
      %v4228 = vpack.c.b16 %v4219, %v4218
      %v4229 = vpack.c.b16 %v4221, %v4220
      %4238 = vmatprep.subr.bf16.mxu0 0
      %4239 = vmatpush1.bf16.msra.mxu0 %v4222
      %4240 = vmatprep.subr.bf16.mxu0 0
      %4241 = vmatpush1.bf16.msra.mxu0 %v4223
      %4242 = vmatprep.subr.bf16.mxu0 0
      %4243 = vmatpush1.bf16.msra.mxu0 %v4224
      %4244 = vmatprep.subr.bf16.mxu0 0
      %4245 = vmatpush1.bf16.msra.mxu0 %v4225
      %4246 = vmatprep.subr.bf16.mxu0 0
      %4247 = vmatpush1.bf16.msra.mxu0 %v4226
      %4248 = vmatprep.subr.bf16.mxu0 0
      %4249 = vmatpush1.bf16.msra.mxu0 %v4227
      %4250 = vmatprep.subr.bf16.mxu0 0
      %4251 = vmatpush1.bf16.msra.mxu0 %v4228
      %4252 = vmatprep.subr.bf16.mxu0 0
      %4253 = vmatpush1.bf16.msra.mxu0 %v4229
      %4254 = vmatprep.subr.bf16.mxu0 0
      %4255 = vmatpush1.bf16.msra.mxu0 0
      %4256 = vmatprep.subr.bf16.mxu0 0
      %4257 = vmatpush1.bf16.msra.mxu0 0
      %4258 = vmatprep.subr.bf16.mxu0 0
      %4259 = vmatpush1.bf16.msra.mxu0 0
      %4260 = vmatprep.subr.bf16.mxu0 0
      %4261 = vmatpush1.bf16.msra.mxu0 0
      %4262 = vmatprep.subr.bf16.mxu0 0
      %4263 = vmatpush1.bf16.msra.mxu0 0
      %4264 = vmatprep.subr.bf16.mxu0 0
      %4265 = vmatpush1.bf16.msra.mxu0 0
      %4266 = vmatprep.subr.bf16.mxu0 0
      %4267 = vmatpush1.bf16.msra.mxu0 0
      %4268 = vmatprep.subr.bf16.mxu0 0
      %4269 = vmatpush1.bf16.msra.mxu0 0
      %4270 = vmatprep.mubr.bf16.mxu0 0
      %4271 = vmatmul.mubr.bf16.gmra.mrb[0].mxu0 %v4155
      %v4272 = vpop.f32.mrb[0].mxu0
      %v4273 = vadd.f32 0.0, %v4272
      %v4274 = vpop.f32.mrb[0].mxu0
      %v4275 = vpop.f32.mrb[0].mxu0
      %v4276 = vadd.f32 0.0, %v4275
      %v4277 = vpop.f32.mrb[0].mxu0
      %4278 = vmatprep.mubr.bf16.mxu0 0
      %4279 = vmatmul.mubr.bf16.gmra.mrb[0].mxu0 %v4156
      %v4280 = vpop.f32.mrb[0].mxu0
      %v4281 = vadd.f32 0.0, %v4280
      %v4282 = vpop.f32.mrb[0].mxu0
      %v4283 = vpop.f32.mrb[0].mxu0
      %v4284 = vadd.f32 0.0, %v4283
      %v4285 = vpop.f32.mrb[0].mxu0
      %4286 = vmatprep.mubr.bf16.mxu0 0
      %4287 = vmatmul.mubr.bf16.gmra.mrb[0].mxu0 %v4157
      %v4288 = vpop.f32.mrb[0].mxu0
      %v4289 = vadd.f32 0.0, %v4288
      %v4290 = vpop.f32.mrb[0].mxu0
      %v4291 = vpop.f32.mrb[0].mxu0
      %v4292 = vadd.f32 0.0, %v4291
      %v4293 = vpop.f32.mrb[0].mxu0
      %4294 = vmatprep.mubr.bf16.mxu0 0
      %4295 = vmatmul.mubr.bf16.gmra.mrb[0].mxu0 %v4158
      %v4296 = vpop.f32.mrb[0].mxu0
      %v4297 = vadd.f32 0.0, %v4296
      %v4298 = vpop.f32.mrb[0].mxu0
      %v4299 = vpop.f32.mrb[0].mxu0
      %v4300 = vadd.f32 0.0, %v4299
      %v4301 = vpop.f32.mrb[0].mxu0
      %4302 = vmatprep.mubr.bf16.mxu0 0
      %4303 = vmatmul.mubr.bf16.gmra.mrb[0].mxu0 %v4159
      %v4304 = vpop.f32.mrb[0].mxu0
      %v4305 = vadd.f32 0.0, %v4304
      %v4306 = vpop.f32.mrb[0].mxu0
      %v4307 = vpop.f32.mrb[0].mxu0
      %v4308 = vadd.f32 0.0, %v4307
      %v4309 = vpop.f32.mrb[0].mxu0
      %4310 = vmatprep.mubr.bf16.mxu0 0
      %4311 = vmatmul.mubr.bf16.gmra.mrb[0].mxu0 %v4160
      %v4312 = vpop.f32.mrb[0].mxu0
      %v4313 = vadd.f32 0.0, %v4312
      %v4314 = vpop.f32.mrb[0].mxu0
      %v4315 = vpop.f32.mrb[0].mxu0
      %v4316 = vadd.f32 0.0, %v4315
      %v4317 = vpop.f32.mrb[0].mxu0
      %4318 = vmatprep.mubr.bf16.mxu0 0
      %4319 = vmatmul.mubr.bf16.gmra.mrb[0].mxu0 %v4161
      %v4320 = vpop.f32.mrb[0].mxu0
      %v4321 = vadd.f32 0.0, %v4320
      %v4322 = vpop.f32.mrb[0].mxu0
      %v4323 = vpop.f32.mrb[0].mxu0
      %v4324 = vadd.f32 0.0, %v4323
      %v4325 = vpop.f32.mrb[0].mxu0
      %4326 = vmatprep.mubr.bf16.mxu0 0
      %4327 = vmatmul.mubr.bf16.gmra.mrb[0].mxu0 %v4162
      %v4328 = vpop.f32.mrb[0].mxu0
      %v4329 = vadd.f32 0.0, %v4328
      %v4330 = vpop.f32.mrb[0].mxu0
      %v4331 = vpop.f32.mrb[0].mxu0
      %v4332 = vadd.f32 0.0, %v4331
      %v4333 = vpop.f32.mrb[0].mxu0
      %4334 = vmatprep.mubr.bf16.mxu0 0
      %4335 = vmatmul.mubr.bf16.gmra.mrb[0].mxu0 %v4163
      %v4336 = vpop.f32.mrb[0].mxu0
      %v4337 = vadd.f32 0.0, %v4336
      %v4338 = vpop.f32.mrb[0].mxu0
      %v4339 = vpop.f32.mrb[0].mxu0
      %v4340 = vadd.f32 0.0, %v4339
      %v4341 = vpop.f32.mrb[0].mxu0
      %4342 = vmatprep.mubr.bf16.mxu0 0
      %4343 = vmatmul.mubr.bf16.gmra.mrb[0].mxu0 %v4164
      %v4344 = vpop.f32.mrb[0].mxu0
      %v4345 = vadd.f32 0.0, %v4344
      %v4346 = vpop.f32.mrb[0].mxu0
      %v4347 = vpop.f32.mrb[0].mxu0
      %v4348 = vadd.f32 0.0, %v4347
      %v4349 = vpop.f32.mrb[0].mxu0
      %4350 = vmatprep.mubr.bf16.mxu0 0
      %4351 = vmatmul.mubr.bf16.gmra.mrb[0].mxu0 %v4165
      %v4352 = vpop.f32.mrb[0].mxu0
      %v4353 = vadd.f32 0.0, %v4352
      %v4354 = vpop.f32.mrb[0].mxu0
      %v4355 = vpop.f32.mrb[0].mxu0
      %v4356 = vadd.f32 0.0, %v4355
      %v4357 = vpop.f32.mrb[0].mxu0
      %4358 = vmatprep.mubr.bf16.mxu0 0
      %4359 = vmatmul.mubr.bf16.gmra.mrb[0].mxu0 %v4166
      %v4360 = vpop.f32.mrb[0].mxu0
      %v4361 = vadd.f32 0.0, %v4360
      %v4362 = vpop.f32.mrb[0].mxu0
      %v4363 = vpop.f32.mrb[0].mxu0
      %v4364 = vadd.f32 0.0, %v4363
      %v4365 = vpop.f32.mrb[0].mxu0
      %4366 = vmatprep.mubr.bf16.mxu0 0
      %4367 = vmatmul.mubr.bf16.gmra.mrb[0].mxu0 %v4167
      %v4368 = vpop.f32.mrb[0].mxu0
      %v4369 = vadd.f32 0.0, %v4368
      %v4370 = vpop.f32.mrb[0].mxu0
      %v4371 = vpop.f32.mrb[0].mxu0
      %v4372 = vadd.f32 0.0, %v4371
      %v4373 = vpop.f32.mrb[0].mxu0
      %4374 = vmatprep.mubr.bf16.mxu0 0
      %4375 = vmatmul.mubr.bf16.gmra.mrb[0].mxu0 %v4168
      %v4376 = vpop.f32.mrb[0].mxu0
      %v4377 = vadd.f32 0.0, %v4376
      %v4378 = vpop.f32.mrb[0].mxu0
      %v4379 = vpop.f32.mrb[0].mxu0
      %v4380 = vadd.f32 0.0, %v4379
      %v4381 = vpop.f32.mrb[0].mxu0
      %4382 = vmatprep.mubr.bf16.mxu0 0
      %4383 = vmatmul.mubr.bf16.gmra.mrb[0].mxu0 %v4169
      %v4384 = vpop.f32.mrb[0].mxu0
      %v4385 = vadd.f32 0.0, %v4384
      %v4386 = vpop.f32.mrb[0].mxu0
      %v4387 = vpop.f32.mrb[0].mxu0
      %v4388 = vadd.f32 0.0, %v4387
      %v4389 = vpop.f32.mrb[0].mxu0
      %4390 = vmatprep.mubr.bf16.mxu0 0
      %4391 = vmatmul.mubr.bf16.gmra.mrb[0].mxu0 %v4170
      %v4392 = vpop.f32.mrb[0].mxu0
      %v4393 = vadd.f32 0.0, %v4392
      %v4394 = vpop.f32.mrb[0].mxu0
      %v4395 = vpop.f32.mrb[0].mxu0
      %v4396 = vadd.f32 0.0, %v4395
      %v4397 = vpop.f32.mrb[0].mxu0
      %4398 = vmatprep.mubr.bf16.mxu0 0
      %4399 = vmatmul.mubr.bf16.gmra.mrb[0].mxu0 %v4171
      %v4400 = vpop.f32.mrb[0].mxu0
      %v4401 = vadd.f32 0.0, %v4400
      %v4402 = vpop.f32.mrb[0].mxu0
      %v4403 = vpop.f32.mrb[0].mxu0
      %v4404 = vadd.f32 0.0, %v4403
      %v4405 = vpop.f32.mrb[0].mxu0
      %4406 = vmatprep.mubr.bf16.mxu0 0
      %4407 = vmatmul.mubr.bf16.gmra.mrb[0].mxu0 %v4172
      %v4408 = vpop.f32.mrb[0].mxu0
      %v4409 = vadd.f32 0.0, %v4408
      %v4410 = vpop.f32.mrb[0].mxu0
      %v4411 = vpop.f32.mrb[0].mxu0
      %v4412 = vadd.f32 0.0, %v4411
      %v4413 = vpop.f32.mrb[0].mxu0
      %4414 = vdwg.mxu0
      %v4415 = vadd.f32 %v3977, %v4273
      %v4416 = vadd.f32 %v3980, %v4276
      %v4417 = vadd.f32 %v3985, %v4281
      %v4418 = vadd.f32 %v3988, %v4284
      %v4419 = vadd.f32 %v3993, %v4289
      %v4420 = vadd.f32 %v3996, %v4292
      %v4421 = vadd.f32 %v4001, %v4297
      %v4422 = vadd.f32 %v4004, %v4300
      %v4423 = vadd.f32 %v4009, %v4305
      %v4424 = vadd.f32 %v4012, %v4308
      %v4425 = vadd.f32 %v4017, %v4313
      %v4426 = vadd.f32 %v4020, %v4316
      %v4427 = vadd.f32 %v4025, %v4321
      %v4428 = vadd.f32 %v4028, %v4324
      %v4429 = vadd.f32 %v4033, %v4329
      %v4430 = vadd.f32 %v4036, %v4332
      %v4431 = vadd.f32 %v4041, %v4337
      %v4432 = vadd.f32 %v4044, %v4340
      %v4433 = vadd.f32 %v4049, %v4345
      %v4434 = vadd.f32 %v4052, %v4348
      %v4435 = vadd.f32 %v4057, %v4353
      %v4436 = vadd.f32 %v4060, %v4356
      %v4437 = vadd.f32 %v4065, %v4361
      %v4438 = vadd.f32 %v4068, %v4364
      %v4439 = vadd.f32 %v4073, %v4369
      %v4440 = vadd.f32 %v4076, %v4372
      %v4441 = vadd.f32 %v4081, %v4377
      %v4442 = vadd.f32 %v4084, %v4380
      %v4443 = vadd.f32 %v4089, %v4385
      %v4444 = vadd.f32 %v4092, %v4388
      %v4445 = vadd.f32 %v4097, %v4393
      %v4446 = vadd.f32 %v4100, %v4396
      %v4447 = vadd.f32 %v4105, %v4401
      %v4448 = vadd.f32 %v4108, %v4404
      %v4449 = vadd.f32 %v4113, %v4409
      %v4450 = vadd.f32 %v4116, %v4412
      %v4451 = vld [vmem:[#allocation3 + $0x12] sm:$0xff]
      %v4452 = vld [vmem:[#allocation3 + $0x1a] sm:$0xff]
      %v4453 = vld [vmem:[#allocation3 + $0x22] sm:$0xff]
      %v4454 = vld [vmem:[#allocation3 + $0x2a] sm:$0xff]
      %v4455 = vld [vmem:[#allocation3 + $0x32] sm:$0xff]
      %v4456 = vld [vmem:[#allocation3 + $0x3a] sm:$0xff]
      %v4457 = vld [vmem:[#allocation3 + $0x42] sm:$0xff]
      %v4458 = vld [vmem:[#allocation3 + $0x4a] sm:$0xff]
      %v4459 = vld [vmem:[#allocation3 + $0x52] sm:$0xff]
      %v4460 = vld [vmem:[#allocation3 + $0x5a] sm:$0xff]
      %v4461 = vld [vmem:[#allocation3 + $0x62] sm:$0xff]
      %v4462 = vld [vmem:[#allocation3 + $0x6a] sm:$0xff]
      %v4463 = vld [vmem:[#allocation3 + $0x72] sm:$0xff]
      %v4464 = vld [vmem:[#allocation3 + $0x7a] sm:$0xff]
      %v4465 = vld [vmem:[#allocation3 + $0x82] sm:$0xff]
      %v4466 = vld [vmem:[#allocation3 + $0x8a] sm:$0xff]
      %v4467 = vld [vmem:[#allocation3 + $0x92] sm:$0xff]
      %v4468 = vld [vmem:[#allocation3 + $0x9a] sm:$0xff]
      %v4469 = vld [vmem:[#allocation3 + $0xa2] sm:$0xff]
      %v4470 = vld [vmem:[#allocation3 + $0xaa] sm:$0xff]
      %v4471 = vld [vmem:[#allocation3 + $0xb2] sm:$0xff]
      %v4472 = vld [vmem:[#allocation3 + $0xba] sm:$0xff]
      %v4473 = vld [vmem:[#allocation3 + $0xc2] sm:$0xff]
      %v4474 = vld [vmem:[#allocation3 + $0xca] sm:$0xff]
      %v4475 = vld [vmem:[#allocation3 + $0xd2] sm:$0xff]
      %v4476 = vld [vmem:[#allocation3 + $0xda] sm:$0xff]
      %v4477 = vld [vmem:[#allocation3 + $0xe2] sm:$0xff]
      %v4478 = vld [vmem:[#allocation3 + $0xea] sm:$0xff]
      %v4479 = vld [vmem:[#allocation3 + $0xf2] sm:$0xff]
      %v4480 = vld [vmem:[#allocation3 + $0xfa] sm:$0xff]
      %v4481 = vld [vmem:[#allocation3 + $0x102] sm:$0xff]
      %v4482 = vld [vmem:[#allocation3 + $0x10a] sm:$0xff]
      %v4483 = vld [vmem:[#allocation3 + $0x112] sm:$0xff]
      %v4484 = vld [vmem:[#allocation3 + $0x11a] sm:$0xff]
      %v4485 = vld [vmem:[#allocation3 + $0x122] sm:$0xff]
      %v4486 = vld [vmem:[#allocation3 + $0x12a] sm:$0xff]
      %v4487 = vpack.c.bf16 %v4452, %v4451
      %v4488 = vpack.c.bf16 %v4454, %v4453
      %v4489 = vpack.c.bf16 %v4456, %v4455
      %v4490 = vpack.c.bf16 %v4458, %v4457
      %v4491 = vpack.c.bf16 %v4460, %v4459
      %v4492 = vpack.c.bf16 %v4462, %v4461
      %v4493 = vpack.c.bf16 %v4464, %v4463
      %v4494 = vpack.c.bf16 %v4466, %v4465
      %v4495 = vpack.c.bf16 %v4468, %v4467
      %v4496 = vpack.c.bf16 %v4470, %v4469
      %v4497 = vpack.c.bf16 %v4472, %v4471
      %v4498 = vpack.c.bf16 %v4474, %v4473
      %v4499 = vpack.c.bf16 %v4476, %v4475
      %v4500 = vpack.c.bf16 %v4478, %v4477
      %v4501 = vpack.c.bf16 %v4480, %v4479
      %v4502 = vpack.c.bf16 %v4482, %v4481
      %v4503 = vpack.c.bf16 %v4484, %v4483
      %v4504 = vpack.c.bf16 %v4486, %v4485
      %s4505 = scalar_lea.vmem %s2, 192
      %v4506 = vld [vmem:[%s4505] sm:$0xf]
      %v4507 = vld [vmem:[%s4505 + $0x4] sm:$0xf]
      %v4508 = vld [vmem:[%s4505 + $0x8] sm:$0xf]
      %v4509 = vld [vmem:[%s4505 + $0xc] sm:$0xf]
      %v4510 = vld [vmem:[%s4505 + $0x10] sm:$0xf]
      %v4511 = vld [vmem:[%s4505 + $0x14] sm:$0xf]
      %v4512 = vld [vmem:[%s4505 + $0x18] sm:$0xf]
      %v4513 = vld [vmem:[%s4505 + $0x1c] sm:$0xf]
      %v4514 = vld [vmem:[%s4505 + $0x20] sm:$0xf]
      %v4515 = vld [vmem:[%s4505 + $0x24] sm:$0xf]
      %v4516 = vld [vmem:[%s4505 + $0x28] sm:$0xf]
      %v4517 = vld [vmem:[%s4505 + $0x2c] sm:$0xf]
      %v4518 = vld [vmem:[%s4505 + $0x30] sm:$0xf]
      %v4519 = vld [vmem:[%s4505 + $0x34] sm:$0xf]
      %v4520 = vld [vmem:[%s4505 + $0x38] sm:$0xf]
      %v4521 = vld [vmem:[%s4505 + $0x3c] sm:$0xf]
      %v4538 = vunpack.c.l.b16 %v4506
      %v4539 = vunpack.c.l.b16 %v4507
      %v4540 = vunpack.c.l.b16 %v4508
      %v4541 = vunpack.c.l.b16 %v4509
      %v4542 = vunpack.c.l.b16 %v4510
      %v4543 = vunpack.c.l.b16 %v4511
      %v4544 = vunpack.c.l.b16 %v4512
      %v4545 = vunpack.c.l.b16 %v4513
      %v4546 = vunpack.c.l.b16 %v4514
      %v4547 = vunpack.c.l.b16 %v4515
      %v4548 = vunpack.c.l.b16 %v4516
      %v4549 = vunpack.c.l.b16 %v4517
      %v4550 = vunpack.c.l.b16 %v4518
      %v4551 = vunpack.c.l.b16 %v4519
      %v4552 = vunpack.c.l.b16 %v4520
      %v4553 = vunpack.c.l.b16 %v4521
      %v4554 = vpack.c.b16 %v4539, %v4538
      %v4555 = vpack.c.b16 %v4541, %v4540
      %v4556 = vpack.c.b16 %v4543, %v4542
      %v4557 = vpack.c.b16 %v4545, %v4544
      %v4558 = vpack.c.b16 %v4547, %v4546
      %v4559 = vpack.c.b16 %v4549, %v4548
      %v4560 = vpack.c.b16 %v4551, %v4550
      %v4561 = vpack.c.b16 %v4553, %v4552
      %4570 = vmatprep.subr.bf16.mxu0 0
      %4571 = vmatpush1.bf16.msra.mxu0 %v4554
      %4572 = vmatprep.subr.bf16.mxu0 0
      %4573 = vmatpush1.bf16.msra.mxu0 %v4555
      %4574 = vmatprep.subr.bf16.mxu0 0
      %4575 = vmatpush1.bf16.msra.mxu0 %v4556
      %4576 = vmatprep.subr.bf16.mxu0 0
      %4577 = vmatpush1.bf16.msra.mxu0 %v4557
      %4578 = vmatprep.subr.bf16.mxu0 0
      %4579 = vmatpush1.bf16.msra.mxu0 %v4558
      %4580 = vmatprep.subr.bf16.mxu0 0
      %4581 = vmatpush1.bf16.msra.mxu0 %v4559
      %4582 = vmatprep.subr.bf16.mxu0 0
      %4583 = vmatpush1.bf16.msra.mxu0 %v4560
      %4584 = vmatprep.subr.bf16.mxu0 0
      %4585 = vmatpush1.bf16.msra.mxu0 %v4561
      %4586 = vmatprep.subr.bf16.mxu0 0
      %4587 = vmatpush1.bf16.msra.mxu0 0
      %4588 = vmatprep.subr.bf16.mxu0 0
      %4589 = vmatpush1.bf16.msra.mxu0 0
      %4590 = vmatprep.subr.bf16.mxu0 0
      %4591 = vmatpush1.bf16.msra.mxu0 0
      %4592 = vmatprep.subr.bf16.mxu0 0
      %4593 = vmatpush1.bf16.msra.mxu0 0
      %4594 = vmatprep.subr.bf16.mxu0 0
      %4595 = vmatpush1.bf16.msra.mxu0 0
      %4596 = vmatprep.subr.bf16.mxu0 0
      %4597 = vmatpush1.bf16.msra.mxu0 0
      %4598 = vmatprep.subr.bf16.mxu0 0
      %4599 = vmatpush1.bf16.msra.mxu0 0
      %4600 = vmatprep.subr.bf16.mxu0 0
      %4601 = vmatpush1.bf16.msra.mxu0 0
      %4602 = vmatprep.mubr.bf16.mxu0 0
      %4603 = vmatmul.mubr.bf16.gmra.mrb[0].mxu0 %v4487
      %v4604 = vpop.f32.mrb[0].mxu0
      %v4605 = vadd.f32 0.0, %v4604
      %v4606 = vpop.f32.mrb[0].mxu0
      %v4607 = vpop.f32.mrb[0].mxu0
      %v4608 = vadd.f32 0.0, %v4607
      %v4609 = vpop.f32.mrb[0].mxu0
      %4610 = vmatprep.mubr.bf16.mxu0 0
      %4611 = vmatmul.mubr.bf16.gmra.mrb[0].mxu0 %v4488
      %v4612 = vpop.f32.mrb[0].mxu0
      %v4613 = vadd.f32 0.0, %v4612
      %v4614 = vpop.f32.mrb[0].mxu0
      %v4615 = vpop.f32.mrb[0].mxu0
      %v4616 = vadd.f32 0.0, %v4615
      %v4617 = vpop.f32.mrb[0].mxu0
      %4618 = vmatprep.mubr.bf16.mxu0 0
      %4619 = vmatmul.mubr.bf16.gmra.mrb[0].mxu0 %v4489
      %v4620 = vpop.f32.mrb[0].mxu0
      %v4621 = vadd.f32 0.0, %v4620
      %v4622 = vpop.f32.mrb[0].mxu0
      %v4623 = vpop.f32.mrb[0].mxu0
      %v4624 = vadd.f32 0.0, %v4623
      %v4625 = vpop.f32.mrb[0].mxu0
      %4626 = vmatprep.mubr.bf16.mxu0 0
      %4627 = vmatmul.mubr.bf16.gmra.mrb[0].mxu0 %v4490
      %v4628 = vpop.f32.mrb[0].mxu0
      %v4629 = vadd.f32 0.0, %v4628
      %v4630 = vpop.f32.mrb[0].mxu0
      %v4631 = vpop.f32.mrb[0].mxu0
      %v4632 = vadd.f32 0.0, %v4631
      %v4633 = vpop.f32.mrb[0].mxu0
      %4634 = vmatprep.mubr.bf16.mxu0 0
      %4635 = vmatmul.mubr.bf16.gmra.mrb[0].mxu0 %v4491
      %v4636 = vpop.f32.mrb[0].mxu0
      %v4637 = vadd.f32 0.0, %v4636
      %v4638 = vpop.f32.mrb[0].mxu0
      %v4639 = vpop.f32.mrb[0].mxu0
      %v4640 = vadd.f32 0.0, %v4639
      %v4641 = vpop.f32.mrb[0].mxu0
      %4642 = vmatprep.mubr.bf16.mxu0 0
      %4643 = vmatmul.mubr.bf16.gmra.mrb[0].mxu0 %v4492
      %v4644 = vpop.f32.mrb[0].mxu0
      %v4645 = vadd.f32 0.0, %v4644
      %v4646 = vpop.f32.mrb[0].mxu0
      %v4647 = vpop.f32.mrb[0].mxu0
      %v4648 = vadd.f32 0.0, %v4647
      %v4649 = vpop.f32.mrb[0].mxu0
      %4650 = vmatprep.mubr.bf16.mxu0 0
      %4651 = vmatmul.mubr.bf16.gmra.mrb[0].mxu0 %v4493
      %v4652 = vpop.f32.mrb[0].mxu0
      %v4653 = vadd.f32 0.0, %v4652
      %v4654 = vpop.f32.mrb[0].mxu0
      %v4655 = vpop.f32.mrb[0].mxu0
      %v4656 = vadd.f32 0.0, %v4655
      %v4657 = vpop.f32.mrb[0].mxu0
      %4658 = vmatprep.mubr.bf16.mxu0 0
      %4659 = vmatmul.mubr.bf16.gmra.mrb[0].mxu0 %v4494
      %v4660 = vpop.f32.mrb[0].mxu0
      %v4661 = vadd.f32 0.0, %v4660
      %v4662 = vpop.f32.mrb[0].mxu0
      %v4663 = vpop.f32.mrb[0].mxu0
      %v4664 = vadd.f32 0.0, %v4663
      %v4665 = vpop.f32.mrb[0].mxu0
      %4666 = vmatprep.mubr.bf16.mxu0 0
      %4667 = vmatmul.mubr.bf16.gmra.mrb[0].mxu0 %v4495
      %v4668 = vpop.f32.mrb[0].mxu0
      %v4669 = vadd.f32 0.0, %v4668
      %v4670 = vpop.f32.mrb[0].mxu0
      %v4671 = vpop.f32.mrb[0].mxu0
      %v4672 = vadd.f32 0.0, %v4671
      %v4673 = vpop.f32.mrb[0].mxu0
      %4674 = vmatprep.mubr.bf16.mxu0 0
      %4675 = vmatmul.mubr.bf16.gmra.mrb[0].mxu0 %v4496
      %v4676 = vpop.f32.mrb[0].mxu0
      %v4677 = vadd.f32 0.0, %v4676
      %v4678 = vpop.f32.mrb[0].mxu0
      %v4679 = vpop.f32.mrb[0].mxu0
      %v4680 = vadd.f32 0.0, %v4679
      %v4681 = vpop.f32.mrb[0].mxu0
      %4682 = vmatprep.mubr.bf16.mxu0 0
      %4683 = vmatmul.mubr.bf16.gmra.mrb[0].mxu0 %v4497
      %v4684 = vpop.f32.mrb[0].mxu0
      %v4685 = vadd.f32 0.0, %v4684
      %v4686 = vpop.f32.mrb[0].mxu0
      %v4687 = vpop.f32.mrb[0].mxu0
      %v4688 = vadd.f32 0.0, %v4687
      %v4689 = vpop.f32.mrb[0].mxu0
      %4690 = vmatprep.mubr.bf16.mxu0 0
      %4691 = vmatmul.mubr.bf16.gmra.mrb[0].mxu0 %v4498
      %v4692 = vpop.f32.mrb[0].mxu0
      %v4693 = vadd.f32 0.0, %v4692
      %v4694 = vpop.f32.mrb[0].mxu0
      %v4695 = vpop.f32.mrb[0].mxu0
      %v4696 = vadd.f32 0.0, %v4695
      %v4697 = vpop.f32.mrb[0].mxu0
      %4698 = vmatprep.mubr.bf16.mxu0 0
      %4699 = vmatmul.mubr.bf16.gmra.mrb[0].mxu0 %v4499
      %v4700 = vpop.f32.mrb[0].mxu0
      %v4701 = vadd.f32 0.0, %v4700
      %v4702 = vpop.f32.mrb[0].mxu0
      %v4703 = vpop.f32.mrb[0].mxu0
      %v4704 = vadd.f32 0.0, %v4703
      %v4705 = vpop.f32.mrb[0].mxu0
      %4706 = vmatprep.mubr.bf16.mxu0 0
      %4707 = vmatmul.mubr.bf16.gmra.mrb[0].mxu0 %v4500
      %v4708 = vpop.f32.mrb[0].mxu0
      %v4709 = vadd.f32 0.0, %v4708
      %v4710 = vpop.f32.mrb[0].mxu0
      %v4711 = vpop.f32.mrb[0].mxu0
      %v4712 = vadd.f32 0.0, %v4711
      %v4713 = vpop.f32.mrb[0].mxu0
      %4714 = vmatprep.mubr.bf16.mxu0 0
      %4715 = vmatmul.mubr.bf16.gmra.mrb[0].mxu0 %v4501
      %v4716 = vpop.f32.mrb[0].mxu0
      %v4717 = vadd.f32 0.0, %v4716
      %v4718 = vpop.f32.mrb[0].mxu0
      %v4719 = vpop.f32.mrb[0].mxu0
      %v4720 = vadd.f32 0.0, %v4719
      %v4721 = vpop.f32.mrb[0].mxu0
      %4722 = vmatprep.mubr.bf16.mxu0 0
      %4723 = vmatmul.mubr.bf16.gmra.mrb[0].mxu0 %v4502
      %v4724 = vpop.f32.mrb[0].mxu0
      %v4725 = vadd.f32 0.0, %v4724
      %v4726 = vpop.f32.mrb[0].mxu0
      %v4727 = vpop.f32.mrb[0].mxu0
      %v4728 = vadd.f32 0.0, %v4727
      %v4729 = vpop.f32.mrb[0].mxu0
      %4730 = vmatprep.mubr.bf16.mxu0 0
      %4731 = vmatmul.mubr.bf16.gmra.mrb[0].mxu0 %v4503
      %v4732 = vpop.f32.mrb[0].mxu0
      %v4733 = vadd.f32 0.0, %v4732
      %v4734 = vpop.f32.mrb[0].mxu0
      %v4735 = vpop.f32.mrb[0].mxu0
      %v4736 = vadd.f32 0.0, %v4735
      %v4737 = vpop.f32.mrb[0].mxu0
      %4738 = vmatprep.mubr.bf16.mxu0 0
      %4739 = vmatmul.mubr.bf16.gmra.mrb[0].mxu0 %v4504
      %v4740 = vpop.f32.mrb[0].mxu0
      %v4741 = vadd.f32 0.0, %v4740
      %v4742 = vpop.f32.mrb[0].mxu0
      %v4743 = vpop.f32.mrb[0].mxu0
      %v4744 = vadd.f32 0.0, %v4743
      %v4745 = vpop.f32.mrb[0].mxu0
      %4746 = vdwg.mxu0
      %v4747 = vadd.f32 %v4415, %v4605
      %v4748 = vadd.f32 %v4416, %v4608
      %v4749 = vadd.f32 %v4417, %v4613
      %v4750 = vadd.f32 %v4418, %v4616
      %v4751 = vadd.f32 %v4419, %v4621
      %v4752 = vadd.f32 %v4420, %v4624
      %v4753 = vadd.f32 %v4421, %v4629
      %v4754 = vadd.f32 %v4422, %v4632
      %v4755 = vadd.f32 %v4423, %v4637
      %v4756 = vadd.f32 %v4424, %v4640
      %v4757 = vadd.f32 %v4425, %v4645
      %v4758 = vadd.f32 %v4426, %v4648
      %v4759 = vadd.f32 %v4427, %v4653
      %v4760 = vadd.f32 %v4428, %v4656
      %v4761 = vadd.f32 %v4429, %v4661
      %v4762 = vadd.f32 %v4430, %v4664
      %v4763 = vadd.f32 %v4431, %v4669
      %v4764 = vadd.f32 %v4432, %v4672
      %v4765 = vadd.f32 %v4433, %v4677
      %v4766 = vadd.f32 %v4434, %v4680
      %v4767 = vadd.f32 %v4435, %v4685
      %v4768 = vadd.f32 %v4436, %v4688
      %v4769 = vadd.f32 %v4437, %v4693
      %v4770 = vadd.f32 %v4438, %v4696
      %v4771 = vadd.f32 %v4439, %v4701
      %v4772 = vadd.f32 %v4440, %v4704
      %v4773 = vadd.f32 %v4441, %v4709
      %v4774 = vadd.f32 %v4442, %v4712
      %v4775 = vadd.f32 %v4443, %v4717
      %v4776 = vadd.f32 %v4444, %v4720
      %v4777 = vadd.f32 %v4445, %v4725
      %v4778 = vadd.f32 %v4446, %v4728
      %v4779 = vadd.f32 %v4447, %v4733
      %v4780 = vadd.f32 %v4448, %v4736
      %v4781 = vadd.f32 %v4449, %v4741
      %v4782 = vadd.f32 %v4450, %v4744
      %v4783 = vld [vmem:[#allocation3 + $0x13] sm:$0xff]
      %v4784 = vld [vmem:[#allocation3 + $0x1b] sm:$0xff]
      %v4785 = vld [vmem:[#allocation3 + $0x23] sm:$0xff]
      %v4786 = vld [vmem:[#allocation3 + $0x2b] sm:$0xff]
      %v4787 = vld [vmem:[#allocation3 + $0x33] sm:$0xff]
      %v4788 = vld [vmem:[#allocation3 + $0x3b] sm:$0xff]
      %v4789 = vld [vmem:[#allocation3 + $0x43] sm:$0xff]
      %v4790 = vld [vmem:[#allocation3 + $0x4b] sm:$0xff]
      %v4791 = vld [vmem:[#allocation3 + $0x53] sm:$0xff]
      %v4792 = vld [vmem:[#allocation3 + $0x5b] sm:$0xff]
      %v4793 = vld [vmem:[#allocation3 + $0x63] sm:$0xff]
      %v4794 = vld [vmem:[#allocation3 + $0x6b] sm:$0xff]
      %v4795 = vld [vmem:[#allocation3 + $0x73] sm:$0xff]
      %v4796 = vld [vmem:[#allocation3 + $0x7b] sm:$0xff]
      %v4797 = vld [vmem:[#allocation3 + $0x83] sm:$0xff]
      %v4798 = vld [vmem:[#allocation3 + $0x8b] sm:$0xff]
      %v4799 = vld [vmem:[#allocation3 + $0x93] sm:$0xff]
      %v4800 = vld [vmem:[#allocation3 + $0x9b] sm:$0xff]
      %v4801 = vld [vmem:[#allocation3 + $0xa3] sm:$0xff]
      %v4802 = vld [vmem:[#allocation3 + $0xab] sm:$0xff]
      %v4803 = vld [vmem:[#allocation3 + $0xb3] sm:$0xff]
      %v4804 = vld [vmem:[#allocation3 + $0xbb] sm:$0xff]
      %v4805 = vld [vmem:[#allocation3 + $0xc3] sm:$0xff]
      %v4806 = vld [vmem:[#allocation3 + $0xcb] sm:$0xff]
      %v4807 = vld [vmem:[#allocation3 + $0xd3] sm:$0xff]
      %v4808 = vld [vmem:[#allocation3 + $0xdb] sm:$0xff]
      %v4809 = vld [vmem:[#allocation3 + $0xe3] sm:$0xff]
      %v4810 = vld [vmem:[#allocation3 + $0xeb] sm:$0xff]
      %v4811 = vld [vmem:[#allocation3 + $0xf3] sm:$0xff]
      %v4812 = vld [vmem:[#allocation3 + $0xfb] sm:$0xff]
      %v4813 = vld [vmem:[#allocation3 + $0x103] sm:$0xff]
      %v4814 = vld [vmem:[#allocation3 + $0x10b] sm:$0xff]
      %v4815 = vld [vmem:[#allocation3 + $0x113] sm:$0xff]
      %v4816 = vld [vmem:[#allocation3 + $0x11b] sm:$0xff]
      %v4817 = vld [vmem:[#allocation3 + $0x123] sm:$0xff]
      %v4818 = vld [vmem:[#allocation3 + $0x12b] sm:$0xff]
      %v4819 = vpack.c.bf16 %v4784, %v4783
      %v4820 = vpack.c.bf16 %v4786, %v4785
      %v4821 = vpack.c.bf16 %v4788, %v4787
      %v4822 = vpack.c.bf16 %v4790, %v4789
      %v4823 = vpack.c.bf16 %v4792, %v4791
      %v4824 = vpack.c.bf16 %v4794, %v4793
      %v4825 = vpack.c.bf16 %v4796, %v4795
      %v4826 = vpack.c.bf16 %v4798, %v4797
      %v4827 = vpack.c.bf16 %v4800, %v4799
      %v4828 = vpack.c.bf16 %v4802, %v4801
      %v4829 = vpack.c.bf16 %v4804, %v4803
      %v4830 = vpack.c.bf16 %v4806, %v4805
      %v4831 = vpack.c.bf16 %v4808, %v4807
      %v4832 = vpack.c.bf16 %v4810, %v4809
      %v4833 = vpack.c.bf16 %v4812, %v4811
      %v4834 = vpack.c.bf16 %v4814, %v4813
      %v4835 = vpack.c.bf16 %v4816, %v4815
      %v4836 = vpack.c.bf16 %v4818, %v4817
      %s4837 = scalar_lea.vmem %s2, 256
      %v4838 = vld [vmem:[%s4837] sm:$0xf]
      %v4839 = vld [vmem:[%s4837 + $0x4] sm:$0xf]
      %v4840 = vld [vmem:[%s4837 + $0x8] sm:$0xf]
      %v4841 = vld [vmem:[%s4837 + $0xc] sm:$0xf]
      %v4842 = vld [vmem:[%s4837 + $0x10] sm:$0xf]
      %v4843 = vld [vmem:[%s4837 + $0x14] sm:$0xf]
      %v4844 = vld [vmem:[%s4837 + $0x18] sm:$0xf]
      %v4845 = vld [vmem:[%s4837 + $0x1c] sm:$0xf]
      %v4846 = vld [vmem:[%s4837 + $0x20] sm:$0xf]
      %v4847 = vld [vmem:[%s4837 + $0x24] sm:$0xf]
      %v4848 = vld [vmem:[%s4837 + $0x28] sm:$0xf]
      %v4849 = vld [vmem:[%s4837 + $0x2c] sm:$0xf]
      %v4850 = vld [vmem:[%s4837 + $0x30] sm:$0xf]
      %v4851 = vld [vmem:[%s4837 + $0x34] sm:$0xf]
      %v4852 = vld [vmem:[%s4837 + $0x38] sm:$0xf]
      %v4853 = vld [vmem:[%s4837 + $0x3c] sm:$0xf]
      %v4870 = vunpack.c.l.b16 %v4838
      %v4871 = vunpack.c.l.b16 %v4839
      %v4872 = vunpack.c.l.b16 %v4840
      %v4873 = vunpack.c.l.b16 %v4841
      %v4874 = vunpack.c.l.b16 %v4842
      %v4875 = vunpack.c.l.b16 %v4843
      %v4876 = vunpack.c.l.b16 %v4844
      %v4877 = vunpack.c.l.b16 %v4845
      %v4878 = vunpack.c.l.b16 %v4846
      %v4879 = vunpack.c.l.b16 %v4847
      %v4880 = vunpack.c.l.b16 %v4848
      %v4881 = vunpack.c.l.b16 %v4849
      %v4882 = vunpack.c.l.b16 %v4850
      %v4883 = vunpack.c.l.b16 %v4851
      %v4884 = vunpack.c.l.b16 %v4852
      %v4885 = vunpack.c.l.b16 %v4853
      %v4886 = vpack.c.b16 %v4871, %v4870
      %v4887 = vpack.c.b16 %v4873, %v4872
      %v4888 = vpack.c.b16 %v4875, %v4874
      %v4889 = vpack.c.b16 %v4877, %v4876
      %v4890 = vpack.c.b16 %v4879, %v4878
      %v4891 = vpack.c.b16 %v4881, %v4880
      %v4892 = vpack.c.b16 %v4883, %v4882
      %v4893 = vpack.c.b16 %v4885, %v4884
      %4902 = vmatprep.subr.bf16.mxu0 0
      %4903 = vmatpush1.bf16.msra.mxu0 %v4886
      %4904 = vmatprep.subr.bf16.mxu0 0
      %4905 = vmatpush1.bf16.msra.mxu0 %v4887
      %4906 = vmatprep.subr.bf16.mxu0 0
      %4907 = vmatpush1.bf16.msra.mxu0 %v4888
      %4908 = vmatprep.subr.bf16.mxu0 0
      %4909 = vmatpush1.bf16.msra.mxu0 %v4889
      %4910 = vmatprep.subr.bf16.mxu0 0
      %4911 = vmatpush1.bf16.msra.mxu0 %v4890
      %4912 = vmatprep.subr.bf16.mxu0 0
      %4913 = vmatpush1.bf16.msra.mxu0 %v4891
      %4914 = vmatprep.subr.bf16.mxu0 0
      %4915 = vmatpush1.bf16.msra.mxu0 %v4892
      %4916 = vmatprep.subr.bf16.mxu0 0
      %4917 = vmatpush1.bf16.msra.mxu0 %v4893
      %4918 = vmatprep.subr.bf16.mxu0 0
      %4919 = vmatpush1.bf16.msra.mxu0 0
      %4920 = vmatprep.subr.bf16.mxu0 0
      %4921 = vmatpush1.bf16.msra.mxu0 0
      %4922 = vmatprep.subr.bf16.mxu0 0
      %4923 = vmatpush1.bf16.msra.mxu0 0
      %4924 = vmatprep.subr.bf16.mxu0 0
      %4925 = vmatpush1.bf16.msra.mxu0 0
      %4926 = vmatprep.subr.bf16.mxu0 0
      %4927 = vmatpush1.bf16.msra.mxu0 0
      %4928 = vmatprep.subr.bf16.mxu0 0
      %4929 = vmatpush1.bf16.msra.mxu0 0
      %4930 = vmatprep.subr.bf16.mxu0 0
      %4931 = vmatpush1.bf16.msra.mxu0 0
      %4932 = vmatprep.subr.bf16.mxu0 0
      %4933 = vmatpush1.bf16.msra.mxu0 0
      %4934 = vmatprep.mubr.bf16.mxu0 0
      %4935 = vmatmul.mubr.bf16.gmra.mrb[0].mxu0 %v4819
      %v4936 = vpop.f32.mrb[0].mxu0
      %v4937 = vadd.f32 0.0, %v4936
      %v4938 = vpop.f32.mrb[0].mxu0
      %v4939 = vpop.f32.mrb[0].mxu0
      %v4940 = vadd.f32 0.0, %v4939
      %v4941 = vpop.f32.mrb[0].mxu0
      %4942 = vmatprep.mubr.bf16.mxu0 0
      %4943 = vmatmul.mubr.bf16.gmra.mrb[0].mxu0 %v4820
      %v4944 = vpop.f32.mrb[0].mxu0
      %v4945 = vadd.f32 0.0, %v4944
      %v4946 = vpop.f32.mrb[0].mxu0
      %v4947 = vpop.f32.mrb[0].mxu0
      %v4948 = vadd.f32 0.0, %v4947
      %v4949 = vpop.f32.mrb[0].mxu0
      %4950 = vmatprep.mubr.bf16.mxu0 0
      %4951 = vmatmul.mubr.bf16.gmra.mrb[0].mxu0 %v4821
      %v4952 = vpop.f32.mrb[0].mxu0
      %v4953 = vadd.f32 0.0, %v4952
      %v4954 = vpop.f32.mrb[0].mxu0
      %v4955 = vpop.f32.mrb[0].mxu0
      %v4956 = vadd.f32 0.0, %v4955
      %v4957 = vpop.f32.mrb[0].mxu0
      %4958 = vmatprep.mubr.bf16.mxu0 0
      %4959 = vmatmul.mubr.bf16.gmra.mrb[0].mxu0 %v4822
      %v4960 = vpop.f32.mrb[0].mxu0
      %v4961 = vadd.f32 0.0, %v4960
      %v4962 = vpop.f32.mrb[0].mxu0
      %v4963 = vpop.f32.mrb[0].mxu0
      %v4964 = vadd.f32 0.0, %v4963
      %v4965 = vpop.f32.mrb[0].mxu0
      %4966 = vmatprep.mubr.bf16.mxu0 0
      %4967 = vmatmul.mubr.bf16.gmra.mrb[0].mxu0 %v4823
      %v4968 = vpop.f32.mrb[0].mxu0
      %v4969 = vadd.f32 0.0, %v4968
      %v4970 = vpop.f32.mrb[0].mxu0
      %v4971 = vpop.f32.mrb[0].mxu0
      %v4972 = vadd.f32 0.0, %v4971
      %v4973 = vpop.f32.mrb[0].mxu0
      %4974 = vmatprep.mubr.bf16.mxu0 0
      %4975 = vmatmul.mubr.bf16.gmra.mrb[0].mxu0 %v4824
      %v4976 = vpop.f32.mrb[0].mxu0
      %v4977 = vadd.f32 0.0, %v4976
      %v4978 = vpop.f32.mrb[0].mxu0
      %v4979 = vpop.f32.mrb[0].mxu0
      %v4980 = vadd.f32 0.0, %v4979
      %v4981 = vpop.f32.mrb[0].mxu0
      %4982 = vmatprep.mubr.bf16.mxu0 0
      %4983 = vmatmul.mubr.bf16.gmra.mrb[0].mxu0 %v4825
      %v4984 = vpop.f32.mrb[0].mxu0
      %v4985 = vadd.f32 0.0, %v4984
      %v4986 = vpop.f32.mrb[0].mxu0
      %v4987 = vpop.f32.mrb[0].mxu0
      %v4988 = vadd.f32 0.0, %v4987
      %v4989 = vpop.f32.mrb[0].mxu0
      %4990 = vmatprep.mubr.bf16.mxu0 0
      %4991 = vmatmul.mubr.bf16.gmra.mrb[0].mxu0 %v4826
      %v4992 = vpop.f32.mrb[0].mxu0
      %v4993 = vadd.f32 0.0, %v4992
      %v4994 = vpop.f32.mrb[0].mxu0
      %v4995 = vpop.f32.mrb[0].mxu0
      %v4996 = vadd.f32 0.0, %v4995
      %v4997 = vpop.f32.mrb[0].mxu0
      %4998 = vmatprep.mubr.bf16.mxu0 0
      %4999 = vmatmul.mubr.bf16.gmra.mrb[0].mxu0 %v4827
      %v5000 = vpop.f32.mrb[0].mxu0
      %v5001 = vadd.f32 0.0, %v5000
      %v5002 = vpop.f32.mrb[0].mxu0
      %v5003 = vpop.f32.mrb[0].mxu0
      %v5004 = vadd.f32 0.0, %v5003
      %v5005 = vpop.f32.mrb[0].mxu0
      %5006 = vmatprep.mubr.bf16.mxu0 0
      %5007 = vmatmul.mubr.bf16.gmra.mrb[0].mxu0 %v4828
      %v5008 = vpop.f32.mrb[0].mxu0
      %v5009 = vadd.f32 0.0, %v5008
      %v5010 = vpop.f32.mrb[0].mxu0
      %v5011 = vpop.f32.mrb[0].mxu0
      %v5012 = vadd.f32 0.0, %v5011
      %v5013 = vpop.f32.mrb[0].mxu0
      %5014 = vmatprep.mubr.bf16.mxu0 0
      %5015 = vmatmul.mubr.bf16.gmra.mrb[0].mxu0 %v4829
      %v5016 = vpop.f32.mrb[0].mxu0
      %v5017 = vadd.f32 0.0, %v5016
      %v5018 = vpop.f32.mrb[0].mxu0
      %v5019 = vpop.f32.mrb[0].mxu0
      %v5020 = vadd.f32 0.0, %v5019
      %v5021 = vpop.f32.mrb[0].mxu0
      %5022 = vmatprep.mubr.bf16.mxu0 0
      %5023 = vmatmul.mubr.bf16.gmra.mrb[0].mxu0 %v4830
      %v5024 = vpop.f32.mrb[0].mxu0
      %v5025 = vadd.f32 0.0, %v5024
      %v5026 = vpop.f32.mrb[0].mxu0
      %v5027 = vpop.f32.mrb[0].mxu0
      %v5028 = vadd.f32 0.0, %v5027
      %v5029 = vpop.f32.mrb[0].mxu0
      %5030 = vmatprep.mubr.bf16.mxu0 0
      %5031 = vmatmul.mubr.bf16.gmra.mrb[0].mxu0 %v4831
      %v5032 = vpop.f32.mrb[0].mxu0
      %v5033 = vadd.f32 0.0, %v5032
      %v5034 = vpop.f32.mrb[0].mxu0
      %v5035 = vpop.f32.mrb[0].mxu0
      %v5036 = vadd.f32 0.0, %v5035
      %v5037 = vpop.f32.mrb[0].mxu0
      %5038 = vmatprep.mubr.bf16.mxu0 0
      %5039 = vmatmul.mubr.bf16.gmra.mrb[0].mxu0 %v4832
      %v5040 = vpop.f32.mrb[0].mxu0
      %v5041 = vadd.f32 0.0, %v5040
      %v5042 = vpop.f32.mrb[0].mxu0
      %v5043 = vpop.f32.mrb[0].mxu0
      %v5044 = vadd.f32 0.0, %v5043
      %v5045 = vpop.f32.mrb[0].mxu0
      %5046 = vmatprep.mubr.bf16.mxu0 0
      %5047 = vmatmul.mubr.bf16.gmra.mrb[0].mxu0 %v4833
      %v5048 = vpop.f32.mrb[0].mxu0
      %v5049 = vadd.f32 0.0, %v5048
      %v5050 = vpop.f32.mrb[0].mxu0
      %v5051 = vpop.f32.mrb[0].mxu0
      %v5052 = vadd.f32 0.0, %v5051
      %v5053 = vpop.f32.mrb[0].mxu0
      %5054 = vmatprep.mubr.bf16.mxu0 0
      %5055 = vmatmul.mubr.bf16.gmra.mrb[0].mxu0 %v4834
      %v5056 = vpop.f32.mrb[0].mxu0
      %v5057 = vadd.f32 0.0, %v5056
      %v5058 = vpop.f32.mrb[0].mxu0
      %v5059 = vpop.f32.mrb[0].mxu0
      %v5060 = vadd.f32 0.0, %v5059
      %v5061 = vpop.f32.mrb[0].mxu0
      %5062 = vmatprep.mubr.bf16.mxu0 0
      %5063 = vmatmul.mubr.bf16.gmra.mrb[0].mxu0 %v4835
      %v5064 = vpop.f32.mrb[0].mxu0
      %v5065 = vadd.f32 0.0, %v5064
      %v5066 = vpop.f32.mrb[0].mxu0
      %v5067 = vpop.f32.mrb[0].mxu0
      %v5068 = vadd.f32 0.0, %v5067
      %v5069 = vpop.f32.mrb[0].mxu0
      %5070 = vmatprep.mubr.bf16.mxu0 0
      %5071 = vmatmul.mubr.bf16.gmra.mrb[0].mxu0 %v4836
      %v5072 = vpop.f32.mrb[0].mxu0
      %v5073 = vadd.f32 0.0, %v5072
      %v5074 = vpop.f32.mrb[0].mxu0
      %v5075 = vpop.f32.mrb[0].mxu0
      %v5076 = vadd.f32 0.0, %v5075
      %v5077 = vpop.f32.mrb[0].mxu0
      %5078 = vdwg.mxu0
      %v5079 = vadd.f32 %v4747, %v4937
      %v5080 = vadd.f32 %v4748, %v4940
      %v5081 = vadd.f32 %v4749, %v4945
      %v5082 = vadd.f32 %v4750, %v4948
      %v5083 = vadd.f32 %v4751, %v4953
      %v5084 = vadd.f32 %v4752, %v4956
      %v5085 = vadd.f32 %v4753, %v4961
      %v5086 = vadd.f32 %v4754, %v4964
      %v5087 = vadd.f32 %v4755, %v4969
      %v5088 = vadd.f32 %v4756, %v4972
      %v5089 = vadd.f32 %v4757, %v4977
      %v5090 = vadd.f32 %v4758, %v4980
      %v5091 = vadd.f32 %v4759, %v4985
      %v5092 = vadd.f32 %v4760, %v4988
      %v5093 = vadd.f32 %v4761, %v4993
      %v5094 = vadd.f32 %v4762, %v4996
      %v5095 = vadd.f32 %v4763, %v5001
      %v5096 = vadd.f32 %v4764, %v5004
      %v5097 = vadd.f32 %v4765, %v5009
      %v5098 = vadd.f32 %v4766, %v5012
      %v5099 = vadd.f32 %v4767, %v5017
      %v5100 = vadd.f32 %v4768, %v5020
      %v5101 = vadd.f32 %v4769, %v5025
      %v5102 = vadd.f32 %v4770, %v5028
      %v5103 = vadd.f32 %v4771, %v5033
      %v5104 = vadd.f32 %v4772, %v5036
      %v5105 = vadd.f32 %v4773, %v5041
      %v5106 = vadd.f32 %v4774, %v5044
      %v5107 = vadd.f32 %v4775, %v5049
      %v5108 = vadd.f32 %v4776, %v5052
      %v5109 = vadd.f32 %v4777, %v5057
      %v5110 = vadd.f32 %v4778, %v5060
      %v5111 = vadd.f32 %v4779, %v5065
      %v5112 = vadd.f32 %v4780, %v5068
      %v5113 = vadd.f32 %v4781, %v5073
      %v5114 = vadd.f32 %v4782, %v5076
      %v5115 = vld [vmem:[#allocation3 + $0x14] sm:$0xff]
      %v5116 = vld [vmem:[#allocation3 + $0x1c] sm:$0xff]
      %v5117 = vld [vmem:[#allocation3 + $0x24] sm:$0xff]
      %v5118 = vld [vmem:[#allocation3 + $0x2c] sm:$0xff]
      %v5119 = vld [vmem:[#allocation3 + $0x34] sm:$0xff]
      %v5120 = vld [vmem:[#allocation3 + $0x3c] sm:$0xff]
      %v5121 = vld [vmem:[#allocation3 + $0x44] sm:$0xff]
      %v5122 = vld [vmem:[#allocation3 + $0x4c] sm:$0xff]
      %v5123 = vld [vmem:[#allocation3 + $0x54] sm:$0xff]
      %v5124 = vld [vmem:[#allocation3 + $0x5c] sm:$0xff]
      %v5125 = vld [vmem:[#allocation3 + $0x64] sm:$0xff]
      %v5126 = vld [vmem:[#allocation3 + $0x6c] sm:$0xff]
      %v5127 = vld [vmem:[#allocation3 + $0x74] sm:$0xff]
      %v5128 = vld [vmem:[#allocation3 + $0x7c] sm:$0xff]
      %v5129 = vld [vmem:[#allocation3 + $0x84] sm:$0xff]
      %v5130 = vld [vmem:[#allocation3 + $0x8c] sm:$0xff]
      %v5131 = vld [vmem:[#allocation3 + $0x94] sm:$0xff]
      %v5132 = vld [vmem:[#allocation3 + $0x9c] sm:$0xff]
      %v5133 = vld [vmem:[#allocation3 + $0xa4] sm:$0xff]
      %v5134 = vld [vmem:[#allocation3 + $0xac] sm:$0xff]
      %v5135 = vld [vmem:[#allocation3 + $0xb4] sm:$0xff]
      %v5136 = vld [vmem:[#allocation3 + $0xbc] sm:$0xff]
      %v5137 = vld [vmem:[#allocation3 + $0xc4] sm:$0xff]
      %v5138 = vld [vmem:[#allocation3 + $0xcc] sm:$0xff]
      %v5139 = vld [vmem:[#allocation3 + $0xd4] sm:$0xff]
      %v5140 = vld [vmem:[#allocation3 + $0xdc] sm:$0xff]
      %v5141 = vld [vmem:[#allocation3 + $0xe4] sm:$0xff]
      %v5142 = vld [vmem:[#allocation3 + $0xec] sm:$0xff]
      %v5143 = vld [vmem:[#allocation3 + $0xf4] sm:$0xff]
      %v5144 = vld [vmem:[#allocation3 + $0xfc] sm:$0xff]
      %v5145 = vld [vmem:[#allocation3 + $0x104] sm:$0xff]
      %v5146 = vld [vmem:[#allocation3 + $0x10c] sm:$0xff]
      %v5147 = vld [vmem:[#allocation3 + $0x114] sm:$0xff]
      %v5148 = vld [vmem:[#allocation3 + $0x11c] sm:$0xff]
      %v5149 = vld [vmem:[#allocation3 + $0x124] sm:$0xff]
      %v5150 = vld [vmem:[#allocation3 + $0x12c] sm:$0xff]
      %v5151 = vpack.c.bf16 %v5116, %v5115
      %v5152 = vpack.c.bf16 %v5118, %v5117
      %v5153 = vpack.c.bf16 %v5120, %v5119
      %v5154 = vpack.c.bf16 %v5122, %v5121
      %v5155 = vpack.c.bf16 %v5124, %v5123
      %v5156 = vpack.c.bf16 %v5126, %v5125
      %v5157 = vpack.c.bf16 %v5128, %v5127
      %v5158 = vpack.c.bf16 %v5130, %v5129
      %v5159 = vpack.c.bf16 %v5132, %v5131
      %v5160 = vpack.c.bf16 %v5134, %v5133
      %v5161 = vpack.c.bf16 %v5136, %v5135
      %v5162 = vpack.c.bf16 %v5138, %v5137
      %v5163 = vpack.c.bf16 %v5140, %v5139
      %v5164 = vpack.c.bf16 %v5142, %v5141
      %v5165 = vpack.c.bf16 %v5144, %v5143
      %v5166 = vpack.c.bf16 %v5146, %v5145
      %v5167 = vpack.c.bf16 %v5148, %v5147
      %v5168 = vpack.c.bf16 %v5150, %v5149
      %s5169 = scalar_lea.vmem %s2, 320
      %v5170 = vld [vmem:[%s5169] sm:$0xf]
      %v5171 = vld [vmem:[%s5169 + $0x4] sm:$0xf]
      %v5172 = vld [vmem:[%s5169 + $0x8] sm:$0xf]
      %v5173 = vld [vmem:[%s5169 + $0xc] sm:$0xf]
      %v5174 = vld [vmem:[%s5169 + $0x10] sm:$0xf]
      %v5175 = vld [vmem:[%s5169 + $0x14] sm:$0xf]
      %v5176 = vld [vmem:[%s5169 + $0x18] sm:$0xf]
      %v5177 = vld [vmem:[%s5169 + $0x1c] sm:$0xf]
      %v5178 = vld [vmem:[%s5169 + $0x20] sm:$0xf]
      %v5179 = vld [vmem:[%s5169 + $0x24] sm:$0xf]
      %v5180 = vld [vmem:[%s5169 + $0x28] sm:$0xf]
      %v5181 = vld [vmem:[%s5169 + $0x2c] sm:$0xf]
      %v5182 = vld [vmem:[%s5169 + $0x30] sm:$0xf]
      %v5183 = vld [vmem:[%s5169 + $0x34] sm:$0xf]
      %v5184 = vld [vmem:[%s5169 + $0x38] sm:$0xf]
      %v5185 = vld [vmem:[%s5169 + $0x3c] sm:$0xf]
      %v5202 = vunpack.c.l.b16 %v5170
      %v5203 = vunpack.c.l.b16 %v5171
      %v5204 = vunpack.c.l.b16 %v5172
      %v5205 = vunpack.c.l.b16 %v5173
      %v5206 = vunpack.c.l.b16 %v5174
      %v5207 = vunpack.c.l.b16 %v5175
      %v5208 = vunpack.c.l.b16 %v5176
      %v5209 = vunpack.c.l.b16 %v5177
      %v5210 = vunpack.c.l.b16 %v5178
      %v5211 = vunpack.c.l.b16 %v5179
      %v5212 = vunpack.c.l.b16 %v5180
      %v5213 = vunpack.c.l.b16 %v5181
      %v5214 = vunpack.c.l.b16 %v5182
      %v5215 = vunpack.c.l.b16 %v5183
      %v5216 = vunpack.c.l.b16 %v5184
      %v5217 = vunpack.c.l.b16 %v5185
      %v5218 = vpack.c.b16 %v5203, %v5202
      %v5219 = vpack.c.b16 %v5205, %v5204
      %v5220 = vpack.c.b16 %v5207, %v5206
      %v5221 = vpack.c.b16 %v5209, %v5208
      %v5222 = vpack.c.b16 %v5211, %v5210
      %v5223 = vpack.c.b16 %v5213, %v5212
      %v5224 = vpack.c.b16 %v5215, %v5214
      %v5225 = vpack.c.b16 %v5217, %v5216
      %5234 = vmatprep.subr.bf16.mxu0 0
      %5235 = vmatpush1.bf16.msra.mxu0 %v5218
      %5236 = vmatprep.subr.bf16.mxu0 0
      %5237 = vmatpush1.bf16.msra.mxu0 %v5219
      %5238 = vmatprep.subr.bf16.mxu0 0
      %5239 = vmatpush1.bf16.msra.mxu0 %v5220
      %5240 = vmatprep.subr.bf16.mxu0 0
      %5241 = vmatpush1.bf16.msra.mxu0 %v5221
      %5242 = vmatprep.subr.bf16.mxu0 0
      %5243 = vmatpush1.bf16.msra.mxu0 %v5222
      %5244 = vmatprep.subr.bf16.mxu0 0
      %5245 = vmatpush1.bf16.msra.mxu0 %v5223
      %5246 = vmatprep.subr.bf16.mxu0 0
      %5247 = vmatpush1.bf16.msra.mxu0 %v5224
      %5248 = vmatprep.subr.bf16.mxu0 0
      %5249 = vmatpush1.bf16.msra.mxu0 %v5225
      %5250 = vmatprep.subr.bf16.mxu0 0
      %5251 = vmatpush1.bf16.msra.mxu0 0
      %5252 = vmatprep.subr.bf16.mxu0 0
      %5253 = vmatpush1.bf16.msra.mxu0 0
      %5254 = vmatprep.subr.bf16.mxu0 0
      %5255 = vmatpush1.bf16.msra.mxu0 0
      %5256 = vmatprep.subr.bf16.mxu0 0
      %5257 = vmatpush1.bf16.msra.mxu0 0
      %5258 = vmatprep.subr.bf16.mxu0 0
      %5259 = vmatpush1.bf16.msra.mxu0 0
      %5260 = vmatprep.subr.bf16.mxu0 0
      %5261 = vmatpush1.bf16.msra.mxu0 0
      %5262 = vmatprep.subr.bf16.mxu0 0
      %5263 = vmatpush1.bf16.msra.mxu0 0
      %5264 = vmatprep.subr.bf16.mxu0 0
      %5265 = vmatpush1.bf16.msra.mxu0 0
      %5266 = vmatprep.mubr.bf16.mxu0 0
      %5267 = vmatmul.mubr.bf16.gmra.mrb[0].mxu0 %v5151
      %v5268 = vpop.f32.mrb[0].mxu0
      %v5269 = vadd.f32 0.0, %v5268
      %v5270 = vpop.f32.mrb[0].mxu0
      %v5271 = vpop.f32.mrb[0].mxu0
      %v5272 = vadd.f32 0.0, %v5271
      %v5273 = vpop.f32.mrb[0].mxu0
      %5274 = vmatprep.mubr.bf16.mxu0 0
      %5275 = vmatmul.mubr.bf16.gmra.mrb[0].mxu0 %v5152
      %v5276 = vpop.f32.mrb[0].mxu0
      %v5277 = vadd.f32 0.0, %v5276
      %v5278 = vpop.f32.mrb[0].mxu0
      %v5279 = vpop.f32.mrb[0].mxu0
      %v5280 = vadd.f32 0.0, %v5279
      %v5281 = vpop.f32.mrb[0].mxu0
      %5282 = vmatprep.mubr.bf16.mxu0 0
      %5283 = vmatmul.mubr.bf16.gmra.mrb[0].mxu0 %v5153
      %v5284 = vpop.f32.mrb[0].mxu0
      %v5285 = vadd.f32 0.0, %v5284
      %v5286 = vpop.f32.mrb[0].mxu0
      %v5287 = vpop.f32.mrb[0].mxu0
      %v5288 = vadd.f32 0.0, %v5287
      %v5289 = vpop.f32.mrb[0].mxu0
      %5290 = vmatprep.mubr.bf16.mxu0 0
      %5291 = vmatmul.mubr.bf16.gmra.mrb[0].mxu0 %v5154
      %v5292 = vpop.f32.mrb[0].mxu0
      %v5293 = vadd.f32 0.0, %v5292
      %v5294 = vpop.f32.mrb[0].mxu0
      %v5295 = vpop.f32.mrb[0].mxu0
      %v5296 = vadd.f32 0.0, %v5295
      %v5297 = vpop.f32.mrb[0].mxu0
      %5298 = vmatprep.mubr.bf16.mxu0 0
      %5299 = vmatmul.mubr.bf16.gmra.mrb[0].mxu0 %v5155
      %v5300 = vpop.f32.mrb[0].mxu0
      %v5301 = vadd.f32 0.0, %v5300
      %v5302 = vpop.f32.mrb[0].mxu0
      %v5303 = vpop.f32.mrb[0].mxu0
      %v5304 = vadd.f32 0.0, %v5303
      %v5305 = vpop.f32.mrb[0].mxu0
      %5306 = vmatprep.mubr.bf16.mxu0 0
      %5307 = vmatmul.mubr.bf16.gmra.mrb[0].mxu0 %v5156
      %v5308 = vpop.f32.mrb[0].mxu0
      %v5309 = vadd.f32 0.0, %v5308
      %v5310 = vpop.f32.mrb[0].mxu0
      %v5311 = vpop.f32.mrb[0].mxu0
      %v5312 = vadd.f32 0.0, %v5311
      %v5313 = vpop.f32.mrb[0].mxu0
      %5314 = vmatprep.mubr.bf16.mxu0 0
      %5315 = vmatmul.mubr.bf16.gmra.mrb[0].mxu0 %v5157
      %v5316 = vpop.f32.mrb[0].mxu0
      %v5317 = vadd.f32 0.0, %v5316
      %v5318 = vpop.f32.mrb[0].mxu0
      %v5319 = vpop.f32.mrb[0].mxu0
      %v5320 = vadd.f32 0.0, %v5319
      %v5321 = vpop.f32.mrb[0].mxu0
      %5322 = vmatprep.mubr.bf16.mxu0 0
      %5323 = vmatmul.mubr.bf16.gmra.mrb[0].mxu0 %v5158
      %v5324 = vpop.f32.mrb[0].mxu0
      %v5325 = vadd.f32 0.0, %v5324
      %v5326 = vpop.f32.mrb[0].mxu0
      %v5327 = vpop.f32.mrb[0].mxu0
      %v5328 = vadd.f32 0.0, %v5327
      %v5329 = vpop.f32.mrb[0].mxu0
      %5330 = vmatprep.mubr.bf16.mxu0 0
      %5331 = vmatmul.mubr.bf16.gmra.mrb[0].mxu0 %v5159
      %v5332 = vpop.f32.mrb[0].mxu0
      %v5333 = vadd.f32 0.0, %v5332
      %v5334 = vpop.f32.mrb[0].mxu0
      %v5335 = vpop.f32.mrb[0].mxu0
      %v5336 = vadd.f32 0.0, %v5335
      %v5337 = vpop.f32.mrb[0].mxu0
      %5338 = vmatprep.mubr.bf16.mxu0 0
      %5339 = vmatmul.mubr.bf16.gmra.mrb[0].mxu0 %v5160
      %v5340 = vpop.f32.mrb[0].mxu0
      %v5341 = vadd.f32 0.0, %v5340
      %v5342 = vpop.f32.mrb[0].mxu0
      %v5343 = vpop.f32.mrb[0].mxu0
      %v5344 = vadd.f32 0.0, %v5343
      %v5345 = vpop.f32.mrb[0].mxu0
      %5346 = vmatprep.mubr.bf16.mxu0 0
      %5347 = vmatmul.mubr.bf16.gmra.mrb[0].mxu0 %v5161
      %v5348 = vpop.f32.mrb[0].mxu0
      %v5349 = vadd.f32 0.0, %v5348
      %v5350 = vpop.f32.mrb[0].mxu0
      %v5351 = vpop.f32.mrb[0].mxu0
      %v5352 = vadd.f32 0.0, %v5351
      %v5353 = vpop.f32.mrb[0].mxu0
      %5354 = vmatprep.mubr.bf16.mxu0 0
      %5355 = vmatmul.mubr.bf16.gmra.mrb[0].mxu0 %v5162
      %v5356 = vpop.f32.mrb[0].mxu0
      %v5357 = vadd.f32 0.0, %v5356
      %v5358 = vpop.f32.mrb[0].mxu0
      %v5359 = vpop.f32.mrb[0].mxu0
      %v5360 = vadd.f32 0.0, %v5359
      %v5361 = vpop.f32.mrb[0].mxu0
      %5362 = vmatprep.mubr.bf16.mxu0 0
      %5363 = vmatmul.mubr.bf16.gmra.mrb[0].mxu0 %v5163
      %v5364 = vpop.f32.mrb[0].mxu0
      %v5365 = vadd.f32 0.0, %v5364
      %v5366 = vpop.f32.mrb[0].mxu0
      %v5367 = vpop.f32.mrb[0].mxu0
      %v5368 = vadd.f32 0.0, %v5367
      %v5369 = vpop.f32.mrb[0].mxu0
      %5370 = vmatprep.mubr.bf16.mxu0 0
      %5371 = vmatmul.mubr.bf16.gmra.mrb[0].mxu0 %v5164
      %v5372 = vpop.f32.mrb[0].mxu0
      %v5373 = vadd.f32 0.0, %v5372
      %v5374 = vpop.f32.mrb[0].mxu0
      %v5375 = vpop.f32.mrb[0].mxu0
      %v5376 = vadd.f32 0.0, %v5375
      %v5377 = vpop.f32.mrb[0].mxu0
      %5378 = vmatprep.mubr.bf16.mxu0 0
      %5379 = vmatmul.mubr.bf16.gmra.mrb[0].mxu0 %v5165
      %v5380 = vpop.f32.mrb[0].mxu0
      %v5381 = vadd.f32 0.0, %v5380
      %v5382 = vpop.f32.mrb[0].mxu0
      %v5383 = vpop.f32.mrb[0].mxu0
      %v5384 = vadd.f32 0.0, %v5383
      %v5385 = vpop.f32.mrb[0].mxu0
      %5386 = vmatprep.mubr.bf16.mxu0 0
      %5387 = vmatmul.mubr.bf16.gmra.mrb[0].mxu0 %v5166
      %v5388 = vpop.f32.mrb[0].mxu0
      %v5389 = vadd.f32 0.0, %v5388
      %v5390 = vpop.f32.mrb[0].mxu0
      %v5391 = vpop.f32.mrb[0].mxu0
      %v5392 = vadd.f32 0.0, %v5391
      %v5393 = vpop.f32.mrb[0].mxu0
      %5394 = vmatprep.mubr.bf16.mxu0 0
      %5395 = vmatmul.mubr.bf16.gmra.mrb[0].mxu0 %v5167
      %v5396 = vpop.f32.mrb[0].mxu0
      %v5397 = vadd.f32 0.0, %v5396
      %v5398 = vpop.f32.mrb[0].mxu0
      %v5399 = vpop.f32.mrb[0].mxu0
      %v5400 = vadd.f32 0.0, %v5399
      %v5401 = vpop.f32.mrb[0].mxu0
      %5402 = vmatprep.mubr.bf16.mxu0 0
      %5403 = vmatmul.mubr.bf16.gmra.mrb[0].mxu0 %v5168
      %v5404 = vpop.f32.mrb[0].mxu0
      %v5405 = vadd.f32 0.0, %v5404
      %v5406 = vpop.f32.mrb[0].mxu0
      %v5407 = vpop.f32.mrb[0].mxu0
      %v5408 = vadd.f32 0.0, %v5407
      %v5409 = vpop.f32.mrb[0].mxu0
      %5410 = vdwg.mxu0
      %v5411 = vadd.f32 %v5079, %v5269
      %v5412 = vadd.f32 %v5080, %v5272
      %v5413 = vadd.f32 %v5081, %v5277
      %v5414 = vadd.f32 %v5082, %v5280
      %v5415 = vadd.f32 %v5083, %v5285
      %v5416 = vadd.f32 %v5084, %v5288
      %v5417 = vadd.f32 %v5085, %v5293
      %v5418 = vadd.f32 %v5086, %v5296
      %v5419 = vadd.f32 %v5087, %v5301
      %v5420 = vadd.f32 %v5088, %v5304
      %v5421 = vadd.f32 %v5089, %v5309
      %v5422 = vadd.f32 %v5090, %v5312
      %v5423 = vadd.f32 %v5091, %v5317
      %v5424 = vadd.f32 %v5092, %v5320
      %v5425 = vadd.f32 %v5093, %v5325
      %v5426 = vadd.f32 %v5094, %v5328
      %v5427 = vadd.f32 %v5095, %v5333
      %v5428 = vadd.f32 %v5096, %v5336
      %v5429 = vadd.f32 %v5097, %v5341
      %v5430 = vadd.f32 %v5098, %v5344
      %v5431 = vadd.f32 %v5099, %v5349
      %v5432 = vadd.f32 %v5100, %v5352
      %v5433 = vadd.f32 %v5101, %v5357
      %v5434 = vadd.f32 %v5102, %v5360
      %v5435 = vadd.f32 %v5103, %v5365
      %v5436 = vadd.f32 %v5104, %v5368
      %v5437 = vadd.f32 %v5105, %v5373
      %v5438 = vadd.f32 %v5106, %v5376
      %v5439 = vadd.f32 %v5107, %v5381
      %v5440 = vadd.f32 %v5108, %v5384
      %v5441 = vadd.f32 %v5109, %v5389
      %v5442 = vadd.f32 %v5110, %v5392
      %v5443 = vadd.f32 %v5111, %v5397
      %v5444 = vadd.f32 %v5112, %v5400
      %v5445 = vadd.f32 %v5113, %v5405
      %v5446 = vadd.f32 %v5114, %v5408
      %v5447 = vld [vmem:[#allocation3 + $0x24] sm:$0xff]
      %v5448 = vld [vmem:[#allocation3 + $0x2c] sm:$0xff]
      %v5449 = vld [vmem:[#allocation3 + $0x34] sm:$0xff]
      %v5450 = vld [vmem:[#allocation3 + $0x3c] sm:$0xff]
      %v5451 = vld [vmem:[#allocation3 + $0x44] sm:$0xff]
      %v5452 = vld [vmem:[#allocation3 + $0x4c] sm:$0xff]
      %v5453 = vld [vmem:[#allocation3 + $0x54] sm:$0xff]
      %v5454 = vld [vmem:[#allocation3 + $0x5c] sm:$0xff]
      %v5455 = vld [vmem:[#allocation3 + $0x64] sm:$0xff]
      %v5456 = vld [vmem:[#allocation3 + $0x6c] sm:$0xff]
      %v5457 = vld [vmem:[#allocation3 + $0x74] sm:$0xff]
      %v5458 = vld [vmem:[#allocation3 + $0x7c] sm:$0xff]
      %v5459 = vld [vmem:[#allocation3 + $0x84] sm:$0xff]
      %v5460 = vld [vmem:[#allocation3 + $0x8c] sm:$0xff]
      %v5461 = vld [vmem:[#allocation3 + $0x94] sm:$0xff]
      %v5462 = vld [vmem:[#allocation3 + $0x9c] sm:$0xff]
      %v5463 = vld [vmem:[#allocation3 + $0xa4] sm:$0xff]
      %v5464 = vld [vmem:[#allocation3 + $0xac] sm:$0xff]
      %v5465 = vld [vmem:[#allocation3 + $0xb4] sm:$0xff]
      %v5466 = vld [vmem:[#allocation3 + $0xbc] sm:$0xff]
      %v5467 = vld [vmem:[#allocation3 + $0xc4] sm:$0xff]
      %v5468 = vld [vmem:[#allocation3 + $0xcc] sm:$0xff]
      %v5469 = vld [vmem:[#allocation3 + $0xd4] sm:$0xff]
      %v5470 = vld [vmem:[#allocation3 + $0xdc] sm:$0xff]
      %v5471 = vld [vmem:[#allocation3 + $0xe4] sm:$0xff]
      %v5472 = vld [vmem:[#allocation3 + $0xec] sm:$0xff]
      %v5473 = vld [vmem:[#allocation3 + $0xf4] sm:$0xff]
      %v5474 = vld [vmem:[#allocation3 + $0xfc] sm:$0xff]
      %v5475 = vld [vmem:[#allocation3 + $0x104] sm:$0xff]
      %v5476 = vld [vmem:[#allocation3 + $0x10c] sm:$0xff]
      %v5477 = vld [vmem:[#allocation3 + $0x114] sm:$0xff]
      %v5478 = vld [vmem:[#allocation3 + $0x11c] sm:$0xff]
      %v5479 = vld [vmem:[#allocation3 + $0x124] sm:$0xff]
      %v5480 = vld [vmem:[#allocation3 + $0x12c] sm:$0xff]
      %v5481 = vld [vmem:[#allocation3 + $0x134] sm:$0xff]
      %v5482 = vld [vmem:[#allocation3 + $0x13c] sm:$0xff]
      %v5483 = vpack.c.bf16 %v5448, %v5447
      %v5484 = vpack.c.bf16 %v5450, %v5449
      %v5485 = vpack.c.bf16 %v5452, %v5451
      %v5486 = vpack.c.bf16 %v5454, %v5453
      %v5487 = vpack.c.bf16 %v5456, %v5455
      %v5488 = vpack.c.bf16 %v5458, %v5457
      %v5489 = vpack.c.bf16 %v5460, %v5459
      %v5490 = vpack.c.bf16 %v5462, %v5461
      %v5491 = vpack.c.bf16 %v5464, %v5463
      %v5492 = vpack.c.bf16 %v5466, %v5465
      %v5493 = vpack.c.bf16 %v5468, %v5467
      %v5494 = vpack.c.bf16 %v5470, %v5469
      %v5495 = vpack.c.bf16 %v5472, %v5471
      %v5496 = vpack.c.bf16 %v5474, %v5473
      %v5497 = vpack.c.bf16 %v5476, %v5475
      %v5498 = vpack.c.bf16 %v5478, %v5477
      %v5499 = vpack.c.bf16 %v5480, %v5479
      %v5500 = vpack.c.bf16 %v5482, %v5481
      %s5501 = scalar_lea.vmem %s2, 384
      %v5502 = vld [vmem:[%s5501] sm:$0xf]
      %v5503 = vld [vmem:[%s5501 + $0x4] sm:$0xf]
      %v5504 = vld [vmem:[%s5501 + $0x8] sm:$0xf]
      %v5505 = vld [vmem:[%s5501 + $0xc] sm:$0xf]
      %v5506 = vld [vmem:[%s5501 + $0x10] sm:$0xf]
      %v5507 = vld [vmem:[%s5501 + $0x14] sm:$0xf]
      %v5508 = vld [vmem:[%s5501 + $0x18] sm:$0xf]
      %v5509 = vld [vmem:[%s5501 + $0x1c] sm:$0xf]
      %v5510 = vld [vmem:[%s5501 + $0x20] sm:$0xf]
      %v5511 = vld [vmem:[%s5501 + $0x24] sm:$0xf]
      %v5512 = vld [vmem:[%s5501 + $0x28] sm:$0xf]
      %v5513 = vld [vmem:[%s5501 + $0x2c] sm:$0xf]
      %v5514 = vld [vmem:[%s5501 + $0x30] sm:$0xf]
      %v5515 = vld [vmem:[%s5501 + $0x34] sm:$0xf]
      %v5516 = vld [vmem:[%s5501 + $0x38] sm:$0xf]
      %v5517 = vld [vmem:[%s5501 + $0x3c] sm:$0xf]
      %v5534 = vunpack.c.l.b16 %v5502
      %v5535 = vunpack.c.l.b16 %v5503
      %v5536 = vunpack.c.l.b16 %v5504
      %v5537 = vunpack.c.l.b16 %v5505
      %v5538 = vunpack.c.l.b16 %v5506
      %v5539 = vunpack.c.l.b16 %v5507
      %v5540 = vunpack.c.l.b16 %v5508
      %v5541 = vunpack.c.l.b16 %v5509
      %v5542 = vunpack.c.l.b16 %v5510
      %v5543 = vunpack.c.l.b16 %v5511
      %v5544 = vunpack.c.l.b16 %v5512
      %v5545 = vunpack.c.l.b16 %v5513
      %v5546 = vunpack.c.l.b16 %v5514
      %v5547 = vunpack.c.l.b16 %v5515
      %v5548 = vunpack.c.l.b16 %v5516
      %v5549 = vunpack.c.l.b16 %v5517
      %v5550 = vpack.c.b16 %v5535, %v5534
      %v5551 = vpack.c.b16 %v5537, %v5536
      %v5552 = vpack.c.b16 %v5539, %v5538
      %v5553 = vpack.c.b16 %v5541, %v5540
      %v5554 = vpack.c.b16 %v5543, %v5542
      %v5555 = vpack.c.b16 %v5545, %v5544
      %v5556 = vpack.c.b16 %v5547, %v5546
      %v5557 = vpack.c.b16 %v5549, %v5548
      %5566 = vmatprep.subr.bf16.mxu0 0
      %5567 = vmatpush1.bf16.msra.mxu0 %v5550
      %5568 = vmatprep.subr.bf16.mxu0 0
      %5569 = vmatpush1.bf16.msra.mxu0 %v5551
      %5570 = vmatprep.subr.bf16.mxu0 0
      %5571 = vmatpush1.bf16.msra.mxu0 %v5552
      %5572 = vmatprep.subr.bf16.mxu0 0
      %5573 = vmatpush1.bf16.msra.mxu0 %v5553
      %5574 = vmatprep.subr.bf16.mxu0 0
      %5575 = vmatpush1.bf16.msra.mxu0 %v5554
      %5576 = vmatprep.subr.bf16.mxu0 0
      %5577 = vmatpush1.bf16.msra.mxu0 %v5555
      %5578 = vmatprep.subr.bf16.mxu0 0
      %5579 = vmatpush1.bf16.msra.mxu0 %v5556
      %5580 = vmatprep.subr.bf16.mxu0 0
      %5581 = vmatpush1.bf16.msra.mxu0 %v5557
      %5582 = vmatprep.subr.bf16.mxu0 0
      %5583 = vmatpush1.bf16.msra.mxu0 0
      %5584 = vmatprep.subr.bf16.mxu0 0
      %5585 = vmatpush1.bf16.msra.mxu0 0
      %5586 = vmatprep.subr.bf16.mxu0 0
      %5587 = vmatpush1.bf16.msra.mxu0 0
      %5588 = vmatprep.subr.bf16.mxu0 0
      %5589 = vmatpush1.bf16.msra.mxu0 0
      %5590 = vmatprep.subr.bf16.mxu0 0
      %5591 = vmatpush1.bf16.msra.mxu0 0
      %5592 = vmatprep.subr.bf16.mxu0 0
      %5593 = vmatpush1.bf16.msra.mxu0 0
      %5594 = vmatprep.subr.bf16.mxu0 0
      %5595 = vmatpush1.bf16.msra.mxu0 0
      %5596 = vmatprep.subr.bf16.mxu0 0
      %5597 = vmatpush1.bf16.msra.mxu0 0
      %5598 = vmatprep.mubr.bf16.mxu0 0
      %5599 = vmatmul.mubr.bf16.gmra.mrb[0].mxu0 %v5483
      %v5600 = vpop.f32.mrb[0].mxu0
      %v5601 = vadd.f32 0.0, %v5600
      %v5602 = vpop.f32.mrb[0].mxu0
      %v5603 = vpop.f32.mrb[0].mxu0
      %v5604 = vadd.f32 0.0, %v5603
      %v5605 = vpop.f32.mrb[0].mxu0
      %5606 = vmatprep.mubr.bf16.mxu0 0
      %5607 = vmatmul.mubr.bf16.gmra.mrb[0].mxu0 %v5484
      %v5608 = vpop.f32.mrb[0].mxu0
      %v5609 = vadd.f32 0.0, %v5608
      %v5610 = vpop.f32.mrb[0].mxu0
      %v5611 = vpop.f32.mrb[0].mxu0
      %v5612 = vadd.f32 0.0, %v5611
      %v5613 = vpop.f32.mrb[0].mxu0
      %5614 = vmatprep.mubr.bf16.mxu0 0
      %5615 = vmatmul.mubr.bf16.gmra.mrb[0].mxu0 %v5485
      %v5616 = vpop.f32.mrb[0].mxu0
      %v5617 = vadd.f32 0.0, %v5616
      %v5618 = vpop.f32.mrb[0].mxu0
      %v5619 = vpop.f32.mrb[0].mxu0
      %v5620 = vadd.f32 0.0, %v5619
      %v5621 = vpop.f32.mrb[0].mxu0
      %5622 = vmatprep.mubr.bf16.mxu0 0
      %5623 = vmatmul.mubr.bf16.gmra.mrb[0].mxu0 %v5486
      %v5624 = vpop.f32.mrb[0].mxu0
      %v5625 = vadd.f32 0.0, %v5624
      %v5626 = vpop.f32.mrb[0].mxu0
      %v5627 = vpop.f32.mrb[0].mxu0
      %v5628 = vadd.f32 0.0, %v5627
      %v5629 = vpop.f32.mrb[0].mxu0
      %5630 = vmatprep.mubr.bf16.mxu0 0
      %5631 = vmatmul.mubr.bf16.gmra.mrb[0].mxu0 %v5487
      %v5632 = vpop.f32.mrb[0].mxu0
      %v5633 = vadd.f32 0.0, %v5632
      %v5634 = vpop.f32.mrb[0].mxu0
      %v5635 = vpop.f32.mrb[0].mxu0
      %v5636 = vadd.f32 0.0, %v5635
      %v5637 = vpop.f32.mrb[0].mxu0
      %5638 = vmatprep.mubr.bf16.mxu0 0
      %5639 = vmatmul.mubr.bf16.gmra.mrb[0].mxu0 %v5488
      %v5640 = vpop.f32.mrb[0].mxu0
      %v5641 = vadd.f32 0.0, %v5640
      %v5642 = vpop.f32.mrb[0].mxu0
      %v5643 = vpop.f32.mrb[0].mxu0
      %v5644 = vadd.f32 0.0, %v5643
      %v5645 = vpop.f32.mrb[0].mxu0
      %5646 = vmatprep.mubr.bf16.mxu0 0
      %5647 = vmatmul.mubr.bf16.gmra.mrb[0].mxu0 %v5489
      %v5648 = vpop.f32.mrb[0].mxu0
      %v5649 = vadd.f32 0.0, %v5648
      %v5650 = vpop.f32.mrb[0].mxu0
      %v5651 = vpop.f32.mrb[0].mxu0
      %v5652 = vadd.f32 0.0, %v5651
      %v5653 = vpop.f32.mrb[0].mxu0
      %5654 = vmatprep.mubr.bf16.mxu0 0
      %5655 = vmatmul.mubr.bf16.gmra.mrb[0].mxu0 %v5490
      %v5656 = vpop.f32.mrb[0].mxu0
      %v5657 = vadd.f32 0.0, %v5656
      %v5658 = vpop.f32.mrb[0].mxu0
      %v5659 = vpop.f32.mrb[0].mxu0
      %v5660 = vadd.f32 0.0, %v5659
      %v5661 = vpop.f32.mrb[0].mxu0
      %5662 = vmatprep.mubr.bf16.mxu0 0
      %5663 = vmatmul.mubr.bf16.gmra.mrb[0].mxu0 %v5491
      %v5664 = vpop.f32.mrb[0].mxu0
      %v5665 = vadd.f32 0.0, %v5664
      %v5666 = vpop.f32.mrb[0].mxu0
      %v5667 = vpop.f32.mrb[0].mxu0
      %v5668 = vadd.f32 0.0, %v5667
      %v5669 = vpop.f32.mrb[0].mxu0
      %5670 = vmatprep.mubr.bf16.mxu0 0
      %5671 = vmatmul.mubr.bf16.gmra.mrb[0].mxu0 %v5492
      %v5672 = vpop.f32.mrb[0].mxu0
      %v5673 = vadd.f32 0.0, %v5672
      %v5674 = vpop.f32.mrb[0].mxu0
      %v5675 = vpop.f32.mrb[0].mxu0
      %v5676 = vadd.f32 0.0, %v5675
      %v5677 = vpop.f32.mrb[0].mxu0
      %5678 = vmatprep.mubr.bf16.mxu0 0
      %5679 = vmatmul.mubr.bf16.gmra.mrb[0].mxu0 %v5493
      %v5680 = vpop.f32.mrb[0].mxu0
      %v5681 = vadd.f32 0.0, %v5680
      %v5682 = vpop.f32.mrb[0].mxu0
      %v5683 = vpop.f32.mrb[0].mxu0
      %v5684 = vadd.f32 0.0, %v5683
      %v5685 = vpop.f32.mrb[0].mxu0
      %5686 = vmatprep.mubr.bf16.mxu0 0
      %5687 = vmatmul.mubr.bf16.gmra.mrb[0].mxu0 %v5494
      %v5688 = vpop.f32.mrb[0].mxu0
      %v5689 = vadd.f32 0.0, %v5688
      %v5690 = vpop.f32.mrb[0].mxu0
      %v5691 = vpop.f32.mrb[0].mxu0
      %v5692 = vadd.f32 0.0, %v5691
      %v5693 = vpop.f32.mrb[0].mxu0
      %5694 = vmatprep.mubr.bf16.mxu0 0
      %5695 = vmatmul.mubr.bf16.gmra.mrb[0].mxu0 %v5495
      %v5696 = vpop.f32.mrb[0].mxu0
      %v5697 = vadd.f32 0.0, %v5696
      %v5698 = vpop.f32.mrb[0].mxu0
      %v5699 = vpop.f32.mrb[0].mxu0
      %v5700 = vadd.f32 0.0, %v5699
      %v5701 = vpop.f32.mrb[0].mxu0
      %5702 = vmatprep.mubr.bf16.mxu0 0
      %5703 = vmatmul.mubr.bf16.gmra.mrb[0].mxu0 %v5496
      %v5704 = vpop.f32.mrb[0].mxu0
      %v5705 = vadd.f32 0.0, %v5704
      %v5706 = vpop.f32.mrb[0].mxu0
      %v5707 = vpop.f32.mrb[0].mxu0
      %v5708 = vadd.f32 0.0, %v5707
      %v5709 = vpop.f32.mrb[0].mxu0
      %5710 = vmatprep.mubr.bf16.mxu0 0
      %5711 = vmatmul.mubr.bf16.gmra.mrb[0].mxu0 %v5497
      %v5712 = vpop.f32.mrb[0].mxu0
      %v5713 = vadd.f32 0.0, %v5712
      %v5714 = vpop.f32.mrb[0].mxu0
      %v5715 = vpop.f32.mrb[0].mxu0
      %v5716 = vadd.f32 0.0, %v5715
      %v5717 = vpop.f32.mrb[0].mxu0
      %5718 = vmatprep.mubr.bf16.mxu0 0
      %5719 = vmatmul.mubr.bf16.gmra.mrb[0].mxu0 %v5498
      %v5720 = vpop.f32.mrb[0].mxu0
      %v5721 = vadd.f32 0.0, %v5720
      %v5722 = vpop.f32.mrb[0].mxu0
      %v5723 = vpop.f32.mrb[0].mxu0
      %v5724 = vadd.f32 0.0, %v5723
      %v5725 = vpop.f32.mrb[0].mxu0
      %5726 = vmatprep.mubr.bf16.mxu0 0
      %5727 = vmatmul.mubr.bf16.gmra.mrb[0].mxu0 %v5499
      %v5728 = vpop.f32.mrb[0].mxu0
      %v5729 = vadd.f32 0.0, %v5728
      %v5730 = vpop.f32.mrb[0].mxu0
      %v5731 = vpop.f32.mrb[0].mxu0
      %v5732 = vadd.f32 0.0, %v5731
      %v5733 = vpop.f32.mrb[0].mxu0
      %5734 = vmatprep.mubr.bf16.mxu0 0
      %5735 = vmatmul.mubr.bf16.gmra.mrb[0].mxu0 %v5500
      %v5736 = vpop.f32.mrb[0].mxu0
      %v5737 = vadd.f32 0.0, %v5736
      %v5738 = vpop.f32.mrb[0].mxu0
      %v5739 = vpop.f32.mrb[0].mxu0
      %v5740 = vadd.f32 0.0, %v5739
      %v5741 = vpop.f32.mrb[0].mxu0
      %5742 = vdwg.mxu0
      %v5743 = vadd.f32 %v5411, %v5601
      %v5744 = vadd.f32 %v5412, %v5604
      %v5745 = vadd.f32 %v5413, %v5609
      %v5746 = vadd.f32 %v5414, %v5612
      %v5747 = vadd.f32 %v5415, %v5617
      %v5748 = vadd.f32 %v5416, %v5620
      %v5749 = vadd.f32 %v5417, %v5625
      %v5750 = vadd.f32 %v5418, %v5628
      %v5751 = vadd.f32 %v5419, %v5633
      %v5752 = vadd.f32 %v5420, %v5636
      %v5753 = vadd.f32 %v5421, %v5641
      %v5754 = vadd.f32 %v5422, %v5644
      %v5755 = vadd.f32 %v5423, %v5649
      %v5756 = vadd.f32 %v5424, %v5652
      %v5757 = vadd.f32 %v5425, %v5657
      %v5758 = vadd.f32 %v5426, %v5660
      %v5759 = vadd.f32 %v5427, %v5665
      %v5760 = vadd.f32 %v5428, %v5668
      %v5761 = vadd.f32 %v5429, %v5673
      %v5762 = vadd.f32 %v5430, %v5676
      %v5763 = vadd.f32 %v5431, %v5681
      %v5764 = vadd.f32 %v5432, %v5684
      %v5765 = vadd.f32 %v5433, %v5689
      %v5766 = vadd.f32 %v5434, %v5692
      %v5767 = vadd.f32 %v5435, %v5697
      %v5768 = vadd.f32 %v5436, %v5700
      %v5769 = vadd.f32 %v5437, %v5705
      %v5770 = vadd.f32 %v5438, %v5708
      %v5771 = vadd.f32 %v5439, %v5713
      %v5772 = vadd.f32 %v5440, %v5716
      %v5773 = vadd.f32 %v5441, %v5721
      %v5774 = vadd.f32 %v5442, %v5724
      %v5775 = vadd.f32 %v5443, %v5729
      %v5776 = vadd.f32 %v5444, %v5732
      %v5777 = vadd.f32 %v5445, %v5737
      %v5778 = vadd.f32 %v5446, %v5740
      %v5779 = vld [vmem:[#allocation3 + $0x25] sm:$0xff]
      %v5780 = vld [vmem:[#allocation3 + $0x2d] sm:$0xff]
      %v5781 = vld [vmem:[#allocation3 + $0x35] sm:$0xff]
      %v5782 = vld [vmem:[#allocation3 + $0x3d] sm:$0xff]
      %v5783 = vld [vmem:[#allocation3 + $0x45] sm:$0xff]
      %v5784 = vld [vmem:[#allocation3 + $0x4d] sm:$0xff]
      %v5785 = vld [vmem:[#allocation3 + $0x55] sm:$0xff]
      %v5786 = vld [vmem:[#allocation3 + $0x5d] sm:$0xff]
      %v5787 = vld [vmem:[#allocation3 + $0x65] sm:$0xff]
      %v5788 = vld [vmem:[#allocation3 + $0x6d] sm:$0xff]
      %v5789 = vld [vmem:[#allocation3 + $0x75] sm:$0xff]
      %v5790 = vld [vmem:[#allocation3 + $0x7d] sm:$0xff]
      %v5791 = vld [vmem:[#allocation3 + $0x85] sm:$0xff]
      %v5792 = vld [vmem:[#allocation3 + $0x8d] sm:$0xff]
      %v5793 = vld [vmem:[#allocation3 + $0x95] sm:$0xff]
      %v5794 = vld [vmem:[#allocation3 + $0x9d] sm:$0xff]
      %v5795 = vld [vmem:[#allocation3 + $0xa5] sm:$0xff]
      %v5796 = vld [vmem:[#allocation3 + $0xad] sm:$0xff]
      %v5797 = vld [vmem:[#allocation3 + $0xb5] sm:$0xff]
      %v5798 = vld [vmem:[#allocation3 + $0xbd] sm:$0xff]
      %v5799 = vld [vmem:[#allocation3 + $0xc5] sm:$0xff]
      %v5800 = vld [vmem:[#allocation3 + $0xcd] sm:$0xff]
      %v5801 = vld [vmem:[#allocation3 + $0xd5] sm:$0xff]
      %v5802 = vld [vmem:[#allocation3 + $0xdd] sm:$0xff]
      %v5803 = vld [vmem:[#allocation3 + $0xe5] sm:$0xff]
      %v5804 = vld [vmem:[#allocation3 + $0xed] sm:$0xff]
      %v5805 = vld [vmem:[#allocation3 + $0xf5] sm:$0xff]
      %v5806 = vld [vmem:[#allocation3 + $0xfd] sm:$0xff]
      %v5807 = vld [vmem:[#allocation3 + $0x105] sm:$0xff]
      %v5808 = vld [vmem:[#allocation3 + $0x10d] sm:$0xff]
      %v5809 = vld [vmem:[#allocation3 + $0x115] sm:$0xff]
      %v5810 = vld [vmem:[#allocation3 + $0x11d] sm:$0xff]
      %v5811 = vld [vmem:[#allocation3 + $0x125] sm:$0xff]
      %v5812 = vld [vmem:[#allocation3 + $0x12d] sm:$0xff]
      %v5813 = vld [vmem:[#allocation3 + $0x135] sm:$0xff]
      %v5814 = vld [vmem:[#allocation3 + $0x13d] sm:$0xff]
      %v5815 = vpack.c.bf16 %v5780, %v5779
      %v5816 = vpack.c.bf16 %v5782, %v5781
      %v5817 = vpack.c.bf16 %v5784, %v5783
      %v5818 = vpack.c.bf16 %v5786, %v5785
      %v5819 = vpack.c.bf16 %v5788, %v5787
      %v5820 = vpack.c.bf16 %v5790, %v5789
      %v5821 = vpack.c.bf16 %v5792, %v5791
      %v5822 = vpack.c.bf16 %v5794, %v5793
      %v5823 = vpack.c.bf16 %v5796, %v5795
      %v5824 = vpack.c.bf16 %v5798, %v5797
      %v5825 = vpack.c.bf16 %v5800, %v5799
      %v5826 = vpack.c.bf16 %v5802, %v5801
      %v5827 = vpack.c.bf16 %v5804, %v5803
      %v5828 = vpack.c.bf16 %v5806, %v5805
      %v5829 = vpack.c.bf16 %v5808, %v5807
      %v5830 = vpack.c.bf16 %v5810, %v5809
      %v5831 = vpack.c.bf16 %v5812, %v5811
      %v5832 = vpack.c.bf16 %v5814, %v5813
      %s5833 = scalar_lea.vmem %s2, 448
      %v5834 = vld [vmem:[%s5833] sm:$0xf]
      %v5835 = vld [vmem:[%s5833 + $0x4] sm:$0xf]
      %v5836 = vld [vmem:[%s5833 + $0x8] sm:$0xf]
      %v5837 = vld [vmem:[%s5833 + $0xc] sm:$0xf]
      %v5838 = vld [vmem:[%s5833 + $0x10] sm:$0xf]
      %v5839 = vld [vmem:[%s5833 + $0x14] sm:$0xf]
      %v5840 = vld [vmem:[%s5833 + $0x18] sm:$0xf]
      %v5841 = vld [vmem:[%s5833 + $0x1c] sm:$0xf]
      %v5842 = vld [vmem:[%s5833 + $0x20] sm:$0xf]
      %v5843 = vld [vmem:[%s5833 + $0x24] sm:$0xf]
      %v5844 = vld [vmem:[%s5833 + $0x28] sm:$0xf]
      %v5845 = vld [vmem:[%s5833 + $0x2c] sm:$0xf]
      %v5846 = vld [vmem:[%s5833 + $0x30] sm:$0xf]
      %v5847 = vld [vmem:[%s5833 + $0x34] sm:$0xf]
      %v5848 = vld [vmem:[%s5833 + $0x38] sm:$0xf]
      %v5849 = vld [vmem:[%s5833 + $0x3c] sm:$0xf]
      %v5866 = vunpack.c.l.b16 %v5834
      %v5867 = vunpack.c.l.b16 %v5835
      %v5868 = vunpack.c.l.b16 %v5836
      %v5869 = vunpack.c.l.b16 %v5837
      %v5870 = vunpack.c.l.b16 %v5838
      %v5871 = vunpack.c.l.b16 %v5839
      %v5872 = vunpack.c.l.b16 %v5840
      %v5873 = vunpack.c.l.b16 %v5841
      %v5874 = vunpack.c.l.b16 %v5842
      %v5875 = vunpack.c.l.b16 %v5843
      %v5876 = vunpack.c.l.b16 %v5844
      %v5877 = vunpack.c.l.b16 %v5845
      %v5878 = vunpack.c.l.b16 %v5846
      %v5879 = vunpack.c.l.b16 %v5847
      %v5880 = vunpack.c.l.b16 %v5848
      %v5881 = vunpack.c.l.b16 %v5849
      %v5882 = vpack.c.b16 %v5867, %v5866
      %v5883 = vpack.c.b16 %v5869, %v5868
      %v5884 = vpack.c.b16 %v5871, %v5870
      %v5885 = vpack.c.b16 %v5873, %v5872
      %v5886 = vpack.c.b16 %v5875, %v5874
      %v5887 = vpack.c.b16 %v5877, %v5876
      %v5888 = vpack.c.b16 %v5879, %v5878
      %v5889 = vpack.c.b16 %v5881, %v5880
      %5898 = vmatprep.subr.bf16.mxu0 0
      %5899 = vmatpush1.bf16.msra.mxu0 %v5882
      %5900 = vmatprep.subr.bf16.mxu0 0
      %5901 = vmatpush1.bf16.msra.mxu0 %v5883
      %5902 = vmatprep.subr.bf16.mxu0 0
      %5903 = vmatpush1.bf16.msra.mxu0 %v5884
      %5904 = vmatprep.subr.bf16.mxu0 0
      %5905 = vmatpush1.bf16.msra.mxu0 %v5885
      %5906 = vmatprep.subr.bf16.mxu0 0
      %5907 = vmatpush1.bf16.msra.mxu0 %v5886
      %5908 = vmatprep.subr.bf16.mxu0 0
      %5909 = vmatpush1.bf16.msra.mxu0 %v5887
      %5910 = vmatprep.subr.bf16.mxu0 0
      %5911 = vmatpush1.bf16.msra.mxu0 %v5888
      %5912 = vmatprep.subr.bf16.mxu0 0
      %5913 = vmatpush1.bf16.msra.mxu0 %v5889
      %5914 = vmatprep.subr.bf16.mxu0 0
      %5915 = vmatpush1.bf16.msra.mxu0 0
      %5916 = vmatprep.subr.bf16.mxu0 0
      %5917 = vmatpush1.bf16.msra.mxu0 0
      %5918 = vmatprep.subr.bf16.mxu0 0
      %5919 = vmatpush1.bf16.msra.mxu0 0
      %5920 = vmatprep.subr.bf16.mxu0 0
      %5921 = vmatpush1.bf16.msra.mxu0 0
      %5922 = vmatprep.subr.bf16.mxu0 0
      %5923 = vmatpush1.bf16.msra.mxu0 0
      %5924 = vmatprep.subr.bf16.mxu0 0
      %5925 = vmatpush1.bf16.msra.mxu0 0
      %5926 = vmatprep.subr.bf16.mxu0 0
      %5927 = vmatpush1.bf16.msra.mxu0 0
      %5928 = vmatprep.subr.bf16.mxu0 0
      %5929 = vmatpush1.bf16.msra.mxu0 0
      %5930 = vmatprep.mubr.bf16.mxu0 0
      %5931 = vmatmul.mubr.bf16.gmra.mrb[0].mxu0 %v5815
      %v5932 = vpop.f32.mrb[0].mxu0
      %v5933 = vadd.f32 0.0, %v5932
      %v5934 = vpop.f32.mrb[0].mxu0
      %v5935 = vpop.f32.mrb[0].mxu0
      %v5936 = vadd.f32 0.0, %v5935
      %v5937 = vpop.f32.mrb[0].mxu0
      %5938 = vmatprep.mubr.bf16.mxu0 0
      %5939 = vmatmul.mubr.bf16.gmra.mrb[0].mxu0 %v5816
      %v5940 = vpop.f32.mrb[0].mxu0
      %v5941 = vadd.f32 0.0, %v5940
      %v5942 = vpop.f32.mrb[0].mxu0
      %v5943 = vpop.f32.mrb[0].mxu0
      %v5944 = vadd.f32 0.0, %v5943
      %v5945 = vpop.f32.mrb[0].mxu0
      %5946 = vmatprep.mubr.bf16.mxu0 0
      %5947 = vmatmul.mubr.bf16.gmra.mrb[0].mxu0 %v5817
      %v5948 = vpop.f32.mrb[0].mxu0
      %v5949 = vadd.f32 0.0, %v5948
      %v5950 = vpop.f32.mrb[0].mxu0
      %v5951 = vpop.f32.mrb[0].mxu0
      %v5952 = vadd.f32 0.0, %v5951
      %v5953 = vpop.f32.mrb[0].mxu0
      %5954 = vmatprep.mubr.bf16.mxu0 0
      %5955 = vmatmul.mubr.bf16.gmra.mrb[0].mxu0 %v5818
      %v5956 = vpop.f32.mrb[0].mxu0
      %v5957 = vadd.f32 0.0, %v5956
      %v5958 = vpop.f32.mrb[0].mxu0
      %v5959 = vpop.f32.mrb[0].mxu0
      %v5960 = vadd.f32 0.0, %v5959
      %v5961 = vpop.f32.mrb[0].mxu0
      %5962 = vmatprep.mubr.bf16.mxu0 0
      %5963 = vmatmul.mubr.bf16.gmra.mrb[0].mxu0 %v5819
      %v5964 = vpop.f32.mrb[0].mxu0
      %v5965 = vadd.f32 0.0, %v5964
      %v5966 = vpop.f32.mrb[0].mxu0
      %v5967 = vpop.f32.mrb[0].mxu0
      %v5968 = vadd.f32 0.0, %v5967
      %v5969 = vpop.f32.mrb[0].mxu0
      %5970 = vmatprep.mubr.bf16.mxu0 0
      %5971 = vmatmul.mubr.bf16.gmra.mrb[0].mxu0 %v5820
      %v5972 = vpop.f32.mrb[0].mxu0
      %v5973 = vadd.f32 0.0, %v5972
      %v5974 = vpop.f32.mrb[0].mxu0
      %v5975 = vpop.f32.mrb[0].mxu0
      %v5976 = vadd.f32 0.0, %v5975
      %v5977 = vpop.f32.mrb[0].mxu0
      %5978 = vmatprep.mubr.bf16.mxu0 0
      %5979 = vmatmul.mubr.bf16.gmra.mrb[0].mxu0 %v5821
      %v5980 = vpop.f32.mrb[0].mxu0
      %v5981 = vadd.f32 0.0, %v5980
      %v5982 = vpop.f32.mrb[0].mxu0
      %v5983 = vpop.f32.mrb[0].mxu0
      %v5984 = vadd.f32 0.0, %v5983
      %v5985 = vpop.f32.mrb[0].mxu0
      %5986 = vmatprep.mubr.bf16.mxu0 0
      %5987 = vmatmul.mubr.bf16.gmra.mrb[0].mxu0 %v5822
      %v5988 = vpop.f32.mrb[0].mxu0
      %v5989 = vadd.f32 0.0, %v5988
      %v5990 = vpop.f32.mrb[0].mxu0
      %v5991 = vpop.f32.mrb[0].mxu0
      %v5992 = vadd.f32 0.0, %v5991
      %v5993 = vpop.f32.mrb[0].mxu0
      %5994 = vmatprep.mubr.bf16.mxu0 0
      %5995 = vmatmul.mubr.bf16.gmra.mrb[0].mxu0 %v5823
      %v5996 = vpop.f32.mrb[0].mxu0
      %v5997 = vadd.f32 0.0, %v5996
      %v5998 = vpop.f32.mrb[0].mxu0
      %v5999 = vpop.f32.mrb[0].mxu0
      %v6000 = vadd.f32 0.0, %v5999
      %v6001 = vpop.f32.mrb[0].mxu0
      %6002 = vmatprep.mubr.bf16.mxu0 0
      %6003 = vmatmul.mubr.bf16.gmra.mrb[0].mxu0 %v5824
      %v6004 = vpop.f32.mrb[0].mxu0
      %v6005 = vadd.f32 0.0, %v6004
      %v6006 = vpop.f32.mrb[0].mxu0
      %v6007 = vpop.f32.mrb[0].mxu0
      %v6008 = vadd.f32 0.0, %v6007
      %v6009 = vpop.f32.mrb[0].mxu0
      %6010 = vmatprep.mubr.bf16.mxu0 0
      %6011 = vmatmul.mubr.bf16.gmra.mrb[0].mxu0 %v5825
      %v6012 = vpop.f32.mrb[0].mxu0
      %v6013 = vadd.f32 0.0, %v6012
      %v6014 = vpop.f32.mrb[0].mxu0
      %v6015 = vpop.f32.mrb[0].mxu0
      %v6016 = vadd.f32 0.0, %v6015
      %v6017 = vpop.f32.mrb[0].mxu0
      %6018 = vmatprep.mubr.bf16.mxu0 0
      %6019 = vmatmul.mubr.bf16.gmra.mrb[0].mxu0 %v5826
      %v6020 = vpop.f32.mrb[0].mxu0
      %v6021 = vadd.f32 0.0, %v6020
      %v6022 = vpop.f32.mrb[0].mxu0
      %v6023 = vpop.f32.mrb[0].mxu0
      %v6024 = vadd.f32 0.0, %v6023
      %v6025 = vpop.f32.mrb[0].mxu0
      %6026 = vmatprep.mubr.bf16.mxu0 0
      %6027 = vmatmul.mubr.bf16.gmra.mrb[0].mxu0 %v5827
      %v6028 = vpop.f32.mrb[0].mxu0
      %v6029 = vadd.f32 0.0, %v6028
      %v6030 = vpop.f32.mrb[0].mxu0
      %v6031 = vpop.f32.mrb[0].mxu0
      %v6032 = vadd.f32 0.0, %v6031
      %v6033 = vpop.f32.mrb[0].mxu0
      %6034 = vmatprep.mubr.bf16.mxu0 0
      %6035 = vmatmul.mubr.bf16.gmra.mrb[0].mxu0 %v5828
      %v6036 = vpop.f32.mrb[0].mxu0
      %v6037 = vadd.f32 0.0, %v6036
      %v6038 = vpop.f32.mrb[0].mxu0
      %v6039 = vpop.f32.mrb[0].mxu0
      %v6040 = vadd.f32 0.0, %v6039
      %v6041 = vpop.f32.mrb[0].mxu0
      %6042 = vmatprep.mubr.bf16.mxu0 0
      %6043 = vmatmul.mubr.bf16.gmra.mrb[0].mxu0 %v5829
      %v6044 = vpop.f32.mrb[0].mxu0
      %v6045 = vadd.f32 0.0, %v6044
      %v6046 = vpop.f32.mrb[0].mxu0
      %v6047 = vpop.f32.mrb[0].mxu0
      %v6048 = vadd.f32 0.0, %v6047
      %v6049 = vpop.f32.mrb[0].mxu0
      %6050 = vmatprep.mubr.bf16.mxu0 0
      %6051 = vmatmul.mubr.bf16.gmra.mrb[0].mxu0 %v5830
      %v6052 = vpop.f32.mrb[0].mxu0
      %v6053 = vadd.f32 0.0, %v6052
      %v6054 = vpop.f32.mrb[0].mxu0
      %v6055 = vpop.f32.mrb[0].mxu0
      %v6056 = vadd.f32 0.0, %v6055
      %v6057 = vpop.f32.mrb[0].mxu0
      %6058 = vmatprep.mubr.bf16.mxu0 0
      %6059 = vmatmul.mubr.bf16.gmra.mrb[0].mxu0 %v5831
      %v6060 = vpop.f32.mrb[0].mxu0
      %v6061 = vadd.f32 0.0, %v6060
      %v6062 = vpop.f32.mrb[0].mxu0
      %v6063 = vpop.f32.mrb[0].mxu0
      %v6064 = vadd.f32 0.0, %v6063
      %v6065 = vpop.f32.mrb[0].mxu0
      %6066 = vmatprep.mubr.bf16.mxu0 0
      %6067 = vmatmul.mubr.bf16.gmra.mrb[0].mxu0 %v5832
      %v6068 = vpop.f32.mrb[0].mxu0
      %v6069 = vadd.f32 0.0, %v6068
      %v6070 = vpop.f32.mrb[0].mxu0
      %v6071 = vpop.f32.mrb[0].mxu0
      %v6072 = vadd.f32 0.0, %v6071
      %v6073 = vpop.f32.mrb[0].mxu0
      %6074 = vdwg.mxu0
      %v6075 = vadd.f32 %v5743, %v5933
      %v6076 = vadd.f32 %v5744, %v5936
      %v6077 = vadd.f32 %v5745, %v5941
      %v6078 = vadd.f32 %v5746, %v5944
      %v6079 = vadd.f32 %v5747, %v5949
      %v6080 = vadd.f32 %v5748, %v5952
      %v6081 = vadd.f32 %v5749, %v5957
      %v6082 = vadd.f32 %v5750, %v5960
      %v6083 = vadd.f32 %v5751, %v5965
      %v6084 = vadd.f32 %v5752, %v5968
      %v6085 = vadd.f32 %v5753, %v5973
      %v6086 = vadd.f32 %v5754, %v5976
      %v6087 = vadd.f32 %v5755, %v5981
      %v6088 = vadd.f32 %v5756, %v5984
      %v6089 = vadd.f32 %v5757, %v5989
      %v6090 = vadd.f32 %v5758, %v5992
      %v6091 = vadd.f32 %v5759, %v5997
      %v6092 = vadd.f32 %v5760, %v6000
      %v6093 = vadd.f32 %v5761, %v6005
      %v6094 = vadd.f32 %v5762, %v6008
      %v6095 = vadd.f32 %v5763, %v6013
      %v6096 = vadd.f32 %v5764, %v6016
      %v6097 = vadd.f32 %v5765, %v6021
      %v6098 = vadd.f32 %v5766, %v6024
      %v6099 = vadd.f32 %v5767, %v6029
      %v6100 = vadd.f32 %v5768, %v6032
      %v6101 = vadd.f32 %v5769, %v6037
      %v6102 = vadd.f32 %v5770, %v6040
      %v6103 = vadd.f32 %v5771, %v6045
      %v6104 = vadd.f32 %v5772, %v6048
      %v6105 = vadd.f32 %v5773, %v6053
      %v6106 = vadd.f32 %v5774, %v6056
      %v6107 = vadd.f32 %v5775, %v6061
      %v6108 = vadd.f32 %v5776, %v6064
      %v6109 = vadd.f32 %v5777, %v6069
      %v6110 = vadd.f32 %v5778, %v6072
      %v6111 = vld [vmem:[#allocation3 + $0x26] sm:$0xff]
      %v6112 = vld [vmem:[#allocation3 + $0x2e] sm:$0xff]
      %v6113 = vld [vmem:[#allocation3 + $0x36] sm:$0xff]
      %v6114 = vld [vmem:[#allocation3 + $0x3e] sm:$0xff]
      %v6115 = vld [vmem:[#allocation3 + $0x46] sm:$0xff]
      %v6116 = vld [vmem:[#allocation3 + $0x4e] sm:$0xff]
      %v6117 = vld [vmem:[#allocation3 + $0x56] sm:$0xff]
      %v6118 = vld [vmem:[#allocation3 + $0x5e] sm:$0xff]
      %v6119 = vld [vmem:[#allocation3 + $0x66] sm:$0xff]
      %v6120 = vld [vmem:[#allocation3 + $0x6e] sm:$0xff]
      %v6121 = vld [vmem:[#allocation3 + $0x76] sm:$0xff]
      %v6122 = vld [vmem:[#allocation3 + $0x7e] sm:$0xff]
      %v6123 = vld [vmem:[#allocation3 + $0x86] sm:$0xff]
      %v6124 = vld [vmem:[#allocation3 + $0x8e] sm:$0xff]
      %v6125 = vld [vmem:[#allocation3 + $0x96] sm:$0xff]
      %v6126 = vld [vmem:[#allocation3 + $0x9e] sm:$0xff]
      %v6127 = vld [vmem:[#allocation3 + $0xa6] sm:$0xff]
      %v6128 = vld [vmem:[#allocation3 + $0xae] sm:$0xff]
      %v6129 = vld [vmem:[#allocation3 + $0xb6] sm:$0xff]
      %v6130 = vld [vmem:[#allocation3 + $0xbe] sm:$0xff]
      %v6131 = vld [vmem:[#allocation3 + $0xc6] sm:$0xff]
      %v6132 = vld [vmem:[#allocation3 + $0xce] sm:$0xff]
      %v6133 = vld [vmem:[#allocation3 + $0xd6] sm:$0xff]
      %v6134 = vld [vmem:[#allocation3 + $0xde] sm:$0xff]
      %v6135 = vld [vmem:[#allocation3 + $0xe6] sm:$0xff]
      %v6136 = vld [vmem:[#allocation3 + $0xee] sm:$0xff]
      %v6137 = vld [vmem:[#allocation3 + $0xf6] sm:$0xff]
      %v6138 = vld [vmem:[#allocation3 + $0xfe] sm:$0xff]
      %v6139 = vld [vmem:[#allocation3 + $0x106] sm:$0xff]
      %v6140 = vld [vmem:[#allocation3 + $0x10e] sm:$0xff]
      %v6141 = vld [vmem:[#allocation3 + $0x116] sm:$0xff]
      %v6142 = vld [vmem:[#allocation3 + $0x11e] sm:$0xff]
      %v6143 = vld [vmem:[#allocation3 + $0x126] sm:$0xff]
      %v6144 = vld [vmem:[#allocation3 + $0x12e] sm:$0xff]
      %v6145 = vld [vmem:[#allocation3 + $0x136] sm:$0xff]
      %v6146 = vld [vmem:[#allocation3 + $0x13e] sm:$0xff]
      %v6147 = vpack.c.bf16 %v6112, %v6111
      %v6148 = vpack.c.bf16 %v6114, %v6113
      %v6149 = vpack.c.bf16 %v6116, %v6115
      %v6150 = vpack.c.bf16 %v6118, %v6117
      %v6151 = vpack.c.bf16 %v6120, %v6119
      %v6152 = vpack.c.bf16 %v6122, %v6121
      %v6153 = vpack.c.bf16 %v6124, %v6123
      %v6154 = vpack.c.bf16 %v6126, %v6125
      %v6155 = vpack.c.bf16 %v6128, %v6127
      %v6156 = vpack.c.bf16 %v6130, %v6129
      %v6157 = vpack.c.bf16 %v6132, %v6131
      %v6158 = vpack.c.bf16 %v6134, %v6133
      %v6159 = vpack.c.bf16 %v6136, %v6135
      %v6160 = vpack.c.bf16 %v6138, %v6137
      %v6161 = vpack.c.bf16 %v6140, %v6139
      %v6162 = vpack.c.bf16 %v6142, %v6141
      %v6163 = vpack.c.bf16 %v6144, %v6143
      %v6164 = vpack.c.bf16 %v6146, %v6145
      %s6165 = scalar_lea.vmem %s2, 512
      %v6166 = vld [vmem:[%s6165] sm:$0xf]
      %v6167 = vld [vmem:[%s6165 + $0x4] sm:$0xf]
      %v6168 = vld [vmem:[%s6165 + $0x8] sm:$0xf]
      %v6169 = vld [vmem:[%s6165 + $0xc] sm:$0xf]
      %v6170 = vld [vmem:[%s6165 + $0x10] sm:$0xf]
      %v6171 = vld [vmem:[%s6165 + $0x14] sm:$0xf]
      %v6172 = vld [vmem:[%s6165 + $0x18] sm:$0xf]
      %v6173 = vld [vmem:[%s6165 + $0x1c] sm:$0xf]
      %v6174 = vld [vmem:[%s6165 + $0x20] sm:$0xf]
      %v6175 = vld [vmem:[%s6165 + $0x24] sm:$0xf]
      %v6176 = vld [vmem:[%s6165 + $0x28] sm:$0xf]
      %v6177 = vld [vmem:[%s6165 + $0x2c] sm:$0xf]
      %v6178 = vld [vmem:[%s6165 + $0x30] sm:$0xf]
      %v6179 = vld [vmem:[%s6165 + $0x34] sm:$0xf]
      %v6180 = vld [vmem:[%s6165 + $0x38] sm:$0xf]
      %v6181 = vld [vmem:[%s6165 + $0x3c] sm:$0xf]
      %v6198 = vunpack.c.l.b16 %v6166
      %v6199 = vunpack.c.l.b16 %v6167
      %v6200 = vunpack.c.l.b16 %v6168
      %v6201 = vunpack.c.l.b16 %v6169
      %v6202 = vunpack.c.l.b16 %v6170
      %v6203 = vunpack.c.l.b16 %v6171
      %v6204 = vunpack.c.l.b16 %v6172
      %v6205 = vunpack.c.l.b16 %v6173
      %v6206 = vunpack.c.l.b16 %v6174
      %v6207 = vunpack.c.l.b16 %v6175
      %v6208 = vunpack.c.l.b16 %v6176
      %v6209 = vunpack.c.l.b16 %v6177
      %v6210 = vunpack.c.l.b16 %v6178
      %v6211 = vunpack.c.l.b16 %v6179
      %v6212 = vunpack.c.l.b16 %v6180
      %v6213 = vunpack.c.l.b16 %v6181
      %v6214 = vpack.c.b16 %v6199, %v6198
      %v6215 = vpack.c.b16 %v6201, %v6200
      %v6216 = vpack.c.b16 %v6203, %v6202
      %v6217 = vpack.c.b16 %v6205, %v6204
      %v6218 = vpack.c.b16 %v6207, %v6206
      %v6219 = vpack.c.b16 %v6209, %v6208
      %v6220 = vpack.c.b16 %v6211, %v6210
      %v6221 = vpack.c.b16 %v6213, %v6212
      %6230 = vmatprep.subr.bf16.mxu0 0
      %6231 = vmatpush1.bf16.msra.mxu0 %v6214
      %6232 = vmatprep.subr.bf16.mxu0 0
      %6233 = vmatpush1.bf16.msra.mxu0 %v6215
      %6234 = vmatprep.subr.bf16.mxu0 0
      %6235 = vmatpush1.bf16.msra.mxu0 %v6216
      %6236 = vmatprep.subr.bf16.mxu0 0
      %6237 = vmatpush1.bf16.msra.mxu0 %v6217
      %6238 = vmatprep.subr.bf16.mxu0 0
      %6239 = vmatpush1.bf16.msra.mxu0 %v6218
      %6240 = vmatprep.subr.bf16.mxu0 0
      %6241 = vmatpush1.bf16.msra.mxu0 %v6219
      %6242 = vmatprep.subr.bf16.mxu0 0
      %6243 = vmatpush1.bf16.msra.mxu0 %v6220
      %6244 = vmatprep.subr.bf16.mxu0 0
      %6245 = vmatpush1.bf16.msra.mxu0 %v6221
      %6246 = vmatprep.subr.bf16.mxu0 0
      %6247 = vmatpush1.bf16.msra.mxu0 0
      %6248 = vmatprep.subr.bf16.mxu0 0
      %6249 = vmatpush1.bf16.msra.mxu0 0
      %6250 = vmatprep.subr.bf16.mxu0 0
      %6251 = vmatpush1.bf16.msra.mxu0 0
      %6252 = vmatprep.subr.bf16.mxu0 0
      %6253 = vmatpush1.bf16.msra.mxu0 0
      %6254 = vmatprep.subr.bf16.mxu0 0
      %6255 = vmatpush1.bf16.msra.mxu0 0
      %6256 = vmatprep.subr.bf16.mxu0 0
      %6257 = vmatpush1.bf16.msra.mxu0 0
      %6258 = vmatprep.subr.bf16.mxu0 0
      %6259 = vmatpush1.bf16.msra.mxu0 0
      %6260 = vmatprep.subr.bf16.mxu0 0
      %6261 = vmatpush1.bf16.msra.mxu0 0
      %6262 = vmatprep.mubr.bf16.mxu0 0
      %6263 = vmatmul.mubr.bf16.gmra.mrb[0].mxu0 %v6147
      %v6264 = vpop.f32.mrb[0].mxu0
      %v6265 = vadd.f32 0.0, %v6264
      %v6266 = vpop.f32.mrb[0].mxu0
      %v6267 = vpop.f32.mrb[0].mxu0
      %v6268 = vadd.f32 0.0, %v6267
      %v6269 = vpop.f32.mrb[0].mxu0
      %6270 = vmatprep.mubr.bf16.mxu0 0
      %6271 = vmatmul.mubr.bf16.gmra.mrb[0].mxu0 %v6148
      %v6272 = vpop.f32.mrb[0].mxu0
      %v6273 = vadd.f32 0.0, %v6272
      %v6274 = vpop.f32.mrb[0].mxu0
      %v6275 = vpop.f32.mrb[0].mxu0
      %v6276 = vadd.f32 0.0, %v6275
      %v6277 = vpop.f32.mrb[0].mxu0
      %6278 = vmatprep.mubr.bf16.mxu0 0
      %6279 = vmatmul.mubr.bf16.gmra.mrb[0].mxu0 %v6149
      %v6280 = vpop.f32.mrb[0].mxu0
      %v6281 = vadd.f32 0.0, %v6280
      %v6282 = vpop.f32.mrb[0].mxu0
      %v6283 = vpop.f32.mrb[0].mxu0
      %v6284 = vadd.f32 0.0, %v6283
      %v6285 = vpop.f32.mrb[0].mxu0
      %6286 = vmatprep.mubr.bf16.mxu0 0
      %6287 = vmatmul.mubr.bf16.gmra.mrb[0].mxu0 %v6150
      %v6288 = vpop.f32.mrb[0].mxu0
      %v6289 = vadd.f32 0.0, %v6288
      %v6290 = vpop.f32.mrb[0].mxu0
      %v6291 = vpop.f32.mrb[0].mxu0
      %v6292 = vadd.f32 0.0, %v6291
      %v6293 = vpop.f32.mrb[0].mxu0
      %6294 = vmatprep.mubr.bf16.mxu0 0
      %6295 = vmatmul.mubr.bf16.gmra.mrb[0].mxu0 %v6151
      %v6296 = vpop.f32.mrb[0].mxu0
      %v6297 = vadd.f32 0.0, %v6296
      %v6298 = vpop.f32.mrb[0].mxu0
      %v6299 = vpop.f32.mrb[0].mxu0
      %v6300 = vadd.f32 0.0, %v6299
      %v6301 = vpop.f32.mrb[0].mxu0
      %6302 = vmatprep.mubr.bf16.mxu0 0
      %6303 = vmatmul.mubr.bf16.gmra.mrb[0].mxu0 %v6152
      %v6304 = vpop.f32.mrb[0].mxu0
      %v6305 = vadd.f32 0.0, %v6304
      %v6306 = vpop.f32.mrb[0].mxu0
      %v6307 = vpop.f32.mrb[0].mxu0
      %v6308 = vadd.f32 0.0, %v6307
      %v6309 = vpop.f32.mrb[0].mxu0
      %6310 = vmatprep.mubr.bf16.mxu0 0
      %6311 = vmatmul.mubr.bf16.gmra.mrb[0].mxu0 %v6153
      %v6312 = vpop.f32.mrb[0].mxu0
      %v6313 = vadd.f32 0.0, %v6312
      %v6314 = vpop.f32.mrb[0].mxu0
      %v6315 = vpop.f32.mrb[0].mxu0
      %v6316 = vadd.f32 0.0, %v6315
      %v6317 = vpop.f32.mrb[0].mxu0
      %6318 = vmatprep.mubr.bf16.mxu0 0
      %6319 = vmatmul.mubr.bf16.gmra.mrb[0].mxu0 %v6154
      %v6320 = vpop.f32.mrb[0].mxu0
      %v6321 = vadd.f32 0.0, %v6320
      %v6322 = vpop.f32.mrb[0].mxu0
      %v6323 = vpop.f32.mrb[0].mxu0
      %v6324 = vadd.f32 0.0, %v6323
      %v6325 = vpop.f32.mrb[0].mxu0
      %6326 = vmatprep.mubr.bf16.mxu0 0
      %6327 = vmatmul.mubr.bf16.gmra.mrb[0].mxu0 %v6155
      %v6328 = vpop.f32.mrb[0].mxu0
      %v6329 = vadd.f32 0.0, %v6328
      %v6330 = vpop.f32.mrb[0].mxu0
      %v6331 = vpop.f32.mrb[0].mxu0
      %v6332 = vadd.f32 0.0, %v6331
      %v6333 = vpop.f32.mrb[0].mxu0
      %6334 = vmatprep.mubr.bf16.mxu0 0
      %6335 = vmatmul.mubr.bf16.gmra.mrb[0].mxu0 %v6156
      %v6336 = vpop.f32.mrb[0].mxu0
      %v6337 = vadd.f32 0.0, %v6336
      %v6338 = vpop.f32.mrb[0].mxu0
      %v6339 = vpop.f32.mrb[0].mxu0
      %v6340 = vadd.f32 0.0, %v6339
      %v6341 = vpop.f32.mrb[0].mxu0
      %6342 = vmatprep.mubr.bf16.mxu0 0
      %6343 = vmatmul.mubr.bf16.gmra.mrb[0].mxu0 %v6157
      %v6344 = vpop.f32.mrb[0].mxu0
      %v6345 = vadd.f32 0.0, %v6344
      %v6346 = vpop.f32.mrb[0].mxu0
      %v6347 = vpop.f32.mrb[0].mxu0
      %v6348 = vadd.f32 0.0, %v6347
      %v6349 = vpop.f32.mrb[0].mxu0
      %6350 = vmatprep.mubr.bf16.mxu0 0
      %6351 = vmatmul.mubr.bf16.gmra.mrb[0].mxu0 %v6158
      %v6352 = vpop.f32.mrb[0].mxu0
      %v6353 = vadd.f32 0.0, %v6352
      %v6354 = vpop.f32.mrb[0].mxu0
      %v6355 = vpop.f32.mrb[0].mxu0
      %v6356 = vadd.f32 0.0, %v6355
      %v6357 = vpop.f32.mrb[0].mxu0
      %6358 = vmatprep.mubr.bf16.mxu0 0
      %6359 = vmatmul.mubr.bf16.gmra.mrb[0].mxu0 %v6159
      %v6360 = vpop.f32.mrb[0].mxu0
      %v6361 = vadd.f32 0.0, %v6360
      %v6362 = vpop.f32.mrb[0].mxu0
      %v6363 = vpop.f32.mrb[0].mxu0
      %v6364 = vadd.f32 0.0, %v6363
      %v6365 = vpop.f32.mrb[0].mxu0
      %6366 = vmatprep.mubr.bf16.mxu0 0
      %6367 = vmatmul.mubr.bf16.gmra.mrb[0].mxu0 %v6160
      %v6368 = vpop.f32.mrb[0].mxu0
      %v6369 = vadd.f32 0.0, %v6368
      %v6370 = vpop.f32.mrb[0].mxu0
      %v6371 = vpop.f32.mrb[0].mxu0
      %v6372 = vadd.f32 0.0, %v6371
      %v6373 = vpop.f32.mrb[0].mxu0
      %6374 = vmatprep.mubr.bf16.mxu0 0
      %6375 = vmatmul.mubr.bf16.gmra.mrb[0].mxu0 %v6161
      %v6376 = vpop.f32.mrb[0].mxu0
      %v6377 = vadd.f32 0.0, %v6376
      %v6378 = vpop.f32.mrb[0].mxu0
      %v6379 = vpop.f32.mrb[0].mxu0
      %v6380 = vadd.f32 0.0, %v6379
      %v6381 = vpop.f32.mrb[0].mxu0
      %6382 = vmatprep.mubr.bf16.mxu0 0
      %6383 = vmatmul.mubr.bf16.gmra.mrb[0].mxu0 %v6162
      %v6384 = vpop.f32.mrb[0].mxu0
      %v6385 = vadd.f32 0.0, %v6384
      %v6386 = vpop.f32.mrb[0].mxu0
      %v6387 = vpop.f32.mrb[0].mxu0
      %v6388 = vadd.f32 0.0, %v6387
      %v6389 = vpop.f32.mrb[0].mxu0
      %6390 = vmatprep.mubr.bf16.mxu0 0
      %6391 = vmatmul.mubr.bf16.gmra.mrb[0].mxu0 %v6163
      %v6392 = vpop.f32.mrb[0].mxu0
      %v6393 = vadd.f32 0.0, %v6392
      %v6394 = vpop.f32.mrb[0].mxu0
      %v6395 = vpop.f32.mrb[0].mxu0
      %v6396 = vadd.f32 0.0, %v6395
      %v6397 = vpop.f32.mrb[0].mxu0
      %6398 = vmatprep.mubr.bf16.mxu0 0
      %6399 = vmatmul.mubr.bf16.gmra.mrb[0].mxu0 %v6164
      %v6400 = vpop.f32.mrb[0].mxu0
      %v6401 = vadd.f32 0.0, %v6400
      %v6402 = vpop.f32.mrb[0].mxu0
      %v6403 = vpop.f32.mrb[0].mxu0
      %v6404 = vadd.f32 0.0, %v6403
      %v6405 = vpop.f32.mrb[0].mxu0
      %6406 = vdwg.mxu0
      %v6407 = vadd.f32 %v6075, %v6265
      %v6408 = vadd.f32 %v6076, %v6268
      %v6409 = vadd.f32 %v6077, %v6273
      %v6410 = vadd.f32 %v6078, %v6276
      %v6411 = vadd.f32 %v6079, %v6281
      %v6412 = vadd.f32 %v6080, %v6284
      %v6413 = vadd.f32 %v6081, %v6289
      %v6414 = vadd.f32 %v6082, %v6292
      %v6415 = vadd.f32 %v6083, %v6297
      %v6416 = vadd.f32 %v6084, %v6300
      %v6417 = vadd.f32 %v6085, %v6305
      %v6418 = vadd.f32 %v6086, %v6308
      %v6419 = vadd.f32 %v6087, %v6313
      %v6420 = vadd.f32 %v6088, %v6316
      %v6421 = vadd.f32 %v6089, %v6321
      %v6422 = vadd.f32 %v6090, %v6324
      %v6423 = vadd.f32 %v6091, %v6329
      %v6424 = vadd.f32 %v6092, %v6332
      %v6425 = vadd.f32 %v6093, %v6337
      %v6426 = vadd.f32 %v6094, %v6340
      %v6427 = vadd.f32 %v6095, %v6345
      %v6428 = vadd.f32 %v6096, %v6348
      %v6429 = vadd.f32 %v6097, %v6353
      %v6430 = vadd.f32 %v6098, %v6356
      %v6431 = vadd.f32 %v6099, %v6361
      %v6432 = vadd.f32 %v6100, %v6364
      %v6433 = vadd.f32 %v6101, %v6369
      %v6434 = vadd.f32 %v6102, %v6372
      %v6435 = vadd.f32 %v6103, %v6377
      %v6436 = vadd.f32 %v6104, %v6380
      %v6437 = vadd.f32 %v6105, %v6385
      %v6438 = vadd.f32 %v6106, %v6388
      %v6439 = vadd.f32 %v6107, %v6393
      %v6440 = vadd.f32 %v6108, %v6396
      %v6441 = vadd.f32 %v6109, %v6401
      %v6442 = vadd.f32 %v6110, %v6404
      %v6443 = vadd.f32 %v203, %v6407
      %v6444 = vadd.f32 %v204, %v6408
      %6445 = vst [vmem:[%s197] sm:$0xff] %v6443
      %6446 = vst [vmem:[%s197 + $0x8] sm:$0xff] %v6444
      %vm6450 = vcmask 1045504
      %v6451 = vrot.slane %v6409, 2
      %v6452 = vrot.slane %v6410, 2
      %v6453 = vsel %vm6450, %v6451, %v6452
      %v6454 = vrot.slane %v6411, 2
      %v6455 = vsel %vm6450, %v6452, %v6454
      %v6458 = vadd.f32 %v205, %v6453
      %v6459 = vadd.f32 %v206, %v6455
      %6460 = vst [vmem:[%s197 + $0x10] sm:$0xff] %v6458
      %6461 = vst [vmem:[%s197 + $0x18] sm:$0xff] %v6459
      %vm6464 = vcmask 1043456
      %v6465 = vrot.slane %v6411, 4
      %v6466 = vrot.slane %v6412, 4
      %v6467 = vsel %vm6464, %v6465, %v6466
      %v6468 = vrot.slane %v6413, 4
      %v6469 = vsel %vm6464, %v6466, %v6468
      %v6472 = vadd.f32 %v207, %v6467
      %v6473 = vadd.f32 %v208, %v6469
      %6474 = vst [vmem:[%s197 + $0x20] sm:$0xff] %v6472
      %6475 = vst [vmem:[%s197 + $0x28] sm:$0xff] %v6473
      %vm6478 = vcmask 1041408
      %v6479 = vrot.slane %v6413, 6
      %v6480 = vrot.slane %v6414, 6
      %v6481 = vsel %vm6478, %v6479, %v6480
      %v6482 = vrot.slane %v6415, 6
      %v6483 = vsel %vm6478, %v6480, %v6482
      %v6486 = vadd.f32 %v209, %v6481
      %v6487 = vadd.f32 %v210, %v6483
      %6488 = vst [vmem:[%s197 + $0x30] sm:$0xff] %v6486
      %6489 = vst [vmem:[%s197 + $0x38] sm:$0xff] %v6487
      %v6490 = vadd.f32 %v211, %v6416
      %v6491 = vadd.f32 %v212, %v6417
      %6492 = vst [vmem:[%s197 + $0x40] sm:$0xff] %v6490
      %6493 = vst [vmem:[%s197 + $0x48] sm:$0xff] %v6491
      %v6497 = vrot.slane %v6418, 2
      %v6498 = vrot.slane %v6419, 2
      %v6499 = vsel %vm6450, %v6497, %v6498
      %v6500 = vrot.slane %v6420, 2
      %v6501 = vsel %vm6450, %v6498, %v6500
      %v6504 = vadd.f32 %v213, %v6499
      %v6505 = vadd.f32 %v214, %v6501
      %6506 = vst [vmem:[%s197 + $0x50] sm:$0xff] %v6504
      %6507 = vst [vmem:[%s197 + $0x58] sm:$0xff] %v6505
      %v6510 = vrot.slane %v6420, 4
      %v6511 = vrot.slane %v6421, 4
      %v6512 = vsel %vm6464, %v6510, %v6511
      %v6513 = vrot.slane %v6422, 4
      %v6514 = vsel %vm6464, %v6511, %v6513
      %v6517 = vadd.f32 %v215, %v6512
      %v6518 = vadd.f32 %v216, %v6514
      %6519 = vst [vmem:[%s197 + $0x60] sm:$0xff] %v6517
      %6520 = vst [vmem:[%s197 + $0x68] sm:$0xff] %v6518
      %v6523 = vrot.slane %v6422, 6
      %v6524 = vrot.slane %v6423, 6
      %v6525 = vsel %vm6478, %v6523, %v6524
      %v6526 = vrot.slane %v6424, 6
      %v6527 = vsel %vm6478, %v6524, %v6526
      %v6530 = vadd.f32 %v217, %v6525
      %v6531 = vadd.f32 %v218, %v6527
      %6532 = vst [vmem:[%s197 + $0x70] sm:$0xff] %v6530
      %6533 = vst [vmem:[%s197 + $0x78] sm:$0xff] %v6531
      %v6534 = vadd.f32 %v219, %v6425
      %v6535 = vadd.f32 %v220, %v6426
      %6536 = vst [vmem:[%s197 + $0x80] sm:$0xff] %v6534
      %6537 = vst [vmem:[%s197 + $0x88] sm:$0xff] %v6535
      %v6541 = vrot.slane %v6427, 2
      %v6542 = vrot.slane %v6428, 2
      %v6543 = vsel %vm6450, %v6541, %v6542
      %v6544 = vrot.slane %v6429, 2
      %v6545 = vsel %vm6450, %v6542, %v6544
      %v6548 = vadd.f32 %v221, %v6543
      %v6549 = vadd.f32 %v222, %v6545
      %6550 = vst [vmem:[%s197 + $0x90] sm:$0xff] %v6548
      %6551 = vst [vmem:[%s197 + $0x98] sm:$0xff] %v6549
      %v6554 = vrot.slane %v6429, 4
      %v6555 = vrot.slane %v6430, 4
      %v6556 = vsel %vm6464, %v6554, %v6555
      %v6557 = vrot.slane %v6431, 4
      %v6558 = vsel %vm6464, %v6555, %v6557
      %v6561 = vadd.f32 %v223, %v6556
      %v6562 = vadd.f32 %v224, %v6558
      %6563 = vst [vmem:[%s197 + $0xa0] sm:$0xff] %v6561
      %6564 = vst [vmem:[%s197 + $0xa8] sm:$0xff] %v6562
      %v6567 = vrot.slane %v6431, 6
      %v6568 = vrot.slane %v6432, 6
      %v6569 = vsel %vm6478, %v6567, %v6568
      %v6570 = vrot.slane %v6433, 6
      %v6571 = vsel %vm6478, %v6568, %v6570
      %v6574 = vadd.f32 %v225, %v6569
      %v6575 = vadd.f32 %v226, %v6571
      %6576 = vst [vmem:[%s197 + $0xb0] sm:$0xff] %v6574
      %6577 = vst [vmem:[%s197 + $0xb8] sm:$0xff] %v6575
      %v6578 = vadd.f32 %v227, %v6434
      %v6579 = vadd.f32 %v228, %v6435
      %6580 = vst [vmem:[%s197 + $0xc0] sm:$0xff] %v6578
      %6581 = vst [vmem:[%s197 + $0xc8] sm:$0xff] %v6579
      %v6585 = vrot.slane %v6436, 2
      %v6586 = vrot.slane %v6437, 2
      %v6587 = vsel %vm6450, %v6585, %v6586
      %v6588 = vrot.slane %v6438, 2
      %v6589 = vsel %vm6450, %v6586, %v6588
      %v6592 = vadd.f32 %v229, %v6587
      %v6593 = vadd.f32 %v230, %v6589
      %6594 = vst [vmem:[%s197 + $0xd0] sm:$0xff] %v6592
      %6595 = vst [vmem:[%s197 + $0xd8] sm:$0xff] %v6593
      %v6598 = vrot.slane %v6438, 4
      %v6599 = vrot.slane %v6439, 4
      %v6600 = vsel %vm6464, %v6598, %v6599
      %v6601 = vrot.slane %v6440, 4
      %v6602 = vsel %vm6464, %v6599, %v6601
      %v6605 = vadd.f32 %v231, %v6600
      %v6606 = vadd.f32 %v232, %v6602
      %6607 = vst [vmem:[%s197 + $0xe0] sm:$0xff] %v6605
      %6608 = vst [vmem:[%s197 + $0xe8] sm:$0xff] %v6606
      %v6611 = vrot.slane %v6440, 6
      %v6612 = vrot.slane %v6441, 6
      %v6613 = vsel %vm6478, %v6611, %v6612
      %v6614 = vrot.slane %v6442, 6
      %v6615 = vsel %vm6478, %v6612, %v6614
      %v6618 = vadd.f32 %v233, %v6613
      %v6619 = vadd.f32 %v234, %v6615
      %6620 = vst [vmem:[%s197 + $0xf0] sm:$0xff] %v6618
      %6621 = vst [vmem:[%s197 + $0xf8] sm:$0xff] %v6619
      %p6622 = scmp.lt.s32.totalorder %s15, 1
      %s6623 = scalar_select %p6622, %s15, 1
      %s6624 = smul.addr %s6623, 32
      %s6625 = smul.addr %s6624, 8
      %s6626 = scalar_lea.vmem %s4, %s6625
      // Predicated region
      $region37: #{basic_unit_forward.1} parent=35 // pred_check
        %p6627 = pneg %p122
      $region38: #{basic_unit_forward.1} parent=35 // pred_check_branch
        %6629 = sbr.rel (%p6627) target = $region40
      $region39: #{basic_unit_forward.1} parent=35 // pred_region
        _
      $region40: #{basic_unit_forward.1} parent=35 // pred_fallthru
        _
    $region36: #{basic_unit_forward.1} parent=5 // pred_fallthru
      _
    %p6630 = scmp.le.s32.totalorder 2, %s10
    // Predicated region
    $region41: #{basic_unit_forward.1} parent=5 // pred_check
      %p6631 = pneg %p6630
    $region42: #{basic_unit_forward.1} parent=5 // pred_check_branch
      %6633 = sbr.rel (%p6631) target = $region44
    $region43: #{basic_unit_forward.1} parent=5 // pred_region
      %s6634 = ssub.s32 %s10, 2
      // Predicated region
      $region45: #{basic_unit_forward.1} parent=43 // pred_check
        %p6635 = pneg %p128
      $region46: #{basic_unit_forward.1} parent=43 // pred_check_branch
        %6637 = sbr.rel (%p6635) target = $region48
      $region47: #{basic_unit_forward.1} parent=43 // pred_region
        %p6638 = scmp.lt.s32.totalorder %s16, 1
        %s6639 = scalar_select %p6638, %s16, 1
        %s6640 = smul.addr %s6639, 32
        %s6641 = smul.addr %s6640, 8
        %s6642 = scalar_lea.vmem %s4, %s6641
      $region48: #{basic_unit_forward.1} parent=43 // pred_fallthru
        _
    $region44: #{basic_unit_forward.1} parent=5 // pred_fallthru
      _
  $region6: #{basic_unit_forward.1} parent=0 // loop_footer
    %s14 = sadd.s32 1, %s10
  $region7: #{basic_unit_forward.1} parent=0 // loop_footer_branch
    %9 = sbr.rel target = $region3
  $region8: #{basic_unit_forward.1} parent=0 // loop_exit
    _

</llo_original>
